<compile_context>
chip_gen: v5e
topology: v5e:2x2
jax: 0.10.0
libtpu: 0.0.40
codegen_flags: <defaults>
</compile_context>

<pallas_src>
import numpy as np

import jax
import jax.numpy as jnp
from jax import lax
from jax.experimental import pallas as pl
from jax.experimental.pallas import tpu as pltpu


# --------------------------------------------------------------------------
# Static geometry helpers (flattened zero-padded grid per layer)
# --------------------------------------------------------------------------
def _round_up(n, m):
    return ((n + m - 1) // m) * m


def _layer_geom(h, w):
    """Geometry of one layer's flattened zero-padded (h+2)x(w+2) input grid."""
    pitch = w + 2                                   # flat-row pitch of the grid
    base = pitch + 1                                # first interior flat row
    rows = _round_up((h - 1) * pitch + w, 8)        # computed output rows
    slab = _round_up(base + rows + pitch + 1, 16)   # input slab rows (taps stay in-bounds)
    return pitch, base, rows, slab


def _pool_select(dst_rows, src_rows, dst_pitch, src_pitch, hp, wp):
    """S[2a+b] selects pre-pool pixel (2m+a, 2n+b) (flat row (2m+a)*src_pitch+(2n+b))
    into the next layer's zero-padded slab row (m+1)*dst_pitch+(n+1)."""
    mats = np.zeros((4, dst_rows, src_rows), np.float32)
    for a in range(2):
        for b in range(2):
            for m in range(hp):
                for n in range(wp):
                    mats[2 * a + b,
                         (m + 1) * dst_pitch + (n + 1),
                         (2 * m + a) * src_pitch + (2 * n + b)] = 1.0
    return mats


def _scatter_select(dst_rows, src_rows, dst_pitch, src_pitch, hs, ws):
    """T[2dy+dx] scatters transposed-conv parity-group row m*src_pitch+n into the
    next layer's zero-padded slab row (2m+dy+1)*dst_pitch+(2n+dx+1)."""
    mats = np.zeros((4, dst_rows, src_rows), np.float32)
    for dy in range(2):
        for dx in range(2):
            for m in range(hs):
                for n in range(ws):
                    mats[2 * dy + dx,
                         (2 * m + dy + 1) * dst_pitch + (2 * n + dx + 1),
                         m * src_pitch + n] = 1.0
    return mats


def _final_select(dst_rows, src_rows, out_w, src_pitch, hs, ws):
    """U[2ey+ex] scatters transposed-conv parity-group row u*src_pitch+v into the
    flattened NHWC output row (2u+ey)*out_w + (2v+ex)."""
    mats = np.zeros((4, dst_rows, src_rows), np.float32)
    for ey in range(2):
        for ex in range(2):
            for u in range(hs):
                for v in range(ws):
                    mats[2 * ey + ex,
                         (2 * u + ey) * out_w + (2 * v + ex),
                         u * src_pitch + v] = 1.0
    return mats


# --------------------------------------------------------------------------
# Operand preparation (wrapper-side, cheap one-time glue)
# --------------------------------------------------------------------------
def _make_slab(x_nhwc, cpad, slab_rows):
    """Zero-pad spatially by 1, pad channels, flatten to (rows, C), pad rows."""
    n, h, w, c = x_nhwc.shape
    xp = jnp.pad(x_nhwc, ((0, 0), (1, 1), (1, 1), (0, cpad - c)))
    xf = xp.reshape(n, (h + 2) * (w + 2), cpad)
    xf = jnp.pad(xf, ((0, 0), (0, slab_rows - (h + 2) * (w + 2)), (0, 0)))
    return xf.astype(jnp.bfloat16)


def _conv_taps(w, cin_pad):
    """Conv2d weight (Cout, Cin, 3, 3) -> (9, cin_pad, Cout) bf16, tap-major."""
    cout, cin = w.shape[:2]
    taps = [jnp.transpose(w[:, :, dh, dw]) for dh in range(3) for dw in range(3)]
    ws = jnp.stack(taps, 0)
    ws = jnp.pad(ws, ((0, 0), (0, cin_pad - cin), (0, 0)))
    return ws.astype(jnp.bfloat16)


def _tconv_taps(w, cout_pad):
    """ConvTranspose2d weight (Cin, Cout, 4, 4) -> (16, Cin, cout_pad) bf16.
    Group-major over output parity (dy, dx); tap order (a, b) within a group."""
    cin, cout = w.shape[:2]
    taps = []
    for dy in range(2):
        for dx in range(2):
            for a in range(2):
                for b in range(2):
                    taps.append(w[:, :, 3 - dy - 2 * a, 3 - dx - 2 * b])
    ws = jnp.stack(taps, 0)
    ws = jnp.pad(ws, ((0, 0), (0, 0), (0, cout_pad - cout)))
    return ws.astype(jnp.bfloat16)


def _bias(b, cpad):
    return jnp.pad(b.astype(jnp.float32), (0, cpad - b.shape[0])).reshape(1, cpad)


# --------------------------------------------------------------------------
# Fused forward pass (one Pallas kernel)
# --------------------------------------------------------------------------
def conv_example_forward(x_nchw, params):
    """ConvExample.forward: pool(relu(conv1)) -> pool(relu(conv2)) ->
    relu(transconv1) -> transconv2.  NCHW in / NCHW out, like the PyTorch module."""
    x = jnp.transpose(x_nchw, (0, 2, 3, 1))            # NCHW -> NHWC
    N, H, W, Cin = x.shape
    assert H % 4 == 0 and W % 4 == 0
    Cout = params["tconv2_w"].shape[1]

    C1, C2, C3 = 16, 32, 16                            # fixed module widths
    cin_p = _round_up(Cin, 8)
    cout_p = _round_up(Cout, 8)

    # Per-layer flattened-padded-grid geometry.
    p1, base1, r1, slab1_rows = _layer_geom(H, W)              # conv1   (HxW)
    p2, base2, r2, slab2_rows = _layer_geom(H // 2, W // 2)    # conv2   (H/2 x W/2)
    p3, base3, r3, slab3_rows = _layer_geom(H // 4, W // 4)    # tconv1  (H/4 x W/4)
    p4, base4, r4, slab4_rows = _layer_geom(H // 2, W // 2)    # tconv2  (H/2 x W/2)

    sh1 = [(dh - 1) * p1 + (dw - 1) for dh in range(3) for dw in range(3)]
    sh2 = [(dh - 1) * p2 + (dw - 1) for dh in range(3) for dw in range(3)]
    sh3 = [[(dy + a - 1) * p3 + (dx + b - 1) for a in range(2) for b in range(2)]
           for dy in range(2) for dx in range(2)]
    sh4 = [[(dy + a - 1) * p4 + (dx + b - 1) for a in range(2) for b in range(2)]
           for dy in range(2) for dx in range(2)]

    # Streamed / resident operands (all matmul operands are bf16).
    slab1 = _make_slab(x, cin_p, slab1_rows)
    w1 = _conv_taps(params["conv1_w"], cin_p)
    w2 = _conv_taps(params["conv2_w"], C1)
    w3 = _tconv_taps(params["tconv1_w"], C3)
    w4 = _tconv_taps(params["tconv2_w"], cout_p)
    bias1 = _bias(params["conv1_b"], C1)
    bias2 = _bias(params["conv2_b"], C2)
    bias3 = _bias(params["tconv1_b"], C3)
    bias4 = _bias(params["tconv2_b"], cout_p)

    sel1 = jnp.asarray(_pool_select(slab2_rows, r1, p2, p1, H // 2, W // 2), jnp.bfloat16)
    sel2 = jnp.asarray(_pool_select(slab3_rows, r2, p3, p2, H // 4, W // 4), jnp.bfloat16)
    selT = jnp.asarray(_scatter_select(slab4_rows, r3, p4, p3, H // 4, W // 4), jnp.bfloat16)
    selU = jnp.asarray(_final_select(H * W, r4, W, p4, H // 2, W // 2), jnp.bfloat16)

    def kernel(x_ref, w1_ref, b1_ref, w2_ref, b2_ref, w3_ref, b3_ref,
               w4_ref, b4_ref, s1_ref, s2_ref, t_ref, u_ref, o_ref,
               slab2_ref, slab3_ref, slab4_ref):

        def taps(read, w_ref, t0, shifts, base, rows):
            """In-kernel im2col: sum over shifted bf16 slices @ per-tap weights."""
            acc = jnp.zeros((rows, w_ref.shape[-1]), jnp.float32)
            for t, s in enumerate(shifts):
                acc = acc + jnp.dot(read(base + s, rows), w_ref[t0 + t],
                                    preferred_element_type=jnp.float32)
            return acc

        def pool(sel_ref, y):
            """MaxPool2x2 + zero-pad + re-flatten via 4 exact 0/1 selection matmuls."""
            out = jnp.dot(sel_ref[0], y, preferred_element_type=jnp.float32)
            for k in range(1, 4):
                out = jnp.maximum(
                    out, jnp.dot(sel_ref[k], y, preferred_element_type=jnp.float32))
            return out

        # -- conv1 (3x3, pad 1) + bias + ReLU, then fused maxpool into slab2 --
        rd = lambda st, n: x_ref[0, pl.ds(st, n), :]
        y = jnp.maximum(taps(rd, w1_ref, 0, sh1, base1, r1) + b1_ref[...], 0.0)
        slab2_ref[...] = pool(s1_ref, y.astype(jnp.bfloat16)).astype(jnp.bfloat16)

        # -- conv2 (3x3, pad 1) + bias + ReLU, then fused maxpool into slab3 --
        rd = lambda st, n: slab2_ref[pl.ds(st, n), :]
        y = jnp.maximum(taps(rd, w2_ref, 0, sh2, base2, r2) + b2_ref[...], 0.0)
        slab3_ref[...] = pool(s2_ref, y.astype(jnp.bfloat16)).astype(jnp.bfloat16)

        # -- transconv1 (4x4, s2, p1) + ReLU: 4 sub-pixel parity groups,
        #    interleaved + zero-padded into slab4 via selection matmuls --
        rd = lambda st, n: slab3_ref[pl.ds(st, n), :]
        acc = jnp.zeros(slab4_ref.shape, jnp.float32)
        for gi in range(4):
            yg = jnp.maximum(taps(rd, w3_ref, 4 * gi, sh3[gi], base3, r3)
                             + b3_ref[...], 0.0).astype(jnp.bfloat16)
            acc = acc + jnp.dot(t_ref[gi], yg, preferred_element_type=jnp.float32)
        slab4_ref[...] = acc.astype(jnp.bfloat16)

        # -- transconv2 (4x4, s2, p1), no ReLU: groups assembled to flat NHWC --
        rd = lambda st, n: slab4_ref[pl.ds(st, n), :]
        out = jnp.zeros((o_ref.shape[1], o_ref.shape[2]), jnp.float32)
        for gi in range(4):
            yg = (taps(rd, w4_ref, 4 * gi, sh4[gi], base4, r4)
                  + b4_ref[...]).astype(jnp.bfloat16)
            out = out + jnp.dot(u_ref[gi], yg, preferred_element_type=jnp.float32)
        o_ref[0, :, :] = out.astype(o_ref.dtype)

    def _res(arr):                                     # grid-resident operand
        nd = arr.ndim
        return pl.BlockSpec(arr.shape, lambda i: (0,) * nd)

    # Advisory cost estimate: resident weights / selectors counted once.
    macs = (r1 * 9 * cin_p * C1 + 4 * slab2_rows * r1 * C1
            + r2 * 9 * C1 * C2 + 4 * slab3_rows * r2 * C2
            + 4 * r3 * 4 * C2 * C3 + 4 * slab4_rows * r3 * C3
            + 4 * r4 * 4 * C3 * cout_p + 4 * H * W * r4 * cout_p)
    const_bytes = sum(int(a.size) * a.dtype.itemsize
                      for a in (w1, w2, w3, w4, sel1, sel2, selT, selU))
    const_bytes += 4 * (C1 + C2 + C3 + cout_p)
    bytes_accessed = int(slab1.size * slab1.dtype.itemsize
                         + N * H * W * cout_p * 2 + const_bytes)

    out = pl.pallas_call(
        kernel,
        out_shape=jax.ShapeDtypeStruct((N, H * W, cout_p), jnp.bfloat16),
        grid_spec=pltpu.PrefetchScalarGridSpec(
            num_scalar_prefetch=0,
            grid=(N,),
            in_specs=[
                pl.BlockSpec((1, slab1_rows, cin_p), lambda i: (i, 0, 0)),
                _res(w1), _res(bias1), _res(w2), _res(bias2),
                _res(w3), _res(bias3), _res(w4), _res(bias4),
                _res(sel1), _res(sel2), _res(selT), _res(selU),
            ],
            out_specs=pl.BlockSpec((1, H * W, cout_p), lambda i: (i, 0, 0)),
            scratch_shapes=[
                pltpu.VMEM((slab2_rows, C1), jnp.bfloat16),
                pltpu.VMEM((slab3_rows, C2), jnp.bfloat16),
                pltpu.VMEM((slab4_rows, C3), jnp.bfloat16),
            ],
        ),
        compiler_params=pltpu.CompilerParams(
            dimension_semantics=("parallel",)),
        cost_estimate=pl.CostEstimate(
            flops=2 * N * macs, transcendentals=0, bytes_accessed=bytes_accessed),
    )(slab1, w1, bias1, w2, bias2, w3, bias3, w4, bias4, sel1, sel2, selT, selU)

    out = out[:, :, :Cout].reshape(N, H, W, Cout).astype(jnp.float32)
    return jnp.transpose(out, (0, 3, 1, 2))            # NHWC -> NCHW


# --------------------------------------------------------------------------
# Pure-JAX reference (f32, lax.conv) for correctness checking
# --------------------------------------------------------------------------
def _maxpool2x2(x_nhwc):
    n, h, w, c = x_nhwc.shape
    return jnp.max(x_nhwc.reshape(n, h // 2, 2, w // 2, 2, c), axis=(2, 4))


def reference_forward(x_nchw, p):
    x = jnp.transpose(x_nchw, (0, 2, 3, 1)).astype(jnp.float32)

    def conv(x, w, b):                                  # w: (Cout, Cin, 3, 3)
        rhs = jnp.transpose(w, (2, 3, 1, 0))            # HWIO
        y = lax.conv_general_dilated(x, rhs, (1, 1), ((1, 1), (1, 1)),
                                     dimension_numbers=("NHWC", "HWIO", "NHWC"))
        return y + b

    def tconv(x, w, b):                                 # w: (Cin, Cout, 4, 4)
        rhs = jnp.transpose(w[:, :, ::-1, ::-1], (2, 3, 0, 1))   # flipped, HWIO
        y = lax.conv_general_dilated(x, rhs, (1, 1), ((2, 2), (2, 2)),
                                     lhs_dilation=(2, 2),
                                     dimension_numbers=("NHWC", "HWIO", "NHWC"))
        return y + b

    y = _maxpool2x2(jnp.maximum(conv(x, p["conv1_w"], p["conv1_b"]), 0.0))
    y = _maxpool2x2(jnp.maximum(conv(y, p["conv2_w"], p["conv2_b"]), 0.0))
    y = jnp.maximum(tconv(y, p["tconv1_w"], p["tconv1_b"]), 0.0)
    y = tconv(y, p["tconv2_w"], p["tconv2_b"])
    return jnp.transpose(y, (0, 3, 1, 2))


def init_params(key, in_channels, output_channels):
    ks = jax.random.split(key, 8)

    def w_conv(k, cout, cin, ksz):
        fan_in = cin * ksz * ksz
        return jax.random.normal(k, (cout, cin, ksz, ksz), jnp.float32) / jnp.sqrt(fan_in)

    def w_tconv(k, cin, cout, ksz):
        fan_in = cin * ksz * ksz
        return jax.random.normal(k, (cin, cout, ksz, ksz), jnp.float32) / jnp.sqrt(fan_in)

    def bias(k, c):
        return 0.05 * jax.random.normal(k, (c,), jnp.float32)

    return {
        "conv1_w": w_conv(ks[0], 16, in_channels, 3), "conv1_b": bias(ks[1], 16),
        "conv2_w": w_conv(ks[2], 32, 16, 3),          "conv2_b": bias(ks[3], 32),
        "tconv1_w": w_tconv(ks[4], 32, 16, 4),        "tconv1_b": bias(ks[5], 16),
        "tconv2_w": w_tconv(ks[6], 16, output_channels, 4),
        "tconv2_b": bias(ks[7], output_channels),
    }


if __name__ == "__main__":
    key = jax.random.PRNGKey(0)
    kx, kp = jax.random.split(key)

    N, IN_C, OUT_C, H, W = 2, 4, 4, 16, 16
    x = jax.random.normal(kx, (N, IN_C, H, W), jnp.float32)      # NCHW, like PyTorch
    params = init_params(kp, IN_C, OUT_C)

    fwd = jax.jit(conv_example_forward)
    out = jax.block_until_ready(fwd(x, params))
    assert out.shape == (N, OUT_C, H, W), out.shape

    ref = jax.block_until_ready(reference_forward(x, params))
    err = float(jnp.max(jnp.abs(out - ref)))
    assert err < 8e-2, err    # bf16-streamed operands vs f32 reference

    print("KERNEL_OK")
</pallas_src>

<mosaic_0001>
module attributes {stable_mosaic.version = 11 : i64} {
  func.func @kernel(%arg0: i32, %arg1: memref<1x336x8xbf16, #tpu.memory_space<vmem>>, %arg2: memref<9x8x16xbf16, #tpu.memory_space<vmem>>, %arg3: memref<1x16xf32, #tpu.memory_space<vmem>>, %arg4: memref<9x16x32xbf16, #tpu.memory_space<vmem>>, %arg5: memref<1x32xf32, #tpu.memory_space<vmem>>, %arg6: memref<16x32x16xbf16, #tpu.memory_space<vmem>>, %arg7: memref<1x16xf32, #tpu.memory_space<vmem>>, %arg8: memref<16x16x8xbf16, #tpu.memory_space<vmem>>, %arg9: memref<1x8xf32, #tpu.memory_space<vmem>>, %arg10: memref<4x112x288xbf16, #tpu.memory_space<vmem>>, %arg11: memref<4x48x80xbf16, #tpu.memory_space<vmem>>, %arg12: memref<4x112x24xbf16, #tpu.memory_space<vmem>>, %arg13: memref<4x256x80xbf16, #tpu.memory_space<vmem>>, %arg14: memref<1x256x8xbf16, #tpu.memory_space<vmem>>, %arg15: memref<112x16xbf16, #tpu.memory_space<vmem>>, %arg16: memref<48x32xbf16, #tpu.memory_space<vmem>>, %arg17: memref<112x16xbf16, #tpu.memory_space<vmem>>) attributes {dimension_semantics = [#tpu.dimension_semantics<parallel>], iteration_bounds = array<i64: 2>, scalar_prefetch = 0 : i64, scratch_operands = 3 : i64, tpu.core_type = #tpu.core_type<tc>, window_params = [{transform_indices = @transform_0, window_bounds = array<i64: 1, 336, 8>}, {pipeline_mode = #tpu.pipeline_mode<synchronous>, transform_indices = @transform_1, window_bounds = array<i64: 9, 8, 16>}, {pipeline_mode = #tpu.pipeline_mode<synchronous>, transform_indices = @transform_2, window_bounds = array<i64: 1, 16>}, {pipeline_mode = #tpu.pipeline_mode<synchronous>, transform_indices = @transform_3, window_bounds = array<i64: 9, 16, 32>}, {pipeline_mode = #tpu.pipeline_mode<synchronous>, transform_indices = @transform_4, window_bounds = array<i64: 1, 32>}, {pipeline_mode = #tpu.pipeline_mode<synchronous>, transform_indices = @transform_5, window_bounds = array<i64: 16, 32, 16>}, {pipeline_mode = #tpu.pipeline_mode<synchronous>, transform_indices = @transform_6, window_bounds = array<i64: 1, 16>}, {pipeline_mode = #tpu.pipeline_mode<synchronous>, transform_indices = @transform_7, window_bounds = array<i64: 16, 16, 8>}, {pipeline_mode = #tpu.pipeline_mode<synchronous>, transform_indices = @transform_8, window_bounds = array<i64: 1, 8>}, {pipeline_mode = #tpu.pipeline_mode<synchronous>, transform_indices = @transform_9, window_bounds = array<i64: 4, 112, 288>}, {pipeline_mode = #tpu.pipeline_mode<synchronous>, transform_indices = @transform_10, window_bounds = array<i64: 4, 48, 80>}, {pipeline_mode = #tpu.pipeline_mode<synchronous>, transform_indices = @transform_11, window_bounds = array<i64: 4, 112, 24>}, {pipeline_mode = #tpu.pipeline_mode<synchronous>, transform_indices = @transform_12, window_bounds = array<i64: 4, 256, 80>}, {transform_indices = @transform_13, window_bounds = array<i64: 1, 256, 8>}]} {
    %cst = arith.constant 0.000000e+00 : f32
    %0 = vector.broadcast %cst : f32 to vector<288x16xf32>
    %c0 = arith.constant 0 : index
    %c0_0 = arith.constant 0 : index
    %c0_1 = arith.constant 0 : index
    %1 = vector.load %arg1[%c0, %c0_0, %c0_1] : memref<1x336x8xbf16, #tpu.memory_space<vmem>>, vector<1x288x8xbf16>
    %2 = vector.shape_cast %1 : vector<1x288x8xbf16> to vector<288x8xbf16>
    %c0_2 = arith.constant 0 : index
    %c0_3 = arith.constant 0 : index
    %c0_4 = arith.constant 0 : index
    %3 = vector.load %arg2[%c0_2, %c0_3, %c0_4] : memref<9x8x16xbf16, #tpu.memory_space<vmem>>, vector<1x8x16xbf16>
    %4 = vector.shape_cast %3 : vector<1x8x16xbf16> to vector<8x16xbf16>
    %cst_5 = arith.constant dense<0.000000e+00> : vector<288x16xf32>
    %5 = tpu.matmul %2, %4, %cst_5 {dimension_numbers = #tpu.dot_dimension_numbers<[1], [0], [0], [1], [0, 0, 1, 1], [], []>} : vector<288x8xbf16>, vector<8x16xbf16>, vector<288x16xf32> -> vector<288x16xf32>
    %6 = arith.addf %0, %5 : vector<288x16xf32>
    %c0_6 = arith.constant 0 : index
    %c1 = arith.constant 1 : index
    %c0_7 = arith.constant 0 : index
    %7 = vector.load %arg1[%c0_6, %c1, %c0_7] : memref<1x336x8xbf16, #tpu.memory_space<vmem>>, vector<1x288x8xbf16>
    %8 = vector.shape_cast %7 : vector<1x288x8xbf16> to vector<288x8xbf16>
    %c1_8 = arith.constant 1 : index
    %c0_9 = arith.constant 0 : index
    %c0_10 = arith.constant 0 : index
    %9 = vector.load %arg2[%c1_8, %c0_9, %c0_10] : memref<9x8x16xbf16, #tpu.memory_space<vmem>>, vector<1x8x16xbf16>
    %10 = vector.shape_cast %9 : vector<1x8x16xbf16> to vector<8x16xbf16>
    %cst_11 = arith.constant dense<0.000000e+00> : vector<288x16xf32>
    %11 = tpu.matmul %8, %10, %cst_11 {dimension_numbers = #tpu.dot_dimension_numbers<[1], [0], [0], [1], [0, 0, 1, 1], [], []>} : vector<288x8xbf16>, vector<8x16xbf16>, vector<288x16xf32> -> vector<288x16xf32>
    %12 = arith.addf %6, %11 : vector<288x16xf32>
    %c0_12 = arith.constant 0 : index
    %c2 = arith.constant 2 : index
    %c0_13 = arith.constant 0 : index
    %13 = vector.load %arg1[%c0_12, %c2, %c0_13] : memref<1x336x8xbf16, #tpu.memory_space<vmem>>, vector<1x288x8xbf16>
    %14 = vector.shape_cast %13 : vector<1x288x8xbf16> to vector<288x8xbf16>
    %c2_14 = arith.constant 2 : index
    %c0_15 = arith.constant 0 : index
    %c0_16 = arith.constant 0 : index
    %15 = vector.load %arg2[%c2_14, %c0_15, %c0_16] : memref<9x8x16xbf16, #tpu.memory_space<vmem>>, vector<1x8x16xbf16>
    %16 = vector.shape_cast %15 : vector<1x8x16xbf16> to vector<8x16xbf16>
    %cst_17 = arith.constant dense<0.000000e+00> : vector<288x16xf32>
    %17 = tpu.matmul %14, %16, %cst_17 {dimension_numbers = #tpu.dot_dimension_numbers<[1], [0], [0], [1], [0, 0, 1, 1], [], []>} : vector<288x8xbf16>, vector<8x16xbf16>, vector<288x16xf32> -> vector<288x16xf32>
    %18 = arith.addf %12, %17 : vector<288x16xf32>
    %c0_18 = arith.constant 0 : index
    %c18 = arith.constant 18 : index
    %c0_19 = arith.constant 0 : index
    %19 = vector.load %arg1[%c0_18, %c18, %c0_19] : memref<1x336x8xbf16, #tpu.memory_space<vmem>>, vector<1x288x8xbf16>
    %20 = vector.shape_cast %19 : vector<1x288x8xbf16> to vector<288x8xbf16>
    %c3 = arith.constant 3 : index
    %c0_20 = arith.constant 0 : index
    %c0_21 = arith.constant 0 : index
    %21 = vector.load %arg2[%c3, %c0_20, %c0_21] : memref<9x8x16xbf16, #tpu.memory_space<vmem>>, vector<1x8x16xbf16>
    %22 = vector.shape_cast %21 : vector<1x8x16xbf16> to vector<8x16xbf16>
    %cst_22 = arith.constant dense<0.000000e+00> : vector<288x16xf32>
    %23 = tpu.matmul %20, %22, %cst_22 {dimension_numbers = #tpu.dot_dimension_numbers<[1], [0], [0], [1], [0, 0, 1, 1], [], []>} : vector<288x8xbf16>, vector<8x16xbf16>, vector<288x16xf32> -> vector<288x16xf32>
    %24 = arith.addf %18, %23 : vector<288x16xf32>
    %c0_23 = arith.constant 0 : index
    %c19 = arith.constant 19 : index
    %c0_24 = arith.constant 0 : index
    %25 = vector.load %arg1[%c0_23, %c19, %c0_24] : memref<1x336x8xbf16, #tpu.memory_space<vmem>>, vector<1x288x8xbf16>
    %26 = vector.shape_cast %25 : vector<1x288x8xbf16> to vector<288x8xbf16>
    %c4 = arith.constant 4 : index
    %c0_25 = arith.constant 0 : index
    %c0_26 = arith.constant 0 : index
    %27 = vector.load %arg2[%c4, %c0_25, %c0_26] : memref<9x8x16xbf16, #tpu.memory_space<vmem>>, vector<1x8x16xbf16>
    %28 = vector.shape_cast %27 : vector<1x8x16xbf16> to vector<8x16xbf16>
    %cst_27 = arith.constant dense<0.000000e+00> : vector<288x16xf32>
    %29 = tpu.matmul %26, %28, %cst_27 {dimension_numbers = #tpu.dot_dimension_numbers<[1], [0], [0], [1], [0, 0, 1, 1], [], []>} : vector<288x8xbf16>, vector<8x16xbf16>, vector<288x16xf32> -> vector<288x16xf32>
    %30 = arith.addf %24, %29 : vector<288x16xf32>
    %c0_28 = arith.constant 0 : index
    %c20 = arith.constant 20 : index
    %c0_29 = arith.constant 0 : index
    %31 = vector.load %arg1[%c0_28, %c20, %c0_29] : memref<1x336x8xbf16, #tpu.memory_space<vmem>>, vector<1x288x8xbf16>
    %32 = vector.shape_cast %31 : vector<1x288x8xbf16> to vector<288x8xbf16>
    %c5 = arith.constant 5 : index
    %c0_30 = arith.constant 0 : index
    %c0_31 = arith.constant 0 : index
    %33 = vector.load %arg2[%c5, %c0_30, %c0_31] : memref<9x8x16xbf16, #tpu.memory_space<vmem>>, vector<1x8x16xbf16>
    %34 = vector.shape_cast %33 : vector<1x8x16xbf16> to vector<8x16xbf16>
    %cst_32 = arith.constant dense<0.000000e+00> : vector<288x16xf32>
    %35 = tpu.matmul %32, %34, %cst_32 {dimension_numbers = #tpu.dot_dimension_numbers<[1], [0], [0], [1], [0, 0, 1, 1], [], []>} : vector<288x8xbf16>, vector<8x16xbf16>, vector<288x16xf32> -> vector<288x16xf32>
    %36 = arith.addf %30, %35 : vector<288x16xf32>
    %c0_33 = arith.constant 0 : index
    %c36 = arith.constant 36 : index
    %c0_34 = arith.constant 0 : index
    %37 = vector.load %arg1[%c0_33, %c36, %c0_34] : memref<1x336x8xbf16, #tpu.memory_space<vmem>>, vector<1x288x8xbf16>
    %38 = vector.shape_cast %37 : vector<1x288x8xbf16> to vector<288x8xbf16>
    %c6 = arith.constant 6 : index
    %c0_35 = arith.constant 0 : index
    %c0_36 = arith.constant 0 : index
    %39 = vector.load %arg2[%c6, %c0_35, %c0_36] : memref<9x8x16xbf16, #tpu.memory_space<vmem>>, vector<1x8x16xbf16>
    %40 = vector.shape_cast %39 : vector<1x8x16xbf16> to vector<8x16xbf16>
    %cst_37 = arith.constant dense<0.000000e+00> : vector<288x16xf32>
    %41 = tpu.matmul %38, %40, %cst_37 {dimension_numbers = #tpu.dot_dimension_numbers<[1], [0], [0], [1], [0, 0, 1, 1], [], []>} : vector<288x8xbf16>, vector<8x16xbf16>, vector<288x16xf32> -> vector<288x16xf32>
    %42 = arith.addf %36, %41 : vector<288x16xf32>
    %c0_38 = arith.constant 0 : index
    %c37 = arith.constant 37 : index
    %c0_39 = arith.constant 0 : index
    %43 = vector.load %arg1[%c0_38, %c37, %c0_39] : memref<1x336x8xbf16, #tpu.memory_space<vmem>>, vector<1x288x8xbf16>
    %44 = vector.shape_cast %43 : vector<1x288x8xbf16> to vector<288x8xbf16>
    %c7 = arith.constant 7 : index
    %c0_40 = arith.constant 0 : index
    %c0_41 = arith.constant 0 : index
    %45 = vector.load %arg2[%c7, %c0_40, %c0_41] : memref<9x8x16xbf16, #tpu.memory_space<vmem>>, vector<1x8x16xbf16>
    %46 = vector.shape_cast %45 : vector<1x8x16xbf16> to vector<8x16xbf16>
    %cst_42 = arith.constant dense<0.000000e+00> : vector<288x16xf32>
    %47 = tpu.matmul %44, %46, %cst_42 {dimension_numbers = #tpu.dot_dimension_numbers<[1], [0], [0], [1], [0, 0, 1, 1], [], []>} : vector<288x8xbf16>, vector<8x16xbf16>, vector<288x16xf32> -> vector<288x16xf32>
    %48 = arith.addf %42, %47 : vector<288x16xf32>
    %c0_43 = arith.constant 0 : index
    %c38 = arith.constant 38 : index
    %c0_44 = arith.constant 0 : index
    %49 = vector.load %arg1[%c0_43, %c38, %c0_44] : memref<1x336x8xbf16, #tpu.memory_space<vmem>>, vector<1x288x8xbf16>
    %50 = vector.shape_cast %49 : vector<1x288x8xbf16> to vector<288x8xbf16>
    %c8 = arith.constant 8 : index
    %c0_45 = arith.constant 0 : index
    %c0_46 = arith.constant 0 : index
    %51 = vector.load %arg2[%c8, %c0_45, %c0_46] : memref<9x8x16xbf16, #tpu.memory_space<vmem>>, vector<1x8x16xbf16>
    %52 = vector.shape_cast %51 : vector<1x8x16xbf16> to vector<8x16xbf16>
    %cst_47 = arith.constant dense<0.000000e+00> : vector<288x16xf32>
    %53 = tpu.matmul %50, %52, %cst_47 {dimension_numbers = #tpu.dot_dimension_numbers<[1], [0], [0], [1], [0, 0, 1, 1], [], []>} : vector<288x8xbf16>, vector<8x16xbf16>, vector<288x16xf32> -> vector<288x16xf32>
    %54 = arith.addf %48, %53 : vector<288x16xf32>
    %c0_48 = arith.constant 0 : index
    %c0_49 = arith.constant 0 : index
    %55 = vector.load %arg3[%c0_48, %c0_49] : memref<1x16xf32, #tpu.memory_space<vmem>>, vector<1x16xf32>
    %56 = vector.broadcast %55 : vector<1x16xf32> to vector<288x16xf32>
    %57 = arith.addf %54, %56 : vector<288x16xf32>
    %cst_50 = arith.constant 0.000000e+00 : f32
    %58 = vector.broadcast %cst_50 : f32 to vector<288x16xf32>
    %59 = arith.maximumf %57, %58 : vector<288x16xf32>
    %60 = arith.truncf %59 : vector<288x16xf32> to vector<288x16xbf16>
    %c0_51 = arith.constant 0 : index
    %c0_52 = arith.constant 0 : index
    %c0_53 = arith.constant 0 : index
    %61 = vector.load %arg10[%c0_51, %c0_52, %c0_53] : memref<4x112x288xbf16, #tpu.memory_space<vmem>>, vector<1x112x288xbf16>
    %62 = vector.shape_cast %61 : vector<1x112x288xbf16> to vector<112x288xbf16>
    %cst_54 = arith.constant dense<0.000000e+00> : vector<112x16xf32>
    %63 = tpu.matmul %62, %60, %cst_54 {dimension_numbers = #tpu.dot_dimension_numbers<[1], [0], [0], [1], [0, 0, 1, 1], [], []>} : vector<112x288xbf16>, vector<288x16xbf16>, vector<112x16xf32> -> vector<112x16xf32>
    %c1_55 = arith.constant 1 : index
    %c0_56 = arith.constant 0 : index
    %c0_57 = arith.constant 0 : index
    %64 = vector.load %arg10[%c1_55, %c0_56, %c0_57] : memref<4x112x288xbf16, #tpu.memory_space<vmem>>, vector<1x112x288xbf16>
    %65 = vector.shape_cast %64 : vector<1x112x288xbf16> to vector<112x288xbf16>
    %cst_58 = arith.constant dense<0.000000e+00> : vector<112x16xf32>
    %66 = tpu.matmul %65, %60, %cst_58 {dimension_numbers = #tpu.dot_dimension_numbers<[1], [0], [0], [1], [0, 0, 1, 1], [], []>} : vector<112x288xbf16>, vector<288x16xbf16>, vector<112x16xf32> -> vector<112x16xf32>
    %67 = arith.maximumf %63, %66 : vector<112x16xf32>
    %c2_59 = arith.constant 2 : index
    %c0_60 = arith.constant 0 : index
    %c0_61 = arith.constant 0 : index
    %68 = vector.load %arg10[%c2_59, %c0_60, %c0_61] : memref<4x112x288xbf16, #tpu.memory_space<vmem>>, vector<1x112x288xbf16>
    %69 = vector.shape_cast %68 : vector<1x112x288xbf16> to vector<112x288xbf16>
    %cst_62 = arith.constant dense<0.000000e+00> : vector<112x16xf32>
    %70 = tpu.matmul %69, %60, %cst_62 {dimension_numbers = #tpu.dot_dimension_numbers<[1], [0], [0], [1], [0, 0, 1, 1], [], []>} : vector<112x288xbf16>, vector<288x16xbf16>, vector<112x16xf32> -> vector<112x16xf32>
    %71 = arith.maximumf %67, %70 : vector<112x16xf32>
    %c3_63 = arith.constant 3 : index
    %c0_64 = arith.constant 0 : index
    %c0_65 = arith.constant 0 : index
    %72 = vector.load %arg10[%c3_63, %c0_64, %c0_65] : memref<4x112x288xbf16, #tpu.memory_space<vmem>>, vector<1x112x288xbf16>
    %73 = vector.shape_cast %72 : vector<1x112x288xbf16> to vector<112x288xbf16>
    %cst_66 = arith.constant dense<0.000000e+00> : vector<112x16xf32>
    %74 = tpu.matmul %73, %60, %cst_66 {dimension_numbers = #tpu.dot_dimension_numbers<[1], [0], [0], [1], [0, 0, 1, 1], [], []>} : vector<112x288xbf16>, vector<288x16xbf16>, vector<112x16xf32> -> vector<112x16xf32>
    %75 = arith.maximumf %71, %74 : vector<112x16xf32>
    %76 = arith.truncf %75 : vector<112x16xf32> to vector<112x16xbf16>
    %c0_67 = arith.constant 0 : index
    %c0_68 = arith.constant 0 : index
    %77 = vector.load %arg15[%c0_67, %c0_68] : memref<112x16xbf16, #tpu.memory_space<vmem>>, vector<112x16xbf16>
    tpu.vector_store %arg15[%c0_67, %c0_68], %76 {strides = array<i32>} : memref<112x16xbf16, #tpu.memory_space<vmem>>, vector<112x16xbf16>,
    %cst_69 = arith.constant 0.000000e+00 : f32
    %78 = vector.broadcast %cst_69 : f32 to vector<80x32xf32>
    %c0_70 = arith.constant 0 : index
    %c0_71 = arith.constant 0 : index
    %79 = vector.load %arg15[%c0_70, %c0_71] : memref<112x16xbf16, #tpu.memory_space<vmem>>, vector<80x16xbf16>
    %c0_72 = arith.constant 0 : index
    %c0_73 = arith.constant 0 : index
    %c0_74 = arith.constant 0 : index
    %80 = vector.load %arg4[%c0_72, %c0_73, %c0_74] : memref<9x16x32xbf16, #tpu.memory_space<vmem>>, vector<1x16x32xbf16>
    %81 = vector.shape_cast %80 : vector<1x16x32xbf16> to vector<16x32xbf16>
    %cst_75 = arith.constant dense<0.000000e+00> : vector<80x32xf32>
    %82 = tpu.matmul %79, %81, %cst_75 {dimension_numbers = #tpu.dot_dimension_numbers<[1], [0], [0], [1], [0, 0, 1, 1], [], []>} : vector<80x16xbf16>, vector<16x32xbf16>, vector<80x32xf32> -> vector<80x32xf32>
    %83 = arith.addf %78, %82 : vector<80x32xf32>
    %c1_76 = arith.constant 1 : index
    %c0_77 = arith.constant 0 : index
    %84 = vector.load %arg15[%c1_76, %c0_77] : memref<112x16xbf16, #tpu.memory_space<vmem>>, vector<80x16xbf16>
    %c1_78 = arith.constant 1 : index
    %c0_79 = arith.constant 0 : index
    %c0_80 = arith.constant 0 : index
    %85 = vector.load %arg4[%c1_78, %c0_79, %c0_80] : memref<9x16x32xbf16, #tpu.memory_space<vmem>>, vector<1x16x32xbf16>
    %86 = vector.shape_cast %85 : vector<1x16x32xbf16> to vector<16x32xbf16>
    %cst_81 = arith.constant dense<0.000000e+00> : vector<80x32xf32>
    %87 = tpu.matmul %84, %86, %cst_81 {dimension_numbers = #tpu.dot_dimension_numbers<[1], [0], [0], [1], [0, 0, 1, 1], [], []>} : vector<80x16xbf16>, vector<16x32xbf16>, vector<80x32xf32> -> vector<80x32xf32>
    %88 = arith.addf %83, %87 : vector<80x32xf32>
    %c2_82 = arith.constant 2 : index
    %c0_83 = arith.constant 0 : index
    %89 = vector.load %arg15[%c2_82, %c0_83] : memref<112x16xbf16, #tpu.memory_space<vmem>>, vector<80x16xbf16>
    %c2_84 = arith.constant 2 : index
    %c0_85 = arith.constant 0 : index
    %c0_86 = arith.constant 0 : index
    %90 = vector.load %arg4[%c2_84, %c0_85, %c0_86] : memref<9x16x32xbf16, #tpu.memory_space<vmem>>, vector<1x16x32xbf16>
    %91 = vector.shape_cast %90 : vector<1x16x32xbf16> to vector<16x32xbf16>
    %cst_87 = arith.constant dense<0.000000e+00> : vector<80x32xf32>
    %92 = tpu.matmul %89, %91, %cst_87 {dimension_numbers = #tpu.dot_dimension_numbers<[1], [0], [0], [1], [0, 0, 1, 1], [], []>} : vector<80x16xbf16>, vector<16x32xbf16>, vector<80x32xf32> -> vector<80x32xf32>
    %93 = arith.addf %88, %92 : vector<80x32xf32>
    %c10 = arith.constant 10 : index
    %c0_88 = arith.constant 0 : index
    %94 = vector.load %arg15[%c10, %c0_88] : memref<112x16xbf16, #tpu.memory_space<vmem>>, vector<80x16xbf16>
    %c3_89 = arith.constant 3 : index
    %c0_90 = arith.constant 0 : index
    %c0_91 = arith.constant 0 : index
    %95 = vector.load %arg4[%c3_89, %c0_90, %c0_91] : memref<9x16x32xbf16, #tpu.memory_space<vmem>>, vector<1x16x32xbf16>
    %96 = vector.shape_cast %95 : vector<1x16x32xbf16> to vector<16x32xbf16>
    %cst_92 = arith.constant dense<0.000000e+00> : vector<80x32xf32>
    %97 = tpu.matmul %94, %96, %cst_92 {dimension_numbers = #tpu.dot_dimension_numbers<[1], [0], [0], [1], [0, 0, 1, 1], [], []>} : vector<80x16xbf16>, vector<16x32xbf16>, vector<80x32xf32> -> vector<80x32xf32>
    %98 = arith.addf %93, %97 : vector<80x32xf32>
    %c11 = arith.constant 11 : index
    %c0_93 = arith.constant 0 : index
    %99 = vector.load %arg15[%c11, %c0_93] : memref<112x16xbf16, #tpu.memory_space<vmem>>, vector<80x16xbf16>
    %c4_94 = arith.constant 4 : index
    %c0_95 = arith.constant 0 : index
    %c0_96 = arith.constant 0 : index
    %100 = vector.load %arg4[%c4_94, %c0_95, %c0_96] : memref<9x16x32xbf16, #tpu.memory_space<vmem>>, vector<1x16x32xbf16>
    %101 = vector.shape_cast %100 : vector<1x16x32xbf16> to vector<16x32xbf16>
    %cst_97 = arith.constant dense<0.000000e+00> : vector<80x32xf32>
    %102 = tpu.matmul %99, %101, %cst_97 {dimension_numbers = #tpu.dot_dimension_numbers<[1], [0], [0], [1], [0, 0, 1, 1], [], []>} : vector<80x16xbf16>, vector<16x32xbf16>, vector<80x32xf32> -> vector<80x32xf32>
    %103 = arith.addf %98, %102 : vector<80x32xf32>
    %c12 = arith.constant 12 : index
    %c0_98 = arith.constant 0 : index
    %104 = vector.load %arg15[%c12, %c0_98] : memref<112x16xbf16, #tpu.memory_space<vmem>>, vector<80x16xbf16>
    %c5_99 = arith.constant 5 : index
    %c0_100 = arith.constant 0 : index
    %c0_101 = arith.constant 0 : index
    %105 = vector.load %arg4[%c5_99, %c0_100, %c0_101] : memref<9x16x32xbf16, #tpu.memory_space<vmem>>, vector<1x16x32xbf16>
    %106 = vector.shape_cast %105 : vector<1x16x32xbf16> to vector<16x32xbf16>
    %cst_102 = arith.constant dense<0.000000e+00> : vector<80x32xf32>
    %107 = tpu.matmul %104, %106, %cst_102 {dimension_numbers = #tpu.dot_dimension_numbers<[1], [0], [0], [1], [0, 0, 1, 1], [], []>} : vector<80x16xbf16>, vector<16x32xbf16>, vector<80x32xf32> -> vector<80x32xf32>
    %108 = arith.addf %103, %107 : vector<80x32xf32>
    %c20_103 = arith.constant 20 : index
    %c0_104 = arith.constant 0 : index
    %109 = vector.load %arg15[%c20_103, %c0_104] : memref<112x16xbf16, #tpu.memory_space<vmem>>, vector<80x16xbf16>
    %c6_105 = arith.constant 6 : index
    %c0_106 = arith.constant 0 : index
    %c0_107 = arith.constant 0 : index
    %110 = vector.load %arg4[%c6_105, %c0_106, %c0_107] : memref<9x16x32xbf16, #tpu.memory_space<vmem>>, vector<1x16x32xbf16>
    %111 = vector.shape_cast %110 : vector<1x16x32xbf16> to vector<16x32xbf16>
    %cst_108 = arith.constant dense<0.000000e+00> : vector<80x32xf32>
    %112 = tpu.matmul %109, %111, %cst_108 {dimension_numbers = #tpu.dot_dimension_numbers<[1], [0], [0], [1], [0, 0, 1, 1], [], []>} : vector<80x16xbf16>, vector<16x32xbf16>, vector<80x32xf32> -> vector<80x32xf32>
    %113 = arith.addf %108, %112 : vector<80x32xf32>
    %c21 = arith.constant 21 : index
    %c0_109 = arith.constant 0 : index
    %114 = vector.load %arg15[%c21, %c0_109] : memref<112x16xbf16, #tpu.memory_space<vmem>>, vector<80x16xbf16>
    %c7_110 = arith.constant 7 : index
    %c0_111 = arith.constant 0 : index
    %c0_112 = arith.constant 0 : index
    %115 = vector.load %arg4[%c7_110, %c0_111, %c0_112] : memref<9x16x32xbf16, #tpu.memory_space<vmem>>, vector<1x16x32xbf16>
    %116 = vector.shape_cast %115 : vector<1x16x32xbf16> to vector<16x32xbf16>
    %cst_113 = arith.constant dense<0.000000e+00> : vector<80x32xf32>
    %117 = tpu.matmul %114, %116, %cst_113 {dimension_numbers = #tpu.dot_dimension_numbers<[1], [0], [0], [1], [0, 0, 1, 1], [], []>} : vector<80x16xbf16>, vector<16x32xbf16>, vector<80x32xf32> -> vector<80x32xf32>
    %118 = arith.addf %113, %117 : vector<80x32xf32>
    %c22 = arith.constant 22 : index
    %c0_114 = arith.constant 0 : index
    %119 = vector.load %arg15[%c22, %c0_114] : memref<112x16xbf16, #tpu.memory_space<vmem>>, vector<80x16xbf16>
    %c8_115 = arith.constant 8 : index
    %c0_116 = arith.constant 0 : index
    %c0_117 = arith.constant 0 : index
    %120 = vector.load %arg4[%c8_115, %c0_116, %c0_117] : memref<9x16x32xbf16, #tpu.memory_space<vmem>>, vector<1x16x32xbf16>
    %121 = vector.shape_cast %120 : vector<1x16x32xbf16> to vector<16x32xbf16>
    %cst_118 = arith.constant dense<0.000000e+00> : vector<80x32xf32>
    %122 = tpu.matmul %119, %121, %cst_118 {dimension_numbers = #tpu.dot_dimension_numbers<[1], [0], [0], [1], [0, 0, 1, 1], [], []>} : vector<80x16xbf16>, vector<16x32xbf16>, vector<80x32xf32> -> vector<80x32xf32>
    %123 = arith.addf %118, %122 : vector<80x32xf32>
    %c0_119 = arith.constant 0 : index
    %c0_120 = arith.constant 0 : index
    %124 = vector.load %arg5[%c0_119, %c0_120] : memref<1x32xf32, #tpu.memory_space<vmem>>, vector<1x32xf32>
    %125 = vector.broadcast %124 : vector<1x32xf32> to vector<80x32xf32>
    %126 = arith.addf %123, %125 : vector<80x32xf32>
    %cst_121 = arith.constant 0.000000e+00 : f32
    %127 = vector.broadcast %cst_121 : f32 to vector<80x32xf32>
    %128 = arith.maximumf %126, %127 : vector<80x32xf32>
    %129 = arith.truncf %128 : vector<80x32xf32> to vector<80x32xbf16>
    %c0_122 = arith.constant 0 : index
    %c0_123 = arith.constant 0 : index
    %c0_124 = arith.constant 0 : index
    %130 = vector.load %arg11[%c0_122, %c0_123, %c0_124] : memref<4x48x80xbf16, #tpu.memory_space<vmem>>, vector<1x48x80xbf16>
    %131 = vector.shape_cast %130 : vector<1x48x80xbf16> to vector<48x80xbf16>
    %cst_125 = arith.constant dense<0.000000e+00> : vector<48x32xf32>
    %132 = tpu.matmul %131, %129, %cst_125 {dimension_numbers = #tpu.dot_dimension_numbers<[1], [0], [0], [1], [0, 0, 1, 1], [], []>} : vector<48x80xbf16>, vector<80x32xbf16>, vector<48x32xf32> -> vector<48x32xf32>
    %c1_126 = arith.constant 1 : index
    %c0_127 = arith.constant 0 : index
    %c0_128 = arith.constant 0 : index
    %133 = vector.load %arg11[%c1_126, %c0_127, %c0_128] : memref<4x48x80xbf16, #tpu.memory_space<vmem>>, vector<1x48x80xbf16>
    %134 = vector.shape_cast %133 : vector<1x48x80xbf16> to vector<48x80xbf16>
    %cst_129 = arith.constant dense<0.000000e+00> : vector<48x32xf32>
    %135 = tpu.matmul %134, %129, %cst_129 {dimension_numbers = #tpu.dot_dimension_numbers<[1], [0], [0], [1], [0, 0, 1, 1], [], []>} : vector<48x80xbf16>, vector<80x32xbf16>, vector<48x32xf32> -> vector<48x32xf32>
    %136 = arith.maximumf %132, %135 : vector<48x32xf32>
    %c2_130 = arith.constant 2 : index
    %c0_131 = arith.constant 0 : index
    %c0_132 = arith.constant 0 : index
    %137 = vector.load %arg11[%c2_130, %c0_131, %c0_132] : memref<4x48x80xbf16, #tpu.memory_space<vmem>>, vector<1x48x80xbf16>
    %138 = vector.shape_cast %137 : vector<1x48x80xbf16> to vector<48x80xbf16>
    %cst_133 = arith.constant dense<0.000000e+00> : vector<48x32xf32>
    %139 = tpu.matmul %138, %129, %cst_133 {dimension_numbers = #tpu.dot_dimension_numbers<[1], [0], [0], [1], [0, 0, 1, 1], [], []>} : vector<48x80xbf16>, vector<80x32xbf16>, vector<48x32xf32> -> vector<48x32xf32>
    %140 = arith.maximumf %136, %139 : vector<48x32xf32>
    %c3_134 = arith.constant 3 : index
    %c0_135 = arith.constant 0 : index
    %c0_136 = arith.constant 0 : index
    %141 = vector.load %arg11[%c3_134, %c0_135, %c0_136] : memref<4x48x80xbf16, #tpu.memory_space<vmem>>, vector<1x48x80xbf16>
    %142 = vector.shape_cast %141 : vector<1x48x80xbf16> to vector<48x80xbf16>
    %cst_137 = arith.constant dense<0.000000e+00> : vector<48x32xf32>
    %143 = tpu.matmul %142, %129, %cst_137 {dimension_numbers = #tpu.dot_dimension_numbers<[1], [0], [0], [1], [0, 0, 1, 1], [], []>} : vector<48x80xbf16>, vector<80x32xbf16>, vector<48x32xf32> -> vector<48x32xf32>
    %144 = arith.maximumf %140, %143 : vector<48x32xf32>
    %145 = arith.truncf %144 : vector<48x32xf32> to vector<48x32xbf16>
    %c0_138 = arith.constant 0 : index
    %c0_139 = arith.constant 0 : index
    %146 = vector.load %arg16[%c0_138, %c0_139] : memref<48x32xbf16, #tpu.memory_space<vmem>>, vector<48x32xbf16>
    tpu.vector_store %arg16[%c0_138, %c0_139], %145 {strides = array<i32>} : memref<48x32xbf16, #tpu.memory_space<vmem>>, vector<48x32xbf16>,
    %cst_140 = arith.constant 0.000000e+00 : f32
    %147 = vector.broadcast %cst_140 : f32 to vector<112x16xf32>
    %cst_141 = arith.constant 0.000000e+00 : f32
    %148 = vector.broadcast %cst_141 : f32 to vector<24x16xf32>
    %c0_142 = arith.constant 0 : index
    %c0_143 = arith.constant 0 : index
    %149 = vector.load %arg16[%c0_142, %c0_143] : memref<48x32xbf16, #tpu.memory_space<vmem>>, vector<24x32xbf16>
    %c0_144 = arith.constant 0 : index
    %c0_145 = arith.constant 0 : index
    %c0_146 = arith.constant 0 : index
    %150 = vector.load %arg6[%c0_144, %c0_145, %c0_146] : memref<16x32x16xbf16, #tpu.memory_space<vmem>>, vector<1x32x16xbf16>
    %151 = vector.shape_cast %150 : vector<1x32x16xbf16> to vector<32x16xbf16>
    %cst_147 = arith.constant dense<0.000000e+00> : vector<24x16xf32>
    %152 = tpu.matmul %149, %151, %cst_147 {dimension_numbers = #tpu.dot_dimension_numbers<[1], [0], [0], [1], [0, 0, 1, 1], [], []>} : vector<24x32xbf16>, vector<32x16xbf16>, vector<24x16xf32> -> vector<24x16xf32>
    %153 = arith.addf %148, %152 : vector<24x16xf32>
    %c1_148 = arith.constant 1 : index
    %c0_149 = arith.constant 0 : index
    %154 = vector.load %arg16[%c1_148, %c0_149] : memref<48x32xbf16, #tpu.memory_space<vmem>>, vector<24x32xbf16>
    %c1_150 = arith.constant 1 : index
    %c0_151 = arith.constant 0 : index
    %c0_152 = arith.constant 0 : index
    %155 = vector.load %arg6[%c1_150, %c0_151, %c0_152] : memref<16x32x16xbf16, #tpu.memory_space<vmem>>, vector<1x32x16xbf16>
    %156 = vector.shape_cast %155 : vector<1x32x16xbf16> to vector<32x16xbf16>
    %cst_153 = arith.constant dense<0.000000e+00> : vector<24x16xf32>
    %157 = tpu.matmul %154, %156, %cst_153 {dimension_numbers = #tpu.dot_dimension_numbers<[1], [0], [0], [1], [0, 0, 1, 1], [], []>} : vector<24x32xbf16>, vector<32x16xbf16>, vector<24x16xf32> -> vector<24x16xf32>
    %158 = arith.addf %153, %157 : vector<24x16xf32>
    %c6_154 = arith.constant 6 : index
    %c0_155 = arith.constant 0 : index
    %159 = vector.load %arg16[%c6_154, %c0_155] : memref<48x32xbf16, #tpu.memory_space<vmem>>, vector<24x32xbf16>
    %c2_156 = arith.constant 2 : index
    %c0_157 = arith.constant 0 : index
    %c0_158 = arith.constant 0 : index
    %160 = vector.load %arg6[%c2_156, %c0_157, %c0_158] : memref<16x32x16xbf16, #tpu.memory_space<vmem>>, vector<1x32x16xbf16>
    %161 = vector.shape_cast %160 : vector<1x32x16xbf16> to vector<32x16xbf16>
    %cst_159 = arith.constant dense<0.000000e+00> : vector<24x16xf32>
    %162 = tpu.matmul %159, %161, %cst_159 {dimension_numbers = #tpu.dot_dimension_numbers<[1], [0], [0], [1], [0, 0, 1, 1], [], []>} : vector<24x32xbf16>, vector<32x16xbf16>, vector<24x16xf32> -> vector<24x16xf32>
    %163 = arith.addf %158, %162 : vector<24x16xf32>
    %c7_160 = arith.constant 7 : index
    %c0_161 = arith.constant 0 : index
    %164 = vector.load %arg16[%c7_160, %c0_161] : memref<48x32xbf16, #tpu.memory_space<vmem>>, vector<24x32xbf16>
    %c3_162 = arith.constant 3 : index
    %c0_163 = arith.constant 0 : index
    %c0_164 = arith.constant 0 : index
    %165 = vector.load %arg6[%c3_162, %c0_163, %c0_164] : memref<16x32x16xbf16, #tpu.memory_space<vmem>>, vector<1x32x16xbf16>
    %166 = vector.shape_cast %165 : vector<1x32x16xbf16> to vector<32x16xbf16>
    %cst_165 = arith.constant dense<0.000000e+00> : vector<24x16xf32>
    %167 = tpu.matmul %164, %166, %cst_165 {dimension_numbers = #tpu.dot_dimension_numbers<[1], [0], [0], [1], [0, 0, 1, 1], [], []>} : vector<24x32xbf16>, vector<32x16xbf16>, vector<24x16xf32> -> vector<24x16xf32>
    %168 = arith.addf %163, %167 : vector<24x16xf32>
    %c0_166 = arith.constant 0 : index
    %c0_167 = arith.constant 0 : index
    %169 = vector.load %arg7[%c0_166, %c0_167] : memref<1x16xf32, #tpu.memory_space<vmem>>, vector<1x16xf32>
    %170 = vector.broadcast %169 : vector<1x16xf32> to vector<24x16xf32>
    %171 = arith.addf %168, %170 : vector<24x16xf32>
    %cst_168 = arith.constant 0.000000e+00 : f32
    %172 = vector.broadcast %cst_168 : f32 to vector<24x16xf32>
    %173 = arith.maximumf %171, %172 : vector<24x16xf32>
    %174 = arith.truncf %173 : vector<24x16xf32> to vector<24x16xbf16>
    %c0_169 = arith.constant 0 : index
    %c0_170 = arith.constant 0 : index
    %c0_171 = arith.constant 0 : index
    %175 = vector.load %arg12[%c0_169, %c0_170, %c0_171] : memref<4x112x24xbf16, #tpu.memory_space<vmem>>, vector<1x112x24xbf16>
    %176 = vector.shape_cast %175 : vector<1x112x24xbf16> to vector<112x24xbf16>
    %cst_172 = arith.constant dense<0.000000e+00> : vector<112x16xf32>
    %177 = tpu.matmul %176, %174, %cst_172 {dimension_numbers = #tpu.dot_dimension_numbers<[1], [0], [0], [1], [0, 0, 1, 1], [], []>} : vector<112x24xbf16>, vector<24x16xbf16>, vector<112x16xf32> -> vector<112x16xf32>
    %178 = arith.addf %147, %177 : vector<112x16xf32>
    %cst_173 = arith.constant 0.000000e+00 : f32
    %179 = vector.broadcast %cst_173 : f32 to vector<24x16xf32>
    %c1_174 = arith.constant 1 : index
    %c0_175 = arith.constant 0 : index
    %180 = vector.load %arg16[%c1_174, %c0_175] : memref<48x32xbf16, #tpu.memory_space<vmem>>, vector<24x32xbf16>
    %c4_176 = arith.constant 4 : index
    %c0_177 = arith.constant 0 : index
    %c0_178 = arith.constant 0 : index
    %181 = vector.load %arg6[%c4_176, %c0_177, %c0_178] : memref<16x32x16xbf16, #tpu.memory_space<vmem>>, vector<1x32x16xbf16>
    %182 = vector.shape_cast %181 : vector<1x32x16xbf16> to vector<32x16xbf16>
    %cst_179 = arith.constant dense<0.000000e+00> : vector<24x16xf32>
    %183 = tpu.matmul %180, %182, %cst_179 {dimension_numbers = #tpu.dot_dimension_numbers<[1], [0], [0], [1], [0, 0, 1, 1], [], []>} : vector<24x32xbf16>, vector<32x16xbf16>, vector<24x16xf32> -> vector<24x16xf32>
    %184 = arith.addf %179, %183 : vector<24x16xf32>
    %c2_180 = arith.constant 2 : index
    %c0_181 = arith.constant 0 : index
    %185 = vector.load %arg16[%c2_180, %c0_181] : memref<48x32xbf16, #tpu.memory_space<vmem>>, vector<24x32xbf16>
    %c5_182 = arith.constant 5 : index
    %c0_183 = arith.constant 0 : index
    %c0_184 = arith.constant 0 : index
    %186 = vector.load %arg6[%c5_182, %c0_183, %c0_184] : memref<16x32x16xbf16, #tpu.memory_space<vmem>>, vector<1x32x16xbf16>
    %187 = vector.shape_cast %186 : vector<1x32x16xbf16> to vector<32x16xbf16>
    %cst_185 = arith.constant dense<0.000000e+00> : vector<24x16xf32>
    %188 = tpu.matmul %185, %187, %cst_185 {dimension_numbers = #tpu.dot_dimension_numbers<[1], [0], [0], [1], [0, 0, 1, 1], [], []>} : vector<24x32xbf16>, vector<32x16xbf16>, vector<24x16xf32> -> vector<24x16xf32>
    %189 = arith.addf %184, %188 : vector<24x16xf32>
    %c7_186 = arith.constant 7 : index
    %c0_187 = arith.constant 0 : index
    %190 = vector.load %arg16[%c7_186, %c0_187] : memref<48x32xbf16, #tpu.memory_space<vmem>>, vector<24x32xbf16>
    %c6_188 = arith.constant 6 : index
    %c0_189 = arith.constant 0 : index
    %c0_190 = arith.constant 0 : index
    %191 = vector.load %arg6[%c6_188, %c0_189, %c0_190] : memref<16x32x16xbf16, #tpu.memory_space<vmem>>, vector<1x32x16xbf16>
    %192 = vector.shape_cast %191 : vector<1x32x16xbf16> to vector<32x16xbf16>
    %cst_191 = arith.constant dense<0.000000e+00> : vector<24x16xf32>
    %193 = tpu.matmul %190, %192, %cst_191 {dimension_numbers = #tpu.dot_dimension_numbers<[1], [0], [0], [1], [0, 0, 1, 1], [], []>} : vector<24x32xbf16>, vector<32x16xbf16>, vector<24x16xf32> -> vector<24x16xf32>
    %194 = arith.addf %189, %193 : vector<24x16xf32>
    %c8_192 = arith.constant 8 : index
    %c0_193 = arith.constant 0 : index
    %195 = vector.load %arg16[%c8_192, %c0_193] : memref<48x32xbf16, #tpu.memory_space<vmem>>, vector<24x32xbf16>
    %c7_194 = arith.constant 7 : index
    %c0_195 = arith.constant 0 : index
    %c0_196 = arith.constant 0 : index
    %196 = vector.load %arg6[%c7_194, %c0_195, %c0_196] : memref<16x32x16xbf16, #tpu.memory_space<vmem>>, vector<1x32x16xbf16>
    %197 = vector.shape_cast %196 : vector<1x32x16xbf16> to vector<32x16xbf16>
    %cst_197 = arith.constant dense<0.000000e+00> : vector<24x16xf32>
    %198 = tpu.matmul %195, %197, %cst_197 {dimension_numbers = #tpu.dot_dimension_numbers<[1], [0], [0], [1], [0, 0, 1, 1], [], []>} : vector<24x32xbf16>, vector<32x16xbf16>, vector<24x16xf32> -> vector<24x16xf32>
    %199 = arith.addf %194, %198 : vector<24x16xf32>
    %c0_198 = arith.constant 0 : index
    %c0_199 = arith.constant 0 : index
    %200 = vector.load %arg7[%c0_198, %c0_199] : memref<1x16xf32, #tpu.memory_space<vmem>>, vector<1x16xf32>
    %201 = vector.broadcast %200 : vector<1x16xf32> to vector<24x16xf32>
    %202 = arith.addf %199, %201 : vector<24x16xf32>
    %cst_200 = arith.constant 0.000000e+00 : f32
    %203 = vector.broadcast %cst_200 : f32 to vector<24x16xf32>
    %204 = arith.maximumf %202, %203 : vector<24x16xf32>
    %205 = arith.truncf %204 : vector<24x16xf32> to vector<24x16xbf16>
    %c1_201 = arith.constant 1 : index
    %c0_202 = arith.constant 0 : index
    %c0_203 = arith.constant 0 : index
    %206 = vector.load %arg12[%c1_201, %c0_202, %c0_203] : memref<4x112x24xbf16, #tpu.memory_space<vmem>>, vector<1x112x24xbf16>
    %207 = vector.shape_cast %206 : vector<1x112x24xbf16> to vector<112x24xbf16>
    %cst_204 = arith.constant dense<0.000000e+00> : vector<112x16xf32>
    %208 = tpu.matmul %207, %205, %cst_204 {dimension_numbers = #tpu.dot_dimension_numbers<[1], [0], [0], [1], [0, 0, 1, 1], [], []>} : vector<112x24xbf16>, vector<24x16xbf16>, vector<112x16xf32> -> vector<112x16xf32>
    %209 = arith.addf %178, %208 : vector<112x16xf32>
    %cst_205 = arith.constant 0.000000e+00 : f32
    %210 = vector.broadcast %cst_205 : f32 to vector<24x16xf32>
    %c6_206 = arith.constant 6 : index
    %c0_207 = arith.constant 0 : index
    %211 = vector.load %arg16[%c6_206, %c0_207] : memref<48x32xbf16, #tpu.memory_space<vmem>>, vector<24x32xbf16>
    %c8_208 = arith.constant 8 : index
    %c0_209 = arith.constant 0 : index
    %c0_210 = arith.constant 0 : index
    %212 = vector.load %arg6[%c8_208, %c0_209, %c0_210] : memref<16x32x16xbf16, #tpu.memory_space<vmem>>, vector<1x32x16xbf16>
    %213 = vector.shape_cast %212 : vector<1x32x16xbf16> to vector<32x16xbf16>
    %cst_211 = arith.constant dense<0.000000e+00> : vector<24x16xf32>
    %214 = tpu.matmul %211, %213, %cst_211 {dimension_numbers = #tpu.dot_dimension_numbers<[1], [0], [0], [1], [0, 0, 1, 1], [], []>} : vector<24x32xbf16>, vector<32x16xbf16>, vector<24x16xf32> -> vector<24x16xf32>
    %215 = arith.addf %210, %214 : vector<24x16xf32>
    %c7_212 = arith.constant 7 : index
    %c0_213 = arith.constant 0 : index
    %216 = vector.load %arg16[%c7_212, %c0_213] : memref<48x32xbf16, #tpu.memory_space<vmem>>, vector<24x32xbf16>
    %c9 = arith.constant 9 : index
    %c0_214 = arith.constant 0 : index
    %c0_215 = arith.constant 0 : index
    %217 = vector.load %arg6[%c9, %c0_214, %c0_215] : memref<16x32x16xbf16, #tpu.memory_space<vmem>>, vector<1x32x16xbf16>
    %218 = vector.shape_cast %217 : vector<1x32x16xbf16> to vector<32x16xbf16>
    %cst_216 = arith.constant dense<0.000000e+00> : vector<24x16xf32>
    %219 = tpu.matmul %216, %218, %cst_216 {dimension_numbers = #tpu.dot_dimension_numbers<[1], [0], [0], [1], [0, 0, 1, 1], [], []>} : vector<24x32xbf16>, vector<32x16xbf16>, vector<24x16xf32> -> vector<24x16xf32>
    %220 = arith.addf %215, %219 : vector<24x16xf32>
    %c12_217 = arith.constant 12 : index
    %c0_218 = arith.constant 0 : index
    %221 = vector.load %arg16[%c12_217, %c0_218] : memref<48x32xbf16, #tpu.memory_space<vmem>>, vector<24x32xbf16>
    %c10_219 = arith.constant 10 : index
    %c0_220 = arith.constant 0 : index
    %c0_221 = arith.constant 0 : index
    %222 = vector.load %arg6[%c10_219, %c0_220, %c0_221] : memref<16x32x16xbf16, #tpu.memory_space<vmem>>, vector<1x32x16xbf16>
    %223 = vector.shape_cast %222 : vector<1x32x16xbf16> to vector<32x16xbf16>
    %cst_222 = arith.constant dense<0.000000e+00> : vector<24x16xf32>
    %224 = tpu.matmul %221, %223, %cst_222 {dimension_numbers = #tpu.dot_dimension_numbers<[1], [0], [0], [1], [0, 0, 1, 1], [], []>} : vector<24x32xbf16>, vector<32x16xbf16>, vector<24x16xf32> -> vector<24x16xf32>
    %225 = arith.addf %220, %224 : vector<24x16xf32>
    %c13 = arith.constant 13 : index
    %c0_223 = arith.constant 0 : index
    %226 = vector.load %arg16[%c13, %c0_223] : memref<48x32xbf16, #tpu.memory_space<vmem>>, vector<24x32xbf16>
    %c11_224 = arith.constant 11 : index
    %c0_225 = arith.constant 0 : index
    %c0_226 = arith.constant 0 : index
    %227 = vector.load %arg6[%c11_224, %c0_225, %c0_226] : memref<16x32x16xbf16, #tpu.memory_space<vmem>>, vector<1x32x16xbf16>
    %228 = vector.shape_cast %227 : vector<1x32x16xbf16> to vector<32x16xbf16>
    %cst_227 = arith.constant dense<0.000000e+00> : vector<24x16xf32>
    %229 = tpu.matmul %226, %228, %cst_227 {dimension_numbers = #tpu.dot_dimension_numbers<[1], [0], [0], [1], [0, 0, 1, 1], [], []>} : vector<24x32xbf16>, vector<32x16xbf16>, vector<24x16xf32> -> vector<24x16xf32>
    %230 = arith.addf %225, %229 : vector<24x16xf32>
    %c0_228 = arith.constant 0 : index
    %c0_229 = arith.constant 0 : index
    %231 = vector.load %arg7[%c0_228, %c0_229] : memref<1x16xf32, #tpu.memory_space<vmem>>, vector<1x16xf32>
    %232 = vector.broadcast %231 : vector<1x16xf32> to vector<24x16xf32>
    %233 = arith.addf %230, %232 : vector<24x16xf32>
    %cst_230 = arith.constant 0.000000e+00 : f32
    %234 = vector.broadcast %cst_230 : f32 to vector<24x16xf32>
    %235 = arith.maximumf %233, %234 : vector<24x16xf32>
    %236 = arith.truncf %235 : vector<24x16xf32> to vector<24x16xbf16>
    %c2_231 = arith.constant 2 : index
    %c0_232 = arith.constant 0 : index
    %c0_233 = arith.constant 0 : index
    %237 = vector.load %arg12[%c2_231, %c0_232, %c0_233] : memref<4x112x24xbf16, #tpu.memory_space<vmem>>, vector<1x112x24xbf16>
    %238 = vector.shape_cast %237 : vector<1x112x24xbf16> to vector<112x24xbf16>
    %cst_234 = arith.constant dense<0.000000e+00> : vector<112x16xf32>
    %239 = tpu.matmul %238, %236, %cst_234 {dimension_numbers = #tpu.dot_dimension_numbers<[1], [0], [0], [1], [0, 0, 1, 1], [], []>} : vector<112x24xbf16>, vector<24x16xbf16>, vector<112x16xf32> -> vector<112x16xf32>
    %240 = arith.addf %209, %239 : vector<112x16xf32>
    %cst_235 = arith.constant 0.000000e+00 : f32
    %241 = vector.broadcast %cst_235 : f32 to vector<24x16xf32>
    %c7_236 = arith.constant 7 : index
    %c0_237 = arith.constant 0 : index
    %242 = vector.load %arg16[%c7_236, %c0_237] : memref<48x32xbf16, #tpu.memory_space<vmem>>, vector<24x32xbf16>
    %c12_238 = arith.constant 12 : index
    %c0_239 = arith.constant 0 : index
    %c0_240 = arith.constant 0 : index
    %243 = vector.load %arg6[%c12_238, %c0_239, %c0_240] : memref<16x32x16xbf16, #tpu.memory_space<vmem>>, vector<1x32x16xbf16>
    %244 = vector.shape_cast %243 : vector<1x32x16xbf16> to vector<32x16xbf16>
    %cst_241 = arith.constant dense<0.000000e+00> : vector<24x16xf32>
    %245 = tpu.matmul %242, %244, %cst_241 {dimension_numbers = #tpu.dot_dimension_numbers<[1], [0], [0], [1], [0, 0, 1, 1], [], []>} : vector<24x32xbf16>, vector<32x16xbf16>, vector<24x16xf32> -> vector<24x16xf32>
    %246 = arith.addf %241, %245 : vector<24x16xf32>
    %c8_242 = arith.constant 8 : index
    %c0_243 = arith.constant 0 : index
    %247 = vector.load %arg16[%c8_242, %c0_243] : memref<48x32xbf16, #tpu.memory_space<vmem>>, vector<24x32xbf16>
    %c13_244 = arith.constant 13 : index
    %c0_245 = arith.constant 0 : index
    %c0_246 = arith.constant 0 : index
    %248 = vector.load %arg6[%c13_244, %c0_245, %c0_246] : memref<16x32x16xbf16, #tpu.memory_space<vmem>>, vector<1x32x16xbf16>
    %249 = vector.shape_cast %248 : vector<1x32x16xbf16> to vector<32x16xbf16>
    %cst_247 = arith.constant dense<0.000000e+00> : vector<24x16xf32>
    %250 = tpu.matmul %247, %249, %cst_247 {dimension_numbers = #tpu.dot_dimension_numbers<[1], [0], [0], [1], [0, 0, 1, 1], [], []>} : vector<24x32xbf16>, vector<32x16xbf16>, vector<24x16xf32> -> vector<24x16xf32>
    %251 = arith.addf %246, %250 : vector<24x16xf32>
    %c13_248 = arith.constant 13 : index
    %c0_249 = arith.constant 0 : index
    %252 = vector.load %arg16[%c13_248, %c0_249] : memref<48x32xbf16, #tpu.memory_space<vmem>>, vector<24x32xbf16>
    %c14 = arith.constant 14 : index
    %c0_250 = arith.constant 0 : index
    %c0_251 = arith.constant 0 : index
    %253 = vector.load %arg6[%c14, %c0_250, %c0_251] : memref<16x32x16xbf16, #tpu.memory_space<vmem>>, vector<1x32x16xbf16>
    %254 = vector.shape_cast %253 : vector<1x32x16xbf16> to vector<32x16xbf16>
    %cst_252 = arith.constant dense<0.000000e+00> : vector<24x16xf32>
    %255 = tpu.matmul %252, %254, %cst_252 {dimension_numbers = #tpu.dot_dimension_numbers<[1], [0], [0], [1], [0, 0, 1, 1], [], []>} : vector<24x32xbf16>, vector<32x16xbf16>, vector<24x16xf32> -> vector<24x16xf32>
    %256 = arith.addf %251, %255 : vector<24x16xf32>
    %c14_253 = arith.constant 14 : index
    %c0_254 = arith.constant 0 : index
    %257 = vector.load %arg16[%c14_253, %c0_254] : memref<48x32xbf16, #tpu.memory_space<vmem>>, vector<24x32xbf16>
    %c15 = arith.constant 15 : index
    %c0_255 = arith.constant 0 : index
    %c0_256 = arith.constant 0 : index
    %258 = vector.load %arg6[%c15, %c0_255, %c0_256] : memref<16x32x16xbf16, #tpu.memory_space<vmem>>, vector<1x32x16xbf16>
    %259 = vector.shape_cast %258 : vector<1x32x16xbf16> to vector<32x16xbf16>
    %cst_257 = arith.constant dense<0.000000e+00> : vector<24x16xf32>
    %260 = tpu.matmul %257, %259, %cst_257 {dimension_numbers = #tpu.dot_dimension_numbers<[1], [0], [0], [1], [0, 0, 1, 1], [], []>} : vector<24x32xbf16>, vector<32x16xbf16>, vector<24x16xf32> -> vector<24x16xf32>
    %261 = arith.addf %256, %260 : vector<24x16xf32>
    %c0_258 = arith.constant 0 : index
    %c0_259 = arith.constant 0 : index
    %262 = vector.load %arg7[%c0_258, %c0_259] : memref<1x16xf32, #tpu.memory_space<vmem>>, vector<1x16xf32>
    %263 = vector.broadcast %262 : vector<1x16xf32> to vector<24x16xf32>
    %264 = arith.addf %261, %263 : vector<24x16xf32>
    %cst_260 = arith.constant 0.000000e+00 : f32
    %265 = vector.broadcast %cst_260 : f32 to vector<24x16xf32>
    %266 = arith.maximumf %264, %265 : vector<24x16xf32>
    %267 = arith.truncf %266 : vector<24x16xf32> to vector<24x16xbf16>
    %c3_261 = arith.constant 3 : index
    %c0_262 = arith.constant 0 : index
    %c0_263 = arith.constant 0 : index
    %268 = vector.load %arg12[%c3_261, %c0_262, %c0_263] : memref<4x112x24xbf16, #tpu.memory_space<vmem>>, vector<1x112x24xbf16>
    %269 = vector.shape_cast %268 : vector<1x112x24xbf16> to vector<112x24xbf16>
    %cst_264 = arith.constant dense<0.000000e+00> : vector<112x16xf32>
    %270 = tpu.matmul %269, %267, %cst_264 {dimension_numbers = #tpu.dot_dimension_numbers<[1], [0], [0], [1], [0, 0, 1, 1], [], []>} : vector<112x24xbf16>, vector<24x16xbf16>, vector<112x16xf32> -> vector<112x16xf32>
    %271 = arith.addf %240, %270 : vector<112x16xf32>
    %272 = arith.truncf %271 : vector<112x16xf32> to vector<112x16xbf16>
    %c0_265 = arith.constant 0 : index
    %c0_266 = arith.constant 0 : index
    %273 = vector.load %arg17[%c0_265, %c0_266] : memref<112x16xbf16, #tpu.memory_space<vmem>>, vector<112x16xbf16>
    tpu.vector_store %arg17[%c0_265, %c0_266], %272 {strides = array<i32>} : memref<112x16xbf16, #tpu.memory_space<vmem>>, vector<112x16xbf16>,
    %cst_267 = arith.constant 0.000000e+00 : f32
    %274 = vector.broadcast %cst_267 : f32 to vector<256x8xf32>
    %cst_268 = arith.constant 0.000000e+00 : f32
    %275 = vector.broadcast %cst_268 : f32 to vector<80x8xf32>
    %c0_269 = arith.constant 0 : index
    %c0_270 = arith.constant 0 : index
    %276 = vector.load %arg17[%c0_269, %c0_270] : memref<112x16xbf16, #tpu.memory_space<vmem>>, vector<80x16xbf16>
    %c0_271 = arith.constant 0 : index
    %c0_272 = arith.constant 0 : index
    %c0_273 = arith.constant 0 : index
    %277 = vector.load %arg8[%c0_271, %c0_272, %c0_273] : memref<16x16x8xbf16, #tpu.memory_space<vmem>>, vector<1x16x8xbf16>
    %278 = vector.shape_cast %277 : vector<1x16x8xbf16> to vector<16x8xbf16>
    %cst_274 = arith.constant dense<0.000000e+00> : vector<80x8xf32>
    %279 = tpu.matmul %276, %278, %cst_274 {dimension_numbers = #tpu.dot_dimension_numbers<[1], [0], [0], [1], [0, 0, 1, 1], [], []>} : vector<80x16xbf16>, vector<16x8xbf16>, vector<80x8xf32> -> vector<80x8xf32>
    %280 = arith.addf %275, %279 : vector<80x8xf32>
    %c1_275 = arith.constant 1 : index
    %c0_276 = arith.constant 0 : index
    %281 = vector.load %arg17[%c1_275, %c0_276] : memref<112x16xbf16, #tpu.memory_space<vmem>>, vector<80x16xbf16>
    %c1_277 = arith.constant 1 : index
    %c0_278 = arith.constant 0 : index
    %c0_279 = arith.constant 0 : index
    %282 = vector.load %arg8[%c1_277, %c0_278, %c0_279] : memref<16x16x8xbf16, #tpu.memory_space<vmem>>, vector<1x16x8xbf16>
    %283 = vector.shape_cast %282 : vector<1x16x8xbf16> to vector<16x8xbf16>
    %cst_280 = arith.constant dense<0.000000e+00> : vector<80x8xf32>
    %284 = tpu.matmul %281, %283, %cst_280 {dimension_numbers = #tpu.dot_dimension_numbers<[1], [0], [0], [1], [0, 0, 1, 1], [], []>} : vector<80x16xbf16>, vector<16x8xbf16>, vector<80x8xf32> -> vector<80x8xf32>
    %285 = arith.addf %280, %284 : vector<80x8xf32>
    %c10_281 = arith.constant 10 : index
    %c0_282 = arith.constant 0 : index
    %286 = vector.load %arg17[%c10_281, %c0_282] : memref<112x16xbf16, #tpu.memory_space<vmem>>, vector<80x16xbf16>
    %c2_283 = arith.constant 2 : index
    %c0_284 = arith.constant 0 : index
    %c0_285 = arith.constant 0 : index
    %287 = vector.load %arg8[%c2_283, %c0_284, %c0_285] : memref<16x16x8xbf16, #tpu.memory_space<vmem>>, vector<1x16x8xbf16>
    %288 = vector.shape_cast %287 : vector<1x16x8xbf16> to vector<16x8xbf16>
    %cst_286 = arith.constant dense<0.000000e+00> : vector<80x8xf32>
    %289 = tpu.matmul %286, %288, %cst_286 {dimension_numbers = #tpu.dot_dimension_numbers<[1], [0], [0], [1], [0, 0, 1, 1], [], []>} : vector<80x16xbf16>, vector<16x8xbf16>, vector<80x8xf32> -> vector<80x8xf32>
    %290 = arith.addf %285, %289 : vector<80x8xf32>
    %c11_287 = arith.constant 11 : index
    %c0_288 = arith.constant 0 : index
    %291 = vector.load %arg17[%c11_287, %c0_288] : memref<112x16xbf16, #tpu.memory_space<vmem>>, vector<80x16xbf16>
    %c3_289 = arith.constant 3 : index
    %c0_290 = arith.constant 0 : index
    %c0_291 = arith.constant 0 : index
    %292 = vector.load %arg8[%c3_289, %c0_290, %c0_291] : memref<16x16x8xbf16, #tpu.memory_space<vmem>>, vector<1x16x8xbf16>
    %293 = vector.shape_cast %292 : vector<1x16x8xbf16> to vector<16x8xbf16>
    %cst_292 = arith.constant dense<0.000000e+00> : vector<80x8xf32>
    %294 = tpu.matmul %291, %293, %cst_292 {dimension_numbers = #tpu.dot_dimension_numbers<[1], [0], [0], [1], [0, 0, 1, 1], [], []>} : vector<80x16xbf16>, vector<16x8xbf16>, vector<80x8xf32> -> vector<80x8xf32>
    %295 = arith.addf %290, %294 : vector<80x8xf32>
    %c0_293 = arith.constant 0 : index
    %c0_294 = arith.constant 0 : index
    %296 = vector.load %arg9[%c0_293, %c0_294] : memref<1x8xf32, #tpu.memory_space<vmem>>, vector<1x8xf32>
    %297 = vector.broadcast %296 : vector<1x8xf32> to vector<80x8xf32>
    %298 = arith.addf %295, %297 : vector<80x8xf32>
    %299 = arith.truncf %298 : vector<80x8xf32> to vector<80x8xbf16>
    %c0_295 = arith.constant 0 : index
    %c0_296 = arith.constant 0 : index
    %c0_297 = arith.constant 0 : index
    %300 = vector.load %arg13[%c0_295, %c0_296, %c0_297] : memref<4x256x80xbf16, #tpu.memory_space<vmem>>, vector<1x256x80xbf16>
    %301 = vector.shape_cast %300 : vector<1x256x80xbf16> to vector<256x80xbf16>
    %cst_298 = arith.constant dense<0.000000e+00> : vector<256x8xf32>
    %302 = tpu.matmul %301, %299, %cst_298 {dimension_numbers = #tpu.dot_dimension_numbers<[1], [0], [0], [1], [0, 0, 1, 1], [], []>} : vector<256x80xbf16>, vector<80x8xbf16>, vector<256x8xf32> -> vector<256x8xf32>
    %303 = arith.addf %274, %302 : vector<256x8xf32>
    %cst_299 = arith.constant 0.000000e+00 : f32
    %304 = vector.broadcast %cst_299 : f32 to vector<80x8xf32>
    %c1_300 = arith.constant 1 : index
    %c0_301 = arith.constant 0 : index
    %305 = vector.load %arg17[%c1_300, %c0_301] : memref<112x16xbf16, #tpu.memory_space<vmem>>, vector<80x16xbf16>
    %c4_302 = arith.constant 4 : index
    %c0_303 = arith.constant 0 : index
    %c0_304 = arith.constant 0 : index
    %306 = vector.load %arg8[%c4_302, %c0_303, %c0_304] : memref<16x16x8xbf16, #tpu.memory_space<vmem>>, vector<1x16x8xbf16>
    %307 = vector.shape_cast %306 : vector<1x16x8xbf16> to vector<16x8xbf16>
    %cst_305 = arith.constant dense<0.000000e+00> : vector<80x8xf32>
    %308 = tpu.matmul %305, %307, %cst_305 {dimension_numbers = #tpu.dot_dimension_numbers<[1], [0], [0], [1], [0, 0, 1, 1], [], []>} : vector<80x16xbf16>, vector<16x8xbf16>, vector<80x8xf32> -> vector<80x8xf32>
    %309 = arith.addf %304, %308 : vector<80x8xf32>
    %c2_306 = arith.constant 2 : index
    %c0_307 = arith.constant 0 : index
    %310 = vector.load %arg17[%c2_306, %c0_307] : memref<112x16xbf16, #tpu.memory_space<vmem>>, vector<80x16xbf16>
    %c5_308 = arith.constant 5 : index
    %c0_309 = arith.constant 0 : index
    %c0_310 = arith.constant 0 : index
    %311 = vector.load %arg8[%c5_308, %c0_309, %c0_310] : memref<16x16x8xbf16, #tpu.memory_space<vmem>>, vector<1x16x8xbf16>
    %312 = vector.shape_cast %311 : vector<1x16x8xbf16> to vector<16x8xbf16>
    %cst_311 = arith.constant dense<0.000000e+00> : vector<80x8xf32>
    %313 = tpu.matmul %310, %312, %cst_311 {dimension_numbers = #tpu.dot_dimension_numbers<[1], [0], [0], [1], [0, 0, 1, 1], [], []>} : vector<80x16xbf16>, vector<16x8xbf16>, vector<80x8xf32> -> vector<80x8xf32>
    %314 = arith.addf %309, %313 : vector<80x8xf32>
    %c11_312 = arith.constant 11 : index
    %c0_313 = arith.constant 0 : index
    %315 = vector.load %arg17[%c11_312, %c0_313] : memref<112x16xbf16, #tpu.memory_space<vmem>>, vector<80x16xbf16>
    %c6_314 = arith.constant 6 : index
    %c0_315 = arith.constant 0 : index
    %c0_316 = arith.constant 0 : index
    %316 = vector.load %arg8[%c6_314, %c0_315, %c0_316] : memref<16x16x8xbf16, #tpu.memory_space<vmem>>, vector<1x16x8xbf16>
    %317 = vector.shape_cast %316 : vector<1x16x8xbf16> to vector<16x8xbf16>
    %cst_317 = arith.constant dense<0.000000e+00> : vector<80x8xf32>
    %318 = tpu.matmul %315, %317, %cst_317 {dimension_numbers = #tpu.dot_dimension_numbers<[1], [0], [0], [1], [0, 0, 1, 1], [], []>} : vector<80x16xbf16>, vector<16x8xbf16>, vector<80x8xf32> -> vector<80x8xf32>
    %319 = arith.addf %314, %318 : vector<80x8xf32>
    %c12_318 = arith.constant 12 : index
    %c0_319 = arith.constant 0 : index
    %320 = vector.load %arg17[%c12_318, %c0_319] : memref<112x16xbf16, #tpu.memory_space<vmem>>, vector<80x16xbf16>
    %c7_320 = arith.constant 7 : index
    %c0_321 = arith.constant 0 : index
    %c0_322 = arith.constant 0 : index
    %321 = vector.load %arg8[%c7_320, %c0_321, %c0_322] : memref<16x16x8xbf16, #tpu.memory_space<vmem>>, vector<1x16x8xbf16>
    %322 = vector.shape_cast %321 : vector<1x16x8xbf16> to vector<16x8xbf16>
    %cst_323 = arith.constant dense<0.000000e+00> : vector<80x8xf32>
    %323 = tpu.matmul %320, %322, %cst_323 {dimension_numbers = #tpu.dot_dimension_numbers<[1], [0], [0], [1], [0, 0, 1, 1], [], []>} : vector<80x16xbf16>, vector<16x8xbf16>, vector<80x8xf32> -> vector<80x8xf32>
    %324 = arith.addf %319, %323 : vector<80x8xf32>
    %c0_324 = arith.constant 0 : index
    %c0_325 = arith.constant 0 : index
    %325 = vector.load %arg9[%c0_324, %c0_325] : memref<1x8xf32, #tpu.memory_space<vmem>>, vector<1x8xf32>
    %326 = vector.broadcast %325 : vector<1x8xf32> to vector<80x8xf32>
    %327 = arith.addf %324, %326 : vector<80x8xf32>
    %328 = arith.truncf %327 : vector<80x8xf32> to vector<80x8xbf16>
    %c1_326 = arith.constant 1 : index
    %c0_327 = arith.constant 0 : index
    %c0_328 = arith.constant 0 : index
    %329 = vector.load %arg13[%c1_326, %c0_327, %c0_328] : memref<4x256x80xbf16, #tpu.memory_space<vmem>>, vector<1x256x80xbf16>
    %330 = vector.shape_cast %329 : vector<1x256x80xbf16> to vector<256x80xbf16>
    %cst_329 = arith.constant dense<0.000000e+00> : vector<256x8xf32>
    %331 = tpu.matmul %330, %328, %cst_329 {dimension_numbers = #tpu.dot_dimension_numbers<[1], [0], [0], [1], [0, 0, 1, 1], [], []>} : vector<256x80xbf16>, vector<80x8xbf16>, vector<256x8xf32> -> vector<256x8xf32>
    %332 = arith.addf %303, %331 : vector<256x8xf32>
    %cst_330 = arith.constant 0.000000e+00 : f32
    %333 = vector.broadcast %cst_330 : f32 to vector<80x8xf32>
    %c10_331 = arith.constant 10 : index
    %c0_332 = arith.constant 0 : index
    %334 = vector.load %arg17[%c10_331, %c0_332] : memref<112x16xbf16, #tpu.memory_space<vmem>>, vector<80x16xbf16>
    %c8_333 = arith.constant 8 : index
    %c0_334 = arith.constant 0 : index
    %c0_335 = arith.constant 0 : index
    %335 = vector.load %arg8[%c8_333, %c0_334, %c0_335] : memref<16x16x8xbf16, #tpu.memory_space<vmem>>, vector<1x16x8xbf16>
    %336 = vector.shape_cast %335 : vector<1x16x8xbf16> to vector<16x8xbf16>
    %cst_336 = arith.constant dense<0.000000e+00> : vector<80x8xf32>
    %337 = tpu.matmul %334, %336, %cst_336 {dimension_numbers = #tpu.dot_dimension_numbers<[1], [0], [0], [1], [0, 0, 1, 1], [], []>} : vector<80x16xbf16>, vector<16x8xbf16>, vector<80x8xf32> -> vector<80x8xf32>
    %338 = arith.addf %333, %337 : vector<80x8xf32>
    %c11_337 = arith.constant 11 : index
    %c0_338 = arith.constant 0 : index
    %339 = vector.load %arg17[%c11_337, %c0_338] : memref<112x16xbf16, #tpu.memory_space<vmem>>, vector<80x16xbf16>
    %c9_339 = arith.constant 9 : index
    %c0_340 = arith.constant 0 : index
    %c0_341 = arith.constant 0 : index
    %340 = vector.load %arg8[%c9_339, %c0_340, %c0_341] : memref<16x16x8xbf16, #tpu.memory_space<vmem>>, vector<1x16x8xbf16>
    %341 = vector.shape_cast %340 : vector<1x16x8xbf16> to vector<16x8xbf16>
    %cst_342 = arith.constant dense<0.000000e+00> : vector<80x8xf32>
    %342 = tpu.matmul %339, %341, %cst_342 {dimension_numbers = #tpu.dot_dimension_numbers<[1], [0], [0], [1], [0, 0, 1, 1], [], []>} : vector<80x16xbf16>, vector<16x8xbf16>, vector<80x8xf32> -> vector<80x8xf32>
    %343 = arith.addf %338, %342 : vector<80x8xf32>
    %c20_343 = arith.constant 20 : index
    %c0_344 = arith.constant 0 : index
    %344 = vector.load %arg17[%c20_343, %c0_344] : memref<112x16xbf16, #tpu.memory_space<vmem>>, vector<80x16xbf16>
    %c10_345 = arith.constant 10 : index
    %c0_346 = arith.constant 0 : index
    %c0_347 = arith.constant 0 : index
    %345 = vector.load %arg8[%c10_345, %c0_346, %c0_347] : memref<16x16x8xbf16, #tpu.memory_space<vmem>>, vector<1x16x8xbf16>
    %346 = vector.shape_cast %345 : vector<1x16x8xbf16> to vector<16x8xbf16>
    %cst_348 = arith.constant dense<0.000000e+00> : vector<80x8xf32>
    %347 = tpu.matmul %344, %346, %cst_348 {dimension_numbers = #tpu.dot_dimension_numbers<[1], [0], [0], [1], [0, 0, 1, 1], [], []>} : vector<80x16xbf16>, vector<16x8xbf16>, vector<80x8xf32> -> vector<80x8xf32>
    %348 = arith.addf %343, %347 : vector<80x8xf32>
    %c21_349 = arith.constant 21 : index
    %c0_350 = arith.constant 0 : index
    %349 = vector.load %arg17[%c21_349, %c0_350] : memref<112x16xbf16, #tpu.memory_space<vmem>>, vector<80x16xbf16>
    %c11_351 = arith.constant 11 : index
    %c0_352 = arith.constant 0 : index
    %c0_353 = arith.constant 0 : index
    %350 = vector.load %arg8[%c11_351, %c0_352, %c0_353] : memref<16x16x8xbf16, #tpu.memory_space<vmem>>, vector<1x16x8xbf16>
    %351 = vector.shape_cast %350 : vector<1x16x8xbf16> to vector<16x8xbf16>
    %cst_354 = arith.constant dense<0.000000e+00> : vector<80x8xf32>
    %352 = tpu.matmul %349, %351, %cst_354 {dimension_numbers = #tpu.dot_dimension_numbers<[1], [0], [0], [1], [0, 0, 1, 1], [], []>} : vector<80x16xbf16>, vector<16x8xbf16>, vector<80x8xf32> -> vector<80x8xf32>
    %353 = arith.addf %348, %352 : vector<80x8xf32>
    %c0_355 = arith.constant 0 : index
    %c0_356 = arith.constant 0 : index
    %354 = vector.load %arg9[%c0_355, %c0_356] : memref<1x8xf32, #tpu.memory_space<vmem>>, vector<1x8xf32>
    %355 = vector.broadcast %354 : vector<1x8xf32> to vector<80x8xf32>
    %356 = arith.addf %353, %355 : vector<80x8xf32>
    %357 = arith.truncf %356 : vector<80x8xf32> to vector<80x8xbf16>
    %c2_357 = arith.constant 2 : index
    %c0_358 = arith.constant 0 : index
    %c0_359 = arith.constant 0 : index
    %358 = vector.load %arg13[%c2_357, %c0_358, %c0_359] : memref<4x256x80xbf16, #tpu.memory_space<vmem>>, vector<1x256x80xbf16>
    %359 = vector.shape_cast %358 : vector<1x256x80xbf16> to vector<256x80xbf16>
    %cst_360 = arith.constant dense<0.000000e+00> : vector<256x8xf32>
    %360 = tpu.matmul %359, %357, %cst_360 {dimension_numbers = #tpu.dot_dimension_numbers<[1], [0], [0], [1], [0, 0, 1, 1], [], []>} : vector<256x80xbf16>, vector<80x8xbf16>, vector<256x8xf32> -> vector<256x8xf32>
    %361 = arith.addf %332, %360 : vector<256x8xf32>
    %cst_361 = arith.constant 0.000000e+00 : f32
    %362 = vector.broadcast %cst_361 : f32 to vector<80x8xf32>
    %c11_362 = arith.constant 11 : index
    %c0_363 = arith.constant 0 : index
    %363 = vector.load %arg17[%c11_362, %c0_363] : memref<112x16xbf16, #tpu.memory_space<vmem>>, vector<80x16xbf16>
    %c12_364 = arith.constant 12 : index
    %c0_365 = arith.constant 0 : index
    %c0_366 = arith.constant 0 : index
    %364 = vector.load %arg8[%c12_364, %c0_365, %c0_366] : memref<16x16x8xbf16, #tpu.memory_space<vmem>>, vector<1x16x8xbf16>
    %365 = vector.shape_cast %364 : vector<1x16x8xbf16> to vector<16x8xbf16>
    %cst_367 = arith.constant dense<0.000000e+00> : vector<80x8xf32>
    %366 = tpu.matmul %363, %365, %cst_367 {dimension_numbers = #tpu.dot_dimension_numbers<[1], [0], [0], [1], [0, 0, 1, 1], [], []>} : vector<80x16xbf16>, vector<16x8xbf16>, vector<80x8xf32> -> vector<80x8xf32>
    %367 = arith.addf %362, %366 : vector<80x8xf32>
    %c12_368 = arith.constant 12 : index
    %c0_369 = arith.constant 0 : index
    %368 = vector.load %arg17[%c12_368, %c0_369] : memref<112x16xbf16, #tpu.memory_space<vmem>>, vector<80x16xbf16>
    %c13_370 = arith.constant 13 : index
    %c0_371 = arith.constant 0 : index
    %c0_372 = arith.constant 0 : index
    %369 = vector.load %arg8[%c13_370, %c0_371, %c0_372] : memref<16x16x8xbf16, #tpu.memory_space<vmem>>, vector<1x16x8xbf16>
    %370 = vector.shape_cast %369 : vector<1x16x8xbf16> to vector<16x8xbf16>
    %cst_373 = arith.constant dense<0.000000e+00> : vector<80x8xf32>
    %371 = tpu.matmul %368, %370, %cst_373 {dimension_numbers = #tpu.dot_dimension_numbers<[1], [0], [0], [1], [0, 0, 1, 1], [], []>} : vector<80x16xbf16>, vector<16x8xbf16>, vector<80x8xf32> -> vector<80x8xf32>
    %372 = arith.addf %367, %371 : vector<80x8xf32>
    %c21_374 = arith.constant 21 : index
    %c0_375 = arith.constant 0 : index
    %373 = vector.load %arg17[%c21_374, %c0_375] : memref<112x16xbf16, #tpu.memory_space<vmem>>, vector<80x16xbf16>
    %c14_376 = arith.constant 14 : index
    %c0_377 = arith.constant 0 : index
    %c0_378 = arith.constant 0 : index
    %374 = vector.load %arg8[%c14_376, %c0_377, %c0_378] : memref<16x16x8xbf16, #tpu.memory_space<vmem>>, vector<1x16x8xbf16>
    %375 = vector.shape_cast %374 : vector<1x16x8xbf16> to vector<16x8xbf16>
    %cst_379 = arith.constant dense<0.000000e+00> : vector<80x8xf32>
    %376 = tpu.matmul %373, %375, %cst_379 {dimension_numbers = #tpu.dot_dimension_numbers<[1], [0], [0], [1], [0, 0, 1, 1], [], []>} : vector<80x16xbf16>, vector<16x8xbf16>, vector<80x8xf32> -> vector<80x8xf32>
    %377 = arith.addf %372, %376 : vector<80x8xf32>
    %c22_380 = arith.constant 22 : index
    %c0_381 = arith.constant 0 : index
    %378 = vector.load %arg17[%c22_380, %c0_381] : memref<112x16xbf16, #tpu.memory_space<vmem>>, vector<80x16xbf16>
    %c15_382 = arith.constant 15 : index
    %c0_383 = arith.constant 0 : index
    %c0_384 = arith.constant 0 : index
    %379 = vector.load %arg8[%c15_382, %c0_383, %c0_384] : memref<16x16x8xbf16, #tpu.memory_space<vmem>>, vector<1x16x8xbf16>
    %380 = vector.shape_cast %379 : vector<1x16x8xbf16> to vector<16x8xbf16>
    %cst_385 = arith.constant dense<0.000000e+00> : vector<80x8xf32>
    %381 = tpu.matmul %378, %380, %cst_385 {dimension_numbers = #tpu.dot_dimension_numbers<[1], [0], [0], [1], [0, 0, 1, 1], [], []>} : vector<80x16xbf16>, vector<16x8xbf16>, vector<80x8xf32> -> vector<80x8xf32>
    %382 = arith.addf %377, %381 : vector<80x8xf32>
    %c0_386 = arith.constant 0 : index
    %c0_387 = arith.constant 0 : index
    %383 = vector.load %arg9[%c0_386, %c0_387] : memref<1x8xf32, #tpu.memory_space<vmem>>, vector<1x8xf32>
    %384 = vector.broadcast %383 : vector<1x8xf32> to vector<80x8xf32>
    %385 = arith.addf %382, %384 : vector<80x8xf32>
    %386 = arith.truncf %385 : vector<80x8xf32> to vector<80x8xbf16>
    %c3_388 = arith.constant 3 : index
    %c0_389 = arith.constant 0 : index
    %c0_390 = arith.constant 0 : index
    %387 = vector.load %arg13[%c3_388, %c0_389, %c0_390] : memref<4x256x80xbf16, #tpu.memory_space<vmem>>, vector<1x256x80xbf16>
    %388 = vector.shape_cast %387 : vector<1x256x80xbf16> to vector<256x80xbf16>
    %cst_391 = arith.constant dense<0.000000e+00> : vector<256x8xf32>
    %389 = tpu.matmul %388, %386, %cst_391 {dimension_numbers = #tpu.dot_dimension_numbers<[1], [0], [0], [1], [0, 0, 1, 1], [], []>} : vector<256x80xbf16>, vector<80x8xbf16>, vector<256x8xf32> -> vector<256x8xf32>
    %390 = arith.addf %361, %389 : vector<256x8xf32>
    %391 = arith.truncf %390 : vector<256x8xf32> to vector<256x8xbf16>
    %c0_392 = arith.constant 0 : index
    %c0_393 = arith.constant 0 : index
    %c0_394 = arith.constant 0 : index
    %392 = vector.load %arg14[%c0_392, %c0_393, %c0_394] : memref<1x256x8xbf16, #tpu.memory_space<vmem>>, vector<1x256x8xbf16>
    %393 = vector.shape_cast %392 : vector<1x256x8xbf16> to vector<256x8xbf16>
    %394 = vector.shape_cast %391 : vector<256x8xbf16> to vector<1x256x8xbf16>
    tpu.vector_store %arg14[%c0_392, %c0_393, %c0_394], %394 {strides = array<i32>} : memref<1x256x8xbf16, #tpu.memory_space<vmem>>, vector<1x256x8xbf16>,
    return
  }
  func.func @transform_0(%arg0: i32) -> (i32, i32, i32) {
    %c0_i32 = arith.constant 0 : i32
    %c0_i32_0 = arith.constant 0 : i32
    %c0_i32_1 = arith.constant 0 : i32
    return %arg0, %c0_i32, %c0_i32_0 : i32, i32, i32
  }
  func.func @transform_1(%arg0: i32) -> (i32, i32, i32) {
    %c0_i32 = arith.constant 0 : i32
    %c0_i32_0 = arith.constant 0 : i32
    %c0_i32_1 = arith.constant 0 : i32
    %c0_i32_2 = arith.constant 0 : i32
    return %c0_i32, %c0_i32_0, %c0_i32_1 : i32, i32, i32
  }
  func.func @transform_2(%arg0: i32) -> (i32, i32) {
    %c0_i32 = arith.constant 0 : i32
    %c0_i32_0 = arith.constant 0 : i32
    %c0_i32_1 = arith.constant 0 : i32
    return %c0_i32, %c0_i32_0 : i32, i32
  }
  func.func @transform_3(%arg0: i32) -> (i32, i32, i32) {
    %c0_i32 = arith.constant 0 : i32
    %c0_i32_0 = arith.constant 0 : i32
    %c0_i32_1 = arith.constant 0 : i32
    %c0_i32_2 = arith.constant 0 : i32
    return %c0_i32, %c0_i32_0, %c0_i32_1 : i32, i32, i32
  }
  func.func @transform_4(%arg0: i32) -> (i32, i32) {
    %c0_i32 = arith.constant 0 : i32
    %c0_i32_0 = arith.constant 0 : i32
    %c0_i32_1 = arith.constant 0 : i32
    return %c0_i32, %c0_i32_0 : i32, i32
  }
  func.func @transform_5(%arg0: i32) -> (i32, i32, i32) {
    %c0_i32 = arith.constant 0 : i32
    %c0_i32_0 = arith.constant 0 : i32
    %c0_i32_1 = arith.constant 0 : i32
    %c0_i32_2 = arith.constant 0 : i32
    return %c0_i32, %c0_i32_0, %c0_i32_1 : i32, i32, i32
  }
  func.func @transform_6(%arg0: i32) -> (i32, i32) {
    %c0_i32 = arith.constant 0 : i32
    %c0_i32_0 = arith.constant 0 : i32
    %c0_i32_1 = arith.constant 0 : i32
    return %c0_i32, %c0_i32_0 : i32, i32
  }
  func.func @transform_7(%arg0: i32) -> (i32, i32, i32) {
    %c0_i32 = arith.constant 0 : i32
    %c0_i32_0 = arith.constant 0 : i32
    %c0_i32_1 = arith.constant 0 : i32
    %c0_i32_2 = arith.constant 0 : i32
    return %c0_i32, %c0_i32_0, %c0_i32_1 : i32, i32, i32
  }
  func.func @transform_8(%arg0: i32) -> (i32, i32) {
    %c0_i32 = arith.constant 0 : i32
    %c0_i32_0 = arith.constant 0 : i32
    %c0_i32_1 = arith.constant 0 : i32
    return %c0_i32, %c0_i32_0 : i32, i32
  }
  func.func @transform_9(%arg0: i32) -> (i32, i32, i32) {
    %c0_i32 = arith.constant 0 : i32
    %c0_i32_0 = arith.constant 0 : i32
    %c0_i32_1 = arith.constant 0 : i32
    %c0_i32_2 = arith.constant 0 : i32
    return %c0_i32, %c0_i32_0, %c0_i32_1 : i32, i32, i32
  }
  func.func @transform_10(%arg0: i32) -> (i32, i32, i32) {
    %c0_i32 = arith.constant 0 : i32
    %c0_i32_0 = arith.constant 0 : i32
    %c0_i32_1 = arith.constant 0 : i32
    %c0_i32_2 = arith.constant 0 : i32
    return %c0_i32, %c0_i32_0, %c0_i32_1 : i32, i32, i32
  }
  func.func @transform_11(%arg0: i32) -> (i32, i32, i32) {
    %c0_i32 = arith.constant 0 : i32
    %c0_i32_0 = arith.constant 0 : i32
    %c0_i32_1 = arith.constant 0 : i32
    %c0_i32_2 = arith.constant 0 : i32
    return %c0_i32, %c0_i32_0, %c0_i32_1 : i32, i32, i32
  }
  func.func @transform_12(%arg0: i32) -> (i32, i32, i32) {
    %c0_i32 = arith.constant 0 : i32
    %c0_i32_0 = arith.constant 0 : i32
    %c0_i32_1 = arith.constant 0 : i32
    %c0_i32_2 = arith.constant 0 : i32
    return %c0_i32, %c0_i32_0, %c0_i32_1 : i32, i32, i32
  }
  func.func @transform_13(%arg0: i32) -> (i32, i32, i32) {
    %c0_i32 = arith.constant 0 : i32
    %c0_i32_0 = arith.constant 0 : i32
    %c0_i32_1 = arith.constant 0 : i32
    return %arg0, %c0_i32, %c0_i32_0 : i32, i32, i32
  }
}

</mosaic_0001>

<llo_original>
// kernel: conv_example_forward.1
$region0: #{conv_example_forward.1}
  #allocation0 [shape = 'u32[]', space=smem, size = 0x4, offset = 0x4, fixed_abs, tag = 'smem constant byte address 0x4 - core index']
  #allocation1 [shape = 'u32[72,128]{1,0:T(1,128)}', space=vmem, size = 0x9000, scoped, tag = 'internal scratch']
  #allocation2 [shape = 'bf16[112,16]{1,0:T(8,128)(2,1)}', space=vmem, size = 0x7000, scoped, tag = 'scratch operand']
  #allocation3 [shape = 'bf16[48,32]{1,0:T(8,128)(2,1)}', space=vmem, size = 0x3000, scoped, tag = 'scratch operand']
  #allocation4 [shape = 'bf16[112,16]{1,0:T(8,128)(2,1)}', space=vmem, size = 0x7000, scoped, tag = 'scratch operand']
  %s0 = inlined_call_operand.vmem [shape: bf16[2,336,8], index: 0, kind: input, shape index: {}]
  %s1 = inlined_call_operand.vmem [shape: bf16[9,8,16], index: 1, kind: input, shape index: {}]
  %s2 = inlined_call_operand.vmem [shape: f32[1,16], index: 2, kind: input, shape index: {}]
  %s3 = inlined_call_operand.vmem [shape: bf16[9,16,32], index: 3, kind: input, shape index: {}]
  %s4 = inlined_call_operand.vmem [shape: f32[1,32], index: 4, kind: input, shape index: {}]
  %s5 = inlined_call_operand.vmem [shape: bf16[16,32,16], index: 5, kind: input, shape index: {}]
  %s6 = inlined_call_operand.vmem [shape: f32[1,16], index: 6, kind: input, shape index: {}]
  %s7 = inlined_call_operand.vmem [shape: bf16[16,16,8], index: 7, kind: input, shape index: {}]
  %s8 = inlined_call_operand.vmem [shape: f32[1,8], index: 8, kind: input, shape index: {}]
  %s9 = inlined_call_operand.vmem [shape: bf16[4,112,288], index: 9, kind: input, shape index: {}]
  %s10 = inlined_call_operand.vmem [shape: bf16[4,48,80], index: 10, kind: input, shape index: {}]
  %s11 = inlined_call_operand.vmem [shape: bf16[4,112,24], index: 11, kind: input, shape index: {}]
  %s12 = inlined_call_operand.vmem [shape: bf16[4,256,80], index: 12, kind: input, shape index: {}]
  %s13 = inlined_call_operand.vmem [shape: bf16[2,256,8], index: 13, kind: output, shape index: {}]
  %s14 = sld [smem:[#allocation0]]
  $region85: #{conv_example_forward.1} parent=0
    _
  %s16 = ssub.s32 1, %s14
  %s17 = scalar_select 0, %s16, %s14
  loop: start=0, step=1, limit=4
  $region2: #{conv_example_forward.1} parent=0 // loop_pre_header
    _
  $region3: #{conv_example_forward.1} parent=0 // loop_header
    %s19 = sphi 0, %s23
    %p20 = scmp.ge.s32.totalorder %s19, 4
    %s29 = sphi 0, %s31
    %s32 = sphi 0, %s29
    %s33 = sphi 0, %s32
    %s49 = sphi 0, %s33
    %s53 = sphi 0, %s53
    %s55 = sphi 0, %s53
    %s56 = sphi 0, %s55
    %s70 = sphi 0, %s56
    %s74 = sphi 0, %s74
    %s76 = sphi 0, %s74
    %s77 = sphi 0, %s76
    %s91 = sphi 0, %s77
    %s95 = sphi 0, %s95
    %s97 = sphi 0, %s95
    %s98 = sphi 0, %s97
    %s112 = sphi 0, %s98
    %s116 = sphi 0, %s116
    %s118 = sphi 0, %s116
    %s119 = sphi 0, %s118
    %s133 = sphi 0, %s119
    %s137 = sphi 0, %s137
    %s139 = sphi 0, %s137
    %s140 = sphi 0, %s139
    %s154 = sphi 0, %s140
    %s158 = sphi 0, %s158
    %s160 = sphi 0, %s158
    %s161 = sphi 0, %s160
    %s175 = sphi 0, %s161
    %s179 = sphi 0, %s179
    %s181 = sphi 0, %s179
    %s182 = sphi 0, %s181
    %s196 = sphi 0, %s182
    %s200 = sphi 0, %s200
    %s202 = sphi 0, %s200
    %s203 = sphi 0, %s202
    %s217 = sphi 0, %s203
    %s221 = sphi 0, %s221
    %s223 = sphi 0, %s221
    %s224 = sphi 0, %s223
    %s238 = sphi 0, %s224
    %s242 = sphi 0, %s242
    %s244 = sphi 0, %s242
    %s245 = sphi 0, %s244
    %s259 = sphi 0, %s245
    %s263 = sphi 0, %s263
    %s265 = sphi 0, %s263
    %s266 = sphi 0, %s265
    %s280 = sphi 0, %s266
    %s284 = sphi 0, %s284
    %s286 = sphi 0, %s284
    %s287 = sphi 0, %s286
    %s301 = sphi 0, %s287
    %s307 = sphi 0, %s309
    %s310 = sphi 0, %s307
    %s311 = sphi 0, %s310
    %s327 = sphi 0, %s311
  $region4: #{conv_example_forward.1} parent=0 // loop_header_branch
    %22 = sbr.rel (%p20) target = $region8
  $region5: #{conv_example_forward.1} parent=0 // loop_body
    %s24 = ssub.s32 %s19, 1
    %s25 = ssub.s32 %s19, 2
    %s26 = sadd.s32 %s19, 1
    %s27 = ssub.s32 %s19, %s26
    %p28 = scmp.eq.s32.totalorder %s27, 0
    %s30 = sadd.s32 %s29, 1
    %s31 = scalar_select %p28, %s29, %s30
    %p34 = pneg %p28
    %p35 = scmp.eq.s32.totalorder %s19, 1
    %p36 = por %p34, %p35
    %p37 = scmp.ne.s32.totalorder %s29, %s32
    %p38 = scmp.eq.s32.totalorder %s19, 0
    %p39 = por %p37, %p38
    %p40 = scmp.ne.s32.totalorder %s29, %s32
    %p41 = scmp.eq.s32.totalorder %s24, 1
    %p42 = por %p40, %p41
    %p43 = scmp.ne.s32.totalorder %s32, %s33
    %p44 = scmp.eq.s32.totalorder %s24, 0
    %p45 = por %p43, %p44
    %p46 = scmp.ne.s32.totalorder %s32, %s33
    %p47 = scmp.eq.s32.totalorder %s25, 1
    %p48 = por %p46, %p47
    %p50 = scmp.ne.s32.totalorder %s33, %s49
    %p51 = scmp.eq.s32.totalorder %s25, 0
    %p52 = por %p50, %p51
    %s54 = sadd.s32 %s53, 1
    %p57 = scmp.eq.s32.totalorder %s19, 1
    %p58 = scmp.ne.s32.totalorder %s53, %s55
    %p59 = scmp.eq.s32.totalorder %s19, 0
    %p60 = por %p58, %p59
    %p61 = scmp.ne.s32.totalorder %s53, %s55
    %p62 = scmp.eq.s32.totalorder %s24, 1
    %p63 = por %p61, %p62
    %p64 = scmp.ne.s32.totalorder %s55, %s56
    %p65 = scmp.eq.s32.totalorder %s24, 0
    %p66 = por %p64, %p65
    %p67 = scmp.ne.s32.totalorder %s55, %s56
    %p68 = scmp.eq.s32.totalorder %s25, 1
    %p69 = por %p67, %p68
    %p71 = scmp.ne.s32.totalorder %s56, %s70
    %p72 = scmp.eq.s32.totalorder %s25, 0
    %p73 = por %p71, %p72
    %s75 = sadd.s32 %s74, 1
    %p78 = scmp.eq.s32.totalorder %s19, 1
    %p79 = scmp.ne.s32.totalorder %s74, %s76
    %p80 = scmp.eq.s32.totalorder %s19, 0
    %p81 = por %p79, %p80
    %p82 = scmp.ne.s32.totalorder %s74, %s76
    %p83 = scmp.eq.s32.totalorder %s24, 1
    %p84 = por %p82, %p83
    %p85 = scmp.ne.s32.totalorder %s76, %s77
    %p86 = scmp.eq.s32.totalorder %s24, 0
    %p87 = por %p85, %p86
    %p88 = scmp.ne.s32.totalorder %s76, %s77
    %p89 = scmp.eq.s32.totalorder %s25, 1
    %p90 = por %p88, %p89
    %p92 = scmp.ne.s32.totalorder %s77, %s91
    %p93 = scmp.eq.s32.totalorder %s25, 0
    %p94 = por %p92, %p93
    %s96 = sadd.s32 %s95, 1
    %p99 = scmp.eq.s32.totalorder %s19, 1
    %p100 = scmp.ne.s32.totalorder %s95, %s97
    %p101 = scmp.eq.s32.totalorder %s19, 0
    %p102 = por %p100, %p101
    %p103 = scmp.ne.s32.totalorder %s95, %s97
    %p104 = scmp.eq.s32.totalorder %s24, 1
    %p105 = por %p103, %p104
    %p106 = scmp.ne.s32.totalorder %s97, %s98
    %p107 = scmp.eq.s32.totalorder %s24, 0
    %p108 = por %p106, %p107
    %p109 = scmp.ne.s32.totalorder %s97, %s98
    %p110 = scmp.eq.s32.totalorder %s25, 1
    %p111 = por %p109, %p110
    %p113 = scmp.ne.s32.totalorder %s98, %s112
    %p114 = scmp.eq.s32.totalorder %s25, 0
    %p115 = por %p113, %p114
    %s117 = sadd.s32 %s116, 1
    %p120 = scmp.eq.s32.totalorder %s19, 1
    %p121 = scmp.ne.s32.totalorder %s116, %s118
    %p122 = scmp.eq.s32.totalorder %s19, 0
    %p123 = por %p121, %p122
    %p124 = scmp.ne.s32.totalorder %s116, %s118
    %p125 = scmp.eq.s32.totalorder %s24, 1
    %p126 = por %p124, %p125
    %p127 = scmp.ne.s32.totalorder %s118, %s119
    %p128 = scmp.eq.s32.totalorder %s24, 0
    %p129 = por %p127, %p128
    %p130 = scmp.ne.s32.totalorder %s118, %s119
    %p131 = scmp.eq.s32.totalorder %s25, 1
    %p132 = por %p130, %p131
    %p134 = scmp.ne.s32.totalorder %s119, %s133
    %p135 = scmp.eq.s32.totalorder %s25, 0
    %p136 = por %p134, %p135
    %s138 = sadd.s32 %s137, 1
    %p141 = scmp.eq.s32.totalorder %s19, 1
    %p142 = scmp.ne.s32.totalorder %s137, %s139
    %p143 = scmp.eq.s32.totalorder %s19, 0
    %p144 = por %p142, %p143
    %p145 = scmp.ne.s32.totalorder %s137, %s139
    %p146 = scmp.eq.s32.totalorder %s24, 1
    %p147 = por %p145, %p146
    %p148 = scmp.ne.s32.totalorder %s139, %s140
    %p149 = scmp.eq.s32.totalorder %s24, 0
    %p150 = por %p148, %p149
    %p151 = scmp.ne.s32.totalorder %s139, %s140
    %p152 = scmp.eq.s32.totalorder %s25, 1
    %p153 = por %p151, %p152
    %p155 = scmp.ne.s32.totalorder %s140, %s154
    %p156 = scmp.eq.s32.totalorder %s25, 0
    %p157 = por %p155, %p156
    %s159 = sadd.s32 %s158, 1
    %p162 = scmp.eq.s32.totalorder %s19, 1
    %p163 = scmp.ne.s32.totalorder %s158, %s160
    %p164 = scmp.eq.s32.totalorder %s19, 0
    %p165 = por %p163, %p164
    %p166 = scmp.ne.s32.totalorder %s158, %s160
    %p167 = scmp.eq.s32.totalorder %s24, 1
    %p168 = por %p166, %p167
    %p169 = scmp.ne.s32.totalorder %s160, %s161
    %p170 = scmp.eq.s32.totalorder %s24, 0
    %p171 = por %p169, %p170
    %p172 = scmp.ne.s32.totalorder %s160, %s161
    %p173 = scmp.eq.s32.totalorder %s25, 1
    %p174 = por %p172, %p173
    %p176 = scmp.ne.s32.totalorder %s161, %s175
    %p177 = scmp.eq.s32.totalorder %s25, 0
    %p178 = por %p176, %p177
    %s180 = sadd.s32 %s179, 1
    %p183 = scmp.eq.s32.totalorder %s19, 1
    %p184 = scmp.ne.s32.totalorder %s179, %s181
    %p185 = scmp.eq.s32.totalorder %s19, 0
    %p186 = por %p184, %p185
    %p187 = scmp.ne.s32.totalorder %s179, %s181
    %p188 = scmp.eq.s32.totalorder %s24, 1
    %p189 = por %p187, %p188
    %p190 = scmp.ne.s32.totalorder %s181, %s182
    %p191 = scmp.eq.s32.totalorder %s24, 0
    %p192 = por %p190, %p191
    %p193 = scmp.ne.s32.totalorder %s181, %s182
    %p194 = scmp.eq.s32.totalorder %s25, 1
    %p195 = por %p193, %p194
    %p197 = scmp.ne.s32.totalorder %s182, %s196
    %p198 = scmp.eq.s32.totalorder %s25, 0
    %p199 = por %p197, %p198
    %s201 = sadd.s32 %s200, 1
    %p204 = scmp.eq.s32.totalorder %s19, 1
    %p205 = scmp.ne.s32.totalorder %s200, %s202
    %p206 = scmp.eq.s32.totalorder %s19, 0
    %p207 = por %p205, %p206
    %p208 = scmp.ne.s32.totalorder %s200, %s202
    %p209 = scmp.eq.s32.totalorder %s24, 1
    %p210 = por %p208, %p209
    %p211 = scmp.ne.s32.totalorder %s202, %s203
    %p212 = scmp.eq.s32.totalorder %s24, 0
    %p213 = por %p211, %p212
    %p214 = scmp.ne.s32.totalorder %s202, %s203
    %p215 = scmp.eq.s32.totalorder %s25, 1
    %p216 = por %p214, %p215
    %p218 = scmp.ne.s32.totalorder %s203, %s217
    %p219 = scmp.eq.s32.totalorder %s25, 0
    %p220 = por %p218, %p219
    %s222 = sadd.s32 %s221, 1
    %p225 = scmp.eq.s32.totalorder %s19, 1
    %p226 = scmp.ne.s32.totalorder %s221, %s223
    %p227 = scmp.eq.s32.totalorder %s19, 0
    %p228 = por %p226, %p227
    %p229 = scmp.ne.s32.totalorder %s221, %s223
    %p230 = scmp.eq.s32.totalorder %s24, 1
    %p231 = por %p229, %p230
    %p232 = scmp.ne.s32.totalorder %s223, %s224
    %p233 = scmp.eq.s32.totalorder %s24, 0
    %p234 = por %p232, %p233
    %p235 = scmp.ne.s32.totalorder %s223, %s224
    %p236 = scmp.eq.s32.totalorder %s25, 1
    %p237 = por %p235, %p236
    %p239 = scmp.ne.s32.totalorder %s224, %s238
    %p240 = scmp.eq.s32.totalorder %s25, 0
    %p241 = por %p239, %p240
    %s243 = sadd.s32 %s242, 1
    %p246 = scmp.eq.s32.totalorder %s19, 1
    %p247 = scmp.ne.s32.totalorder %s242, %s244
    %p248 = scmp.eq.s32.totalorder %s19, 0
    %p249 = por %p247, %p248
    %p250 = scmp.ne.s32.totalorder %s242, %s244
    %p251 = scmp.eq.s32.totalorder %s24, 1
    %p252 = por %p250, %p251
    %p253 = scmp.ne.s32.totalorder %s244, %s245
    %p254 = scmp.eq.s32.totalorder %s24, 0
    %p255 = por %p253, %p254
    %p256 = scmp.ne.s32.totalorder %s244, %s245
    %p257 = scmp.eq.s32.totalorder %s25, 1
    %p258 = por %p256, %p257
    %p260 = scmp.ne.s32.totalorder %s245, %s259
    %p261 = scmp.eq.s32.totalorder %s25, 0
    %p262 = por %p260, %p261
    %s264 = sadd.s32 %s263, 1
    %p267 = scmp.eq.s32.totalorder %s19, 1
    %p268 = scmp.ne.s32.totalorder %s263, %s265
    %p269 = scmp.eq.s32.totalorder %s19, 0
    %p270 = por %p268, %p269
    %p271 = scmp.ne.s32.totalorder %s263, %s265
    %p272 = scmp.eq.s32.totalorder %s24, 1
    %p273 = por %p271, %p272
    %p274 = scmp.ne.s32.totalorder %s265, %s266
    %p275 = scmp.eq.s32.totalorder %s24, 0
    %p276 = por %p274, %p275
    %p277 = scmp.ne.s32.totalorder %s265, %s266
    %p278 = scmp.eq.s32.totalorder %s25, 1
    %p279 = por %p277, %p278
    %p281 = scmp.ne.s32.totalorder %s266, %s280
    %p282 = scmp.eq.s32.totalorder %s25, 0
    %p283 = por %p281, %p282
    %s285 = sadd.s32 %s284, 1
    %p288 = scmp.eq.s32.totalorder %s19, 1
    %p289 = scmp.ne.s32.totalorder %s284, %s286
    %p290 = scmp.eq.s32.totalorder %s19, 0
    %p291 = por %p289, %p290
    %p292 = scmp.ne.s32.totalorder %s284, %s286
    %p293 = scmp.eq.s32.totalorder %s24, 1
    %p294 = por %p292, %p293
    %p295 = scmp.ne.s32.totalorder %s286, %s287
    %p296 = scmp.eq.s32.totalorder %s24, 0
    %p297 = por %p295, %p296
    %p298 = scmp.ne.s32.totalorder %s286, %s287
    %p299 = scmp.eq.s32.totalorder %s25, 1
    %p300 = por %p298, %p299
    %p302 = scmp.ne.s32.totalorder %s287, %s301
    %p303 = scmp.eq.s32.totalorder %s25, 0
    %p304 = por %p302, %p303
    %s305 = ssub.s32 %s19, %s26
    %p306 = scmp.eq.s32.totalorder %s305, 0
    %s308 = sadd.s32 %s307, 1
    %s309 = scalar_select %p306, %s307, %s308
    %p312 = pneg %p306
    %p313 = scmp.eq.s32.totalorder %s19, 1
    %p314 = por %p312, %p313
    %p315 = scmp.ne.s32.totalorder %s307, %s310
    %p316 = scmp.eq.s32.totalorder %s19, 0
    %p317 = por %p315, %p316
    %p318 = scmp.ne.s32.totalorder %s307, %s310
    %p319 = scmp.eq.s32.totalorder %s24, 1
    %p320 = por %p318, %p319
    %p321 = scmp.ne.s32.totalorder %s310, %s311
    %p322 = scmp.eq.s32.totalorder %s24, 0
    %p323 = por %p321, %p322
    %p324 = scmp.ne.s32.totalorder %s310, %s311
    %p325 = scmp.eq.s32.totalorder %s25, 1
    %p326 = por %p324, %p325
    %p328 = scmp.ne.s32.totalorder %s311, %s327
    %p329 = scmp.eq.s32.totalorder %s25, 0
    %p330 = por %p328, %p329
    %p331 = scmp.le.s32.totalorder 1, %s19
    %p332 = scmp.lt.s32.totalorder %s19, 3
    %p333 = pnand %p331, %p332
    %p334 = pneg %p333
    // Predicated region
    $region9: #{conv_example_forward.1} parent=5 // pred_check
      _
    $region10: #{conv_example_forward.1} parent=5 // pred_check_branch
      %336 = sbr.rel (%p333) target = $region12
    $region11: #{conv_example_forward.1} parent=5 // pred_region
      %s337 = ssub.s32 %s19, 1
      // Predicated region
      $region13: #{conv_example_forward.1} parent=11 // pred_check
        %p338 = pneg %p66
      $region14: #{conv_example_forward.1} parent=11 // pred_check_branch
        %340 = sbr.rel (%p338) target = $region16
      $region15: #{conv_example_forward.1} parent=11 // pred_region
        _
      $region16: #{conv_example_forward.1} parent=11 // pred_fallthru
        _
      // Predicated region
      $region17: #{conv_example_forward.1} parent=11 // pred_check
        %p341 = pneg %p87
      $region18: #{conv_example_forward.1} parent=11 // pred_check_branch
        %343 = sbr.rel (%p341) target = $region20
      $region19: #{conv_example_forward.1} parent=11 // pred_region
        _
      $region20: #{conv_example_forward.1} parent=11 // pred_fallthru
        _
      // Predicated region
      $region21: #{conv_example_forward.1} parent=11 // pred_check
        %p344 = pneg %p108
      $region22: #{conv_example_forward.1} parent=11 // pred_check_branch
        %346 = sbr.rel (%p344) target = $region24
      $region23: #{conv_example_forward.1} parent=11 // pred_region
        _
      $region24: #{conv_example_forward.1} parent=11 // pred_fallthru
        _
      // Predicated region
      $region25: #{conv_example_forward.1} parent=11 // pred_check
        %p347 = pneg %p129
      $region26: #{conv_example_forward.1} parent=11 // pred_check_branch
        %349 = sbr.rel (%p347) target = $region28
      $region27: #{conv_example_forward.1} parent=11 // pred_region
        _
      $region28: #{conv_example_forward.1} parent=11 // pred_fallthru
        _
      // Predicated region
      $region29: #{conv_example_forward.1} parent=11 // pred_check
        %p350 = pneg %p150
      $region30: #{conv_example_forward.1} parent=11 // pred_check_branch
        %352 = sbr.rel (%p350) target = $region32
      $region31: #{conv_example_forward.1} parent=11 // pred_region
        _
      $region32: #{conv_example_forward.1} parent=11 // pred_fallthru
        _
      // Predicated region
      $region33: #{conv_example_forward.1} parent=11 // pred_check
        %p353 = pneg %p171
      $region34: #{conv_example_forward.1} parent=11 // pred_check_branch
        %355 = sbr.rel (%p353) target = $region36
      $region35: #{conv_example_forward.1} parent=11 // pred_region
        _
      $region36: #{conv_example_forward.1} parent=11 // pred_fallthru
        _
      // Predicated region
      $region37: #{conv_example_forward.1} parent=11 // pred_check
        %p356 = pneg %p192
      $region38: #{conv_example_forward.1} parent=11 // pred_check_branch
        %358 = sbr.rel (%p356) target = $region40
      $region39: #{conv_example_forward.1} parent=11 // pred_region
        _
      $region40: #{conv_example_forward.1} parent=11 // pred_fallthru
        _
      // Predicated region
      $region41: #{conv_example_forward.1} parent=11 // pred_check
        %p359 = pneg %p213
      $region42: #{conv_example_forward.1} parent=11 // pred_check_branch
        %361 = sbr.rel (%p359) target = $region44
      $region43: #{conv_example_forward.1} parent=11 // pred_region
        _
      $region44: #{conv_example_forward.1} parent=11 // pred_fallthru
        _
      // Predicated region
      $region45: #{conv_example_forward.1} parent=11 // pred_check
        %p362 = pneg %p234
      $region46: #{conv_example_forward.1} parent=11 // pred_check_branch
        %364 = sbr.rel (%p362) target = $region48
      $region47: #{conv_example_forward.1} parent=11 // pred_region
        _
      $region48: #{conv_example_forward.1} parent=11 // pred_fallthru
        _
      // Predicated region
      $region49: #{conv_example_forward.1} parent=11 // pred_check
        %p365 = pneg %p255
      $region50: #{conv_example_forward.1} parent=11 // pred_check_branch
        %367 = sbr.rel (%p365) target = $region52
      $region51: #{conv_example_forward.1} parent=11 // pred_region
        _
      $region52: #{conv_example_forward.1} parent=11 // pred_fallthru
        _
      // Predicated region
      $region53: #{conv_example_forward.1} parent=11 // pred_check
        %p368 = pneg %p276
      $region54: #{conv_example_forward.1} parent=11 // pred_check_branch
        %370 = sbr.rel (%p368) target = $region56
      $region55: #{conv_example_forward.1} parent=11 // pred_region
        _
      $region56: #{conv_example_forward.1} parent=11 // pred_fallthru
        _
      // Predicated region
      $region57: #{conv_example_forward.1} parent=11 // pred_check
        %p371 = pneg %p297
      $region58: #{conv_example_forward.1} parent=11 // pred_check_branch
        %373 = sbr.rel (%p371) target = $region60
      $region59: #{conv_example_forward.1} parent=11 // pred_region
        _
      $region60: #{conv_example_forward.1} parent=11 // pred_fallthru
        _
    $region12: #{conv_example_forward.1} parent=5 // pred_fallthru
      _
    %p374 = scmp.lt.s32.totalorder %s19, 2
    // Predicated region
    $region61: #{conv_example_forward.1} parent=5 // pred_check
      %p375 = pneg %p374
    $region62: #{conv_example_forward.1} parent=5 // pred_check_branch
      %377 = sbr.rel (%p375) target = $region64
    $region63: #{conv_example_forward.1} parent=5 // pred_region
      // Predicated region
      $region65: #{conv_example_forward.1} parent=63 // pred_check
        %p378 = pneg %p39
      $region66: #{conv_example_forward.1} parent=63 // pred_check_branch
        %380 = sbr.rel (%p378) target = $region68
      $region67: #{conv_example_forward.1} parent=63 // pred_region
        %p381 = scmp.lt.s32.totalorder %s19, 1
        %s382 = scalar_select %p381, %s19, 1
        %s383 = smul.addr %s382, 42
        %s384 = smul.addr %s383, 4
        %s385 = scalar_lea.vmem %s0, %s384
      $region68: #{conv_example_forward.1} parent=63 // pred_fallthru
        _
    $region64: #{conv_example_forward.1} parent=5 // pred_fallthru
      _
    %p386 = scmp.le.s32.totalorder 1, %s19
    %p387 = scmp.lt.s32.totalorder %s19, 3
    %p388 = pnand %p386, %p387
    %p389 = pneg %p388
    // Predicated region
    $region69: #{conv_example_forward.1} parent=5 // pred_check
      _
    $region70: #{conv_example_forward.1} parent=5 // pred_check_branch
      %391 = sbr.rel (%p388) target = $region72
    $region71: #{conv_example_forward.1} parent=5 // pred_region
      %s392 = ssub.s32 %s19, 1
      %p393 = scmp.lt.s32.totalorder %s24, 1
      %s394 = scalar_select %p393, %s24, 1
      %s395 = smul.addr %s394, 42
      %s396 = smul.addr %s395, 4
      %s397 = scalar_lea.vmem %s0, %s396
      %p398 = pneg %p45
      %p399 = pneg %p42
      %p400 = pneg %p66
      %p401 = pneg %p63
      %p402 = pneg %p87
      %p403 = pneg %p84
      %p404 = pneg %p108
      %p405 = pneg %p105
      %p406 = pneg %p129
      %p407 = pneg %p126
      %p408 = pneg %p150
      %p409 = pneg %p147
      %p410 = pneg %p171
      %p411 = pneg %p168
      %p412 = pneg %p192
      %p413 = pneg %p189
      %p414 = pneg %p213
      %p415 = pneg %p210
      %p416 = pneg %p234
      %p417 = pneg %p231
      %p418 = pneg %p255
      %p419 = pneg %p252
      %p420 = pneg %p276
      %p421 = pneg %p273
      %p422 = pneg %p297
      %p423 = pneg %p294
      %p424 = pneg %p323
      %p425 = pneg %p320
      %p426 = scmp.lt.s32.totalorder %s24, 1
      %s427 = scalar_select %p426, %s24, 1
      %s428 = smul.addr %s427, 32
      %s429 = smul.addr %s428, 4
      %s430 = scalar_lea.vmem %s13, %s429
      %p431 = scmp.lt.s32.totalorder %s24, 1
      %s432 = scalar_select %p431, %s24, 1
      %s433 = smul.addr %s432, 42
      %s434 = smul.addr %s433, 4
      %s435 = scalar_lea.vmem %s0, %s434
      %p436 = scmp.lt.s32.totalorder %s24, 1
      %s437 = scalar_select %p436, %s24, 1
      %s438 = smul.addr %s437, 32
      %s439 = smul.addr %s438, 4
      %s440 = scalar_lea.vmem %s13, %s439
      %v442 = vld [vmem:[%s435] sm:$0xf]
      %v443 = vld [vmem:[%s435 + $0x4] sm:$0xf]
      %v444 = vld [vmem:[%s435 + $0x8] sm:$0xf]
      %v445 = vld [vmem:[%s435 + $0xc] sm:$0xf]
      %v446 = vld [vmem:[%s435 + $0x10] sm:$0xf]
      %v447 = vld [vmem:[%s435 + $0x14] sm:$0xf]
      %v448 = vld [vmem:[%s435 + $0x18] sm:$0xf]
      %v449 = vld [vmem:[%s435 + $0x1c] sm:$0xf]
      %v450 = vld [vmem:[%s435 + $0x20] sm:$0xf]
      %v451 = vld [vmem:[%s435 + $0x24] sm:$0xf]
      %v452 = vld [vmem:[%s435 + $0x28] sm:$0xf]
      %v453 = vld [vmem:[%s435 + $0x2c] sm:$0xf]
      %v454 = vld [vmem:[%s435 + $0x30] sm:$0xf]
      %v455 = vld [vmem:[%s435 + $0x34] sm:$0xf]
      %v456 = vld [vmem:[%s435 + $0x38] sm:$0xf]
      %v457 = vld [vmem:[%s435 + $0x3c] sm:$0xf]
      %v458 = vld [vmem:[%s435 + $0x40] sm:$0xf]
      %v459 = vld [vmem:[%s435 + $0x44] sm:$0xf]
      %v460 = vld [vmem:[%s435 + $0x48] sm:$0xf]
      %v461 = vld [vmem:[%s435 + $0x4c] sm:$0xf]
      %v462 = vld [vmem:[%s435 + $0x50] sm:$0xf]
      %v463 = vld [vmem:[%s435 + $0x54] sm:$0xf]
      %v464 = vld [vmem:[%s435 + $0x58] sm:$0xf]
      %v465 = vld [vmem:[%s435 + $0x5c] sm:$0xf]
      %v466 = vld [vmem:[%s435 + $0x60] sm:$0xf]
      %v467 = vld [vmem:[%s435 + $0x64] sm:$0xf]
      %v468 = vld [vmem:[%s435 + $0x68] sm:$0xf]
      %v469 = vld [vmem:[%s435 + $0x6c] sm:$0xf]
      %v470 = vld [vmem:[%s435 + $0x70] sm:$0xf]
      %v471 = vld [vmem:[%s435 + $0x74] sm:$0xf]
      %v472 = vld [vmem:[%s435 + $0x78] sm:$0xf]
      %v473 = vld [vmem:[%s435 + $0x7c] sm:$0xf]
      %v474 = vld [vmem:[%s435 + $0x80] sm:$0xf]
      %v475 = vld [vmem:[%s435 + $0x84] sm:$0xf]
      %v476 = vld [vmem:[%s435 + $0x88] sm:$0xf]
      %v477 = vld [vmem:[%s435 + $0x8c] sm:$0xf]
      %v478 = vld [vmem:[%s1] sm:$0xf]
      %v479 = vld [vmem:[%s435 + $0x90] sm:$0x1]
      %s480 = scalar_lea.vmem %s1, 4
      %v481 = vld [vmem:[%s480] sm:$0xf]
      %v519 = vunpack.c.l.b16 %v442
      %v520 = vunpack.c.l.b16 %v443
      %v521 = vunpack.c.l.b16 %v444
      %v522 = vunpack.c.l.b16 %v445
      %v523 = vunpack.c.l.b16 %v446
      %v524 = vunpack.c.l.b16 %v447
      %v525 = vunpack.c.l.b16 %v448
      %v526 = vunpack.c.l.b16 %v449
      %v527 = vunpack.c.l.b16 %v450
      %v528 = vunpack.c.l.b16 %v451
      %v529 = vunpack.c.l.b16 %v452
      %v530 = vunpack.c.l.b16 %v453
      %v531 = vunpack.c.l.b16 %v454
      %v532 = vunpack.c.l.b16 %v455
      %v533 = vunpack.c.l.b16 %v456
      %v534 = vunpack.c.l.b16 %v457
      %v535 = vunpack.c.l.b16 %v458
      %v536 = vunpack.c.l.b16 %v459
      %v537 = vunpack.c.l.b16 %v460
      %v538 = vunpack.c.l.b16 %v461
      %v539 = vunpack.c.l.b16 %v462
      %v540 = vunpack.c.l.b16 %v463
      %v541 = vunpack.c.l.b16 %v464
      %v542 = vunpack.c.l.b16 %v465
      %v543 = vunpack.c.l.b16 %v466
      %v544 = vunpack.c.l.b16 %v467
      %v545 = vunpack.c.l.b16 %v468
      %v546 = vunpack.c.l.b16 %v469
      %v547 = vunpack.c.l.b16 %v470
      %v548 = vunpack.c.l.b16 %v471
      %v549 = vunpack.c.l.b16 %v472
      %v550 = vunpack.c.l.b16 %v473
      %v551 = vunpack.c.l.b16 %v474
      %v552 = vunpack.c.l.b16 %v475
      %v553 = vunpack.c.l.b16 %v476
      %v554 = vunpack.c.l.b16 %v477
      %v555 = vunpack.c.l.b16 %v479
      %v556 = vpack.c.b16 %v520, %v519
      %v557 = vpack.c.b16 %v522, %v521
      %v558 = vpack.c.b16 %v524, %v523
      %v559 = vpack.c.b16 %v526, %v525
      %v560 = vpack.c.b16 %v528, %v527
      %v561 = vpack.c.b16 %v530, %v529
      %v562 = vpack.c.b16 %v532, %v531
      %v563 = vpack.c.b16 %v534, %v533
      %v564 = vpack.c.b16 %v536, %v535
      %v565 = vpack.c.b16 %v538, %v537
      %v566 = vpack.c.b16 %v540, %v539
      %v567 = vpack.c.b16 %v542, %v541
      %v568 = vpack.c.b16 %v544, %v543
      %v569 = vpack.c.b16 %v546, %v545
      %v570 = vpack.c.b16 %v548, %v547
      %v571 = vpack.c.b16 %v550, %v549
      %v572 = vpack.c.b16 %v552, %v551
      %v573 = vpack.c.b16 %v554, %v553
      %v574 = vpack.c.b16 %v555, %v555
      %vm575 = vsmask.f32 7424
      %v577 = vshrl.u32 %v556, 16
      %v579 = vshll.u32 %v556, 16
      %v581 = vrot.slane %v579, 1
      %v582 = vor.u32 %v577, %v581
      %v584 = vshll.u32 %v557, 16
      %v586 = vrot.slane %v584, 1
      %v587 = vsel %vm575, %v582, %v586
      %v588 = vshrl.u32 %v557, 16
      %v590 = vor.u32 %v588, %v586
      %v592 = vshll.u32 %v558, 16
      %v594 = vrot.slane %v592, 1
      %v595 = vsel %vm575, %v590, %v594
      %v596 = vshrl.u32 %v558, 16
      %v598 = vor.u32 %v596, %v594
      %v600 = vshll.u32 %v559, 16
      %v602 = vrot.slane %v600, 1
      %v603 = vsel %vm575, %v598, %v602
      %v604 = vshrl.u32 %v559, 16
      %v606 = vor.u32 %v604, %v602
      %v608 = vshll.u32 %v560, 16
      %v610 = vrot.slane %v608, 1
      %v611 = vsel %vm575, %v606, %v610
      %v612 = vshrl.u32 %v560, 16
      %v614 = vor.u32 %v612, %v610
      %v616 = vshll.u32 %v561, 16
      %v618 = vrot.slane %v616, 1
      %v619 = vsel %vm575, %v614, %v618
      %v620 = vshrl.u32 %v561, 16
      %v622 = vor.u32 %v620, %v618
      %v624 = vshll.u32 %v562, 16
      %v626 = vrot.slane %v624, 1
      %v627 = vsel %vm575, %v622, %v626
      %v628 = vshrl.u32 %v562, 16
      %v630 = vor.u32 %v628, %v626
      %v632 = vshll.u32 %v563, 16
      %v634 = vrot.slane %v632, 1
      %v635 = vsel %vm575, %v630, %v634
      %v636 = vshrl.u32 %v563, 16
      %v638 = vor.u32 %v636, %v634
      %v640 = vshll.u32 %v564, 16
      %v642 = vrot.slane %v640, 1
      %v643 = vsel %vm575, %v638, %v642
      %v644 = vshrl.u32 %v564, 16
      %v646 = vor.u32 %v644, %v642
      %v648 = vshll.u32 %v565, 16
      %v650 = vrot.slane %v648, 1
      %v651 = vsel %vm575, %v646, %v650
      %v652 = vshrl.u32 %v565, 16
      %v654 = vor.u32 %v652, %v650
      %v656 = vshll.u32 %v566, 16
      %v658 = vrot.slane %v656, 1
      %v659 = vsel %vm575, %v654, %v658
      %v660 = vshrl.u32 %v566, 16
      %v662 = vor.u32 %v660, %v658
      %v664 = vshll.u32 %v567, 16
      %v666 = vrot.slane %v664, 1
      %v667 = vsel %vm575, %v662, %v666
      %v668 = vshrl.u32 %v567, 16
      %v670 = vor.u32 %v668, %v666
      %v672 = vshll.u32 %v568, 16
      %v674 = vrot.slane %v672, 1
      %v675 = vsel %vm575, %v670, %v674
      %v676 = vshrl.u32 %v568, 16
      %v678 = vor.u32 %v676, %v674
      %v680 = vshll.u32 %v569, 16
      %v682 = vrot.slane %v680, 1
      %v683 = vsel %vm575, %v678, %v682
      %v684 = vshrl.u32 %v569, 16
      %v686 = vor.u32 %v684, %v682
      %v688 = vshll.u32 %v570, 16
      %v690 = vrot.slane %v688, 1
      %v691 = vsel %vm575, %v686, %v690
      %v692 = vshrl.u32 %v570, 16
      %v694 = vor.u32 %v692, %v690
      %v696 = vshll.u32 %v571, 16
      %v698 = vrot.slane %v696, 1
      %v699 = vsel %vm575, %v694, %v698
      %v700 = vshrl.u32 %v571, 16
      %v702 = vor.u32 %v700, %v698
      %v704 = vshll.u32 %v572, 16
      %v706 = vrot.slane %v704, 1
      %v707 = vsel %vm575, %v702, %v706
      %v708 = vshrl.u32 %v572, 16
      %v710 = vor.u32 %v708, %v706
      %v712 = vshll.u32 %v573, 16
      %v714 = vrot.slane %v712, 1
      %v715 = vsel %vm575, %v710, %v714
      %v716 = vshrl.u32 %v573, 16
      %v718 = vor.u32 %v716, %v714
      %v720 = vshll.u32 %v574, 16
      %v722 = vrot.slane %v720, 1
      %v723 = vsel %vm575, %v718, %v722
      %vm724 = vcmask 64512
      %v726 = vsel %vm724, %v587, 0
      %v729 = vsel %vm724, %v595, 0
      %v732 = vsel %vm724, %v603, 0
      %v735 = vsel %vm724, %v611, 0
      %v738 = vsel %vm724, %v619, 0
      %v741 = vsel %vm724, %v627, 0
      %v744 = vsel %vm724, %v635, 0
      %v747 = vsel %vm724, %v643, 0
      %v750 = vsel %vm724, %v651, 0
      %v753 = vsel %vm724, %v659, 0
      %v756 = vsel %vm724, %v667, 0
      %v759 = vsel %vm724, %v675, 0
      %v762 = vsel %vm724, %v683, 0
      %v765 = vsel %vm724, %v691, 0
      %v768 = vsel %vm724, %v699, 0
      %v771 = vsel %vm724, %v707, 0
      %v774 = vsel %vm724, %v715, 0
      %v777 = vsel %vm724, %v723, 0
      %vm779 = vcmask 1043456
      %v781 = vsel %vm779, %v481, 0
      %783 = vmatpush.bf16.msra.mxu0 0
      %784 = vmatpush.bf16.msra.mxu0 0
      %785 = vmatpush.bf16.msra.mxu0 0
      %786 = vmatpush.bf16.msra.mxu0 0
      %787 = vmatpush.bf16.msra.mxu0 0
      %788 = vmatpush.bf16.msra.mxu0 0
      %789 = vmatpush.bf16.msra.mxu0 0
      %790 = vmatpush.bf16.msra.mxu0 %v781
      %791 = vmatmul.bf16.gmra.mxu0 %v726
      %v792 = vpop.f32.mrf.mxu0
      %v793 = vadd.f32 0.0, %v792
      %v794 = vpop.f32.mrf.mxu0
      %v795 = vadd.f32 0.0, %v794
      %796 = vmatmul.bf16.gmra.mxu0 %v729
      %v797 = vpop.f32.mrf.mxu0
      %v798 = vadd.f32 0.0, %v797
      %v799 = vpop.f32.mrf.mxu0
      %v800 = vadd.f32 0.0, %v799
      %801 = vmatmul.bf16.gmra.mxu0 %v732
      %v802 = vpop.f32.mrf.mxu0
      %v803 = vadd.f32 0.0, %v802
      %v804 = vpop.f32.mrf.mxu0
      %v805 = vadd.f32 0.0, %v804
      %806 = vmatmul.bf16.gmra.mxu0 %v735
      %v807 = vpop.f32.mrf.mxu0
      %v808 = vadd.f32 0.0, %v807
      %v809 = vpop.f32.mrf.mxu0
      %v810 = vadd.f32 0.0, %v809
      %811 = vmatmul.bf16.gmra.mxu0 %v738
      %v812 = vpop.f32.mrf.mxu0
      %v813 = vadd.f32 0.0, %v812
      %v814 = vpop.f32.mrf.mxu0
      %v815 = vadd.f32 0.0, %v814
      %816 = vmatmul.bf16.gmra.mxu0 %v741
      %v817 = vpop.f32.mrf.mxu0
      %v818 = vadd.f32 0.0, %v817
      %v819 = vpop.f32.mrf.mxu0
      %v820 = vadd.f32 0.0, %v819
      %821 = vmatmul.bf16.gmra.mxu0 %v744
      %v822 = vpop.f32.mrf.mxu0
      %v823 = vadd.f32 0.0, %v822
      %v824 = vpop.f32.mrf.mxu0
      %v825 = vadd.f32 0.0, %v824
      %826 = vmatmul.bf16.gmra.mxu0 %v747
      %v827 = vpop.f32.mrf.mxu0
      %v828 = vadd.f32 0.0, %v827
      %v829 = vpop.f32.mrf.mxu0
      %v830 = vadd.f32 0.0, %v829
      %831 = vmatmul.bf16.gmra.mxu0 %v750
      %v832 = vpop.f32.mrf.mxu0
      %v833 = vadd.f32 0.0, %v832
      %v834 = vpop.f32.mrf.mxu0
      %v835 = vadd.f32 0.0, %v834
      %836 = vmatmul.bf16.gmra.mxu0 %v753
      %v837 = vpop.f32.mrf.mxu0
      %v838 = vadd.f32 0.0, %v837
      %v839 = vpop.f32.mrf.mxu0
      %v840 = vadd.f32 0.0, %v839
      %841 = vmatmul.bf16.gmra.mxu0 %v756
      %v842 = vpop.f32.mrf.mxu0
      %v843 = vadd.f32 0.0, %v842
      %v844 = vpop.f32.mrf.mxu0
      %v845 = vadd.f32 0.0, %v844
      %846 = vmatmul.bf16.gmra.mxu0 %v759
      %v847 = vpop.f32.mrf.mxu0
      %v848 = vadd.f32 0.0, %v847
      %v849 = vpop.f32.mrf.mxu0
      %v850 = vadd.f32 0.0, %v849
      %851 = vmatmul.bf16.gmra.mxu0 %v762
      %v852 = vpop.f32.mrf.mxu0
      %v853 = vadd.f32 0.0, %v852
      %v854 = vpop.f32.mrf.mxu0
      %v855 = vadd.f32 0.0, %v854
      %856 = vmatmul.bf16.gmra.mxu0 %v765
      %v857 = vpop.f32.mrf.mxu0
      %v858 = vadd.f32 0.0, %v857
      %v859 = vpop.f32.mrf.mxu0
      %v860 = vadd.f32 0.0, %v859
      %861 = vmatmul.bf16.gmra.mxu0 %v768
      %v862 = vpop.f32.mrf.mxu0
      %v863 = vadd.f32 0.0, %v862
      %v864 = vpop.f32.mrf.mxu0
      %v865 = vadd.f32 0.0, %v864
      %866 = vmatmul.bf16.gmra.mxu0 %v771
      %v867 = vpop.f32.mrf.mxu0
      %v868 = vadd.f32 0.0, %v867
      %v869 = vpop.f32.mrf.mxu0
      %v870 = vadd.f32 0.0, %v869
      %871 = vmatmul.bf16.gmra.mxu0 %v774
      %v872 = vpop.f32.mrf.mxu0
      %v873 = vadd.f32 0.0, %v872
      %v874 = vpop.f32.mrf.mxu0
      %v875 = vadd.f32 0.0, %v874
      %876 = vmatmul.bf16.gmra.mxu0 %v777
      %v877 = vpop.f32.mrf.mxu0
      %v878 = vadd.f32 0.0, %v877
      %v879 = vpop.f32.mrf.mxu0
      %v880 = vadd.f32 0.0, %v879
      %881 = vdwg.mxu0
      %v882 = vsel %vm724, %v556, 0
      %v884 = vsel %vm724, %v557, 0
      %v886 = vsel %vm724, %v558, 0
      %v888 = vsel %vm724, %v559, 0
      %v890 = vsel %vm724, %v560, 0
      %v892 = vsel %vm724, %v561, 0
      %v894 = vsel %vm724, %v562, 0
      %v896 = vsel %vm724, %v563, 0
      %v898 = vsel %vm724, %v564, 0
      %v900 = vsel %vm724, %v565, 0
      %v902 = vsel %vm724, %v566, 0
      %v904 = vsel %vm724, %v567, 0
      %v906 = vsel %vm724, %v568, 0
      %v908 = vsel %vm724, %v569, 0
      %v910 = vsel %vm724, %v570, 0
      %v912 = vsel %vm724, %v571, 0
      %v914 = vsel %vm724, %v572, 0
      %v916 = vsel %vm724, %v573, 0
      %v919 = vsel %vm779, %v478, 0
      %921 = vmatpush.bf16.msra.mxu0 0
      %922 = vmatpush.bf16.msra.mxu0 0
      %923 = vmatpush.bf16.msra.mxu0 0
      %924 = vmatpush.bf16.msra.mxu0 0
      %925 = vmatpush.bf16.msra.mxu0 0
      %926 = vmatpush.bf16.msra.mxu0 0
      %927 = vmatpush.bf16.msra.mxu0 0
      %928 = vmatpush.bf16.msra.mxu0 %v919
      %929 = vmatmul.bf16.gmra.mxu0 %v882
      %v930 = vpop.f32.mrf.mxu0
      %v931 = vadd.f32 %v793, %v930
      %v932 = vpop.f32.mrf.mxu0
      %v933 = vadd.f32 %v795, %v932
      %934 = vmatmul.bf16.gmra.mxu0 %v884
      %v935 = vpop.f32.mrf.mxu0
      %v936 = vadd.f32 %v798, %v935
      %v937 = vpop.f32.mrf.mxu0
      %v938 = vadd.f32 %v800, %v937
      %939 = vmatmul.bf16.gmra.mxu0 %v886
      %v940 = vpop.f32.mrf.mxu0
      %v941 = vadd.f32 %v803, %v940
      %v942 = vpop.f32.mrf.mxu0
      %v943 = vadd.f32 %v805, %v942
      %944 = vmatmul.bf16.gmra.mxu0 %v888
      %v945 = vpop.f32.mrf.mxu0
      %v946 = vadd.f32 %v808, %v945
      %v947 = vpop.f32.mrf.mxu0
      %v948 = vadd.f32 %v810, %v947
      %949 = vmatmul.bf16.gmra.mxu0 %v890
      %v950 = vpop.f32.mrf.mxu0
      %v951 = vadd.f32 %v813, %v950
      %v952 = vpop.f32.mrf.mxu0
      %v953 = vadd.f32 %v815, %v952
      %954 = vmatmul.bf16.gmra.mxu0 %v892
      %v955 = vpop.f32.mrf.mxu0
      %v956 = vadd.f32 %v818, %v955
      %v957 = vpop.f32.mrf.mxu0
      %v958 = vadd.f32 %v820, %v957
      %959 = vmatmul.bf16.gmra.mxu0 %v894
      %v960 = vpop.f32.mrf.mxu0
      %v961 = vadd.f32 %v823, %v960
      %v962 = vpop.f32.mrf.mxu0
      %v963 = vadd.f32 %v825, %v962
      %964 = vmatmul.bf16.gmra.mxu0 %v896
      %v965 = vpop.f32.mrf.mxu0
      %v966 = vadd.f32 %v828, %v965
      %v967 = vpop.f32.mrf.mxu0
      %v968 = vadd.f32 %v830, %v967
      %969 = vmatmul.bf16.gmra.mxu0 %v898
      %v970 = vpop.f32.mrf.mxu0
      %v971 = vadd.f32 %v833, %v970
      %v972 = vpop.f32.mrf.mxu0
      %v973 = vadd.f32 %v835, %v972
      %974 = vmatmul.bf16.gmra.mxu0 %v900
      %v975 = vpop.f32.mrf.mxu0
      %v976 = vadd.f32 %v838, %v975
      %v977 = vpop.f32.mrf.mxu0
      %v978 = vadd.f32 %v840, %v977
      %979 = vmatmul.bf16.gmra.mxu0 %v902
      %v980 = vpop.f32.mrf.mxu0
      %v981 = vadd.f32 %v843, %v980
      %v982 = vpop.f32.mrf.mxu0
      %v983 = vadd.f32 %v845, %v982
      %984 = vmatmul.bf16.gmra.mxu0 %v904
      %v985 = vpop.f32.mrf.mxu0
      %v986 = vadd.f32 %v848, %v985
      %v987 = vpop.f32.mrf.mxu0
      %v988 = vadd.f32 %v850, %v987
      %989 = vmatmul.bf16.gmra.mxu0 %v906
      %v990 = vpop.f32.mrf.mxu0
      %v991 = vadd.f32 %v853, %v990
      %v992 = vpop.f32.mrf.mxu0
      %v993 = vadd.f32 %v855, %v992
      %994 = vmatmul.bf16.gmra.mxu0 %v908
      %v995 = vpop.f32.mrf.mxu0
      %v996 = vadd.f32 %v858, %v995
      %v997 = vpop.f32.mrf.mxu0
      %v998 = vadd.f32 %v860, %v997
      %999 = vmatmul.bf16.gmra.mxu0 %v910
      %v1000 = vpop.f32.mrf.mxu0
      %v1001 = vadd.f32 %v863, %v1000
      %v1002 = vpop.f32.mrf.mxu0
      %v1003 = vadd.f32 %v865, %v1002
      %1004 = vmatmul.bf16.gmra.mxu0 %v912
      %v1005 = vpop.f32.mrf.mxu0
      %v1006 = vadd.f32 %v868, %v1005
      %v1007 = vpop.f32.mrf.mxu0
      %v1008 = vadd.f32 %v870, %v1007
      %1009 = vmatmul.bf16.gmra.mxu0 %v914
      %v1010 = vpop.f32.mrf.mxu0
      %v1011 = vadd.f32 %v873, %v1010
      %v1012 = vpop.f32.mrf.mxu0
      %v1013 = vadd.f32 %v875, %v1012
      %1014 = vmatmul.bf16.gmra.mxu0 %v916
      %v1015 = vpop.f32.mrf.mxu0
      %v1016 = vadd.f32 %v878, %v1015
      %v1017 = vpop.f32.mrf.mxu0
      %v1018 = vadd.f32 %v880, %v1017
      %1019 = vdwg.mxu0
      %v1020 = vld [vmem:[%s435] sm:$0xe]
      %s1021 = scalar_lea.vmem %s1, 8
      %v1022 = vld [vmem:[%s1021] sm:$0xf]
      %v1024 = vunpack.c.l.b16 %v1020
      %v1025 = vpack.c.b16 %v520, %v1024
      %vm1026 = vcmask 1046528
      %v1027 = vrot.slane %v1025, 1
      %v1028 = vrot.slane %v557, 1
      %v1029 = vsel %vm1026, %v1027, %v1028
      %v1030 = vrot.slane %v558, 1
      %v1031 = vsel %vm1026, %v1028, %v1030
      %v1032 = vrot.slane %v559, 1
      %v1033 = vsel %vm1026, %v1030, %v1032
      %v1034 = vrot.slane %v560, 1
      %v1035 = vsel %vm1026, %v1032, %v1034
      %v1036 = vrot.slane %v561, 1
      %v1037 = vsel %vm1026, %v1034, %v1036
      %v1038 = vrot.slane %v562, 1
      %v1039 = vsel %vm1026, %v1036, %v1038
      %v1040 = vrot.slane %v563, 1
      %v1041 = vsel %vm1026, %v1038, %v1040
      %v1042 = vrot.slane %v564, 1
      %v1043 = vsel %vm1026, %v1040, %v1042
      %v1044 = vrot.slane %v565, 1
      %v1045 = vsel %vm1026, %v1042, %v1044
      %v1046 = vrot.slane %v566, 1
      %v1047 = vsel %vm1026, %v1044, %v1046
      %v1048 = vrot.slane %v567, 1
      %v1049 = vsel %vm1026, %v1046, %v1048
      %v1050 = vrot.slane %v568, 1
      %v1051 = vsel %vm1026, %v1048, %v1050
      %v1052 = vrot.slane %v569, 1
      %v1053 = vsel %vm1026, %v1050, %v1052
      %v1054 = vrot.slane %v570, 1
      %v1055 = vsel %vm1026, %v1052, %v1054
      %v1056 = vrot.slane %v571, 1
      %v1057 = vsel %vm1026, %v1054, %v1056
      %v1058 = vrot.slane %v572, 1
      %v1059 = vsel %vm1026, %v1056, %v1058
      %v1060 = vrot.slane %v573, 1
      %v1061 = vsel %vm1026, %v1058, %v1060
      %v1062 = vrot.slane %v574, 1
      %v1063 = vsel %vm1026, %v1060, %v1062
      %v1065 = vsel %vm724, %v1029, 0
      %v1068 = vsel %vm724, %v1031, 0
      %v1071 = vsel %vm724, %v1033, 0
      %v1074 = vsel %vm724, %v1035, 0
      %v1077 = vsel %vm724, %v1037, 0
      %v1080 = vsel %vm724, %v1039, 0
      %v1083 = vsel %vm724, %v1041, 0
      %v1086 = vsel %vm724, %v1043, 0
      %v1089 = vsel %vm724, %v1045, 0
      %v1092 = vsel %vm724, %v1047, 0
      %v1095 = vsel %vm724, %v1049, 0
      %v1098 = vsel %vm724, %v1051, 0
      %v1101 = vsel %vm724, %v1053, 0
      %v1104 = vsel %vm724, %v1055, 0
      %v1107 = vsel %vm724, %v1057, 0
      %v1110 = vsel %vm724, %v1059, 0
      %v1113 = vsel %vm724, %v1061, 0
      %v1116 = vsel %vm724, %v1063, 0
      %v1119 = vsel %vm779, %v1022, 0
      %1121 = vmatpush.bf16.msra.mxu0 0
      %1122 = vmatpush.bf16.msra.mxu0 0
      %1123 = vmatpush.bf16.msra.mxu0 0
      %1124 = vmatpush.bf16.msra.mxu0 0
      %1125 = vmatpush.bf16.msra.mxu0 0
      %1126 = vmatpush.bf16.msra.mxu0 0
      %1127 = vmatpush.bf16.msra.mxu0 0
      %1128 = vmatpush.bf16.msra.mxu0 %v1119
      %1129 = vmatmul.bf16.gmra.mxu0 %v1065
      %v1130 = vpop.f32.mrf.mxu0
      %v1131 = vadd.f32 0.0, %v1130
      %v1132 = vpop.f32.mrf.mxu0
      %v1133 = vadd.f32 0.0, %v1132
      %1134 = vmatmul.bf16.gmra.mxu0 %v1068
      %v1135 = vpop.f32.mrf.mxu0
      %v1136 = vadd.f32 0.0, %v1135
      %v1137 = vpop.f32.mrf.mxu0
      %v1138 = vadd.f32 0.0, %v1137
      %1139 = vmatmul.bf16.gmra.mxu0 %v1071
      %v1140 = vpop.f32.mrf.mxu0
      %v1141 = vadd.f32 0.0, %v1140
      %v1142 = vpop.f32.mrf.mxu0
      %v1143 = vadd.f32 0.0, %v1142
      %1144 = vmatmul.bf16.gmra.mxu0 %v1074
      %v1145 = vpop.f32.mrf.mxu0
      %v1146 = vadd.f32 0.0, %v1145
      %v1147 = vpop.f32.mrf.mxu0
      %v1148 = vadd.f32 0.0, %v1147
      %1149 = vmatmul.bf16.gmra.mxu0 %v1077
      %v1150 = vpop.f32.mrf.mxu0
      %v1151 = vadd.f32 0.0, %v1150
      %v1152 = vpop.f32.mrf.mxu0
      %v1153 = vadd.f32 0.0, %v1152
      %1154 = vmatmul.bf16.gmra.mxu0 %v1080
      %v1155 = vpop.f32.mrf.mxu0
      %v1156 = vadd.f32 0.0, %v1155
      %v1157 = vpop.f32.mrf.mxu0
      %v1158 = vadd.f32 0.0, %v1157
      %1159 = vmatmul.bf16.gmra.mxu0 %v1083
      %v1160 = vpop.f32.mrf.mxu0
      %v1161 = vadd.f32 0.0, %v1160
      %v1162 = vpop.f32.mrf.mxu0
      %v1163 = vadd.f32 0.0, %v1162
      %1164 = vmatmul.bf16.gmra.mxu0 %v1086
      %v1165 = vpop.f32.mrf.mxu0
      %v1166 = vadd.f32 0.0, %v1165
      %v1167 = vpop.f32.mrf.mxu0
      %v1168 = vadd.f32 0.0, %v1167
      %1169 = vmatmul.bf16.gmra.mxu0 %v1089
      %v1170 = vpop.f32.mrf.mxu0
      %v1171 = vadd.f32 0.0, %v1170
      %v1172 = vpop.f32.mrf.mxu0
      %v1173 = vadd.f32 0.0, %v1172
      %1174 = vmatmul.bf16.gmra.mxu0 %v1092
      %v1175 = vpop.f32.mrf.mxu0
      %v1176 = vadd.f32 0.0, %v1175
      %v1177 = vpop.f32.mrf.mxu0
      %v1178 = vadd.f32 0.0, %v1177
      %1179 = vmatmul.bf16.gmra.mxu0 %v1095
      %v1180 = vpop.f32.mrf.mxu0
      %v1181 = vadd.f32 0.0, %v1180
      %v1182 = vpop.f32.mrf.mxu0
      %v1183 = vadd.f32 0.0, %v1182
      %1184 = vmatmul.bf16.gmra.mxu0 %v1098
      %v1185 = vpop.f32.mrf.mxu0
      %v1186 = vadd.f32 0.0, %v1185
      %v1187 = vpop.f32.mrf.mxu0
      %v1188 = vadd.f32 0.0, %v1187
      %1189 = vmatmul.bf16.gmra.mxu0 %v1101
      %v1190 = vpop.f32.mrf.mxu0
      %v1191 = vadd.f32 0.0, %v1190
      %v1192 = vpop.f32.mrf.mxu0
      %v1193 = vadd.f32 0.0, %v1192
      %1194 = vmatmul.bf16.gmra.mxu0 %v1104
      %v1195 = vpop.f32.mrf.mxu0
      %v1196 = vadd.f32 0.0, %v1195
      %v1197 = vpop.f32.mrf.mxu0
      %v1198 = vadd.f32 0.0, %v1197
      %1199 = vmatmul.bf16.gmra.mxu0 %v1107
      %v1200 = vpop.f32.mrf.mxu0
      %v1201 = vadd.f32 0.0, %v1200
      %v1202 = vpop.f32.mrf.mxu0
      %v1203 = vadd.f32 0.0, %v1202
      %1204 = vmatmul.bf16.gmra.mxu0 %v1110
      %v1205 = vpop.f32.mrf.mxu0
      %v1206 = vadd.f32 0.0, %v1205
      %v1207 = vpop.f32.mrf.mxu0
      %v1208 = vadd.f32 0.0, %v1207
      %1209 = vmatmul.bf16.gmra.mxu0 %v1113
      %v1210 = vpop.f32.mrf.mxu0
      %v1211 = vadd.f32 0.0, %v1210
      %v1212 = vpop.f32.mrf.mxu0
      %v1213 = vadd.f32 0.0, %v1212
      %1214 = vmatmul.bf16.gmra.mxu0 %v1116
      %v1215 = vpop.f32.mrf.mxu0
      %v1216 = vadd.f32 0.0, %v1215
      %v1217 = vpop.f32.mrf.mxu0
      %v1218 = vadd.f32 0.0, %v1217
      %1219 = vdwg.mxu0
      %v1220 = vadd.f32 %v931, %v1131
      %v1221 = vadd.f32 %v933, %v1133
      %v1222 = vadd.f32 %v936, %v1136
      %v1223 = vadd.f32 %v938, %v1138
      %v1224 = vadd.f32 %v941, %v1141
      %v1225 = vadd.f32 %v943, %v1143
      %v1226 = vadd.f32 %v946, %v1146
      %v1227 = vadd.f32 %v948, %v1148
      %v1228 = vadd.f32 %v951, %v1151
      %v1229 = vadd.f32 %v953, %v1153
      %v1230 = vadd.f32 %v956, %v1156
      %v1231 = vadd.f32 %v958, %v1158
      %v1232 = vadd.f32 %v961, %v1161
      %v1233 = vadd.f32 %v963, %v1163
      %v1234 = vadd.f32 %v966, %v1166
      %v1235 = vadd.f32 %v968, %v1168
      %v1236 = vadd.f32 %v971, %v1171
      %v1237 = vadd.f32 %v973, %v1173
      %v1238 = vadd.f32 %v976, %v1176
      %v1239 = vadd.f32 %v978, %v1178
      %v1240 = vadd.f32 %v981, %v1181
      %v1241 = vadd.f32 %v983, %v1183
      %v1242 = vadd.f32 %v986, %v1186
      %v1243 = vadd.f32 %v988, %v1188
      %v1244 = vadd.f32 %v991, %v1191
      %v1245 = vadd.f32 %v993, %v1193
      %v1246 = vadd.f32 %v996, %v1196
      %v1247 = vadd.f32 %v998, %v1198
      %v1248 = vadd.f32 %v1001, %v1201
      %v1249 = vadd.f32 %v1003, %v1203
      %v1250 = vadd.f32 %v1006, %v1206
      %v1251 = vadd.f32 %v1008, %v1208
      %v1252 = vadd.f32 %v1011, %v1211
      %v1253 = vadd.f32 %v1013, %v1213
      %v1254 = vadd.f32 %v1016, %v1216
      %v1255 = vadd.f32 %v1018, %v1218
      %v1256 = vld [vmem:[%s435 + $0x8] sm:$0xe]
      %v1257 = vld [vmem:[%s435 + $0xc] sm:$0xf]
      %v1258 = vld [vmem:[%s435 + $0x10] sm:$0xf]
      %v1259 = vld [vmem:[%s435 + $0x14] sm:$0xf]
      %v1260 = vld [vmem:[%s435 + $0x18] sm:$0xf]
      %v1261 = vld [vmem:[%s435 + $0x1c] sm:$0xf]
      %v1262 = vld [vmem:[%s435 + $0x20] sm:$0xf]
      %v1263 = vld [vmem:[%s435 + $0x24] sm:$0xf]
      %v1264 = vld [vmem:[%s435 + $0x28] sm:$0xf]
      %v1265 = vld [vmem:[%s435 + $0x2c] sm:$0xf]
      %v1266 = vld [vmem:[%s435 + $0x30] sm:$0xf]
      %v1267 = vld [vmem:[%s435 + $0x34] sm:$0xf]
      %v1268 = vld [vmem:[%s435 + $0x38] sm:$0xf]
      %v1269 = vld [vmem:[%s435 + $0x3c] sm:$0xf]
      %v1270 = vld [vmem:[%s435 + $0x40] sm:$0xf]
      %v1271 = vld [vmem:[%s435 + $0x44] sm:$0xf]
      %v1272 = vld [vmem:[%s435 + $0x48] sm:$0xf]
      %v1273 = vld [vmem:[%s435 + $0x4c] sm:$0xf]
      %v1274 = vld [vmem:[%s435 + $0x50] sm:$0xf]
      %v1275 = vld [vmem:[%s435 + $0x54] sm:$0xf]
      %v1276 = vld [vmem:[%s435 + $0x58] sm:$0xf]
      %v1277 = vld [vmem:[%s435 + $0x5c] sm:$0xf]
      %v1278 = vld [vmem:[%s435 + $0x60] sm:$0xf]
      %v1279 = vld [vmem:[%s435 + $0x64] sm:$0xf]
      %v1280 = vld [vmem:[%s435 + $0x68] sm:$0xf]
      %v1281 = vld [vmem:[%s435 + $0x6c] sm:$0xf]
      %v1282 = vld [vmem:[%s435 + $0x70] sm:$0xf]
      %v1283 = vld [vmem:[%s435 + $0x74] sm:$0xf]
      %v1284 = vld [vmem:[%s435 + $0x78] sm:$0xf]
      %v1285 = vld [vmem:[%s435 + $0x7c] sm:$0xf]
      %v1286 = vld [vmem:[%s435 + $0x80] sm:$0xf]
      %v1287 = vld [vmem:[%s435 + $0x84] sm:$0xf]
      %v1288 = vld [vmem:[%s435 + $0x88] sm:$0xf]
      %v1289 = vld [vmem:[%s435 + $0x8c] sm:$0xf]
      %v1290 = vld [vmem:[%s435 + $0x90] sm:$0xf]
      %v1291 = vld [vmem:[%s435 + $0x94] sm:$0xf]
      %v1292 = vld [vmem:[%s435 + $0x98] sm:$0x1]
      %s1293 = scalar_lea.vmem %s1, 12
      %v1294 = vld [vmem:[%s1293] sm:$0xf]
      %v1332 = vunpack.c.l.b16 %v1256
      %v1333 = vunpack.c.l.b16 %v1257
      %v1334 = vunpack.c.l.b16 %v1258
      %v1335 = vunpack.c.l.b16 %v1259
      %v1336 = vunpack.c.l.b16 %v1260
      %v1337 = vunpack.c.l.b16 %v1261
      %v1338 = vunpack.c.l.b16 %v1262
      %v1339 = vunpack.c.l.b16 %v1263
      %v1340 = vunpack.c.l.b16 %v1264
      %v1341 = vunpack.c.l.b16 %v1265
      %v1342 = vunpack.c.l.b16 %v1266
      %v1343 = vunpack.c.l.b16 %v1267
      %v1344 = vunpack.c.l.b16 %v1268
      %v1345 = vunpack.c.l.b16 %v1269
      %v1346 = vunpack.c.l.b16 %v1270
      %v1347 = vunpack.c.l.b16 %v1271
      %v1348 = vunpack.c.l.b16 %v1272
      %v1349 = vunpack.c.l.b16 %v1273
      %v1350 = vunpack.c.l.b16 %v1274
      %v1351 = vunpack.c.l.b16 %v1275
      %v1352 = vunpack.c.l.b16 %v1276
      %v1353 = vunpack.c.l.b16 %v1277
      %v1354 = vunpack.c.l.b16 %v1278
      %v1355 = vunpack.c.l.b16 %v1279
      %v1356 = vunpack.c.l.b16 %v1280
      %v1357 = vunpack.c.l.b16 %v1281
      %v1358 = vunpack.c.l.b16 %v1282
      %v1359 = vunpack.c.l.b16 %v1283
      %v1360 = vunpack.c.l.b16 %v1284
      %v1361 = vunpack.c.l.b16 %v1285
      %v1362 = vunpack.c.l.b16 %v1286
      %v1363 = vunpack.c.l.b16 %v1287
      %v1364 = vunpack.c.l.b16 %v1288
      %v1365 = vunpack.c.l.b16 %v1289
      %v1366 = vunpack.c.l.b16 %v1290
      %v1367 = vunpack.c.l.b16 %v1291
      %v1368 = vunpack.c.l.b16 %v1292
      %v1369 = vpack.c.b16 %v1333, %v1332
      %v1370 = vpack.c.b16 %v1335, %v1334
      %v1371 = vpack.c.b16 %v1337, %v1336
      %v1372 = vpack.c.b16 %v1339, %v1338
      %v1373 = vpack.c.b16 %v1341, %v1340
      %v1374 = vpack.c.b16 %v1343, %v1342
      %v1375 = vpack.c.b16 %v1345, %v1344
      %v1376 = vpack.c.b16 %v1347, %v1346
      %v1377 = vpack.c.b16 %v1349, %v1348
      %v1378 = vpack.c.b16 %v1351, %v1350
      %v1379 = vpack.c.b16 %v1353, %v1352
      %v1380 = vpack.c.b16 %v1355, %v1354
      %v1381 = vpack.c.b16 %v1357, %v1356
      %v1382 = vpack.c.b16 %v1359, %v1358
      %v1383 = vpack.c.b16 %v1361, %v1360
      %v1384 = vpack.c.b16 %v1363, %v1362
      %v1385 = vpack.c.b16 %v1365, %v1364
      %v1386 = vpack.c.b16 %v1367, %v1366
      %v1387 = vpack.c.b16 %v1368, %v1368
      %v1388 = vrot.slane %v1369, 1
      %v1389 = vrot.slane %v1370, 1
      %v1390 = vsel %vm1026, %v1388, %v1389
      %v1391 = vrot.slane %v1371, 1
      %v1392 = vsel %vm1026, %v1389, %v1391
      %v1393 = vrot.slane %v1372, 1
      %v1394 = vsel %vm1026, %v1391, %v1393
      %v1395 = vrot.slane %v1373, 1
      %v1396 = vsel %vm1026, %v1393, %v1395
      %v1397 = vrot.slane %v1374, 1
      %v1398 = vsel %vm1026, %v1395, %v1397
      %v1399 = vrot.slane %v1375, 1
      %v1400 = vsel %vm1026, %v1397, %v1399
      %v1401 = vrot.slane %v1376, 1
      %v1402 = vsel %vm1026, %v1399, %v1401
      %v1403 = vrot.slane %v1377, 1
      %v1404 = vsel %vm1026, %v1401, %v1403
      %v1405 = vrot.slane %v1378, 1
      %v1406 = vsel %vm1026, %v1403, %v1405
      %v1407 = vrot.slane %v1379, 1
      %v1408 = vsel %vm1026, %v1405, %v1407
      %v1409 = vrot.slane %v1380, 1
      %v1410 = vsel %vm1026, %v1407, %v1409
      %v1411 = vrot.slane %v1381, 1
      %v1412 = vsel %vm1026, %v1409, %v1411
      %v1413 = vrot.slane %v1382, 1
      %v1414 = vsel %vm1026, %v1411, %v1413
      %v1415 = vrot.slane %v1383, 1
      %v1416 = vsel %vm1026, %v1413, %v1415
      %v1417 = vrot.slane %v1384, 1
      %v1418 = vsel %vm1026, %v1415, %v1417
      %v1419 = vrot.slane %v1385, 1
      %v1420 = vsel %vm1026, %v1417, %v1419
      %v1421 = vrot.slane %v1386, 1
      %v1422 = vsel %vm1026, %v1419, %v1421
      %v1423 = vrot.slane %v1387, 1
      %v1424 = vsel %vm1026, %v1421, %v1423
      %v1426 = vsel %vm724, %v1390, 0
      %v1429 = vsel %vm724, %v1392, 0
      %v1432 = vsel %vm724, %v1394, 0
      %v1435 = vsel %vm724, %v1396, 0
      %v1438 = vsel %vm724, %v1398, 0
      %v1441 = vsel %vm724, %v1400, 0
      %v1444 = vsel %vm724, %v1402, 0
      %v1447 = vsel %vm724, %v1404, 0
      %v1450 = vsel %vm724, %v1406, 0
      %v1453 = vsel %vm724, %v1408, 0
      %v1456 = vsel %vm724, %v1410, 0
      %v1459 = vsel %vm724, %v1412, 0
      %v1462 = vsel %vm724, %v1414, 0
      %v1465 = vsel %vm724, %v1416, 0
      %v1468 = vsel %vm724, %v1418, 0
      %v1471 = vsel %vm724, %v1420, 0
      %v1474 = vsel %vm724, %v1422, 0
      %v1477 = vsel %vm724, %v1424, 0
      %v1480 = vsel %vm779, %v1294, 0
      %1482 = vmatpush.bf16.msra.mxu0 0
      %1483 = vmatpush.bf16.msra.mxu0 0
      %1484 = vmatpush.bf16.msra.mxu0 0
      %1485 = vmatpush.bf16.msra.mxu0 0
      %1486 = vmatpush.bf16.msra.mxu0 0
      %1487 = vmatpush.bf16.msra.mxu0 0
      %1488 = vmatpush.bf16.msra.mxu0 0
      %1489 = vmatpush.bf16.msra.mxu0 %v1480
      %1490 = vmatmul.bf16.gmra.mxu0 %v1426
      %v1491 = vpop.f32.mrf.mxu0
      %v1492 = vadd.f32 0.0, %v1491
      %v1493 = vpop.f32.mrf.mxu0
      %v1494 = vadd.f32 0.0, %v1493
      %1495 = vmatmul.bf16.gmra.mxu0 %v1429
      %v1496 = vpop.f32.mrf.mxu0
      %v1497 = vadd.f32 0.0, %v1496
      %v1498 = vpop.f32.mrf.mxu0
      %v1499 = vadd.f32 0.0, %v1498
      %1500 = vmatmul.bf16.gmra.mxu0 %v1432
      %v1501 = vpop.f32.mrf.mxu0
      %v1502 = vadd.f32 0.0, %v1501
      %v1503 = vpop.f32.mrf.mxu0
      %v1504 = vadd.f32 0.0, %v1503
      %1505 = vmatmul.bf16.gmra.mxu0 %v1435
      %v1506 = vpop.f32.mrf.mxu0
      %v1507 = vadd.f32 0.0, %v1506
      %v1508 = vpop.f32.mrf.mxu0
      %v1509 = vadd.f32 0.0, %v1508
      %1510 = vmatmul.bf16.gmra.mxu0 %v1438
      %v1511 = vpop.f32.mrf.mxu0
      %v1512 = vadd.f32 0.0, %v1511
      %v1513 = vpop.f32.mrf.mxu0
      %v1514 = vadd.f32 0.0, %v1513
      %1515 = vmatmul.bf16.gmra.mxu0 %v1441
      %v1516 = vpop.f32.mrf.mxu0
      %v1517 = vadd.f32 0.0, %v1516
      %v1518 = vpop.f32.mrf.mxu0
      %v1519 = vadd.f32 0.0, %v1518
      %1520 = vmatmul.bf16.gmra.mxu0 %v1444
      %v1521 = vpop.f32.mrf.mxu0
      %v1522 = vadd.f32 0.0, %v1521
      %v1523 = vpop.f32.mrf.mxu0
      %v1524 = vadd.f32 0.0, %v1523
      %1525 = vmatmul.bf16.gmra.mxu0 %v1447
      %v1526 = vpop.f32.mrf.mxu0
      %v1527 = vadd.f32 0.0, %v1526
      %v1528 = vpop.f32.mrf.mxu0
      %v1529 = vadd.f32 0.0, %v1528
      %1530 = vmatmul.bf16.gmra.mxu0 %v1450
      %v1531 = vpop.f32.mrf.mxu0
      %v1532 = vadd.f32 0.0, %v1531
      %v1533 = vpop.f32.mrf.mxu0
      %v1534 = vadd.f32 0.0, %v1533
      %1535 = vmatmul.bf16.gmra.mxu0 %v1453
      %v1536 = vpop.f32.mrf.mxu0
      %v1537 = vadd.f32 0.0, %v1536
      %v1538 = vpop.f32.mrf.mxu0
      %v1539 = vadd.f32 0.0, %v1538
      %1540 = vmatmul.bf16.gmra.mxu0 %v1456
      %v1541 = vpop.f32.mrf.mxu0
      %v1542 = vadd.f32 0.0, %v1541
      %v1543 = vpop.f32.mrf.mxu0
      %v1544 = vadd.f32 0.0, %v1543
      %1545 = vmatmul.bf16.gmra.mxu0 %v1459
      %v1546 = vpop.f32.mrf.mxu0
      %v1547 = vadd.f32 0.0, %v1546
      %v1548 = vpop.f32.mrf.mxu0
      %v1549 = vadd.f32 0.0, %v1548
      %1550 = vmatmul.bf16.gmra.mxu0 %v1462
      %v1551 = vpop.f32.mrf.mxu0
      %v1552 = vadd.f32 0.0, %v1551
      %v1553 = vpop.f32.mrf.mxu0
      %v1554 = vadd.f32 0.0, %v1553
      %1555 = vmatmul.bf16.gmra.mxu0 %v1465
      %v1556 = vpop.f32.mrf.mxu0
      %v1557 = vadd.f32 0.0, %v1556
      %v1558 = vpop.f32.mrf.mxu0
      %v1559 = vadd.f32 0.0, %v1558
      %1560 = vmatmul.bf16.gmra.mxu0 %v1468
      %v1561 = vpop.f32.mrf.mxu0
      %v1562 = vadd.f32 0.0, %v1561
      %v1563 = vpop.f32.mrf.mxu0
      %v1564 = vadd.f32 0.0, %v1563
      %1565 = vmatmul.bf16.gmra.mxu0 %v1471
      %v1566 = vpop.f32.mrf.mxu0
      %v1567 = vadd.f32 0.0, %v1566
      %v1568 = vpop.f32.mrf.mxu0
      %v1569 = vadd.f32 0.0, %v1568
      %1570 = vmatmul.bf16.gmra.mxu0 %v1474
      %v1571 = vpop.f32.mrf.mxu0
      %v1572 = vadd.f32 0.0, %v1571
      %v1573 = vpop.f32.mrf.mxu0
      %v1574 = vadd.f32 0.0, %v1573
      %1575 = vmatmul.bf16.gmra.mxu0 %v1477
      %v1576 = vpop.f32.mrf.mxu0
      %v1577 = vadd.f32 0.0, %v1576
      %v1578 = vpop.f32.mrf.mxu0
      %v1579 = vadd.f32 0.0, %v1578
      %1580 = vdwg.mxu0
      %v1581 = vadd.f32 %v1220, %v1492
      %v1582 = vadd.f32 %v1221, %v1494
      %v1583 = vadd.f32 %v1222, %v1497
      %v1584 = vadd.f32 %v1223, %v1499
      %v1585 = vadd.f32 %v1224, %v1502
      %v1586 = vadd.f32 %v1225, %v1504
      %v1587 = vadd.f32 %v1226, %v1507
      %v1588 = vadd.f32 %v1227, %v1509
      %v1589 = vadd.f32 %v1228, %v1512
      %v1590 = vadd.f32 %v1229, %v1514
      %v1591 = vadd.f32 %v1230, %v1517
      %v1592 = vadd.f32 %v1231, %v1519
      %v1593 = vadd.f32 %v1232, %v1522
      %v1594 = vadd.f32 %v1233, %v1524
      %v1595 = vadd.f32 %v1234, %v1527
      %v1596 = vadd.f32 %v1235, %v1529
      %v1597 = vadd.f32 %v1236, %v1532
      %v1598 = vadd.f32 %v1237, %v1534
      %v1599 = vadd.f32 %v1238, %v1537
      %v1600 = vadd.f32 %v1239, %v1539
      %v1601 = vadd.f32 %v1240, %v1542
      %v1602 = vadd.f32 %v1241, %v1544
      %v1603 = vadd.f32 %v1242, %v1547
      %v1604 = vadd.f32 %v1243, %v1549
      %v1605 = vadd.f32 %v1244, %v1552
      %v1606 = vadd.f32 %v1245, %v1554
      %v1607 = vadd.f32 %v1246, %v1557
      %v1608 = vadd.f32 %v1247, %v1559
      %v1609 = vadd.f32 %v1248, %v1562
      %v1610 = vadd.f32 %v1249, %v1564
      %v1611 = vadd.f32 %v1250, %v1567
      %v1612 = vadd.f32 %v1251, %v1569
      %v1613 = vadd.f32 %v1252, %v1572
      %v1614 = vadd.f32 %v1253, %v1574
      %v1615 = vadd.f32 %v1254, %v1577
      %v1616 = vadd.f32 %v1255, %v1579
      %v1617 = vld [vmem:[%s435 + $0x98] sm:$0x3]
      %s1618 = scalar_lea.vmem %s1, 16
      %v1619 = vld [vmem:[%s1618] sm:$0xf]
      %v1621 = vunpack.c.l.b16 %v1617
      %v1622 = vpack.c.b16 %v1621, %v1621
      %vm1623 = vsmask.f32 6400
      %v1625 = vshrl.u32 %v1369, 16
      %v1627 = vrot.slane %v1625, 1
      %v1628 = vshll.u32 %v1369, 16
      %v1630 = vrot.slane %v1628, 2
      %v1631 = vor.u32 %v1627, %v1630
      %v1633 = vshrl.u32 %v1370, 16
      %v1635 = vrot.slane %v1633, 1
      %v1636 = vshll.u32 %v1370, 16
      %v1638 = vrot.slane %v1636, 2
      %v1639 = vor.u32 %v1635, %v1638
      %v1640 = vsel %vm1623, %v1631, %v1639
      %v1642 = vshrl.u32 %v1371, 16
      %v1644 = vrot.slane %v1642, 1
      %v1645 = vshll.u32 %v1371, 16
      %v1647 = vrot.slane %v1645, 2
      %v1648 = vor.u32 %v1644, %v1647
      %v1649 = vsel %vm1623, %v1639, %v1648
      %v1651 = vshrl.u32 %v1372, 16
      %v1653 = vrot.slane %v1651, 1
      %v1654 = vshll.u32 %v1372, 16
      %v1656 = vrot.slane %v1654, 2
      %v1657 = vor.u32 %v1653, %v1656
      %v1658 = vsel %vm1623, %v1648, %v1657
      %v1660 = vshrl.u32 %v1373, 16
      %v1662 = vrot.slane %v1660, 1
      %v1663 = vshll.u32 %v1373, 16
      %v1665 = vrot.slane %v1663, 2
      %v1666 = vor.u32 %v1662, %v1665
      %v1667 = vsel %vm1623, %v1657, %v1666
      %v1669 = vshrl.u32 %v1374, 16
      %v1671 = vrot.slane %v1669, 1
      %v1672 = vshll.u32 %v1374, 16
      %v1674 = vrot.slane %v1672, 2
      %v1675 = vor.u32 %v1671, %v1674
      %v1676 = vsel %vm1623, %v1666, %v1675
      %v1678 = vshrl.u32 %v1375, 16
      %v1680 = vrot.slane %v1678, 1
      %v1681 = vshll.u32 %v1375, 16
      %v1683 = vrot.slane %v1681, 2
      %v1684 = vor.u32 %v1680, %v1683
      %v1685 = vsel %vm1623, %v1675, %v1684
      %v1687 = vshrl.u32 %v1376, 16
      %v1689 = vrot.slane %v1687, 1
      %v1690 = vshll.u32 %v1376, 16
      %v1692 = vrot.slane %v1690, 2
      %v1693 = vor.u32 %v1689, %v1692
      %v1694 = vsel %vm1623, %v1684, %v1693
      %v1696 = vshrl.u32 %v1377, 16
      %v1698 = vrot.slane %v1696, 1
      %v1699 = vshll.u32 %v1377, 16
      %v1701 = vrot.slane %v1699, 2
      %v1702 = vor.u32 %v1698, %v1701
      %v1703 = vsel %vm1623, %v1693, %v1702
      %v1705 = vshrl.u32 %v1378, 16
      %v1707 = vrot.slane %v1705, 1
      %v1708 = vshll.u32 %v1378, 16
      %v1710 = vrot.slane %v1708, 2
      %v1711 = vor.u32 %v1707, %v1710
      %v1712 = vsel %vm1623, %v1702, %v1711
      %v1714 = vshrl.u32 %v1379, 16
      %v1716 = vrot.slane %v1714, 1
      %v1717 = vshll.u32 %v1379, 16
      %v1719 = vrot.slane %v1717, 2
      %v1720 = vor.u32 %v1716, %v1719
      %v1721 = vsel %vm1623, %v1711, %v1720
      %v1723 = vshrl.u32 %v1380, 16
      %v1725 = vrot.slane %v1723, 1
      %v1726 = vshll.u32 %v1380, 16
      %v1728 = vrot.slane %v1726, 2
      %v1729 = vor.u32 %v1725, %v1728
      %v1730 = vsel %vm1623, %v1720, %v1729
      %v1732 = vshrl.u32 %v1381, 16
      %v1734 = vrot.slane %v1732, 1
      %v1735 = vshll.u32 %v1381, 16
      %v1737 = vrot.slane %v1735, 2
      %v1738 = vor.u32 %v1734, %v1737
      %v1739 = vsel %vm1623, %v1729, %v1738
      %v1741 = vshrl.u32 %v1382, 16
      %v1743 = vrot.slane %v1741, 1
      %v1744 = vshll.u32 %v1382, 16
      %v1746 = vrot.slane %v1744, 2
      %v1747 = vor.u32 %v1743, %v1746
      %v1748 = vsel %vm1623, %v1738, %v1747
      %v1750 = vshrl.u32 %v1383, 16
      %v1752 = vrot.slane %v1750, 1
      %v1753 = vshll.u32 %v1383, 16
      %v1755 = vrot.slane %v1753, 2
      %v1756 = vor.u32 %v1752, %v1755
      %v1757 = vsel %vm1623, %v1747, %v1756
      %v1759 = vshrl.u32 %v1384, 16
      %v1761 = vrot.slane %v1759, 1
      %v1762 = vshll.u32 %v1384, 16
      %v1764 = vrot.slane %v1762, 2
      %v1765 = vor.u32 %v1761, %v1764
      %v1766 = vsel %vm1623, %v1756, %v1765
      %v1768 = vshrl.u32 %v1385, 16
      %v1770 = vrot.slane %v1768, 1
      %v1771 = vshll.u32 %v1385, 16
      %v1773 = vrot.slane %v1771, 2
      %v1774 = vor.u32 %v1770, %v1773
      %v1775 = vsel %vm1623, %v1765, %v1774
      %v1777 = vshrl.u32 %v1386, 16
      %v1779 = vrot.slane %v1777, 1
      %v1780 = vshll.u32 %v1386, 16
      %v1782 = vrot.slane %v1780, 2
      %v1783 = vor.u32 %v1779, %v1782
      %v1784 = vsel %vm1623, %v1774, %v1783
      %v1786 = vshrl.u32 %v1622, 16
      %v1788 = vrot.slane %v1786, 1
      %v1789 = vshll.u32 %v1622, 16
      %v1791 = vrot.slane %v1789, 2
      %v1792 = vor.u32 %v1788, %v1791
      %v1793 = vsel %vm1623, %v1783, %v1792
      %v1795 = vsel %vm724, %v1640, 0
      %v1798 = vsel %vm724, %v1649, 0
      %v1801 = vsel %vm724, %v1658, 0
      %v1804 = vsel %vm724, %v1667, 0
      %v1807 = vsel %vm724, %v1676, 0
      %v1810 = vsel %vm724, %v1685, 0
      %v1813 = vsel %vm724, %v1694, 0
      %v1816 = vsel %vm724, %v1703, 0
      %v1819 = vsel %vm724, %v1712, 0
      %v1822 = vsel %vm724, %v1721, 0
      %v1825 = vsel %vm724, %v1730, 0
      %v1828 = vsel %vm724, %v1739, 0
      %v1831 = vsel %vm724, %v1748, 0
      %v1834 = vsel %vm724, %v1757, 0
      %v1837 = vsel %vm724, %v1766, 0
      %v1840 = vsel %vm724, %v1775, 0
      %v1843 = vsel %vm724, %v1784, 0
      %v1846 = vsel %vm724, %v1793, 0
      %v1849 = vsel %vm779, %v1619, 0
      %1851 = vmatpush.bf16.msra.mxu0 0
      %1852 = vmatpush.bf16.msra.mxu0 0
      %1853 = vmatpush.bf16.msra.mxu0 0
      %1854 = vmatpush.bf16.msra.mxu0 0
      %1855 = vmatpush.bf16.msra.mxu0 0
      %1856 = vmatpush.bf16.msra.mxu0 0
      %1857 = vmatpush.bf16.msra.mxu0 0
      %1858 = vmatpush.bf16.msra.mxu0 %v1849
      %1859 = vmatmul.bf16.gmra.mxu0 %v1795
      %v1860 = vpop.f32.mrf.mxu0
      %v1861 = vadd.f32 0.0, %v1860
      %v1862 = vpop.f32.mrf.mxu0
      %v1863 = vadd.f32 0.0, %v1862
      %1864 = vmatmul.bf16.gmra.mxu0 %v1798
      %v1865 = vpop.f32.mrf.mxu0
      %v1866 = vadd.f32 0.0, %v1865
      %v1867 = vpop.f32.mrf.mxu0
      %v1868 = vadd.f32 0.0, %v1867
      %1869 = vmatmul.bf16.gmra.mxu0 %v1801
      %v1870 = vpop.f32.mrf.mxu0
      %v1871 = vadd.f32 0.0, %v1870
      %v1872 = vpop.f32.mrf.mxu0
      %v1873 = vadd.f32 0.0, %v1872
      %1874 = vmatmul.bf16.gmra.mxu0 %v1804
      %v1875 = vpop.f32.mrf.mxu0
      %v1876 = vadd.f32 0.0, %v1875
      %v1877 = vpop.f32.mrf.mxu0
      %v1878 = vadd.f32 0.0, %v1877
      %1879 = vmatmul.bf16.gmra.mxu0 %v1807
      %v1880 = vpop.f32.mrf.mxu0
      %v1881 = vadd.f32 0.0, %v1880
      %v1882 = vpop.f32.mrf.mxu0
      %v1883 = vadd.f32 0.0, %v1882
      %1884 = vmatmul.bf16.gmra.mxu0 %v1810
      %v1885 = vpop.f32.mrf.mxu0
      %v1886 = vadd.f32 0.0, %v1885
      %v1887 = vpop.f32.mrf.mxu0
      %v1888 = vadd.f32 0.0, %v1887
      %1889 = vmatmul.bf16.gmra.mxu0 %v1813
      %v1890 = vpop.f32.mrf.mxu0
      %v1891 = vadd.f32 0.0, %v1890
      %v1892 = vpop.f32.mrf.mxu0
      %v1893 = vadd.f32 0.0, %v1892
      %1894 = vmatmul.bf16.gmra.mxu0 %v1816
      %v1895 = vpop.f32.mrf.mxu0
      %v1896 = vadd.f32 0.0, %v1895
      %v1897 = vpop.f32.mrf.mxu0
      %v1898 = vadd.f32 0.0, %v1897
      %1899 = vmatmul.bf16.gmra.mxu0 %v1819
      %v1900 = vpop.f32.mrf.mxu0
      %v1901 = vadd.f32 0.0, %v1900
      %v1902 = vpop.f32.mrf.mxu0
      %v1903 = vadd.f32 0.0, %v1902
      %1904 = vmatmul.bf16.gmra.mxu0 %v1822
      %v1905 = vpop.f32.mrf.mxu0
      %v1906 = vadd.f32 0.0, %v1905
      %v1907 = vpop.f32.mrf.mxu0
      %v1908 = vadd.f32 0.0, %v1907
      %1909 = vmatmul.bf16.gmra.mxu0 %v1825
      %v1910 = vpop.f32.mrf.mxu0
      %v1911 = vadd.f32 0.0, %v1910
      %v1912 = vpop.f32.mrf.mxu0
      %v1913 = vadd.f32 0.0, %v1912
      %1914 = vmatmul.bf16.gmra.mxu0 %v1828
      %v1915 = vpop.f32.mrf.mxu0
      %v1916 = vadd.f32 0.0, %v1915
      %v1917 = vpop.f32.mrf.mxu0
      %v1918 = vadd.f32 0.0, %v1917
      %1919 = vmatmul.bf16.gmra.mxu0 %v1831
      %v1920 = vpop.f32.mrf.mxu0
      %v1921 = vadd.f32 0.0, %v1920
      %v1922 = vpop.f32.mrf.mxu0
      %v1923 = vadd.f32 0.0, %v1922
      %1924 = vmatmul.bf16.gmra.mxu0 %v1834
      %v1925 = vpop.f32.mrf.mxu0
      %v1926 = vadd.f32 0.0, %v1925
      %v1927 = vpop.f32.mrf.mxu0
      %v1928 = vadd.f32 0.0, %v1927
      %1929 = vmatmul.bf16.gmra.mxu0 %v1837
      %v1930 = vpop.f32.mrf.mxu0
      %v1931 = vadd.f32 0.0, %v1930
      %v1932 = vpop.f32.mrf.mxu0
      %v1933 = vadd.f32 0.0, %v1932
      %1934 = vmatmul.bf16.gmra.mxu0 %v1840
      %v1935 = vpop.f32.mrf.mxu0
      %v1936 = vadd.f32 0.0, %v1935
      %v1937 = vpop.f32.mrf.mxu0
      %v1938 = vadd.f32 0.0, %v1937
      %1939 = vmatmul.bf16.gmra.mxu0 %v1843
      %v1940 = vpop.f32.mrf.mxu0
      %v1941 = vadd.f32 0.0, %v1940
      %v1942 = vpop.f32.mrf.mxu0
      %v1943 = vadd.f32 0.0, %v1942
      %1944 = vmatmul.bf16.gmra.mxu0 %v1846
      %v1945 = vpop.f32.mrf.mxu0
      %v1946 = vadd.f32 0.0, %v1945
      %v1947 = vpop.f32.mrf.mxu0
      %v1948 = vadd.f32 0.0, %v1947
      %1949 = vdwg.mxu0
      %v1950 = vadd.f32 %v1581, %v1861
      %v1951 = vadd.f32 %v1582, %v1863
      %v1952 = vadd.f32 %v1583, %v1866
      %v1953 = vadd.f32 %v1584, %v1868
      %v1954 = vadd.f32 %v1585, %v1871
      %v1955 = vadd.f32 %v1586, %v1873
      %v1956 = vadd.f32 %v1587, %v1876
      %v1957 = vadd.f32 %v1588, %v1878
      %v1958 = vadd.f32 %v1589, %v1881
      %v1959 = vadd.f32 %v1590, %v1883
      %v1960 = vadd.f32 %v1591, %v1886
      %v1961 = vadd.f32 %v1592, %v1888
      %v1962 = vadd.f32 %v1593, %v1891
      %v1963 = vadd.f32 %v1594, %v1893
      %v1964 = vadd.f32 %v1595, %v1896
      %v1965 = vadd.f32 %v1596, %v1898
      %v1966 = vadd.f32 %v1597, %v1901
      %v1967 = vadd.f32 %v1598, %v1903
      %v1968 = vadd.f32 %v1599, %v1906
      %v1969 = vadd.f32 %v1600, %v1908
      %v1970 = vadd.f32 %v1601, %v1911
      %v1971 = vadd.f32 %v1602, %v1913
      %v1972 = vadd.f32 %v1603, %v1916
      %v1973 = vadd.f32 %v1604, %v1918
      %v1974 = vadd.f32 %v1605, %v1921
      %v1975 = vadd.f32 %v1606, %v1923
      %v1976 = vadd.f32 %v1607, %v1926
      %v1977 = vadd.f32 %v1608, %v1928
      %v1978 = vadd.f32 %v1609, %v1931
      %v1979 = vadd.f32 %v1610, %v1933
      %v1980 = vadd.f32 %v1611, %v1936
      %v1981 = vadd.f32 %v1612, %v1938
      %v1982 = vadd.f32 %v1613, %v1941
      %v1983 = vadd.f32 %v1614, %v1943
      %v1984 = vadd.f32 %v1615, %v1946
      %v1985 = vadd.f32 %v1616, %v1948
      %v1986 = vld [vmem:[%s435 + $0x8] sm:$0xc]
      %s1987 = scalar_lea.vmem %s1, 20
      %v1988 = vld [vmem:[%s1987] sm:$0xf]
      %v1990 = vunpack.c.l.b16 %v1986
      %v1991 = vpack.c.b16 %v1333, %v1990
      %vm1992 = vcmask 1045504
      %v1993 = vrot.slane %v1991, 2
      %v1994 = vrot.slane %v1370, 2
      %v1995 = vsel %vm1992, %v1993, %v1994
      %v1996 = vrot.slane %v1371, 2
      %v1997 = vsel %vm1992, %v1994, %v1996
      %v1998 = vrot.slane %v1372, 2
      %v1999 = vsel %vm1992, %v1996, %v1998
      %v2000 = vrot.slane %v1373, 2
      %v2001 = vsel %vm1992, %v1998, %v2000
      %v2002 = vrot.slane %v1374, 2
      %v2003 = vsel %vm1992, %v2000, %v2002
      %v2004 = vrot.slane %v1375, 2
      %v2005 = vsel %vm1992, %v2002, %v2004
      %v2006 = vrot.slane %v1376, 2
      %v2007 = vsel %vm1992, %v2004, %v2006
      %v2008 = vrot.slane %v1377, 2
      %v2009 = vsel %vm1992, %v2006, %v2008
      %v2010 = vrot.slane %v1378, 2
      %v2011 = vsel %vm1992, %v2008, %v2010
      %v2012 = vrot.slane %v1379, 2
      %v2013 = vsel %vm1992, %v2010, %v2012
      %v2014 = vrot.slane %v1380, 2
      %v2015 = vsel %vm1992, %v2012, %v2014
      %v2016 = vrot.slane %v1381, 2
      %v2017 = vsel %vm1992, %v2014, %v2016
      %v2018 = vrot.slane %v1382, 2
      %v2019 = vsel %vm1992, %v2016, %v2018
      %v2020 = vrot.slane %v1383, 2
      %v2021 = vsel %vm1992, %v2018, %v2020
      %v2022 = vrot.slane %v1384, 2
      %v2023 = vsel %vm1992, %v2020, %v2022
      %v2024 = vrot.slane %v1385, 2
      %v2025 = vsel %vm1992, %v2022, %v2024
      %v2026 = vrot.slane %v1386, 2
      %v2027 = vsel %vm1992, %v2024, %v2026
      %v2028 = vrot.slane %v1622, 2
      %v2029 = vsel %vm1992, %v2026, %v2028
      %v2031 = vsel %vm724, %v1995, 0
      %v2034 = vsel %vm724, %v1997, 0
      %v2037 = vsel %vm724, %v1999, 0
      %v2040 = vsel %vm724, %v2001, 0
      %v2043 = vsel %vm724, %v2003, 0
      %v2046 = vsel %vm724, %v2005, 0
      %v2049 = vsel %vm724, %v2007, 0
      %v2052 = vsel %vm724, %v2009, 0
      %v2055 = vsel %vm724, %v2011, 0
      %v2058 = vsel %vm724, %v2013, 0
      %v2061 = vsel %vm724, %v2015, 0
      %v2064 = vsel %vm724, %v2017, 0
      %v2067 = vsel %vm724, %v2019, 0
      %v2070 = vsel %vm724, %v2021, 0
      %v2073 = vsel %vm724, %v2023, 0
      %v2076 = vsel %vm724, %v2025, 0
      %v2079 = vsel %vm724, %v2027, 0
      %v2082 = vsel %vm724, %v2029, 0
      %v2085 = vsel %vm779, %v1988, 0
      %2087 = vmatpush.bf16.msra.mxu0 0
      %2088 = vmatpush.bf16.msra.mxu0 0
      %2089 = vmatpush.bf16.msra.mxu0 0
      %2090 = vmatpush.bf16.msra.mxu0 0
      %2091 = vmatpush.bf16.msra.mxu0 0
      %2092 = vmatpush.bf16.msra.mxu0 0
      %2093 = vmatpush.bf16.msra.mxu0 0
      %2094 = vmatpush.bf16.msra.mxu0 %v2085
      %2095 = vmatmul.bf16.gmra.mxu0 %v2031
      %v2096 = vpop.f32.mrf.mxu0
      %v2097 = vadd.f32 0.0, %v2096
      %v2098 = vpop.f32.mrf.mxu0
      %v2099 = vadd.f32 0.0, %v2098
      %2100 = vmatmul.bf16.gmra.mxu0 %v2034
      %v2101 = vpop.f32.mrf.mxu0
      %v2102 = vadd.f32 0.0, %v2101
      %v2103 = vpop.f32.mrf.mxu0
      %v2104 = vadd.f32 0.0, %v2103
      %2105 = vmatmul.bf16.gmra.mxu0 %v2037
      %v2106 = vpop.f32.mrf.mxu0
      %v2107 = vadd.f32 0.0, %v2106
      %v2108 = vpop.f32.mrf.mxu0
      %v2109 = vadd.f32 0.0, %v2108
      %2110 = vmatmul.bf16.gmra.mxu0 %v2040
      %v2111 = vpop.f32.mrf.mxu0
      %v2112 = vadd.f32 0.0, %v2111
      %v2113 = vpop.f32.mrf.mxu0
      %v2114 = vadd.f32 0.0, %v2113
      %2115 = vmatmul.bf16.gmra.mxu0 %v2043
      %v2116 = vpop.f32.mrf.mxu0
      %v2117 = vadd.f32 0.0, %v2116
      %v2118 = vpop.f32.mrf.mxu0
      %v2119 = vadd.f32 0.0, %v2118
      %2120 = vmatmul.bf16.gmra.mxu0 %v2046
      %v2121 = vpop.f32.mrf.mxu0
      %v2122 = vadd.f32 0.0, %v2121
      %v2123 = vpop.f32.mrf.mxu0
      %v2124 = vadd.f32 0.0, %v2123
      %2125 = vmatmul.bf16.gmra.mxu0 %v2049
      %v2126 = vpop.f32.mrf.mxu0
      %v2127 = vadd.f32 0.0, %v2126
      %v2128 = vpop.f32.mrf.mxu0
      %v2129 = vadd.f32 0.0, %v2128
      %2130 = vmatmul.bf16.gmra.mxu0 %v2052
      %v2131 = vpop.f32.mrf.mxu0
      %v2132 = vadd.f32 0.0, %v2131
      %v2133 = vpop.f32.mrf.mxu0
      %v2134 = vadd.f32 0.0, %v2133
      %2135 = vmatmul.bf16.gmra.mxu0 %v2055
      %v2136 = vpop.f32.mrf.mxu0
      %v2137 = vadd.f32 0.0, %v2136
      %v2138 = vpop.f32.mrf.mxu0
      %v2139 = vadd.f32 0.0, %v2138
      %2140 = vmatmul.bf16.gmra.mxu0 %v2058
      %v2141 = vpop.f32.mrf.mxu0
      %v2142 = vadd.f32 0.0, %v2141
      %v2143 = vpop.f32.mrf.mxu0
      %v2144 = vadd.f32 0.0, %v2143
      %2145 = vmatmul.bf16.gmra.mxu0 %v2061
      %v2146 = vpop.f32.mrf.mxu0
      %v2147 = vadd.f32 0.0, %v2146
      %v2148 = vpop.f32.mrf.mxu0
      %v2149 = vadd.f32 0.0, %v2148
      %2150 = vmatmul.bf16.gmra.mxu0 %v2064
      %v2151 = vpop.f32.mrf.mxu0
      %v2152 = vadd.f32 0.0, %v2151
      %v2153 = vpop.f32.mrf.mxu0
      %v2154 = vadd.f32 0.0, %v2153
      %2155 = vmatmul.bf16.gmra.mxu0 %v2067
      %v2156 = vpop.f32.mrf.mxu0
      %v2157 = vadd.f32 0.0, %v2156
      %v2158 = vpop.f32.mrf.mxu0
      %v2159 = vadd.f32 0.0, %v2158
      %2160 = vmatmul.bf16.gmra.mxu0 %v2070
      %v2161 = vpop.f32.mrf.mxu0
      %v2162 = vadd.f32 0.0, %v2161
      %v2163 = vpop.f32.mrf.mxu0
      %v2164 = vadd.f32 0.0, %v2163
      %2165 = vmatmul.bf16.gmra.mxu0 %v2073
      %v2166 = vpop.f32.mrf.mxu0
      %v2167 = vadd.f32 0.0, %v2166
      %v2168 = vpop.f32.mrf.mxu0
      %v2169 = vadd.f32 0.0, %v2168
      %2170 = vmatmul.bf16.gmra.mxu0 %v2076
      %v2171 = vpop.f32.mrf.mxu0
      %v2172 = vadd.f32 0.0, %v2171
      %v2173 = vpop.f32.mrf.mxu0
      %v2174 = vadd.f32 0.0, %v2173
      %2175 = vmatmul.bf16.gmra.mxu0 %v2079
      %v2176 = vpop.f32.mrf.mxu0
      %v2177 = vadd.f32 0.0, %v2176
      %v2178 = vpop.f32.mrf.mxu0
      %v2179 = vadd.f32 0.0, %v2178
      %2180 = vmatmul.bf16.gmra.mxu0 %v2082
      %v2181 = vpop.f32.mrf.mxu0
      %v2182 = vadd.f32 0.0, %v2181
      %v2183 = vpop.f32.mrf.mxu0
      %v2184 = vadd.f32 0.0, %v2183
      %2185 = vdwg.mxu0
      %v2186 = vadd.f32 %v1950, %v2097
      %v2187 = vadd.f32 %v1951, %v2099
      %v2188 = vadd.f32 %v1952, %v2102
      %v2189 = vadd.f32 %v1953, %v2104
      %v2190 = vadd.f32 %v1954, %v2107
      %v2191 = vadd.f32 %v1955, %v2109
      %v2192 = vadd.f32 %v1956, %v2112
      %v2193 = vadd.f32 %v1957, %v2114
      %v2194 = vadd.f32 %v1958, %v2117
      %v2195 = vadd.f32 %v1959, %v2119
      %v2196 = vadd.f32 %v1960, %v2122
      %v2197 = vadd.f32 %v1961, %v2124
      %v2198 = vadd.f32 %v1962, %v2127
      %v2199 = vadd.f32 %v1963, %v2129
      %v2200 = vadd.f32 %v1964, %v2132
      %v2201 = vadd.f32 %v1965, %v2134
      %v2202 = vadd.f32 %v1966, %v2137
      %v2203 = vadd.f32 %v1967, %v2139
      %v2204 = vadd.f32 %v1968, %v2142
      %v2205 = vadd.f32 %v1969, %v2144
      %v2206 = vadd.f32 %v1970, %v2147
      %v2207 = vadd.f32 %v1971, %v2149
      %v2208 = vadd.f32 %v1972, %v2152
      %v2209 = vadd.f32 %v1973, %v2154
      %v2210 = vadd.f32 %v1974, %v2157
      %v2211 = vadd.f32 %v1975, %v2159
      %v2212 = vadd.f32 %v1976, %v2162
      %v2213 = vadd.f32 %v1977, %v2164
      %v2214 = vadd.f32 %v1978, %v2167
      %v2215 = vadd.f32 %v1979, %v2169
      %v2216 = vadd.f32 %v1980, %v2172
      %v2217 = vadd.f32 %v1981, %v2174
      %v2218 = vadd.f32 %v1982, %v2177
      %v2219 = vadd.f32 %v1983, %v2179
      %v2220 = vadd.f32 %v1984, %v2182
      %v2221 = vadd.f32 %v1985, %v2184
      %v2222 = vld [vmem:[%s435 + $0x10] sm:$0xc]
      %v2223 = vld [vmem:[%s435 + $0x14] sm:$0xf]
      %v2224 = vld [vmem:[%s435 + $0x18] sm:$0xf]
      %v2225 = vld [vmem:[%s435 + $0x1c] sm:$0xf]
      %v2226 = vld [vmem:[%s435 + $0x20] sm:$0xf]
      %v2227 = vld [vmem:[%s435 + $0x24] sm:$0xf]
      %v2228 = vld [vmem:[%s435 + $0x28] sm:$0xf]
      %v2229 = vld [vmem:[%s435 + $0x2c] sm:$0xf]
      %v2230 = vld [vmem:[%s435 + $0x30] sm:$0xf]
      %v2231 = vld [vmem:[%s435 + $0x34] sm:$0xf]
      %v2232 = vld [vmem:[%s435 + $0x38] sm:$0xf]
      %v2233 = vld [vmem:[%s435 + $0x3c] sm:$0xf]
      %v2234 = vld [vmem:[%s435 + $0x40] sm:$0xf]
      %v2235 = vld [vmem:[%s435 + $0x44] sm:$0xf]
      %v2236 = vld [vmem:[%s435 + $0x48] sm:$0xf]
      %v2237 = vld [vmem:[%s435 + $0x4c] sm:$0xf]
      %v2238 = vld [vmem:[%s435 + $0x50] sm:$0xf]
      %v2239 = vld [vmem:[%s435 + $0x54] sm:$0xf]
      %v2240 = vld [vmem:[%s435 + $0x58] sm:$0xf]
      %v2241 = vld [vmem:[%s435 + $0x5c] sm:$0xf]
      %v2242 = vld [vmem:[%s435 + $0x60] sm:$0xf]
      %v2243 = vld [vmem:[%s435 + $0x64] sm:$0xf]
      %v2244 = vld [vmem:[%s435 + $0x68] sm:$0xf]
      %v2245 = vld [vmem:[%s435 + $0x6c] sm:$0xf]
      %v2246 = vld [vmem:[%s435 + $0x70] sm:$0xf]
      %v2247 = vld [vmem:[%s435 + $0x74] sm:$0xf]
      %v2248 = vld [vmem:[%s435 + $0x78] sm:$0xf]
      %v2249 = vld [vmem:[%s435 + $0x7c] sm:$0xf]
      %v2250 = vld [vmem:[%s435 + $0x80] sm:$0xf]
      %v2251 = vld [vmem:[%s435 + $0x84] sm:$0xf]
      %v2252 = vld [vmem:[%s435 + $0x88] sm:$0xf]
      %v2253 = vld [vmem:[%s435 + $0x8c] sm:$0xf]
      %v2254 = vld [vmem:[%s435 + $0x90] sm:$0xf]
      %v2255 = vld [vmem:[%s435 + $0x94] sm:$0xf]
      %v2256 = vld [vmem:[%s435 + $0x98] sm:$0xf]
      %v2257 = vld [vmem:[%s435 + $0x9c] sm:$0xf]
      %v2258 = vld [vmem:[%s435 + $0xa0] sm:$0x3]
      %s2259 = scalar_lea.vmem %s1, 24
      %v2260 = vld [vmem:[%s2259] sm:$0xf]
      %v2298 = vunpack.c.l.b16 %v2222
      %v2299 = vunpack.c.l.b16 %v2223
      %v2300 = vunpack.c.l.b16 %v2224
      %v2301 = vunpack.c.l.b16 %v2225
      %v2302 = vunpack.c.l.b16 %v2226
      %v2303 = vunpack.c.l.b16 %v2227
      %v2304 = vunpack.c.l.b16 %v2228
      %v2305 = vunpack.c.l.b16 %v2229
      %v2306 = vunpack.c.l.b16 %v2230
      %v2307 = vunpack.c.l.b16 %v2231
      %v2308 = vunpack.c.l.b16 %v2232
      %v2309 = vunpack.c.l.b16 %v2233
      %v2310 = vunpack.c.l.b16 %v2234
      %v2311 = vunpack.c.l.b16 %v2235
      %v2312 = vunpack.c.l.b16 %v2236
      %v2313 = vunpack.c.l.b16 %v2237
      %v2314 = vunpack.c.l.b16 %v2238
      %v2315 = vunpack.c.l.b16 %v2239
      %v2316 = vunpack.c.l.b16 %v2240
      %v2317 = vunpack.c.l.b16 %v2241
      %v2318 = vunpack.c.l.b16 %v2242
      %v2319 = vunpack.c.l.b16 %v2243
      %v2320 = vunpack.c.l.b16 %v2244
      %v2321 = vunpack.c.l.b16 %v2245
      %v2322 = vunpack.c.l.b16 %v2246
      %v2323 = vunpack.c.l.b16 %v2247
      %v2324 = vunpack.c.l.b16 %v2248
      %v2325 = vunpack.c.l.b16 %v2249
      %v2326 = vunpack.c.l.b16 %v2250
      %v2327 = vunpack.c.l.b16 %v2251
      %v2328 = vunpack.c.l.b16 %v2252
      %v2329 = vunpack.c.l.b16 %v2253
      %v2330 = vunpack.c.l.b16 %v2254
      %v2331 = vunpack.c.l.b16 %v2255
      %v2332 = vunpack.c.l.b16 %v2256
      %v2333 = vunpack.c.l.b16 %v2257
      %v2334 = vunpack.c.l.b16 %v2258
      %v2335 = vpack.c.b16 %v2299, %v2298
      %v2336 = vpack.c.b16 %v2301, %v2300
      %v2337 = vpack.c.b16 %v2303, %v2302
      %v2338 = vpack.c.b16 %v2305, %v2304
      %v2339 = vpack.c.b16 %v2307, %v2306
      %v2340 = vpack.c.b16 %v2309, %v2308
      %v2341 = vpack.c.b16 %v2311, %v2310
      %v2342 = vpack.c.b16 %v2313, %v2312
      %v2343 = vpack.c.b16 %v2315, %v2314
      %v2344 = vpack.c.b16 %v2317, %v2316
      %v2345 = vpack.c.b16 %v2319, %v2318
      %v2346 = vpack.c.b16 %v2321, %v2320
      %v2347 = vpack.c.b16 %v2323, %v2322
      %v2348 = vpack.c.b16 %v2325, %v2324
      %v2349 = vpack.c.b16 %v2327, %v2326
      %v2350 = vpack.c.b16 %v2329, %v2328
      %v2351 = vpack.c.b16 %v2331, %v2330
      %v2352 = vpack.c.b16 %v2333, %v2332
      %v2353 = vpack.c.b16 %v2334, %v2334
      %v2354 = vrot.slane %v2335, 2
      %v2355 = vrot.slane %v2336, 2
      %v2356 = vsel %vm1992, %v2354, %v2355
      %v2357 = vrot.slane %v2337, 2
      %v2358 = vsel %vm1992, %v2355, %v2357
      %v2359 = vrot.slane %v2338, 2
      %v2360 = vsel %vm1992, %v2357, %v2359
      %v2361 = vrot.slane %v2339, 2
      %v2362 = vsel %vm1992, %v2359, %v2361
      %v2363 = vrot.slane %v2340, 2
      %v2364 = vsel %vm1992, %v2361, %v2363
      %v2365 = vrot.slane %v2341, 2
      %v2366 = vsel %vm1992, %v2363, %v2365
      %v2367 = vrot.slane %v2342, 2
      %v2368 = vsel %vm1992, %v2365, %v2367
      %v2369 = vrot.slane %v2343, 2
      %v2370 = vsel %vm1992, %v2367, %v2369
      %v2371 = vrot.slane %v2344, 2
      %v2372 = vsel %vm1992, %v2369, %v2371
      %v2373 = vrot.slane %v2345, 2
      %v2374 = vsel %vm1992, %v2371, %v2373
      %v2375 = vrot.slane %v2346, 2
      %v2376 = vsel %vm1992, %v2373, %v2375
      %v2377 = vrot.slane %v2347, 2
      %v2378 = vsel %vm1992, %v2375, %v2377
      %v2379 = vrot.slane %v2348, 2
      %v2380 = vsel %vm1992, %v2377, %v2379
      %v2381 = vrot.slane %v2349, 2
      %v2382 = vsel %vm1992, %v2379, %v2381
      %v2383 = vrot.slane %v2350, 2
      %v2384 = vsel %vm1992, %v2381, %v2383
      %v2385 = vrot.slane %v2351, 2
      %v2386 = vsel %vm1992, %v2383, %v2385
      %v2387 = vrot.slane %v2352, 2
      %v2388 = vsel %vm1992, %v2385, %v2387
      %v2389 = vrot.slane %v2353, 2
      %v2390 = vsel %vm1992, %v2387, %v2389
      %v2392 = vsel %vm724, %v2356, 0
      %v2395 = vsel %vm724, %v2358, 0
      %v2398 = vsel %vm724, %v2360, 0
      %v2401 = vsel %vm724, %v2362, 0
      %v2404 = vsel %vm724, %v2364, 0
      %v2407 = vsel %vm724, %v2366, 0
      %v2410 = vsel %vm724, %v2368, 0
      %v2413 = vsel %vm724, %v2370, 0
      %v2416 = vsel %vm724, %v2372, 0
      %v2419 = vsel %vm724, %v2374, 0
      %v2422 = vsel %vm724, %v2376, 0
      %v2425 = vsel %vm724, %v2378, 0
      %v2428 = vsel %vm724, %v2380, 0
      %v2431 = vsel %vm724, %v2382, 0
      %v2434 = vsel %vm724, %v2384, 0
      %v2437 = vsel %vm724, %v2386, 0
      %v2440 = vsel %vm724, %v2388, 0
      %v2443 = vsel %vm724, %v2390, 0
      %v2446 = vsel %vm779, %v2260, 0
      %2448 = vmatpush.bf16.msra.mxu0 0
      %2449 = vmatpush.bf16.msra.mxu0 0
      %2450 = vmatpush.bf16.msra.mxu0 0
      %2451 = vmatpush.bf16.msra.mxu0 0
      %2452 = vmatpush.bf16.msra.mxu0 0
      %2453 = vmatpush.bf16.msra.mxu0 0
      %2454 = vmatpush.bf16.msra.mxu0 0
      %2455 = vmatpush.bf16.msra.mxu0 %v2446
      %2456 = vmatmul.bf16.gmra.mxu0 %v2392
      %v2457 = vpop.f32.mrf.mxu0
      %v2458 = vadd.f32 0.0, %v2457
      %v2459 = vpop.f32.mrf.mxu0
      %v2460 = vadd.f32 0.0, %v2459
      %2461 = vmatmul.bf16.gmra.mxu0 %v2395
      %v2462 = vpop.f32.mrf.mxu0
      %v2463 = vadd.f32 0.0, %v2462
      %v2464 = vpop.f32.mrf.mxu0
      %v2465 = vadd.f32 0.0, %v2464
      %2466 = vmatmul.bf16.gmra.mxu0 %v2398
      %v2467 = vpop.f32.mrf.mxu0
      %v2468 = vadd.f32 0.0, %v2467
      %v2469 = vpop.f32.mrf.mxu0
      %v2470 = vadd.f32 0.0, %v2469
      %2471 = vmatmul.bf16.gmra.mxu0 %v2401
      %v2472 = vpop.f32.mrf.mxu0
      %v2473 = vadd.f32 0.0, %v2472
      %v2474 = vpop.f32.mrf.mxu0
      %v2475 = vadd.f32 0.0, %v2474
      %2476 = vmatmul.bf16.gmra.mxu0 %v2404
      %v2477 = vpop.f32.mrf.mxu0
      %v2478 = vadd.f32 0.0, %v2477
      %v2479 = vpop.f32.mrf.mxu0
      %v2480 = vadd.f32 0.0, %v2479
      %2481 = vmatmul.bf16.gmra.mxu0 %v2407
      %v2482 = vpop.f32.mrf.mxu0
      %v2483 = vadd.f32 0.0, %v2482
      %v2484 = vpop.f32.mrf.mxu0
      %v2485 = vadd.f32 0.0, %v2484
      %2486 = vmatmul.bf16.gmra.mxu0 %v2410
      %v2487 = vpop.f32.mrf.mxu0
      %v2488 = vadd.f32 0.0, %v2487
      %v2489 = vpop.f32.mrf.mxu0
      %v2490 = vadd.f32 0.0, %v2489
      %2491 = vmatmul.bf16.gmra.mxu0 %v2413
      %v2492 = vpop.f32.mrf.mxu0
      %v2493 = vadd.f32 0.0, %v2492
      %v2494 = vpop.f32.mrf.mxu0
      %v2495 = vadd.f32 0.0, %v2494
      %2496 = vmatmul.bf16.gmra.mxu0 %v2416
      %v2497 = vpop.f32.mrf.mxu0
      %v2498 = vadd.f32 0.0, %v2497
      %v2499 = vpop.f32.mrf.mxu0
      %v2500 = vadd.f32 0.0, %v2499
      %2501 = vmatmul.bf16.gmra.mxu0 %v2419
      %v2502 = vpop.f32.mrf.mxu0
      %v2503 = vadd.f32 0.0, %v2502
      %v2504 = vpop.f32.mrf.mxu0
      %v2505 = vadd.f32 0.0, %v2504
      %2506 = vmatmul.bf16.gmra.mxu0 %v2422
      %v2507 = vpop.f32.mrf.mxu0
      %v2508 = vadd.f32 0.0, %v2507
      %v2509 = vpop.f32.mrf.mxu0
      %v2510 = vadd.f32 0.0, %v2509
      %2511 = vmatmul.bf16.gmra.mxu0 %v2425
      %v2512 = vpop.f32.mrf.mxu0
      %v2513 = vadd.f32 0.0, %v2512
      %v2514 = vpop.f32.mrf.mxu0
      %v2515 = vadd.f32 0.0, %v2514
      %2516 = vmatmul.bf16.gmra.mxu0 %v2428
      %v2517 = vpop.f32.mrf.mxu0
      %v2518 = vadd.f32 0.0, %v2517
      %v2519 = vpop.f32.mrf.mxu0
      %v2520 = vadd.f32 0.0, %v2519
      %2521 = vmatmul.bf16.gmra.mxu0 %v2431
      %v2522 = vpop.f32.mrf.mxu0
      %v2523 = vadd.f32 0.0, %v2522
      %v2524 = vpop.f32.mrf.mxu0
      %v2525 = vadd.f32 0.0, %v2524
      %2526 = vmatmul.bf16.gmra.mxu0 %v2434
      %v2527 = vpop.f32.mrf.mxu0
      %v2528 = vadd.f32 0.0, %v2527
      %v2529 = vpop.f32.mrf.mxu0
      %v2530 = vadd.f32 0.0, %v2529
      %2531 = vmatmul.bf16.gmra.mxu0 %v2437
      %v2532 = vpop.f32.mrf.mxu0
      %v2533 = vadd.f32 0.0, %v2532
      %v2534 = vpop.f32.mrf.mxu0
      %v2535 = vadd.f32 0.0, %v2534
      %2536 = vmatmul.bf16.gmra.mxu0 %v2440
      %v2537 = vpop.f32.mrf.mxu0
      %v2538 = vadd.f32 0.0, %v2537
      %v2539 = vpop.f32.mrf.mxu0
      %v2540 = vadd.f32 0.0, %v2539
      %2541 = vmatmul.bf16.gmra.mxu0 %v2443
      %v2542 = vpop.f32.mrf.mxu0
      %v2543 = vadd.f32 0.0, %v2542
      %v2544 = vpop.f32.mrf.mxu0
      %v2545 = vadd.f32 0.0, %v2544
      %2546 = vdwg.mxu0
      %v2547 = vadd.f32 %v2186, %v2458
      %v2548 = vadd.f32 %v2187, %v2460
      %v2549 = vadd.f32 %v2188, %v2463
      %v2550 = vadd.f32 %v2189, %v2465
      %v2551 = vadd.f32 %v2190, %v2468
      %v2552 = vadd.f32 %v2191, %v2470
      %v2553 = vadd.f32 %v2192, %v2473
      %v2554 = vadd.f32 %v2193, %v2475
      %v2555 = vadd.f32 %v2194, %v2478
      %v2556 = vadd.f32 %v2195, %v2480
      %v2557 = vadd.f32 %v2196, %v2483
      %v2558 = vadd.f32 %v2197, %v2485
      %v2559 = vadd.f32 %v2198, %v2488
      %v2560 = vadd.f32 %v2199, %v2490
      %v2561 = vadd.f32 %v2200, %v2493
      %v2562 = vadd.f32 %v2201, %v2495
      %v2563 = vadd.f32 %v2202, %v2498
      %v2564 = vadd.f32 %v2203, %v2500
      %v2565 = vadd.f32 %v2204, %v2503
      %v2566 = vadd.f32 %v2205, %v2505
      %v2567 = vadd.f32 %v2206, %v2508
      %v2568 = vadd.f32 %v2207, %v2510
      %v2569 = vadd.f32 %v2208, %v2513
      %v2570 = vadd.f32 %v2209, %v2515
      %v2571 = vadd.f32 %v2210, %v2518
      %v2572 = vadd.f32 %v2211, %v2520
      %v2573 = vadd.f32 %v2212, %v2523
      %v2574 = vadd.f32 %v2213, %v2525
      %v2575 = vadd.f32 %v2214, %v2528
      %v2576 = vadd.f32 %v2215, %v2530
      %v2577 = vadd.f32 %v2216, %v2533
      %v2578 = vadd.f32 %v2217, %v2535
      %v2579 = vadd.f32 %v2218, %v2538
      %v2580 = vadd.f32 %v2219, %v2540
      %v2581 = vadd.f32 %v2220, %v2543
      %v2582 = vadd.f32 %v2221, %v2545
      %v2583 = vld [vmem:[%s435 + $0xa0] sm:$0x7]
      %s2584 = scalar_lea.vmem %s1, 28
      %v2585 = vld [vmem:[%s2584] sm:$0xf]
      %v2587 = vunpack.c.l.b16 %v2583
      %v2588 = vpack.c.b16 %v2587, %v2587
      %vm2589 = vsmask.f32 5376
      %v2591 = vshrl.u32 %v2335, 16
      %v2593 = vrot.slane %v2591, 2
      %v2594 = vshll.u32 %v2335, 16
      %v2596 = vrot.slane %v2594, 3
      %v2597 = vor.u32 %v2593, %v2596
      %v2599 = vshrl.u32 %v2336, 16
      %v2601 = vrot.slane %v2599, 2
      %v2602 = vshll.u32 %v2336, 16
      %v2604 = vrot.slane %v2602, 3
      %v2605 = vor.u32 %v2601, %v2604
      %v2606 = vsel %vm2589, %v2597, %v2605
      %v2608 = vshrl.u32 %v2337, 16
      %v2610 = vrot.slane %v2608, 2
      %v2611 = vshll.u32 %v2337, 16
      %v2613 = vrot.slane %v2611, 3
      %v2614 = vor.u32 %v2610, %v2613
      %v2615 = vsel %vm2589, %v2605, %v2614
      %v2617 = vshrl.u32 %v2338, 16
      %v2619 = vrot.slane %v2617, 2
      %v2620 = vshll.u32 %v2338, 16
      %v2622 = vrot.slane %v2620, 3
      %v2623 = vor.u32 %v2619, %v2622
      %v2624 = vsel %vm2589, %v2614, %v2623
      %v2626 = vshrl.u32 %v2339, 16
      %v2628 = vrot.slane %v2626, 2
      %v2629 = vshll.u32 %v2339, 16
      %v2631 = vrot.slane %v2629, 3
      %v2632 = vor.u32 %v2628, %v2631
      %v2633 = vsel %vm2589, %v2623, %v2632
      %v2635 = vshrl.u32 %v2340, 16
      %v2637 = vrot.slane %v2635, 2
      %v2638 = vshll.u32 %v2340, 16
      %v2640 = vrot.slane %v2638, 3
      %v2641 = vor.u32 %v2637, %v2640
      %v2642 = vsel %vm2589, %v2632, %v2641
      %v2644 = vshrl.u32 %v2341, 16
      %v2646 = vrot.slane %v2644, 2
      %v2647 = vshll.u32 %v2341, 16
      %v2649 = vrot.slane %v2647, 3
      %v2650 = vor.u32 %v2646, %v2649
      %v2651 = vsel %vm2589, %v2641, %v2650
      %v2653 = vshrl.u32 %v2342, 16
      %v2655 = vrot.slane %v2653, 2
      %v2656 = vshll.u32 %v2342, 16
      %v2658 = vrot.slane %v2656, 3
      %v2659 = vor.u32 %v2655, %v2658
      %v2660 = vsel %vm2589, %v2650, %v2659
      %v2662 = vshrl.u32 %v2343, 16
      %v2664 = vrot.slane %v2662, 2
      %v2665 = vshll.u32 %v2343, 16
      %v2667 = vrot.slane %v2665, 3
      %v2668 = vor.u32 %v2664, %v2667
      %v2669 = vsel %vm2589, %v2659, %v2668
      %v2671 = vshrl.u32 %v2344, 16
      %v2673 = vrot.slane %v2671, 2
      %v2674 = vshll.u32 %v2344, 16
      %v2676 = vrot.slane %v2674, 3
      %v2677 = vor.u32 %v2673, %v2676
      %v2678 = vsel %vm2589, %v2668, %v2677
      %v2680 = vshrl.u32 %v2345, 16
      %v2682 = vrot.slane %v2680, 2
      %v2683 = vshll.u32 %v2345, 16
      %v2685 = vrot.slane %v2683, 3
      %v2686 = vor.u32 %v2682, %v2685
      %v2687 = vsel %vm2589, %v2677, %v2686
      %v2689 = vshrl.u32 %v2346, 16
      %v2691 = vrot.slane %v2689, 2
      %v2692 = vshll.u32 %v2346, 16
      %v2694 = vrot.slane %v2692, 3
      %v2695 = vor.u32 %v2691, %v2694
      %v2696 = vsel %vm2589, %v2686, %v2695
      %v2698 = vshrl.u32 %v2347, 16
      %v2700 = vrot.slane %v2698, 2
      %v2701 = vshll.u32 %v2347, 16
      %v2703 = vrot.slane %v2701, 3
      %v2704 = vor.u32 %v2700, %v2703
      %v2705 = vsel %vm2589, %v2695, %v2704
      %v2707 = vshrl.u32 %v2348, 16
      %v2709 = vrot.slane %v2707, 2
      %v2710 = vshll.u32 %v2348, 16
      %v2712 = vrot.slane %v2710, 3
      %v2713 = vor.u32 %v2709, %v2712
      %v2714 = vsel %vm2589, %v2704, %v2713
      %v2716 = vshrl.u32 %v2349, 16
      %v2718 = vrot.slane %v2716, 2
      %v2719 = vshll.u32 %v2349, 16
      %v2721 = vrot.slane %v2719, 3
      %v2722 = vor.u32 %v2718, %v2721
      %v2723 = vsel %vm2589, %v2713, %v2722
      %v2725 = vshrl.u32 %v2350, 16
      %v2727 = vrot.slane %v2725, 2
      %v2728 = vshll.u32 %v2350, 16
      %v2730 = vrot.slane %v2728, 3
      %v2731 = vor.u32 %v2727, %v2730
      %v2732 = vsel %vm2589, %v2722, %v2731
      %v2734 = vshrl.u32 %v2351, 16
      %v2736 = vrot.slane %v2734, 2
      %v2737 = vshll.u32 %v2351, 16
      %v2739 = vrot.slane %v2737, 3
      %v2740 = vor.u32 %v2736, %v2739
      %v2741 = vsel %vm2589, %v2731, %v2740
      %v2743 = vshrl.u32 %v2352, 16
      %v2745 = vrot.slane %v2743, 2
      %v2746 = vshll.u32 %v2352, 16
      %v2748 = vrot.slane %v2746, 3
      %v2749 = vor.u32 %v2745, %v2748
      %v2750 = vsel %vm2589, %v2740, %v2749
      %v2752 = vshrl.u32 %v2588, 16
      %v2754 = vrot.slane %v2752, 2
      %v2755 = vshll.u32 %v2588, 16
      %v2757 = vrot.slane %v2755, 3
      %v2758 = vor.u32 %v2754, %v2757
      %v2759 = vsel %vm2589, %v2749, %v2758
      %v2761 = vsel %vm724, %v2606, 0
      %v2764 = vsel %vm724, %v2615, 0
      %v2767 = vsel %vm724, %v2624, 0
      %v2770 = vsel %vm724, %v2633, 0
      %v2773 = vsel %vm724, %v2642, 0
      %v2776 = vsel %vm724, %v2651, 0
      %v2779 = vsel %vm724, %v2660, 0
      %v2782 = vsel %vm724, %v2669, 0
      %v2785 = vsel %vm724, %v2678, 0
      %v2788 = vsel %vm724, %v2687, 0
      %v2791 = vsel %vm724, %v2696, 0
      %v2794 = vsel %vm724, %v2705, 0
      %v2797 = vsel %vm724, %v2714, 0
      %v2800 = vsel %vm724, %v2723, 0
      %v2803 = vsel %vm724, %v2732, 0
      %v2806 = vsel %vm724, %v2741, 0
      %v2809 = vsel %vm724, %v2750, 0
      %v2812 = vsel %vm724, %v2759, 0
      %v2815 = vsel %vm779, %v2585, 0
      %2817 = vmatpush.bf16.msra.mxu0 0
      %2818 = vmatpush.bf16.msra.mxu0 0
      %2819 = vmatpush.bf16.msra.mxu0 0
      %2820 = vmatpush.bf16.msra.mxu0 0
      %2821 = vmatpush.bf16.msra.mxu0 0
      %2822 = vmatpush.bf16.msra.mxu0 0
      %2823 = vmatpush.bf16.msra.mxu0 0
      %2824 = vmatpush.bf16.msra.mxu0 %v2815
      %2825 = vmatmul.bf16.gmra.mxu0 %v2761
      %v2826 = vpop.f32.mrf.mxu0
      %v2827 = vadd.f32 0.0, %v2826
      %v2828 = vpop.f32.mrf.mxu0
      %v2829 = vadd.f32 0.0, %v2828
      %2830 = vmatmul.bf16.gmra.mxu0 %v2764
      %v2831 = vpop.f32.mrf.mxu0
      %v2832 = vadd.f32 0.0, %v2831
      %v2833 = vpop.f32.mrf.mxu0
      %v2834 = vadd.f32 0.0, %v2833
      %2835 = vmatmul.bf16.gmra.mxu0 %v2767
      %v2836 = vpop.f32.mrf.mxu0
      %v2837 = vadd.f32 0.0, %v2836
      %v2838 = vpop.f32.mrf.mxu0
      %v2839 = vadd.f32 0.0, %v2838
      %2840 = vmatmul.bf16.gmra.mxu0 %v2770
      %v2841 = vpop.f32.mrf.mxu0
      %v2842 = vadd.f32 0.0, %v2841
      %v2843 = vpop.f32.mrf.mxu0
      %v2844 = vadd.f32 0.0, %v2843
      %2845 = vmatmul.bf16.gmra.mxu0 %v2773
      %v2846 = vpop.f32.mrf.mxu0
      %v2847 = vadd.f32 0.0, %v2846
      %v2848 = vpop.f32.mrf.mxu0
      %v2849 = vadd.f32 0.0, %v2848
      %2850 = vmatmul.bf16.gmra.mxu0 %v2776
      %v2851 = vpop.f32.mrf.mxu0
      %v2852 = vadd.f32 0.0, %v2851
      %v2853 = vpop.f32.mrf.mxu0
      %v2854 = vadd.f32 0.0, %v2853
      %2855 = vmatmul.bf16.gmra.mxu0 %v2779
      %v2856 = vpop.f32.mrf.mxu0
      %v2857 = vadd.f32 0.0, %v2856
      %v2858 = vpop.f32.mrf.mxu0
      %v2859 = vadd.f32 0.0, %v2858
      %2860 = vmatmul.bf16.gmra.mxu0 %v2782
      %v2861 = vpop.f32.mrf.mxu0
      %v2862 = vadd.f32 0.0, %v2861
      %v2863 = vpop.f32.mrf.mxu0
      %v2864 = vadd.f32 0.0, %v2863
      %2865 = vmatmul.bf16.gmra.mxu0 %v2785
      %v2866 = vpop.f32.mrf.mxu0
      %v2867 = vadd.f32 0.0, %v2866
      %v2868 = vpop.f32.mrf.mxu0
      %v2869 = vadd.f32 0.0, %v2868
      %2870 = vmatmul.bf16.gmra.mxu0 %v2788
      %v2871 = vpop.f32.mrf.mxu0
      %v2872 = vadd.f32 0.0, %v2871
      %v2873 = vpop.f32.mrf.mxu0
      %v2874 = vadd.f32 0.0, %v2873
      %2875 = vmatmul.bf16.gmra.mxu0 %v2791
      %v2876 = vpop.f32.mrf.mxu0
      %v2877 = vadd.f32 0.0, %v2876
      %v2878 = vpop.f32.mrf.mxu0
      %v2879 = vadd.f32 0.0, %v2878
      %2880 = vmatmul.bf16.gmra.mxu0 %v2794
      %v2881 = vpop.f32.mrf.mxu0
      %v2882 = vadd.f32 0.0, %v2881
      %v2883 = vpop.f32.mrf.mxu0
      %v2884 = vadd.f32 0.0, %v2883
      %2885 = vmatmul.bf16.gmra.mxu0 %v2797
      %v2886 = vpop.f32.mrf.mxu0
      %v2887 = vadd.f32 0.0, %v2886
      %v2888 = vpop.f32.mrf.mxu0
      %v2889 = vadd.f32 0.0, %v2888
      %2890 = vmatmul.bf16.gmra.mxu0 %v2800
      %v2891 = vpop.f32.mrf.mxu0
      %v2892 = vadd.f32 0.0, %v2891
      %v2893 = vpop.f32.mrf.mxu0
      %v2894 = vadd.f32 0.0, %v2893
      %2895 = vmatmul.bf16.gmra.mxu0 %v2803
      %v2896 = vpop.f32.mrf.mxu0
      %v2897 = vadd.f32 0.0, %v2896
      %v2898 = vpop.f32.mrf.mxu0
      %v2899 = vadd.f32 0.0, %v2898
      %2900 = vmatmul.bf16.gmra.mxu0 %v2806
      %v2901 = vpop.f32.mrf.mxu0
      %v2902 = vadd.f32 0.0, %v2901
      %v2903 = vpop.f32.mrf.mxu0
      %v2904 = vadd.f32 0.0, %v2903
      %2905 = vmatmul.bf16.gmra.mxu0 %v2809
      %v2906 = vpop.f32.mrf.mxu0
      %v2907 = vadd.f32 0.0, %v2906
      %v2908 = vpop.f32.mrf.mxu0
      %v2909 = vadd.f32 0.0, %v2908
      %2910 = vmatmul.bf16.gmra.mxu0 %v2812
      %v2911 = vpop.f32.mrf.mxu0
      %v2912 = vadd.f32 0.0, %v2911
      %v2913 = vpop.f32.mrf.mxu0
      %v2914 = vadd.f32 0.0, %v2913
      %2915 = vdwg.mxu0
      %v2916 = vadd.f32 %v2547, %v2827
      %v2917 = vadd.f32 %v2548, %v2829
      %v2918 = vadd.f32 %v2549, %v2832
      %v2919 = vadd.f32 %v2550, %v2834
      %v2920 = vadd.f32 %v2551, %v2837
      %v2921 = vadd.f32 %v2552, %v2839
      %v2922 = vadd.f32 %v2553, %v2842
      %v2923 = vadd.f32 %v2554, %v2844
      %v2924 = vadd.f32 %v2555, %v2847
      %v2925 = vadd.f32 %v2556, %v2849
      %v2926 = vadd.f32 %v2557, %v2852
      %v2927 = vadd.f32 %v2558, %v2854
      %v2928 = vadd.f32 %v2559, %v2857
      %v2929 = vadd.f32 %v2560, %v2859
      %v2930 = vadd.f32 %v2561, %v2862
      %v2931 = vadd.f32 %v2562, %v2864
      %v2932 = vadd.f32 %v2563, %v2867
      %v2933 = vadd.f32 %v2564, %v2869
      %v2934 = vadd.f32 %v2565, %v2872
      %v2935 = vadd.f32 %v2566, %v2874
      %v2936 = vadd.f32 %v2567, %v2877
      %v2937 = vadd.f32 %v2568, %v2879
      %v2938 = vadd.f32 %v2569, %v2882
      %v2939 = vadd.f32 %v2570, %v2884
      %v2940 = vadd.f32 %v2571, %v2887
      %v2941 = vadd.f32 %v2572, %v2889
      %v2942 = vadd.f32 %v2573, %v2892
      %v2943 = vadd.f32 %v2574, %v2894
      %v2944 = vadd.f32 %v2575, %v2897
      %v2945 = vadd.f32 %v2576, %v2899
      %v2946 = vadd.f32 %v2577, %v2902
      %v2947 = vadd.f32 %v2578, %v2904
      %v2948 = vadd.f32 %v2579, %v2907
      %v2949 = vadd.f32 %v2580, %v2909
      %v2950 = vadd.f32 %v2581, %v2912
      %v2951 = vadd.f32 %v2582, %v2914
      %v2952 = vld [vmem:[%s435 + $0x10] sm:$0x8]
      %s2953 = scalar_lea.vmem %s1, 32
      %v2954 = vld [vmem:[%s2953] sm:$0xf]
      %v2956 = vunpack.c.l.b16 %v2952
      %v2957 = vpack.c.b16 %v2299, %v2956
      %vm2958 = vcmask 1044480
      %v2959 = vrot.slane %v2957, 3
      %v2960 = vrot.slane %v2336, 3
      %v2961 = vsel %vm2958, %v2959, %v2960
      %v2962 = vrot.slane %v2337, 3
      %v2963 = vsel %vm2958, %v2960, %v2962
      %v2964 = vrot.slane %v2338, 3
      %v2965 = vsel %vm2958, %v2962, %v2964
      %v2966 = vrot.slane %v2339, 3
      %v2967 = vsel %vm2958, %v2964, %v2966
      %v2968 = vrot.slane %v2340, 3
      %v2969 = vsel %vm2958, %v2966, %v2968
      %v2970 = vrot.slane %v2341, 3
      %v2971 = vsel %vm2958, %v2968, %v2970
      %v2972 = vrot.slane %v2342, 3
      %v2973 = vsel %vm2958, %v2970, %v2972
      %v2974 = vrot.slane %v2343, 3
      %v2975 = vsel %vm2958, %v2972, %v2974
      %v2976 = vrot.slane %v2344, 3
      %v2977 = vsel %vm2958, %v2974, %v2976
      %v2978 = vrot.slane %v2345, 3
      %v2979 = vsel %vm2958, %v2976, %v2978
      %v2980 = vrot.slane %v2346, 3
      %v2981 = vsel %vm2958, %v2978, %v2980
      %v2982 = vrot.slane %v2347, 3
      %v2983 = vsel %vm2958, %v2980, %v2982
      %v2984 = vrot.slane %v2348, 3
      %v2985 = vsel %vm2958, %v2982, %v2984
      %v2986 = vrot.slane %v2349, 3
      %v2987 = vsel %vm2958, %v2984, %v2986
      %v2988 = vrot.slane %v2350, 3
      %v2989 = vsel %vm2958, %v2986, %v2988
      %v2990 = vrot.slane %v2351, 3
      %v2991 = vsel %vm2958, %v2988, %v2990
      %v2992 = vrot.slane %v2352, 3
      %v2993 = vsel %vm2958, %v2990, %v2992
      %v2994 = vrot.slane %v2588, 3
      %v2995 = vsel %vm2958, %v2992, %v2994
      %v2997 = vsel %vm724, %v2961, 0
      %v3000 = vsel %vm724, %v2963, 0
      %v3003 = vsel %vm724, %v2965, 0
      %v3006 = vsel %vm724, %v2967, 0
      %v3009 = vsel %vm724, %v2969, 0
      %v3012 = vsel %vm724, %v2971, 0
      %v3015 = vsel %vm724, %v2973, 0
      %v3018 = vsel %vm724, %v2975, 0
      %v3021 = vsel %vm724, %v2977, 0
      %v3024 = vsel %vm724, %v2979, 0
      %v3027 = vsel %vm724, %v2981, 0
      %v3030 = vsel %vm724, %v2983, 0
      %v3033 = vsel %vm724, %v2985, 0
      %v3036 = vsel %vm724, %v2987, 0
      %v3039 = vsel %vm724, %v2989, 0
      %v3042 = vsel %vm724, %v2991, 0
      %v3045 = vsel %vm724, %v2993, 0
      %v3048 = vsel %vm724, %v2995, 0
      %v3051 = vsel %vm779, %v2954, 0
      %3053 = vmatpush.bf16.msra.mxu0 0
      %3054 = vmatpush.bf16.msra.mxu0 0
      %3055 = vmatpush.bf16.msra.mxu0 0
      %3056 = vmatpush.bf16.msra.mxu0 0
      %3057 = vmatpush.bf16.msra.mxu0 0
      %3058 = vmatpush.bf16.msra.mxu0 0
      %3059 = vmatpush.bf16.msra.mxu0 0
      %3060 = vmatpush.bf16.msra.mxu0 %v3051
      %3061 = vmatmul.bf16.gmra.mxu0 %v2997
      %v3062 = vpop.f32.mrf.mxu0
      %v3063 = vadd.f32 0.0, %v3062
      %v3064 = vpop.f32.mrf.mxu0
      %v3065 = vadd.f32 0.0, %v3064
      %3066 = vmatmul.bf16.gmra.mxu0 %v3000
      %v3067 = vpop.f32.mrf.mxu0
      %v3068 = vadd.f32 0.0, %v3067
      %v3069 = vpop.f32.mrf.mxu0
      %v3070 = vadd.f32 0.0, %v3069
      %3071 = vmatmul.bf16.gmra.mxu0 %v3003
      %v3072 = vpop.f32.mrf.mxu0
      %v3073 = vadd.f32 0.0, %v3072
      %v3074 = vpop.f32.mrf.mxu0
      %v3075 = vadd.f32 0.0, %v3074
      %3076 = vmatmul.bf16.gmra.mxu0 %v3006
      %v3077 = vpop.f32.mrf.mxu0
      %v3078 = vadd.f32 0.0, %v3077
      %v3079 = vpop.f32.mrf.mxu0
      %v3080 = vadd.f32 0.0, %v3079
      %3081 = vmatmul.bf16.gmra.mxu0 %v3009
      %v3082 = vpop.f32.mrf.mxu0
      %v3083 = vadd.f32 0.0, %v3082
      %v3084 = vpop.f32.mrf.mxu0
      %v3085 = vadd.f32 0.0, %v3084
      %3086 = vmatmul.bf16.gmra.mxu0 %v3012
      %v3087 = vpop.f32.mrf.mxu0
      %v3088 = vadd.f32 0.0, %v3087
      %v3089 = vpop.f32.mrf.mxu0
      %v3090 = vadd.f32 0.0, %v3089
      %3091 = vmatmul.bf16.gmra.mxu0 %v3015
      %v3092 = vpop.f32.mrf.mxu0
      %v3093 = vadd.f32 0.0, %v3092
      %v3094 = vpop.f32.mrf.mxu0
      %v3095 = vadd.f32 0.0, %v3094
      %3096 = vmatmul.bf16.gmra.mxu0 %v3018
      %v3097 = vpop.f32.mrf.mxu0
      %v3098 = vadd.f32 0.0, %v3097
      %v3099 = vpop.f32.mrf.mxu0
      %v3100 = vadd.f32 0.0, %v3099
      %3101 = vmatmul.bf16.gmra.mxu0 %v3021
      %v3102 = vpop.f32.mrf.mxu0
      %v3103 = vadd.f32 0.0, %v3102
      %v3104 = vpop.f32.mrf.mxu0
      %v3105 = vadd.f32 0.0, %v3104
      %3106 = vmatmul.bf16.gmra.mxu0 %v3024
      %v3107 = vpop.f32.mrf.mxu0
      %v3108 = vadd.f32 0.0, %v3107
      %v3109 = vpop.f32.mrf.mxu0
      %v3110 = vadd.f32 0.0, %v3109
      %3111 = vmatmul.bf16.gmra.mxu0 %v3027
      %v3112 = vpop.f32.mrf.mxu0
      %v3113 = vadd.f32 0.0, %v3112
      %v3114 = vpop.f32.mrf.mxu0
      %v3115 = vadd.f32 0.0, %v3114
      %3116 = vmatmul.bf16.gmra.mxu0 %v3030
      %v3117 = vpop.f32.mrf.mxu0
      %v3118 = vadd.f32 0.0, %v3117
      %v3119 = vpop.f32.mrf.mxu0
      %v3120 = vadd.f32 0.0, %v3119
      %3121 = vmatmul.bf16.gmra.mxu0 %v3033
      %v3122 = vpop.f32.mrf.mxu0
      %v3123 = vadd.f32 0.0, %v3122
      %v3124 = vpop.f32.mrf.mxu0
      %v3125 = vadd.f32 0.0, %v3124
      %3126 = vmatmul.bf16.gmra.mxu0 %v3036
      %v3127 = vpop.f32.mrf.mxu0
      %v3128 = vadd.f32 0.0, %v3127
      %v3129 = vpop.f32.mrf.mxu0
      %v3130 = vadd.f32 0.0, %v3129
      %3131 = vmatmul.bf16.gmra.mxu0 %v3039
      %v3132 = vpop.f32.mrf.mxu0
      %v3133 = vadd.f32 0.0, %v3132
      %v3134 = vpop.f32.mrf.mxu0
      %v3135 = vadd.f32 0.0, %v3134
      %3136 = vmatmul.bf16.gmra.mxu0 %v3042
      %v3137 = vpop.f32.mrf.mxu0
      %v3138 = vadd.f32 0.0, %v3137
      %v3139 = vpop.f32.mrf.mxu0
      %v3140 = vadd.f32 0.0, %v3139
      %3141 = vmatmul.bf16.gmra.mxu0 %v3045
      %v3142 = vpop.f32.mrf.mxu0
      %v3143 = vadd.f32 0.0, %v3142
      %v3144 = vpop.f32.mrf.mxu0
      %v3145 = vadd.f32 0.0, %v3144
      %3146 = vmatmul.bf16.gmra.mxu0 %v3048
      %v3147 = vpop.f32.mrf.mxu0
      %v3148 = vadd.f32 0.0, %v3147
      %v3149 = vpop.f32.mrf.mxu0
      %v3150 = vadd.f32 0.0, %v3149
      %3151 = vdwg.mxu0
      %v3152 = vadd.f32 %v2916, %v3063
      %v3153 = vadd.f32 %v2917, %v3065
      %v3154 = vadd.f32 %v2918, %v3068
      %v3155 = vadd.f32 %v2919, %v3070
      %v3156 = vadd.f32 %v2920, %v3073
      %v3157 = vadd.f32 %v2921, %v3075
      %v3158 = vadd.f32 %v2922, %v3078
      %v3159 = vadd.f32 %v2923, %v3080
      %v3160 = vadd.f32 %v2924, %v3083
      %v3161 = vadd.f32 %v2925, %v3085
      %v3162 = vadd.f32 %v2926, %v3088
      %v3163 = vadd.f32 %v2927, %v3090
      %v3164 = vadd.f32 %v2928, %v3093
      %v3165 = vadd.f32 %v2929, %v3095
      %v3166 = vadd.f32 %v2930, %v3098
      %v3167 = vadd.f32 %v2931, %v3100
      %v3168 = vadd.f32 %v2932, %v3103
      %v3169 = vadd.f32 %v2933, %v3105
      %v3170 = vadd.f32 %v2934, %v3108
      %v3171 = vadd.f32 %v2935, %v3110
      %v3172 = vadd.f32 %v2936, %v3113
      %v3173 = vadd.f32 %v2937, %v3115
      %v3174 = vadd.f32 %v2938, %v3118
      %v3175 = vadd.f32 %v2939, %v3120
      %v3176 = vadd.f32 %v2940, %v3123
      %v3177 = vadd.f32 %v2941, %v3125
      %v3178 = vadd.f32 %v2942, %v3128
      %v3179 = vadd.f32 %v2943, %v3130
      %v3180 = vadd.f32 %v2944, %v3133
      %v3181 = vadd.f32 %v2945, %v3135
      %v3182 = vadd.f32 %v2946, %v3138
      %v3183 = vadd.f32 %v2947, %v3140
      %v3184 = vadd.f32 %v2948, %v3143
      %v3185 = vadd.f32 %v2949, %v3145
      %v3186 = vadd.f32 %v2950, %v3148
      %v3187 = vadd.f32 %v2951, %v3150
      %v3188 = vld [vmem:[%s2] sm:$0x1]
      %v3190 = vperm.slane %v3188, 0
      %v3192 = vadd.f32 %v3152, %v3190
      %v3193 = vadd.f32 %v3153, %v3190
      %v3194 = vadd.f32 %v3154, %v3190
      %v3195 = vadd.f32 %v3155, %v3190
      %v3196 = vadd.f32 %v3156, %v3190
      %v3197 = vadd.f32 %v3157, %v3190
      %v3198 = vadd.f32 %v3158, %v3190
      %v3199 = vadd.f32 %v3159, %v3190
      %v3200 = vadd.f32 %v3160, %v3190
      %v3201 = vadd.f32 %v3161, %v3190
      %v3202 = vadd.f32 %v3162, %v3190
      %v3203 = vadd.f32 %v3163, %v3190
      %v3204 = vadd.f32 %v3164, %v3190
      %v3205 = vadd.f32 %v3165, %v3190
      %v3206 = vadd.f32 %v3166, %v3190
      %v3207 = vadd.f32 %v3167, %v3190
      %v3208 = vadd.f32 %v3168, %v3190
      %v3209 = vadd.f32 %v3169, %v3190
      %v3210 = vadd.f32 %v3170, %v3190
      %v3211 = vadd.f32 %v3171, %v3190
      %v3212 = vadd.f32 %v3172, %v3190
      %v3213 = vadd.f32 %v3173, %v3190
      %v3214 = vadd.f32 %v3174, %v3190
      %v3215 = vadd.f32 %v3175, %v3190
      %v3216 = vadd.f32 %v3176, %v3190
      %v3217 = vadd.f32 %v3177, %v3190
      %v3218 = vadd.f32 %v3178, %v3190
      %v3219 = vadd.f32 %v3179, %v3190
      %v3220 = vadd.f32 %v3180, %v3190
      %v3221 = vadd.f32 %v3181, %v3190
      %v3222 = vadd.f32 %v3182, %v3190
      %v3223 = vadd.f32 %v3183, %v3190
      %v3224 = vadd.f32 %v3184, %v3190
      %v3225 = vadd.f32 %v3185, %v3190
      %v3226 = vadd.f32 %v3186, %v3190
      %v3227 = vadd.f32 %v3187, %v3190
      %v3228 = vmax.f32 %v3192, 0.0
      %v3229 = vmax.f32 %v3193, 0.0
      %v3230 = vmax.f32 %v3194, 0.0
      %v3231 = vmax.f32 %v3195, 0.0
      %v3232 = vmax.f32 %v3196, 0.0
      %v3233 = vmax.f32 %v3197, 0.0
      %v3234 = vmax.f32 %v3198, 0.0
      %v3235 = vmax.f32 %v3199, 0.0
      %v3236 = vmax.f32 %v3200, 0.0
      %v3237 = vmax.f32 %v3201, 0.0
      %v3238 = vmax.f32 %v3202, 0.0
      %v3239 = vmax.f32 %v3203, 0.0
      %v3240 = vmax.f32 %v3204, 0.0
      %v3241 = vmax.f32 %v3205, 0.0
      %v3242 = vmax.f32 %v3206, 0.0
      %v3243 = vmax.f32 %v3207, 0.0
      %v3244 = vmax.f32 %v3208, 0.0
      %v3245 = vmax.f32 %v3209, 0.0
      %v3246 = vmax.f32 %v3210, 0.0
      %v3247 = vmax.f32 %v3211, 0.0
      %v3248 = vmax.f32 %v3212, 0.0
      %v3249 = vmax.f32 %v3213, 0.0
      %v3250 = vmax.f32 %v3214, 0.0
      %v3251 = vmax.f32 %v3215, 0.0
      %v3252 = vmax.f32 %v3216, 0.0
      %v3253 = vmax.f32 %v3217, 0.0
      %v3254 = vmax.f32 %v3218, 0.0
      %v3255 = vmax.f32 %v3219, 0.0
      %v3256 = vmax.f32 %v3220, 0.0
      %v3257 = vmax.f32 %v3221, 0.0
      %v3258 = vmax.f32 %v3222, 0.0
      %v3259 = vmax.f32 %v3223, 0.0
      %v3260 = vmax.f32 %v3224, 0.0
      %v3261 = vmax.f32 %v3225, 0.0
      %v3262 = vmax.f32 %v3226, 0.0
      %v3263 = vmax.f32 %v3227, 0.0
      %v3264 = vpack.c.bf16 %v3229, %v3228
      %v3265 = vpack.c.bf16 %v3231, %v3230
      %v3266 = vpack.c.bf16 %v3233, %v3232
      %v3267 = vpack.c.bf16 %v3235, %v3234
      %v3268 = vpack.c.bf16 %v3237, %v3236
      %v3269 = vpack.c.bf16 %v3239, %v3238
      %v3270 = vpack.c.bf16 %v3241, %v3240
      %v3271 = vpack.c.bf16 %v3243, %v3242
      %v3272 = vpack.c.bf16 %v3245, %v3244
      %v3273 = vpack.c.bf16 %v3247, %v3246
      %v3274 = vpack.c.bf16 %v3249, %v3248
      %v3275 = vpack.c.bf16 %v3251, %v3250
      %v3276 = vpack.c.bf16 %v3253, %v3252
      %v3277 = vpack.c.bf16 %v3255, %v3254
      %v3278 = vpack.c.bf16 %v3257, %v3256
      %v3279 = vpack.c.bf16 %v3259, %v3258
      %v3280 = vpack.c.bf16 %v3261, %v3260
      %v3281 = vpack.c.bf16 %v3263, %v3262
      %v3282 = vld [vmem:[%s9] sm:$0xff]
      %v3283 = vld [vmem:[%s9 + $0x8] sm:$0xf]
      %v3284 = vld [vmem:[%s9 + $0xc] sm:$0xff]
      %v3285 = vld [vmem:[%s9 + $0x14] sm:$0xf]
      %v3286 = vld [vmem:[%s9 + $0x18] sm:$0xff]
      %v3287 = vld [vmem:[%s9 + $0x20] sm:$0xf]
      %v3288 = vld [vmem:[%s9 + $0x24] sm:$0xff]
      %v3289 = vld [vmem:[%s9 + $0x2c] sm:$0xf]
      %v3290 = vld [vmem:[%s9 + $0x30] sm:$0xff]
      %v3291 = vld [vmem:[%s9 + $0x38] sm:$0xf]
      %v3292 = vld [vmem:[%s9 + $0x3c] sm:$0xff]
      %v3293 = vld [vmem:[%s9 + $0x44] sm:$0xf]
      %v3294 = vld [vmem:[%s9 + $0x48] sm:$0xff]
      %v3295 = vld [vmem:[%s9 + $0x50] sm:$0xf]
      %v3296 = vld [vmem:[%s9 + $0x54] sm:$0xff]
      %v3297 = vld [vmem:[%s9 + $0x5c] sm:$0xf]
      %v3298 = vld [vmem:[%s9 + $0x60] sm:$0xff]
      %v3299 = vld [vmem:[%s9 + $0x68] sm:$0xf]
      %v3300 = vld [vmem:[%s9 + $0x6c] sm:$0xff]
      %v3301 = vld [vmem:[%s9 + $0x74] sm:$0xf]
      %v3302 = vld [vmem:[%s9 + $0x78] sm:$0xff]
      %v3303 = vld [vmem:[%s9 + $0x80] sm:$0xf]
      %v3304 = vld [vmem:[%s9 + $0x84] sm:$0xff]
      %v3305 = vld [vmem:[%s9 + $0x8c] sm:$0xf]
      %v3306 = vld [vmem:[%s9 + $0x90] sm:$0xff]
      %v3307 = vld [vmem:[%s9 + $0x98] sm:$0xf]
      %v3308 = vld [vmem:[%s9 + $0x9c] sm:$0xff]
      %v3309 = vld [vmem:[%s9 + $0xa4] sm:$0xf]
      %v3338 = vunpack.c.l.b16 %v3282
      %v3339 = vunpack.c.h.b16 %v3282
      %v3340 = vunpack.c.l.b16 %v3283
      %v3341 = vunpack.c.l.b16 %v3284
      %v3342 = vunpack.c.h.b16 %v3284
      %v3343 = vunpack.c.l.b16 %v3285
      %v3344 = vunpack.c.l.b16 %v3286
      %v3345 = vunpack.c.h.b16 %v3286
      %v3346 = vunpack.c.l.b16 %v3287
      %v3347 = vunpack.c.l.b16 %v3288
      %v3348 = vunpack.c.h.b16 %v3288
      %v3349 = vunpack.c.l.b16 %v3289
      %v3350 = vunpack.c.l.b16 %v3290
      %v3351 = vunpack.c.h.b16 %v3290
      %v3352 = vunpack.c.l.b16 %v3291
      %v3353 = vunpack.c.l.b16 %v3292
      %v3354 = vunpack.c.h.b16 %v3292
      %v3355 = vunpack.c.l.b16 %v3293
      %v3356 = vunpack.c.l.b16 %v3294
      %v3357 = vunpack.c.h.b16 %v3294
      %v3358 = vunpack.c.l.b16 %v3295
      %v3359 = vunpack.c.l.b16 %v3296
      %v3360 = vunpack.c.h.b16 %v3296
      %v3361 = vunpack.c.l.b16 %v3297
      %v3362 = vunpack.c.l.b16 %v3298
      %v3363 = vunpack.c.h.b16 %v3298
      %v3364 = vunpack.c.l.b16 %v3299
      %v3365 = vunpack.c.l.b16 %v3300
      %v3366 = vunpack.c.h.b16 %v3300
      %v3367 = vunpack.c.l.b16 %v3301
      %v3368 = vunpack.c.l.b16 %v3302
      %v3369 = vunpack.c.h.b16 %v3302
      %v3370 = vunpack.c.l.b16 %v3303
      %v3371 = vunpack.c.l.b16 %v3304
      %v3372 = vunpack.c.h.b16 %v3304
      %v3373 = vunpack.c.l.b16 %v3305
      %v3374 = vunpack.c.l.b16 %v3306
      %v3375 = vunpack.c.h.b16 %v3306
      %v3376 = vunpack.c.l.b16 %v3307
      %v3377 = vunpack.c.l.b16 %v3308
      %v3378 = vunpack.c.h.b16 %v3308
      %v3379 = vunpack.c.l.b16 %v3309
      %v3380 = vpack.c.b16 %v3341, %v3338
      %v3381 = vpack.c.b16 %v3342, %v3339
      %v3382 = vpack.c.b16 %v3343, %v3340
      %v3383 = vpack.c.b16 %v3347, %v3344
      %v3384 = vpack.c.b16 %v3348, %v3345
      %v3385 = vpack.c.b16 %v3349, %v3346
      %v3386 = vpack.c.b16 %v3353, %v3350
      %v3387 = vpack.c.b16 %v3354, %v3351
      %v3388 = vpack.c.b16 %v3355, %v3352
      %v3389 = vpack.c.b16 %v3359, %v3356
      %v3390 = vpack.c.b16 %v3360, %v3357
      %v3391 = vpack.c.b16 %v3361, %v3358
      %v3392 = vpack.c.b16 %v3365, %v3362
      %v3393 = vpack.c.b16 %v3366, %v3363
      %v3394 = vpack.c.b16 %v3367, %v3364
      %v3395 = vpack.c.b16 %v3371, %v3368
      %v3396 = vpack.c.b16 %v3372, %v3369
      %v3397 = vpack.c.b16 %v3373, %v3370
      %v3398 = vpack.c.b16 %v3377, %v3374
      %v3399 = vpack.c.b16 %v3378, %v3375
      %v3400 = vpack.c.b16 %v3379, %v3376
      %vm3415 = vcmask 261120
      %v3417 = vsel %vm3415, %v3382, 0
      %v3420 = vsel %vm3415, %v3385, 0
      %v3423 = vsel %vm3415, %v3388, 0
      %v3426 = vsel %vm3415, %v3391, 0
      %v3429 = vsel %vm3415, %v3394, 0
      %v3432 = vsel %vm3415, %v3397, 0
      %v3435 = vsel %vm3415, %v3400, 0
      %3437 = vmatpush.bf16.msra.mxu0 %v3271
      %3438 = vmatpush.bf16.msra.mxu0 %v3270
      %3439 = vmatpush.bf16.msra.mxu0 %v3269
      %3440 = vmatpush.bf16.msra.mxu0 %v3268
      %3441 = vmatpush.bf16.msra.mxu0 %v3267
      %3442 = vmatpush.bf16.msra.mxu0 %v3266
      %3443 = vmatpush.bf16.msra.mxu0 %v3265
      %3444 = vmatpush.bf16.msra.mxu0 %v3264
      %3445 = vmatmul.bf16.gmra.mxu0 %v3380
      %v3446 = vpop.f32.mrf.mxu0
      %v3447 = vadd.f32 0.0, %v3446
      %v3448 = vpop.f32.mrf.mxu0
      %v3449 = vadd.f32 0.0, %v3448
      %3450 = vmatmul.bf16.gmra.mxu0 %v3383
      %v3451 = vpop.f32.mrf.mxu0
      %v3452 = vadd.f32 0.0, %v3451
      %v3453 = vpop.f32.mrf.mxu0
      %v3454 = vadd.f32 0.0, %v3453
      %3455 = vmatmul.bf16.gmra.mxu0 %v3386
      %v3456 = vpop.f32.mrf.mxu0
      %v3457 = vadd.f32 0.0, %v3456
      %v3458 = vpop.f32.mrf.mxu0
      %v3459 = vadd.f32 0.0, %v3458
      %3460 = vmatmul.bf16.gmra.mxu0 %v3389
      %v3461 = vpop.f32.mrf.mxu0
      %v3462 = vadd.f32 0.0, %v3461
      %v3463 = vpop.f32.mrf.mxu0
      %v3464 = vadd.f32 0.0, %v3463
      %3465 = vmatmul.bf16.gmra.mxu0 %v3392
      %v3466 = vpop.f32.mrf.mxu0
      %v3467 = vadd.f32 0.0, %v3466
      %v3468 = vpop.f32.mrf.mxu0
      %v3469 = vadd.f32 0.0, %v3468
      %3470 = vmatmul.bf16.gmra.mxu0 %v3395
      %v3471 = vpop.f32.mrf.mxu0
      %v3472 = vadd.f32 0.0, %v3471
      %v3473 = vpop.f32.mrf.mxu0
      %v3474 = vadd.f32 0.0, %v3473
      %3475 = vmatmul.bf16.gmra.mxu0 %v3398
      %v3476 = vpop.f32.mrf.mxu0
      %v3477 = vadd.f32 0.0, %v3476
      %v3478 = vpop.f32.mrf.mxu0
      %v3479 = vadd.f32 0.0, %v3478
      %3480 = vdwg.mxu0
      %3481 = vmatpush.bf16.msra.mxu0 %v3279
      %3482 = vmatpush.bf16.msra.mxu0 %v3278
      %3483 = vmatpush.bf16.msra.mxu0 %v3277
      %3484 = vmatpush.bf16.msra.mxu0 %v3276
      %3485 = vmatpush.bf16.msra.mxu0 %v3275
      %3486 = vmatpush.bf16.msra.mxu0 %v3274
      %3487 = vmatpush.bf16.msra.mxu0 %v3273
      %3488 = vmatpush.bf16.msra.mxu0 %v3272
      %3489 = vmatmul.bf16.gmra.mxu0 %v3381
      %v3490 = vpop.f32.mrf.mxu0
      %v3491 = vadd.f32 %v3447, %v3490
      %v3492 = vpop.f32.mrf.mxu0
      %v3493 = vadd.f32 %v3449, %v3492
      %3494 = vmatmul.bf16.gmra.mxu0 %v3384
      %v3495 = vpop.f32.mrf.mxu0
      %v3496 = vadd.f32 %v3452, %v3495
      %v3497 = vpop.f32.mrf.mxu0
      %v3498 = vadd.f32 %v3454, %v3497
      %3499 = vmatmul.bf16.gmra.mxu0 %v3387
      %v3500 = vpop.f32.mrf.mxu0
      %v3501 = vadd.f32 %v3457, %v3500
      %v3502 = vpop.f32.mrf.mxu0
      %v3503 = vadd.f32 %v3459, %v3502
      %3504 = vmatmul.bf16.gmra.mxu0 %v3390
      %v3505 = vpop.f32.mrf.mxu0
      %v3506 = vadd.f32 %v3462, %v3505
      %v3507 = vpop.f32.mrf.mxu0
      %v3508 = vadd.f32 %v3464, %v3507
      %3509 = vmatmul.bf16.gmra.mxu0 %v3393
      %v3510 = vpop.f32.mrf.mxu0
      %v3511 = vadd.f32 %v3467, %v3510
      %v3512 = vpop.f32.mrf.mxu0
      %v3513 = vadd.f32 %v3469, %v3512
      %3514 = vmatmul.bf16.gmra.mxu0 %v3396
      %v3515 = vpop.f32.mrf.mxu0
      %v3516 = vadd.f32 %v3472, %v3515
      %v3517 = vpop.f32.mrf.mxu0
      %v3518 = vadd.f32 %v3474, %v3517
      %3519 = vmatmul.bf16.gmra.mxu0 %v3399
      %v3520 = vpop.f32.mrf.mxu0
      %v3521 = vadd.f32 %v3477, %v3520
      %v3522 = vpop.f32.mrf.mxu0
      %v3523 = vadd.f32 %v3479, %v3522
      %3524 = vdwg.mxu0
      %3525 = vmatpush.bf16.msra.mxu0 0
      %3526 = vmatpush.bf16.msra.mxu0 0
      %3527 = vmatpush.bf16.msra.mxu0 0
      %3528 = vmatpush.bf16.msra.mxu0 0
      %3529 = vmatpush.bf16.msra.mxu0 0
      %3530 = vmatpush.bf16.msra.mxu0 0
      %3531 = vmatpush.bf16.msra.mxu0 %v3281
      %3532 = vmatpush.bf16.msra.mxu0 %v3280
      %3533 = vmatmul.bf16.gmra.mxu0 %v3417
      %v3534 = vpop.f32.mrf.mxu0
      %v3535 = vadd.f32 %v3491, %v3534
      %v3536 = vpop.f32.mrf.mxu0
      %v3537 = vadd.f32 %v3493, %v3536
      %3538 = vmatmul.bf16.gmra.mxu0 %v3420
      %v3539 = vpop.f32.mrf.mxu0
      %v3540 = vadd.f32 %v3496, %v3539
      %v3541 = vpop.f32.mrf.mxu0
      %v3542 = vadd.f32 %v3498, %v3541
      %3543 = vmatmul.bf16.gmra.mxu0 %v3423
      %v3544 = vpop.f32.mrf.mxu0
      %v3545 = vadd.f32 %v3501, %v3544
      %v3546 = vpop.f32.mrf.mxu0
      %v3547 = vadd.f32 %v3503, %v3546
      %3548 = vmatmul.bf16.gmra.mxu0 %v3426
      %v3549 = vpop.f32.mrf.mxu0
      %v3550 = vadd.f32 %v3506, %v3549
      %v3551 = vpop.f32.mrf.mxu0
      %v3552 = vadd.f32 %v3508, %v3551
      %3553 = vmatmul.bf16.gmra.mxu0 %v3429
      %v3554 = vpop.f32.mrf.mxu0
      %v3555 = vadd.f32 %v3511, %v3554
      %v3556 = vpop.f32.mrf.mxu0
      %v3557 = vadd.f32 %v3513, %v3556
      %3558 = vmatmul.bf16.gmra.mxu0 %v3432
      %v3559 = vpop.f32.mrf.mxu0
      %v3560 = vadd.f32 %v3516, %v3559
      %v3561 = vpop.f32.mrf.mxu0
      %v3562 = vadd.f32 %v3518, %v3561
      %3563 = vmatmul.bf16.gmra.mxu0 %v3435
      %v3564 = vpop.f32.mrf.mxu0
      %v3565 = vadd.f32 %v3521, %v3564
      %v3566 = vpop.f32.mrf.mxu0
      %v3567 = vadd.f32 %v3523, %v3566
      %3568 = vdwg.mxu0
      %s3569 = scalar_lea.vmem %s9, 168
      %v3570 = vld [vmem:[%s3569] sm:$0xff]
      %v3571 = vld [vmem:[%s3569 + $0x8] sm:$0xf]
      %v3572 = vld [vmem:[%s3569 + $0xc] sm:$0xff]
      %v3573 = vld [vmem:[%s3569 + $0x14] sm:$0xf]
      %v3574 = vld [vmem:[%s3569 + $0x18] sm:$0xff]
      %v3575 = vld [vmem:[%s3569 + $0x20] sm:$0xf]
      %v3576 = vld [vmem:[%s3569 + $0x24] sm:$0xff]
      %v3577 = vld [vmem:[%s3569 + $0x2c] sm:$0xf]
      %v3578 = vld [vmem:[%s3569 + $0x30] sm:$0xff]
      %v3579 = vld [vmem:[%s3569 + $0x38] sm:$0xf]
      %v3580 = vld [vmem:[%s3569 + $0x3c] sm:$0xff]
      %v3581 = vld [vmem:[%s3569 + $0x44] sm:$0xf]
      %v3582 = vld [vmem:[%s3569 + $0x48] sm:$0xff]
      %v3583 = vld [vmem:[%s3569 + $0x50] sm:$0xf]
      %v3584 = vld [vmem:[%s3569 + $0x54] sm:$0xff]
      %v3585 = vld [vmem:[%s3569 + $0x5c] sm:$0xf]
      %v3586 = vld [vmem:[%s3569 + $0x60] sm:$0xff]
      %v3587 = vld [vmem:[%s3569 + $0x68] sm:$0xf]
      %v3588 = vld [vmem:[%s3569 + $0x6c] sm:$0xff]
      %v3589 = vld [vmem:[%s3569 + $0x74] sm:$0xf]
      %v3590 = vld [vmem:[%s3569 + $0x78] sm:$0xff]
      %v3591 = vld [vmem:[%s3569 + $0x80] sm:$0xf]
      %v3592 = vld [vmem:[%s3569 + $0x84] sm:$0xff]
      %v3593 = vld [vmem:[%s3569 + $0x8c] sm:$0xf]
      %v3594 = vld [vmem:[%s3569 + $0x90] sm:$0xff]
      %v3595 = vld [vmem:[%s3569 + $0x98] sm:$0xf]
      %v3596 = vld [vmem:[%s3569 + $0x9c] sm:$0xff]
      %v3597 = vld [vmem:[%s3569 + $0xa4] sm:$0xf]
      %v3626 = vunpack.c.l.b16 %v3570
      %v3627 = vunpack.c.h.b16 %v3570
      %v3628 = vunpack.c.l.b16 %v3571
      %v3629 = vunpack.c.l.b16 %v3572
      %v3630 = vunpack.c.h.b16 %v3572
      %v3631 = vunpack.c.l.b16 %v3573
      %v3632 = vunpack.c.l.b16 %v3574
      %v3633 = vunpack.c.h.b16 %v3574
      %v3634 = vunpack.c.l.b16 %v3575
      %v3635 = vunpack.c.l.b16 %v3576
      %v3636 = vunpack.c.h.b16 %v3576
      %v3637 = vunpack.c.l.b16 %v3577
      %v3638 = vunpack.c.l.b16 %v3578
      %v3639 = vunpack.c.h.b16 %v3578
      %v3640 = vunpack.c.l.b16 %v3579
      %v3641 = vunpack.c.l.b16 %v3580
      %v3642 = vunpack.c.h.b16 %v3580
      %v3643 = vunpack.c.l.b16 %v3581
      %v3644 = vunpack.c.l.b16 %v3582
      %v3645 = vunpack.c.h.b16 %v3582
      %v3646 = vunpack.c.l.b16 %v3583
      %v3647 = vunpack.c.l.b16 %v3584
      %v3648 = vunpack.c.h.b16 %v3584
      %v3649 = vunpack.c.l.b16 %v3585
      %v3650 = vunpack.c.l.b16 %v3586
      %v3651 = vunpack.c.h.b16 %v3586
      %v3652 = vunpack.c.l.b16 %v3587
      %v3653 = vunpack.c.l.b16 %v3588
      %v3654 = vunpack.c.h.b16 %v3588
      %v3655 = vunpack.c.l.b16 %v3589
      %v3656 = vunpack.c.l.b16 %v3590
      %v3657 = vunpack.c.h.b16 %v3590
      %v3658 = vunpack.c.l.b16 %v3591
      %v3659 = vunpack.c.l.b16 %v3592
      %v3660 = vunpack.c.h.b16 %v3592
      %v3661 = vunpack.c.l.b16 %v3593
      %v3662 = vunpack.c.l.b16 %v3594
      %v3663 = vunpack.c.h.b16 %v3594
      %v3664 = vunpack.c.l.b16 %v3595
      %v3665 = vunpack.c.l.b16 %v3596
      %v3666 = vunpack.c.h.b16 %v3596
      %v3667 = vunpack.c.l.b16 %v3597
      %v3668 = vpack.c.b16 %v3629, %v3626
      %v3669 = vpack.c.b16 %v3630, %v3627
      %v3670 = vpack.c.b16 %v3631, %v3628
      %v3671 = vpack.c.b16 %v3635, %v3632
      %v3672 = vpack.c.b16 %v3636, %v3633
      %v3673 = vpack.c.b16 %v3637, %v3634
      %v3674 = vpack.c.b16 %v3641, %v3638
      %v3675 = vpack.c.b16 %v3642, %v3639
      %v3676 = vpack.c.b16 %v3643, %v3640
      %v3677 = vpack.c.b16 %v3647, %v3644
      %v3678 = vpack.c.b16 %v3648, %v3645
      %v3679 = vpack.c.b16 %v3649, %v3646
      %v3680 = vpack.c.b16 %v3653, %v3650
      %v3681 = vpack.c.b16 %v3654, %v3651
      %v3682 = vpack.c.b16 %v3655, %v3652
      %v3683 = vpack.c.b16 %v3659, %v3656
      %v3684 = vpack.c.b16 %v3660, %v3657
      %v3685 = vpack.c.b16 %v3661, %v3658
      %v3686 = vpack.c.b16 %v3665, %v3662
      %v3687 = vpack.c.b16 %v3666, %v3663
      %v3688 = vpack.c.b16 %v3667, %v3664
      %v3704 = vsel %vm3415, %v3670, 0
      %v3707 = vsel %vm3415, %v3673, 0
      %v3710 = vsel %vm3415, %v3676, 0
      %v3713 = vsel %vm3415, %v3679, 0
      %v3716 = vsel %vm3415, %v3682, 0
      %v3719 = vsel %vm3415, %v3685, 0
      %v3722 = vsel %vm3415, %v3688, 0
      %3724 = vmatpush.bf16.msra.mxu0 %v3271
      %3725 = vmatpush.bf16.msra.mxu0 %v3270
      %3726 = vmatpush.bf16.msra.mxu0 %v3269
      %3727 = vmatpush.bf16.msra.mxu0 %v3268
      %3728 = vmatpush.bf16.msra.mxu0 %v3267
      %3729 = vmatpush.bf16.msra.mxu0 %v3266
      %3730 = vmatpush.bf16.msra.mxu0 %v3265
      %3731 = vmatpush.bf16.msra.mxu0 %v3264
      %3732 = vmatmul.bf16.gmra.mxu0 %v3668
      %v3733 = vpop.f32.mrf.mxu0
      %v3734 = vadd.f32 0.0, %v3733
      %v3735 = vpop.f32.mrf.mxu0
      %v3736 = vadd.f32 0.0, %v3735
      %3737 = vmatmul.bf16.gmra.mxu0 %v3671
      %v3738 = vpop.f32.mrf.mxu0
      %v3739 = vadd.f32 0.0, %v3738
      %v3740 = vpop.f32.mrf.mxu0
      %v3741 = vadd.f32 0.0, %v3740
      %3742 = vmatmul.bf16.gmra.mxu0 %v3674
      %v3743 = vpop.f32.mrf.mxu0
      %v3744 = vadd.f32 0.0, %v3743
      %v3745 = vpop.f32.mrf.mxu0
      %v3746 = vadd.f32 0.0, %v3745
      %3747 = vmatmul.bf16.gmra.mxu0 %v3677
      %v3748 = vpop.f32.mrf.mxu0
      %v3749 = vadd.f32 0.0, %v3748
      %v3750 = vpop.f32.mrf.mxu0
      %v3751 = vadd.f32 0.0, %v3750
      %3752 = vmatmul.bf16.gmra.mxu0 %v3680
      %v3753 = vpop.f32.mrf.mxu0
      %v3754 = vadd.f32 0.0, %v3753
      %v3755 = vpop.f32.mrf.mxu0
      %v3756 = vadd.f32 0.0, %v3755
      %3757 = vmatmul.bf16.gmra.mxu0 %v3683
      %v3758 = vpop.f32.mrf.mxu0
      %v3759 = vadd.f32 0.0, %v3758
      %v3760 = vpop.f32.mrf.mxu0
      %v3761 = vadd.f32 0.0, %v3760
      %3762 = vmatmul.bf16.gmra.mxu0 %v3686
      %v3763 = vpop.f32.mrf.mxu0
      %v3764 = vadd.f32 0.0, %v3763
      %v3765 = vpop.f32.mrf.mxu0
      %v3766 = vadd.f32 0.0, %v3765
      %3767 = vdwg.mxu0
      %3768 = vmatpush.bf16.msra.mxu0 %v3279
      %3769 = vmatpush.bf16.msra.mxu0 %v3278
      %3770 = vmatpush.bf16.msra.mxu0 %v3277
      %3771 = vmatpush.bf16.msra.mxu0 %v3276
      %3772 = vmatpush.bf16.msra.mxu0 %v3275
      %3773 = vmatpush.bf16.msra.mxu0 %v3274
      %3774 = vmatpush.bf16.msra.mxu0 %v3273
      %3775 = vmatpush.bf16.msra.mxu0 %v3272
      %3776 = vmatmul.bf16.gmra.mxu0 %v3669
      %v3777 = vpop.f32.mrf.mxu0
      %v3778 = vadd.f32 %v3734, %v3777
      %v3779 = vpop.f32.mrf.mxu0
      %v3780 = vadd.f32 %v3736, %v3779
      %3781 = vmatmul.bf16.gmra.mxu0 %v3672
      %v3782 = vpop.f32.mrf.mxu0
      %v3783 = vadd.f32 %v3739, %v3782
      %v3784 = vpop.f32.mrf.mxu0
      %v3785 = vadd.f32 %v3741, %v3784
      %3786 = vmatmul.bf16.gmra.mxu0 %v3675
      %v3787 = vpop.f32.mrf.mxu0
      %v3788 = vadd.f32 %v3744, %v3787
      %v3789 = vpop.f32.mrf.mxu0
      %v3790 = vadd.f32 %v3746, %v3789
      %3791 = vmatmul.bf16.gmra.mxu0 %v3678
      %v3792 = vpop.f32.mrf.mxu0
      %v3793 = vadd.f32 %v3749, %v3792
      %v3794 = vpop.f32.mrf.mxu0
      %v3795 = vadd.f32 %v3751, %v3794
      %3796 = vmatmul.bf16.gmra.mxu0 %v3681
      %v3797 = vpop.f32.mrf.mxu0
      %v3798 = vadd.f32 %v3754, %v3797
      %v3799 = vpop.f32.mrf.mxu0
      %v3800 = vadd.f32 %v3756, %v3799
      %3801 = vmatmul.bf16.gmra.mxu0 %v3684
      %v3802 = vpop.f32.mrf.mxu0
      %v3803 = vadd.f32 %v3759, %v3802
      %v3804 = vpop.f32.mrf.mxu0
      %v3805 = vadd.f32 %v3761, %v3804
      %3806 = vmatmul.bf16.gmra.mxu0 %v3687
      %v3807 = vpop.f32.mrf.mxu0
      %v3808 = vadd.f32 %v3764, %v3807
      %v3809 = vpop.f32.mrf.mxu0
      %v3810 = vadd.f32 %v3766, %v3809
      %3811 = vdwg.mxu0
      %3812 = vmatpush.bf16.msra.mxu0 0
      %3813 = vmatpush.bf16.msra.mxu0 0
      %3814 = vmatpush.bf16.msra.mxu0 0
      %3815 = vmatpush.bf16.msra.mxu0 0
      %3816 = vmatpush.bf16.msra.mxu0 0
      %3817 = vmatpush.bf16.msra.mxu0 0
      %3818 = vmatpush.bf16.msra.mxu0 %v3281
      %3819 = vmatpush.bf16.msra.mxu0 %v3280
      %3820 = vmatmul.bf16.gmra.mxu0 %v3704
      %v3821 = vpop.f32.mrf.mxu0
      %v3822 = vadd.f32 %v3778, %v3821
      %v3823 = vpop.f32.mrf.mxu0
      %v3824 = vadd.f32 %v3780, %v3823
      %3825 = vmatmul.bf16.gmra.mxu0 %v3707
      %v3826 = vpop.f32.mrf.mxu0
      %v3827 = vadd.f32 %v3783, %v3826
      %v3828 = vpop.f32.mrf.mxu0
      %v3829 = vadd.f32 %v3785, %v3828
      %3830 = vmatmul.bf16.gmra.mxu0 %v3710
      %v3831 = vpop.f32.mrf.mxu0
      %v3832 = vadd.f32 %v3788, %v3831
      %v3833 = vpop.f32.mrf.mxu0
      %v3834 = vadd.f32 %v3790, %v3833
      %3835 = vmatmul.bf16.gmra.mxu0 %v3713
      %v3836 = vpop.f32.mrf.mxu0
      %v3837 = vadd.f32 %v3793, %v3836
      %v3838 = vpop.f32.mrf.mxu0
      %v3839 = vadd.f32 %v3795, %v3838
      %3840 = vmatmul.bf16.gmra.mxu0 %v3716
      %v3841 = vpop.f32.mrf.mxu0
      %v3842 = vadd.f32 %v3798, %v3841
      %v3843 = vpop.f32.mrf.mxu0
      %v3844 = vadd.f32 %v3800, %v3843
      %3845 = vmatmul.bf16.gmra.mxu0 %v3719
      %v3846 = vpop.f32.mrf.mxu0
      %v3847 = vadd.f32 %v3803, %v3846
      %v3848 = vpop.f32.mrf.mxu0
      %v3849 = vadd.f32 %v3805, %v3848
      %3850 = vmatmul.bf16.gmra.mxu0 %v3722
      %v3851 = vpop.f32.mrf.mxu0
      %v3852 = vadd.f32 %v3808, %v3851
      %v3853 = vpop.f32.mrf.mxu0
      %v3854 = vadd.f32 %v3810, %v3853
      %3855 = vdwg.mxu0
      %v3856 = vmax.f32 %v3535, %v3822
      %v3857 = vmax.f32 %v3537, %v3824
      %v3858 = vmax.f32 %v3540, %v3827
      %v3859 = vmax.f32 %v3542, %v3829
      %v3860 = vmax.f32 %v3545, %v3832
      %v3861 = vmax.f32 %v3547, %v3834
      %v3862 = vmax.f32 %v3550, %v3837
      %v3863 = vmax.f32 %v3552, %v3839
      %v3864 = vmax.f32 %v3555, %v3842
      %v3865 = vmax.f32 %v3557, %v3844
      %v3866 = vmax.f32 %v3560, %v3847
      %v3867 = vmax.f32 %v3562, %v3849
      %v3868 = vmax.f32 %v3565, %v3852
      %v3869 = vmax.f32 %v3567, %v3854
      %s3870 = scalar_lea.vmem %s9, 336
      %v3871 = vld [vmem:[%s3870] sm:$0xff]
      %v3872 = vld [vmem:[%s3870 + $0x8] sm:$0xf]
      %v3873 = vld [vmem:[%s3870 + $0xc] sm:$0xff]
      %v3874 = vld [vmem:[%s3870 + $0x14] sm:$0xf]
      %v3875 = vld [vmem:[%s3870 + $0x18] sm:$0xff]
      %v3876 = vld [vmem:[%s3870 + $0x20] sm:$0xf]
      %v3877 = vld [vmem:[%s3870 + $0x24] sm:$0xff]
      %v3878 = vld [vmem:[%s3870 + $0x2c] sm:$0xf]
      %v3879 = vld [vmem:[%s3870 + $0x30] sm:$0xff]
      %v3880 = vld [vmem:[%s3870 + $0x38] sm:$0xf]
      %v3881 = vld [vmem:[%s3870 + $0x3c] sm:$0xff]
      %v3882 = vld [vmem:[%s3870 + $0x44] sm:$0xf]
      %v3883 = vld [vmem:[%s3870 + $0x48] sm:$0xff]
      %v3884 = vld [vmem:[%s3870 + $0x50] sm:$0xf]
      %v3885 = vld [vmem:[%s3870 + $0x54] sm:$0xff]
      %v3886 = vld [vmem:[%s3870 + $0x5c] sm:$0xf]
      %v3887 = vld [vmem:[%s3870 + $0x60] sm:$0xff]
      %v3888 = vld [vmem:[%s3870 + $0x68] sm:$0xf]
      %v3889 = vld [vmem:[%s3870 + $0x6c] sm:$0xff]
      %v3890 = vld [vmem:[%s3870 + $0x74] sm:$0xf]
      %v3891 = vld [vmem:[%s3870 + $0x78] sm:$0xff]
      %v3892 = vld [vmem:[%s3870 + $0x80] sm:$0xf]
      %v3893 = vld [vmem:[%s3870 + $0x84] sm:$0xff]
      %v3894 = vld [vmem:[%s3870 + $0x8c] sm:$0xf]
      %v3895 = vld [vmem:[%s3870 + $0x90] sm:$0xff]
      %v3896 = vld [vmem:[%s3870 + $0x98] sm:$0xf]
      %v3897 = vld [vmem:[%s3870 + $0x9c] sm:$0xff]
      %v3898 = vld [vmem:[%s3870 + $0xa4] sm:$0xf]
      %v3927 = vunpack.c.l.b16 %v3871
      %v3928 = vunpack.c.h.b16 %v3871
      %v3929 = vunpack.c.l.b16 %v3872
      %v3930 = vunpack.c.l.b16 %v3873
      %v3931 = vunpack.c.h.b16 %v3873
      %v3932 = vunpack.c.l.b16 %v3874
      %v3933 = vunpack.c.l.b16 %v3875
      %v3934 = vunpack.c.h.b16 %v3875
      %v3935 = vunpack.c.l.b16 %v3876
      %v3936 = vunpack.c.l.b16 %v3877
      %v3937 = vunpack.c.h.b16 %v3877
      %v3938 = vunpack.c.l.b16 %v3878
      %v3939 = vunpack.c.l.b16 %v3879
      %v3940 = vunpack.c.h.b16 %v3879
      %v3941 = vunpack.c.l.b16 %v3880
      %v3942 = vunpack.c.l.b16 %v3881
      %v3943 = vunpack.c.h.b16 %v3881
      %v3944 = vunpack.c.l.b16 %v3882
      %v3945 = vunpack.c.l.b16 %v3883
      %v3946 = vunpack.c.h.b16 %v3883
      %v3947 = vunpack.c.l.b16 %v3884
      %v3948 = vunpack.c.l.b16 %v3885
      %v3949 = vunpack.c.h.b16 %v3885
      %v3950 = vunpack.c.l.b16 %v3886
      %v3951 = vunpack.c.l.b16 %v3887
      %v3952 = vunpack.c.h.b16 %v3887
      %v3953 = vunpack.c.l.b16 %v3888
      %v3954 = vunpack.c.l.b16 %v3889
      %v3955 = vunpack.c.h.b16 %v3889
      %v3956 = vunpack.c.l.b16 %v3890
      %v3957 = vunpack.c.l.b16 %v3891
      %v3958 = vunpack.c.h.b16 %v3891
      %v3959 = vunpack.c.l.b16 %v3892
      %v3960 = vunpack.c.l.b16 %v3893
      %v3961 = vunpack.c.h.b16 %v3893
      %v3962 = vunpack.c.l.b16 %v3894
      %v3963 = vunpack.c.l.b16 %v3895
      %v3964 = vunpack.c.h.b16 %v3895
      %v3965 = vunpack.c.l.b16 %v3896
      %v3966 = vunpack.c.l.b16 %v3897
      %v3967 = vunpack.c.h.b16 %v3897
      %v3968 = vunpack.c.l.b16 %v3898
      %v3969 = vpack.c.b16 %v3930, %v3927
      %v3970 = vpack.c.b16 %v3931, %v3928
      %v3971 = vpack.c.b16 %v3932, %v3929
      %v3972 = vpack.c.b16 %v3936, %v3933
      %v3973 = vpack.c.b16 %v3937, %v3934
      %v3974 = vpack.c.b16 %v3938, %v3935
      %v3975 = vpack.c.b16 %v3942, %v3939
      %v3976 = vpack.c.b16 %v3943, %v3940
      %v3977 = vpack.c.b16 %v3944, %v3941
      %v3978 = vpack.c.b16 %v3948, %v3945
      %v3979 = vpack.c.b16 %v3949, %v3946
      %v3980 = vpack.c.b16 %v3950, %v3947
      %v3981 = vpack.c.b16 %v3954, %v3951
      %v3982 = vpack.c.b16 %v3955, %v3952
      %v3983 = vpack.c.b16 %v3956, %v3953
      %v3984 = vpack.c.b16 %v3960, %v3957
      %v3985 = vpack.c.b16 %v3961, %v3958
      %v3986 = vpack.c.b16 %v3962, %v3959
      %v3987 = vpack.c.b16 %v3966, %v3963
      %v3988 = vpack.c.b16 %v3967, %v3964
      %v3989 = vpack.c.b16 %v3968, %v3965
      %v4005 = vsel %vm3415, %v3971, 0
      %v4008 = vsel %vm3415, %v3974, 0
      %v4011 = vsel %vm3415, %v3977, 0
      %v4014 = vsel %vm3415, %v3980, 0
      %v4017 = vsel %vm3415, %v3983, 0
      %v4020 = vsel %vm3415, %v3986, 0
      %v4023 = vsel %vm3415, %v3989, 0
      %4025 = vmatpush.bf16.msra.mxu0 %v3271
      %4026 = vmatpush.bf16.msra.mxu0 %v3270
      %4027 = vmatpush.bf16.msra.mxu0 %v3269
      %4028 = vmatpush.bf16.msra.mxu0 %v3268
      %4029 = vmatpush.bf16.msra.mxu0 %v3267
      %4030 = vmatpush.bf16.msra.mxu0 %v3266
      %4031 = vmatpush.bf16.msra.mxu0 %v3265
      %4032 = vmatpush.bf16.msra.mxu0 %v3264
      %4033 = vmatmul.bf16.gmra.mxu0 %v3969
      %v4034 = vpop.f32.mrf.mxu0
      %v4035 = vadd.f32 0.0, %v4034
      %v4036 = vpop.f32.mrf.mxu0
      %v4037 = vadd.f32 0.0, %v4036
      %4038 = vmatmul.bf16.gmra.mxu0 %v3972
      %v4039 = vpop.f32.mrf.mxu0
      %v4040 = vadd.f32 0.0, %v4039
      %v4041 = vpop.f32.mrf.mxu0
      %v4042 = vadd.f32 0.0, %v4041
      %4043 = vmatmul.bf16.gmra.mxu0 %v3975
      %v4044 = vpop.f32.mrf.mxu0
      %v4045 = vadd.f32 0.0, %v4044
      %v4046 = vpop.f32.mrf.mxu0
      %v4047 = vadd.f32 0.0, %v4046
      %4048 = vmatmul.bf16.gmra.mxu0 %v3978
      %v4049 = vpop.f32.mrf.mxu0
      %v4050 = vadd.f32 0.0, %v4049
      %v4051 = vpop.f32.mrf.mxu0
      %v4052 = vadd.f32 0.0, %v4051
      %4053 = vmatmul.bf16.gmra.mxu0 %v3981
      %v4054 = vpop.f32.mrf.mxu0
      %v4055 = vadd.f32 0.0, %v4054
      %v4056 = vpop.f32.mrf.mxu0
      %v4057 = vadd.f32 0.0, %v4056
      %4058 = vmatmul.bf16.gmra.mxu0 %v3984
      %v4059 = vpop.f32.mrf.mxu0
      %v4060 = vadd.f32 0.0, %v4059
      %v4061 = vpop.f32.mrf.mxu0
      %v4062 = vadd.f32 0.0, %v4061
      %4063 = vmatmul.bf16.gmra.mxu0 %v3987
      %v4064 = vpop.f32.mrf.mxu0
      %v4065 = vadd.f32 0.0, %v4064
      %v4066 = vpop.f32.mrf.mxu0
      %v4067 = vadd.f32 0.0, %v4066
      %4068 = vdwg.mxu0
      %4069 = vmatpush.bf16.msra.mxu0 %v3279
      %4070 = vmatpush.bf16.msra.mxu0 %v3278
      %4071 = vmatpush.bf16.msra.mxu0 %v3277
      %4072 = vmatpush.bf16.msra.mxu0 %v3276
      %4073 = vmatpush.bf16.msra.mxu0 %v3275
      %4074 = vmatpush.bf16.msra.mxu0 %v3274
      %4075 = vmatpush.bf16.msra.mxu0 %v3273
      %4076 = vmatpush.bf16.msra.mxu0 %v3272
      %4077 = vmatmul.bf16.gmra.mxu0 %v3970
      %v4078 = vpop.f32.mrf.mxu0
      %v4079 = vadd.f32 %v4035, %v4078
      %v4080 = vpop.f32.mrf.mxu0
      %v4081 = vadd.f32 %v4037, %v4080
      %4082 = vmatmul.bf16.gmra.mxu0 %v3973
      %v4083 = vpop.f32.mrf.mxu0
      %v4084 = vadd.f32 %v4040, %v4083
      %v4085 = vpop.f32.mrf.mxu0
      %v4086 = vadd.f32 %v4042, %v4085
      %4087 = vmatmul.bf16.gmra.mxu0 %v3976
      %v4088 = vpop.f32.mrf.mxu0
      %v4089 = vadd.f32 %v4045, %v4088
      %v4090 = vpop.f32.mrf.mxu0
      %v4091 = vadd.f32 %v4047, %v4090
      %4092 = vmatmul.bf16.gmra.mxu0 %v3979
      %v4093 = vpop.f32.mrf.mxu0
      %v4094 = vadd.f32 %v4050, %v4093
      %v4095 = vpop.f32.mrf.mxu0
      %v4096 = vadd.f32 %v4052, %v4095
      %4097 = vmatmul.bf16.gmra.mxu0 %v3982
      %v4098 = vpop.f32.mrf.mxu0
      %v4099 = vadd.f32 %v4055, %v4098
      %v4100 = vpop.f32.mrf.mxu0
      %v4101 = vadd.f32 %v4057, %v4100
      %4102 = vmatmul.bf16.gmra.mxu0 %v3985
      %v4103 = vpop.f32.mrf.mxu0
      %v4104 = vadd.f32 %v4060, %v4103
      %v4105 = vpop.f32.mrf.mxu0
      %v4106 = vadd.f32 %v4062, %v4105
      %4107 = vmatmul.bf16.gmra.mxu0 %v3988
      %v4108 = vpop.f32.mrf.mxu0
      %v4109 = vadd.f32 %v4065, %v4108
      %v4110 = vpop.f32.mrf.mxu0
      %v4111 = vadd.f32 %v4067, %v4110
      %4112 = vdwg.mxu0
      %4113 = vmatpush.bf16.msra.mxu0 0
      %4114 = vmatpush.bf16.msra.mxu0 0
      %4115 = vmatpush.bf16.msra.mxu0 0
      %4116 = vmatpush.bf16.msra.mxu0 0
      %4117 = vmatpush.bf16.msra.mxu0 0
      %4118 = vmatpush.bf16.msra.mxu0 0
      %4119 = vmatpush.bf16.msra.mxu0 %v3281
      %4120 = vmatpush.bf16.msra.mxu0 %v3280
      %4121 = vmatmul.bf16.gmra.mxu0 %v4005
      %v4122 = vpop.f32.mrf.mxu0
      %v4123 = vadd.f32 %v4079, %v4122
      %v4124 = vpop.f32.mrf.mxu0
      %v4125 = vadd.f32 %v4081, %v4124
      %4126 = vmatmul.bf16.gmra.mxu0 %v4008
      %v4127 = vpop.f32.mrf.mxu0
      %v4128 = vadd.f32 %v4084, %v4127
      %v4129 = vpop.f32.mrf.mxu0
      %v4130 = vadd.f32 %v4086, %v4129
      %4131 = vmatmul.bf16.gmra.mxu0 %v4011
      %v4132 = vpop.f32.mrf.mxu0
      %v4133 = vadd.f32 %v4089, %v4132
      %v4134 = vpop.f32.mrf.mxu0
      %v4135 = vadd.f32 %v4091, %v4134
      %4136 = vmatmul.bf16.gmra.mxu0 %v4014
      %v4137 = vpop.f32.mrf.mxu0
      %v4138 = vadd.f32 %v4094, %v4137
      %v4139 = vpop.f32.mrf.mxu0
      %v4140 = vadd.f32 %v4096, %v4139
      %4141 = vmatmul.bf16.gmra.mxu0 %v4017
      %v4142 = vpop.f32.mrf.mxu0
      %v4143 = vadd.f32 %v4099, %v4142
      %v4144 = vpop.f32.mrf.mxu0
      %v4145 = vadd.f32 %v4101, %v4144
      %4146 = vmatmul.bf16.gmra.mxu0 %v4020
      %v4147 = vpop.f32.mrf.mxu0
      %v4148 = vadd.f32 %v4104, %v4147
      %v4149 = vpop.f32.mrf.mxu0
      %v4150 = vadd.f32 %v4106, %v4149
      %4151 = vmatmul.bf16.gmra.mxu0 %v4023
      %v4152 = vpop.f32.mrf.mxu0
      %v4153 = vadd.f32 %v4109, %v4152
      %v4154 = vpop.f32.mrf.mxu0
      %v4155 = vadd.f32 %v4111, %v4154
      %4156 = vdwg.mxu0
      %v4157 = vmax.f32 %v3856, %v4123
      %v4158 = vmax.f32 %v3857, %v4125
      %v4159 = vmax.f32 %v3858, %v4128
      %v4160 = vmax.f32 %v3859, %v4130
      %v4161 = vmax.f32 %v3860, %v4133
      %v4162 = vmax.f32 %v3861, %v4135
      %v4163 = vmax.f32 %v3862, %v4138
      %v4164 = vmax.f32 %v3863, %v4140
      %v4165 = vmax.f32 %v3864, %v4143
      %v4166 = vmax.f32 %v3865, %v4145
      %v4167 = vmax.f32 %v3866, %v4148
      %v4168 = vmax.f32 %v3867, %v4150
      %v4169 = vmax.f32 %v3868, %v4153
      %v4170 = vmax.f32 %v3869, %v4155
      %s4171 = scalar_lea.vmem %s9, 504
      %v4172 = vld [vmem:[%s4171] sm:$0xff]
      %v4173 = vld [vmem:[%s4171 + $0x8] sm:$0xf]
      %v4174 = vld [vmem:[%s4171 + $0xc] sm:$0xff]
      %v4175 = vld [vmem:[%s4171 + $0x14] sm:$0xf]
      %v4176 = vld [vmem:[%s4171 + $0x18] sm:$0xff]
      %v4177 = vld [vmem:[%s4171 + $0x20] sm:$0xf]
      %v4178 = vld [vmem:[%s4171 + $0x24] sm:$0xff]
      %v4179 = vld [vmem:[%s4171 + $0x2c] sm:$0xf]
      %v4180 = vld [vmem:[%s4171 + $0x30] sm:$0xff]
      %v4181 = vld [vmem:[%s4171 + $0x38] sm:$0xf]
      %v4182 = vld [vmem:[%s4171 + $0x3c] sm:$0xff]
      %v4183 = vld [vmem:[%s4171 + $0x44] sm:$0xf]
      %v4184 = vld [vmem:[%s4171 + $0x48] sm:$0xff]
      %v4185 = vld [vmem:[%s4171 + $0x50] sm:$0xf]
      %v4186 = vld [vmem:[%s4171 + $0x54] sm:$0xff]
      %v4187 = vld [vmem:[%s4171 + $0x5c] sm:$0xf]
      %v4188 = vld [vmem:[%s4171 + $0x60] sm:$0xff]
      %v4189 = vld [vmem:[%s4171 + $0x68] sm:$0xf]
      %v4190 = vld [vmem:[%s4171 + $0x6c] sm:$0xff]
      %v4191 = vld [vmem:[%s4171 + $0x74] sm:$0xf]
      %v4192 = vld [vmem:[%s4171 + $0x78] sm:$0xff]
      %v4193 = vld [vmem:[%s4171 + $0x80] sm:$0xf]
      %v4194 = vld [vmem:[%s4171 + $0x84] sm:$0xff]
      %v4195 = vld [vmem:[%s4171 + $0x8c] sm:$0xf]
      %v4196 = vld [vmem:[%s4171 + $0x90] sm:$0xff]
      %v4197 = vld [vmem:[%s4171 + $0x98] sm:$0xf]
      %v4198 = vld [vmem:[%s4171 + $0x9c] sm:$0xff]
      %v4199 = vld [vmem:[%s4171 + $0xa4] sm:$0xf]
      %v4228 = vunpack.c.l.b16 %v4172
      %v4229 = vunpack.c.h.b16 %v4172
      %v4230 = vunpack.c.l.b16 %v4173
      %v4231 = vunpack.c.l.b16 %v4174
      %v4232 = vunpack.c.h.b16 %v4174
      %v4233 = vunpack.c.l.b16 %v4175
      %v4234 = vunpack.c.l.b16 %v4176
      %v4235 = vunpack.c.h.b16 %v4176
      %v4236 = vunpack.c.l.b16 %v4177
      %v4237 = vunpack.c.l.b16 %v4178
      %v4238 = vunpack.c.h.b16 %v4178
      %v4239 = vunpack.c.l.b16 %v4179
      %v4240 = vunpack.c.l.b16 %v4180
      %v4241 = vunpack.c.h.b16 %v4180
      %v4242 = vunpack.c.l.b16 %v4181
      %v4243 = vunpack.c.l.b16 %v4182
      %v4244 = vunpack.c.h.b16 %v4182
      %v4245 = vunpack.c.l.b16 %v4183
      %v4246 = vunpack.c.l.b16 %v4184
      %v4247 = vunpack.c.h.b16 %v4184
      %v4248 = vunpack.c.l.b16 %v4185
      %v4249 = vunpack.c.l.b16 %v4186
      %v4250 = vunpack.c.h.b16 %v4186
      %v4251 = vunpack.c.l.b16 %v4187
      %v4252 = vunpack.c.l.b16 %v4188
      %v4253 = vunpack.c.h.b16 %v4188
      %v4254 = vunpack.c.l.b16 %v4189
      %v4255 = vunpack.c.l.b16 %v4190
      %v4256 = vunpack.c.h.b16 %v4190
      %v4257 = vunpack.c.l.b16 %v4191
      %v4258 = vunpack.c.l.b16 %v4192
      %v4259 = vunpack.c.h.b16 %v4192
      %v4260 = vunpack.c.l.b16 %v4193
      %v4261 = vunpack.c.l.b16 %v4194
      %v4262 = vunpack.c.h.b16 %v4194
      %v4263 = vunpack.c.l.b16 %v4195
      %v4264 = vunpack.c.l.b16 %v4196
      %v4265 = vunpack.c.h.b16 %v4196
      %v4266 = vunpack.c.l.b16 %v4197
      %v4267 = vunpack.c.l.b16 %v4198
      %v4268 = vunpack.c.h.b16 %v4198
      %v4269 = vunpack.c.l.b16 %v4199
      %v4270 = vpack.c.b16 %v4231, %v4228
      %v4271 = vpack.c.b16 %v4232, %v4229
      %v4272 = vpack.c.b16 %v4233, %v4230
      %v4273 = vpack.c.b16 %v4237, %v4234
      %v4274 = vpack.c.b16 %v4238, %v4235
      %v4275 = vpack.c.b16 %v4239, %v4236
      %v4276 = vpack.c.b16 %v4243, %v4240
      %v4277 = vpack.c.b16 %v4244, %v4241
      %v4278 = vpack.c.b16 %v4245, %v4242
      %v4279 = vpack.c.b16 %v4249, %v4246
      %v4280 = vpack.c.b16 %v4250, %v4247
      %v4281 = vpack.c.b16 %v4251, %v4248
      %v4282 = vpack.c.b16 %v4255, %v4252
      %v4283 = vpack.c.b16 %v4256, %v4253
      %v4284 = vpack.c.b16 %v4257, %v4254
      %v4285 = vpack.c.b16 %v4261, %v4258
      %v4286 = vpack.c.b16 %v4262, %v4259
      %v4287 = vpack.c.b16 %v4263, %v4260
      %v4288 = vpack.c.b16 %v4267, %v4264
      %v4289 = vpack.c.b16 %v4268, %v4265
      %v4290 = vpack.c.b16 %v4269, %v4266
      %v4306 = vsel %vm3415, %v4272, 0
      %v4309 = vsel %vm3415, %v4275, 0
      %v4312 = vsel %vm3415, %v4278, 0
      %v4315 = vsel %vm3415, %v4281, 0
      %v4318 = vsel %vm3415, %v4284, 0
      %v4321 = vsel %vm3415, %v4287, 0
      %v4324 = vsel %vm3415, %v4290, 0
      %4326 = vmatpush.bf16.msra.mxu0 %v3271
      %4327 = vmatpush.bf16.msra.mxu0 %v3270
      %4328 = vmatpush.bf16.msra.mxu0 %v3269
      %4329 = vmatpush.bf16.msra.mxu0 %v3268
      %4330 = vmatpush.bf16.msra.mxu0 %v3267
      %4331 = vmatpush.bf16.msra.mxu0 %v3266
      %4332 = vmatpush.bf16.msra.mxu0 %v3265
      %4333 = vmatpush.bf16.msra.mxu0 %v3264
      %4334 = vmatmul.bf16.gmra.mxu0 %v4270
      %v4335 = vpop.f32.mrf.mxu0
      %v4336 = vadd.f32 0.0, %v4335
      %v4337 = vpop.f32.mrf.mxu0
      %v4338 = vadd.f32 0.0, %v4337
      %4339 = vmatmul.bf16.gmra.mxu0 %v4273
      %v4340 = vpop.f32.mrf.mxu0
      %v4341 = vadd.f32 0.0, %v4340
      %v4342 = vpop.f32.mrf.mxu0
      %v4343 = vadd.f32 0.0, %v4342
      %4344 = vmatmul.bf16.gmra.mxu0 %v4276
      %v4345 = vpop.f32.mrf.mxu0
      %v4346 = vadd.f32 0.0, %v4345
      %v4347 = vpop.f32.mrf.mxu0
      %v4348 = vadd.f32 0.0, %v4347
      %4349 = vmatmul.bf16.gmra.mxu0 %v4279
      %v4350 = vpop.f32.mrf.mxu0
      %v4351 = vadd.f32 0.0, %v4350
      %v4352 = vpop.f32.mrf.mxu0
      %v4353 = vadd.f32 0.0, %v4352
      %4354 = vmatmul.bf16.gmra.mxu0 %v4282
      %v4355 = vpop.f32.mrf.mxu0
      %v4356 = vadd.f32 0.0, %v4355
      %v4357 = vpop.f32.mrf.mxu0
      %v4358 = vadd.f32 0.0, %v4357
      %4359 = vmatmul.bf16.gmra.mxu0 %v4285
      %v4360 = vpop.f32.mrf.mxu0
      %v4361 = vadd.f32 0.0, %v4360
      %v4362 = vpop.f32.mrf.mxu0
      %v4363 = vadd.f32 0.0, %v4362
      %4364 = vmatmul.bf16.gmra.mxu0 %v4288
      %v4365 = vpop.f32.mrf.mxu0
      %v4366 = vadd.f32 0.0, %v4365
      %v4367 = vpop.f32.mrf.mxu0
      %v4368 = vadd.f32 0.0, %v4367
      %4369 = vdwg.mxu0
      %4370 = vmatpush.bf16.msra.mxu0 %v3279
      %4371 = vmatpush.bf16.msra.mxu0 %v3278
      %4372 = vmatpush.bf16.msra.mxu0 %v3277
      %4373 = vmatpush.bf16.msra.mxu0 %v3276
      %4374 = vmatpush.bf16.msra.mxu0 %v3275
      %4375 = vmatpush.bf16.msra.mxu0 %v3274
      %4376 = vmatpush.bf16.msra.mxu0 %v3273
      %4377 = vmatpush.bf16.msra.mxu0 %v3272
      %4378 = vmatmul.bf16.gmra.mxu0 %v4271
      %v4379 = vpop.f32.mrf.mxu0
      %v4380 = vadd.f32 %v4336, %v4379
      %v4381 = vpop.f32.mrf.mxu0
      %v4382 = vadd.f32 %v4338, %v4381
      %4383 = vmatmul.bf16.gmra.mxu0 %v4274
      %v4384 = vpop.f32.mrf.mxu0
      %v4385 = vadd.f32 %v4341, %v4384
      %v4386 = vpop.f32.mrf.mxu0
      %v4387 = vadd.f32 %v4343, %v4386
      %4388 = vmatmul.bf16.gmra.mxu0 %v4277
      %v4389 = vpop.f32.mrf.mxu0
      %v4390 = vadd.f32 %v4346, %v4389
      %v4391 = vpop.f32.mrf.mxu0
      %v4392 = vadd.f32 %v4348, %v4391
      %4393 = vmatmul.bf16.gmra.mxu0 %v4280
      %v4394 = vpop.f32.mrf.mxu0
      %v4395 = vadd.f32 %v4351, %v4394
      %v4396 = vpop.f32.mrf.mxu0
      %v4397 = vadd.f32 %v4353, %v4396
      %4398 = vmatmul.bf16.gmra.mxu0 %v4283
      %v4399 = vpop.f32.mrf.mxu0
      %v4400 = vadd.f32 %v4356, %v4399
      %v4401 = vpop.f32.mrf.mxu0
      %v4402 = vadd.f32 %v4358, %v4401
      %4403 = vmatmul.bf16.gmra.mxu0 %v4286
      %v4404 = vpop.f32.mrf.mxu0
      %v4405 = vadd.f32 %v4361, %v4404
      %v4406 = vpop.f32.mrf.mxu0
      %v4407 = vadd.f32 %v4363, %v4406
      %4408 = vmatmul.bf16.gmra.mxu0 %v4289
      %v4409 = vpop.f32.mrf.mxu0
      %v4410 = vadd.f32 %v4366, %v4409
      %v4411 = vpop.f32.mrf.mxu0
      %v4412 = vadd.f32 %v4368, %v4411
      %4413 = vdwg.mxu0
      %4414 = vmatpush.bf16.msra.mxu0 0
      %4415 = vmatpush.bf16.msra.mxu0 0
      %4416 = vmatpush.bf16.msra.mxu0 0
      %4417 = vmatpush.bf16.msra.mxu0 0
      %4418 = vmatpush.bf16.msra.mxu0 0
      %4419 = vmatpush.bf16.msra.mxu0 0
      %4420 = vmatpush.bf16.msra.mxu0 %v3281
      %4421 = vmatpush.bf16.msra.mxu0 %v3280
      %4422 = vmatmul.bf16.gmra.mxu0 %v4306
      %v4423 = vpop.f32.mrf.mxu0
      %v4424 = vadd.f32 %v4380, %v4423
      %v4425 = vpop.f32.mrf.mxu0
      %v4426 = vadd.f32 %v4382, %v4425
      %4427 = vmatmul.bf16.gmra.mxu0 %v4309
      %v4428 = vpop.f32.mrf.mxu0
      %v4429 = vadd.f32 %v4385, %v4428
      %v4430 = vpop.f32.mrf.mxu0
      %v4431 = vadd.f32 %v4387, %v4430
      %4432 = vmatmul.bf16.gmra.mxu0 %v4312
      %v4433 = vpop.f32.mrf.mxu0
      %v4434 = vadd.f32 %v4390, %v4433
      %v4435 = vpop.f32.mrf.mxu0
      %v4436 = vadd.f32 %v4392, %v4435
      %4437 = vmatmul.bf16.gmra.mxu0 %v4315
      %v4438 = vpop.f32.mrf.mxu0
      %v4439 = vadd.f32 %v4395, %v4438
      %v4440 = vpop.f32.mrf.mxu0
      %v4441 = vadd.f32 %v4397, %v4440
      %4442 = vmatmul.bf16.gmra.mxu0 %v4318
      %v4443 = vpop.f32.mrf.mxu0
      %v4444 = vadd.f32 %v4400, %v4443
      %v4445 = vpop.f32.mrf.mxu0
      %v4446 = vadd.f32 %v4402, %v4445
      %4447 = vmatmul.bf16.gmra.mxu0 %v4321
      %v4448 = vpop.f32.mrf.mxu0
      %v4449 = vadd.f32 %v4405, %v4448
      %v4450 = vpop.f32.mrf.mxu0
      %v4451 = vadd.f32 %v4407, %v4450
      %4452 = vmatmul.bf16.gmra.mxu0 %v4324
      %v4453 = vpop.f32.mrf.mxu0
      %v4454 = vadd.f32 %v4410, %v4453
      %v4455 = vpop.f32.mrf.mxu0
      %v4456 = vadd.f32 %v4412, %v4455
      %4457 = vdwg.mxu0
      %v4458 = vmax.f32 %v4157, %v4424
      %v4459 = vmax.f32 %v4158, %v4426
      %v4460 = vmax.f32 %v4159, %v4429
      %v4461 = vmax.f32 %v4160, %v4431
      %v4462 = vmax.f32 %v4161, %v4434
      %v4463 = vmax.f32 %v4162, %v4436
      %v4464 = vmax.f32 %v4163, %v4439
      %v4465 = vmax.f32 %v4164, %v4441
      %v4466 = vmax.f32 %v4165, %v4444
      %v4467 = vmax.f32 %v4166, %v4446
      %v4468 = vmax.f32 %v4167, %v4449
      %v4469 = vmax.f32 %v4168, %v4451
      %v4470 = vmax.f32 %v4169, %v4454
      %v4471 = vmax.f32 %v4170, %v4456
      %v4472 = vpack.c.bf16 %v4458, %v4458
      %v4473 = vpack.c.bf16 %v4459, %v4459
      %v4474 = vpack.c.bf16 %v4460, %v4460
      %v4475 = vpack.c.bf16 %v4461, %v4461
      %v4476 = vpack.c.bf16 %v4462, %v4462
      %v4477 = vpack.c.bf16 %v4463, %v4463
      %v4478 = vpack.c.bf16 %v4464, %v4464
      %v4479 = vpack.c.bf16 %v4465, %v4465
      %v4480 = vpack.c.bf16 %v4466, %v4466
      %v4481 = vpack.c.bf16 %v4467, %v4467
      %v4482 = vpack.c.bf16 %v4468, %v4468
      %v4483 = vpack.c.bf16 %v4469, %v4469
      %v4484 = vpack.c.bf16 %v4470, %v4470
      %v4485 = vpack.c.bf16 %v4471, %v4471
      %vm4486 = vcmask 125952
      %4487 = vst.msk [vmem:[#allocation2] sm:$0xf] %vm4486, %v4472
      %4488 = vst.msk [vmem:[#allocation2 + $0x4] sm:$0xf] %vm4486, %v4473
      %4489 = vst.msk [vmem:[#allocation2 + $0x8] sm:$0xf] %vm4486, %v4474
      %4490 = vst.msk [vmem:[#allocation2 + $0xc] sm:$0xf] %vm4486, %v4475
      %4491 = vst.msk [vmem:[#allocation2 + $0x10] sm:$0xf] %vm4486, %v4476
      %4492 = vst.msk [vmem:[#allocation2 + $0x14] sm:$0xf] %vm4486, %v4477
      %4493 = vst.msk [vmem:[#allocation2 + $0x18] sm:$0xf] %vm4486, %v4478
      %4494 = vst.msk [vmem:[#allocation2 + $0x1c] sm:$0xf] %vm4486, %v4479
      %4495 = vst.msk [vmem:[#allocation2 + $0x20] sm:$0xf] %vm4486, %v4480
      %4496 = vst.msk [vmem:[#allocation2 + $0x24] sm:$0xf] %vm4486, %v4481
      %4497 = vst.msk [vmem:[#allocation2 + $0x28] sm:$0xf] %vm4486, %v4482
      %4498 = vst.msk [vmem:[#allocation2 + $0x2c] sm:$0xf] %vm4486, %v4483
      %4499 = vst.msk [vmem:[#allocation2 + $0x30] sm:$0xf] %vm4486, %v4484
      %4500 = vst.msk [vmem:[#allocation2 + $0x34] sm:$0xf] %vm4486, %v4485
      %v4501 = vld [vmem:[#allocation2] sm:$0xf]
      %v4502 = vld [vmem:[#allocation2 + $0x4] sm:$0xf]
      %v4503 = vld [vmem:[#allocation2 + $0x8] sm:$0xf]
      %v4504 = vld [vmem:[#allocation2 + $0xc] sm:$0xf]
      %v4505 = vld [vmem:[#allocation2 + $0x10] sm:$0xf]
      %v4506 = vld [vmem:[#allocation2 + $0x14] sm:$0xf]
      %v4507 = vld [vmem:[#allocation2 + $0x18] sm:$0xf]
      %v4508 = vld [vmem:[#allocation2 + $0x1c] sm:$0xf]
      %v4509 = vld [vmem:[#allocation2 + $0x20] sm:$0xf]
      %v4510 = vld [vmem:[#allocation2 + $0x24] sm:$0xf]
      %v4511 = vld [vmem:[%s3] sm:$0xf]
      %v4512 = vld [vmem:[%s3 + $0x4] sm:$0xf]
      %v4513 = vld [vmem:[#allocation2 + $0x28] sm:$0x1]
      %s4514 = scalar_lea.vmem %s3, 8
      %v4515 = vld [vmem:[%s4514] sm:$0xf]
      %v4516 = vld [vmem:[%s4514 + $0x4] sm:$0xf]
      %v4528 = vunpack.c.l.b16 %v4501
      %v4529 = vunpack.c.l.b16 %v4502
      %v4530 = vunpack.c.l.b16 %v4503
      %v4531 = vunpack.c.l.b16 %v4504
      %v4532 = vunpack.c.l.b16 %v4505
      %v4533 = vunpack.c.l.b16 %v4506
      %v4534 = vunpack.c.l.b16 %v4507
      %v4535 = vunpack.c.l.b16 %v4508
      %v4536 = vunpack.c.l.b16 %v4509
      %v4537 = vunpack.c.l.b16 %v4510
      %v4538 = vunpack.c.l.b16 %v4513
      %v4539 = vpack.c.b16 %v4529, %v4528
      %v4540 = vpack.c.b16 %v4531, %v4530
      %v4541 = vpack.c.b16 %v4533, %v4532
      %v4542 = vpack.c.b16 %v4535, %v4534
      %v4543 = vpack.c.b16 %v4537, %v4536
      %v4544 = vpack.c.b16 %v4538, %v4538
      %v4546 = vshrl.u32 %v4539, 16
      %v4548 = vshll.u32 %v4539, 16
      %v4550 = vrot.slane %v4548, 1
      %v4551 = vor.u32 %v4546, %v4550
      %v4553 = vshll.u32 %v4540, 16
      %v4555 = vrot.slane %v4553, 1
      %v4556 = vsel %vm575, %v4551, %v4555
      %v4557 = vshrl.u32 %v4540, 16
      %v4559 = vor.u32 %v4557, %v4555
      %v4561 = vshll.u32 %v4541, 16
      %v4563 = vrot.slane %v4561, 1
      %v4564 = vsel %vm575, %v4559, %v4563
      %v4565 = vshrl.u32 %v4541, 16
      %v4567 = vor.u32 %v4565, %v4563
      %v4569 = vshll.u32 %v4542, 16
      %v4571 = vrot.slane %v4569, 1
      %v4572 = vsel %vm575, %v4567, %v4571
      %v4573 = vshrl.u32 %v4542, 16
      %v4575 = vor.u32 %v4573, %v4571
      %v4577 = vshll.u32 %v4543, 16
      %v4579 = vrot.slane %v4577, 1
      %v4580 = vsel %vm575, %v4575, %v4579
      %v4581 = vshrl.u32 %v4543, 16
      %v4583 = vor.u32 %v4581, %v4579
      %v4585 = vshll.u32 %v4544, 16
      %v4587 = vrot.slane %v4585, 1
      %v4588 = vsel %vm575, %v4583, %v4587
      %v4591 = vunpack.c.l.b16 %v4515
      %v4592 = vunpack.c.l.b16 %v4516
      %v4593 = vpack.c.b16 %v4592, %v4591
      %vm4595 = vcmask 130048
      %v4597 = vsel %vm4595, %v4556, 0
      %v4600 = vsel %vm4595, %v4564, 0
      %v4603 = vsel %vm4595, %v4572, 0
      %v4606 = vsel %vm4595, %v4580, 0
      %v4609 = vsel %vm4595, %v4588, 0
      %4611 = vmatpush.bf16.msra.mxu0 0
      %4612 = vmatpush.bf16.msra.mxu0 0
      %4613 = vmatpush.bf16.msra.mxu0 0
      %4614 = vmatpush.bf16.msra.mxu0 0
      %4615 = vmatpush.bf16.msra.mxu0 0
      %4616 = vmatpush.bf16.msra.mxu0 0
      %4617 = vmatpush.bf16.msra.mxu0 0
      %4618 = vmatpush.bf16.msra.mxu0 %v4593
      %4619 = vmatmul.bf16.gmra.mxu0 %v4597
      %v4620 = vpop.f32.mrf.mxu0
      %v4621 = vadd.f32 0.0, %v4620
      %v4622 = vpop.f32.mrf.mxu0
      %v4623 = vadd.f32 0.0, %v4622
      %4624 = vmatmul.bf16.gmra.mxu0 %v4600
      %v4625 = vpop.f32.mrf.mxu0
      %v4626 = vadd.f32 0.0, %v4625
      %v4627 = vpop.f32.mrf.mxu0
      %v4628 = vadd.f32 0.0, %v4627
      %4629 = vmatmul.bf16.gmra.mxu0 %v4603
      %v4630 = vpop.f32.mrf.mxu0
      %v4631 = vadd.f32 0.0, %v4630
      %v4632 = vpop.f32.mrf.mxu0
      %v4633 = vadd.f32 0.0, %v4632
      %4634 = vmatmul.bf16.gmra.mxu0 %v4606
      %v4635 = vpop.f32.mrf.mxu0
      %v4636 = vadd.f32 0.0, %v4635
      %v4637 = vpop.f32.mrf.mxu0
      %v4638 = vadd.f32 0.0, %v4637
      %4639 = vmatmul.bf16.gmra.mxu0 %v4609
      %v4640 = vpop.f32.mrf.mxu0
      %v4641 = vadd.f32 0.0, %v4640
      %v4642 = vpop.f32.mrf.mxu0
      %v4643 = vadd.f32 0.0, %v4642
      %4644 = vdwg.mxu0
      %v4647 = vunpack.c.l.b16 %v4511
      %v4648 = vunpack.c.l.b16 %v4512
      %v4649 = vpack.c.b16 %v4648, %v4647
      %v4651 = vsel %vm4595, %v4539, 0
      %v4653 = vsel %vm4595, %v4540, 0
      %v4655 = vsel %vm4595, %v4541, 0
      %v4657 = vsel %vm4595, %v4542, 0
      %v4659 = vsel %vm4595, %v4543, 0
      %4661 = vmatpush.bf16.msra.mxu0 0
      %4662 = vmatpush.bf16.msra.mxu0 0
      %4663 = vmatpush.bf16.msra.mxu0 0
      %4664 = vmatpush.bf16.msra.mxu0 0
      %4665 = vmatpush.bf16.msra.mxu0 0
      %4666 = vmatpush.bf16.msra.mxu0 0
      %4667 = vmatpush.bf16.msra.mxu0 0
      %4668 = vmatpush.bf16.msra.mxu0 %v4649
      %4669 = vmatmul.bf16.gmra.mxu0 %v4651
      %v4670 = vpop.f32.mrf.mxu0
      %v4671 = vadd.f32 %v4621, %v4670
      %v4672 = vpop.f32.mrf.mxu0
      %v4673 = vadd.f32 %v4623, %v4672
      %4674 = vmatmul.bf16.gmra.mxu0 %v4653
      %v4675 = vpop.f32.mrf.mxu0
      %v4676 = vadd.f32 %v4626, %v4675
      %v4677 = vpop.f32.mrf.mxu0
      %v4678 = vadd.f32 %v4628, %v4677
      %4679 = vmatmul.bf16.gmra.mxu0 %v4655
      %v4680 = vpop.f32.mrf.mxu0
      %v4681 = vadd.f32 %v4631, %v4680
      %v4682 = vpop.f32.mrf.mxu0
      %v4683 = vadd.f32 %v4633, %v4682
      %4684 = vmatmul.bf16.gmra.mxu0 %v4657
      %v4685 = vpop.f32.mrf.mxu0
      %v4686 = vadd.f32 %v4636, %v4685
      %v4687 = vpop.f32.mrf.mxu0
      %v4688 = vadd.f32 %v4638, %v4687
      %4689 = vmatmul.bf16.gmra.mxu0 %v4659
      %v4690 = vpop.f32.mrf.mxu0
      %v4691 = vadd.f32 %v4641, %v4690
      %v4692 = vpop.f32.mrf.mxu0
      %v4693 = vadd.f32 %v4643, %v4692
      %4694 = vdwg.mxu0
      %v4695 = vld [vmem:[#allocation2] sm:$0xe]
      %s4696 = scalar_lea.vmem %s3, 16
      %v4697 = vld [vmem:[%s4696] sm:$0xf]
      %v4698 = vld [vmem:[%s4696 + $0x4] sm:$0xf]
      %v4700 = vunpack.c.l.b16 %v4695
      %v4701 = vpack.c.b16 %v4529, %v4700
      %v4702 = vrot.slane %v4701, 1
      %v4703 = vrot.slane %v4540, 1
      %v4704 = vsel %vm1026, %v4702, %v4703
      %v4705 = vrot.slane %v4541, 1
      %v4706 = vsel %vm1026, %v4703, %v4705
      %v4707 = vrot.slane %v4542, 1
      %v4708 = vsel %vm1026, %v4705, %v4707
      %v4709 = vrot.slane %v4543, 1
      %v4710 = vsel %vm1026, %v4707, %v4709
      %v4711 = vrot.slane %v4544, 1
      %v4712 = vsel %vm1026, %v4709, %v4711
      %v4715 = vunpack.c.l.b16 %v4697
      %v4716 = vunpack.c.l.b16 %v4698
      %v4717 = vpack.c.b16 %v4716, %v4715
      %v4720 = vsel %vm4595, %v4704, 0
      %v4723 = vsel %vm4595, %v4706, 0
      %v4726 = vsel %vm4595, %v4708, 0
      %v4729 = vsel %vm4595, %v4710, 0
      %v4732 = vsel %vm4595, %v4712, 0
      %4734 = vmatpush.bf16.msra.mxu0 0
      %4735 = vmatpush.bf16.msra.mxu0 0
      %4736 = vmatpush.bf16.msra.mxu0 0
      %4737 = vmatpush.bf16.msra.mxu0 0
      %4738 = vmatpush.bf16.msra.mxu0 0
      %4739 = vmatpush.bf16.msra.mxu0 0
      %4740 = vmatpush.bf16.msra.mxu0 0
      %4741 = vmatpush.bf16.msra.mxu0 %v4717
      %4742 = vmatmul.bf16.gmra.mxu0 %v4720
      %v4743 = vpop.f32.mrf.mxu0
      %v4744 = vadd.f32 0.0, %v4743
      %v4745 = vpop.f32.mrf.mxu0
      %v4746 = vadd.f32 0.0, %v4745
      %4747 = vmatmul.bf16.gmra.mxu0 %v4723
      %v4748 = vpop.f32.mrf.mxu0
      %v4749 = vadd.f32 0.0, %v4748
      %v4750 = vpop.f32.mrf.mxu0
      %v4751 = vadd.f32 0.0, %v4750
      %4752 = vmatmul.bf16.gmra.mxu0 %v4726
      %v4753 = vpop.f32.mrf.mxu0
      %v4754 = vadd.f32 0.0, %v4753
      %v4755 = vpop.f32.mrf.mxu0
      %v4756 = vadd.f32 0.0, %v4755
      %4757 = vmatmul.bf16.gmra.mxu0 %v4729
      %v4758 = vpop.f32.mrf.mxu0
      %v4759 = vadd.f32 0.0, %v4758
      %v4760 = vpop.f32.mrf.mxu0
      %v4761 = vadd.f32 0.0, %v4760
      %4762 = vmatmul.bf16.gmra.mxu0 %v4732
      %v4763 = vpop.f32.mrf.mxu0
      %v4764 = vadd.f32 0.0, %v4763
      %v4765 = vpop.f32.mrf.mxu0
      %v4766 = vadd.f32 0.0, %v4765
      %4767 = vdwg.mxu0
      %v4768 = vadd.f32 %v4671, %v4744
      %v4769 = vadd.f32 %v4673, %v4746
      %v4770 = vadd.f32 %v4676, %v4749
      %v4771 = vadd.f32 %v4678, %v4751
      %v4772 = vadd.f32 %v4681, %v4754
      %v4773 = vadd.f32 %v4683, %v4756
      %v4774 = vadd.f32 %v4686, %v4759
      %v4775 = vadd.f32 %v4688, %v4761
      %v4776 = vadd.f32 %v4691, %v4764
      %v4777 = vadd.f32 %v4693, %v4766
      %v4778 = vld [vmem:[#allocation2 + $0x4] sm:$0xe]
      %v4779 = vld [vmem:[#allocation2 + $0x8] sm:$0xf]
      %v4780 = vld [vmem:[#allocation2 + $0xc] sm:$0xf]
      %v4781 = vld [vmem:[#allocation2 + $0x10] sm:$0xf]
      %v4782 = vld [vmem:[#allocation2 + $0x14] sm:$0xf]
      %v4783 = vld [vmem:[#allocation2 + $0x18] sm:$0xf]
      %v4784 = vld [vmem:[#allocation2 + $0x1c] sm:$0xf]
      %v4785 = vld [vmem:[#allocation2 + $0x20] sm:$0xf]
      %v4786 = vld [vmem:[#allocation2 + $0x24] sm:$0xf]
      %v4787 = vld [vmem:[#allocation2 + $0x28] sm:$0xf]
      %v4788 = vld [vmem:[#allocation2 + $0x2c] sm:$0x1]
      %s4789 = scalar_lea.vmem %s3, 24
      %v4790 = vld [vmem:[%s4789] sm:$0xf]
      %v4791 = vld [vmem:[%s4789 + $0x4] sm:$0xf]
      %v4803 = vunpack.c.l.b16 %v4778
      %v4804 = vunpack.c.l.b16 %v4779
      %v4805 = vunpack.c.l.b16 %v4780
      %v4806 = vunpack.c.l.b16 %v4781
      %v4807 = vunpack.c.l.b16 %v4782
      %v4808 = vunpack.c.l.b16 %v4783
      %v4809 = vunpack.c.l.b16 %v4784
      %v4810 = vunpack.c.l.b16 %v4785
      %v4811 = vunpack.c.l.b16 %v4786
      %v4812 = vunpack.c.l.b16 %v4787
      %v4813 = vunpack.c.l.b16 %v4788
      %v4814 = vpack.c.b16 %v4804, %v4803
      %v4815 = vpack.c.b16 %v4806, %v4805
      %v4816 = vpack.c.b16 %v4808, %v4807
      %v4817 = vpack.c.b16 %v4810, %v4809
      %v4818 = vpack.c.b16 %v4812, %v4811
      %v4819 = vpack.c.b16 %v4813, %v4813
      %v4820 = vrot.slane %v4814, 1
      %v4821 = vrot.slane %v4815, 1
      %v4822 = vsel %vm1026, %v4820, %v4821
      %v4823 = vrot.slane %v4816, 1
      %v4824 = vsel %vm1026, %v4821, %v4823
      %v4825 = vrot.slane %v4817, 1
      %v4826 = vsel %vm1026, %v4823, %v4825
      %v4827 = vrot.slane %v4818, 1
      %v4828 = vsel %vm1026, %v4825, %v4827
      %v4829 = vrot.slane %v4819, 1
      %v4830 = vsel %vm1026, %v4827, %v4829
      %v4833 = vunpack.c.l.b16 %v4790
      %v4834 = vunpack.c.l.b16 %v4791
      %v4835 = vpack.c.b16 %v4834, %v4833
      %v4838 = vsel %vm4595, %v4822, 0
      %v4841 = vsel %vm4595, %v4824, 0
      %v4844 = vsel %vm4595, %v4826, 0
      %v4847 = vsel %vm4595, %v4828, 0
      %v4850 = vsel %vm4595, %v4830, 0
      %4852 = vmatpush.bf16.msra.mxu0 0
      %4853 = vmatpush.bf16.msra.mxu0 0
      %4854 = vmatpush.bf16.msra.mxu0 0
      %4855 = vmatpush.bf16.msra.mxu0 0
      %4856 = vmatpush.bf16.msra.mxu0 0
      %4857 = vmatpush.bf16.msra.mxu0 0
      %4858 = vmatpush.bf16.msra.mxu0 0
      %4859 = vmatpush.bf16.msra.mxu0 %v4835
      %4860 = vmatmul.bf16.gmra.mxu0 %v4838
      %v4861 = vpop.f32.mrf.mxu0
      %v4862 = vadd.f32 0.0, %v4861
      %v4863 = vpop.f32.mrf.mxu0
      %v4864 = vadd.f32 0.0, %v4863
      %4865 = vmatmul.bf16.gmra.mxu0 %v4841
      %v4866 = vpop.f32.mrf.mxu0
      %v4867 = vadd.f32 0.0, %v4866
      %v4868 = vpop.f32.mrf.mxu0
      %v4869 = vadd.f32 0.0, %v4868
      %4870 = vmatmul.bf16.gmra.mxu0 %v4844
      %v4871 = vpop.f32.mrf.mxu0
      %v4872 = vadd.f32 0.0, %v4871
      %v4873 = vpop.f32.mrf.mxu0
      %v4874 = vadd.f32 0.0, %v4873
      %4875 = vmatmul.bf16.gmra.mxu0 %v4847
      %v4876 = vpop.f32.mrf.mxu0
      %v4877 = vadd.f32 0.0, %v4876
      %v4878 = vpop.f32.mrf.mxu0
      %v4879 = vadd.f32 0.0, %v4878
      %4880 = vmatmul.bf16.gmra.mxu0 %v4850
      %v4881 = vpop.f32.mrf.mxu0
      %v4882 = vadd.f32 0.0, %v4881
      %v4883 = vpop.f32.mrf.mxu0
      %v4884 = vadd.f32 0.0, %v4883
      %4885 = vdwg.mxu0
      %v4886 = vadd.f32 %v4768, %v4862
      %v4887 = vadd.f32 %v4769, %v4864
      %v4888 = vadd.f32 %v4770, %v4867
      %v4889 = vadd.f32 %v4771, %v4869
      %v4890 = vadd.f32 %v4772, %v4872
      %v4891 = vadd.f32 %v4773, %v4874
      %v4892 = vadd.f32 %v4774, %v4877
      %v4893 = vadd.f32 %v4775, %v4879
      %v4894 = vadd.f32 %v4776, %v4882
      %v4895 = vadd.f32 %v4777, %v4884
      %v4896 = vld [vmem:[#allocation2 + $0x2c] sm:$0x3]
      %s4897 = scalar_lea.vmem %s3, 32
      %v4898 = vld [vmem:[%s4897] sm:$0xf]
      %v4899 = vld [vmem:[%s4897 + $0x4] sm:$0xf]
      %v4901 = vunpack.c.l.b16 %v4896
      %v4902 = vpack.c.b16 %v4901, %v4901
      %v4904 = vshrl.u32 %v4814, 16
      %v4906 = vrot.slane %v4904, 1
      %v4907 = vshll.u32 %v4814, 16
      %v4909 = vrot.slane %v4907, 2
      %v4910 = vor.u32 %v4906, %v4909
      %v4912 = vshrl.u32 %v4815, 16
      %v4914 = vrot.slane %v4912, 1
      %v4915 = vshll.u32 %v4815, 16
      %v4917 = vrot.slane %v4915, 2
      %v4918 = vor.u32 %v4914, %v4917
      %v4919 = vsel %vm1623, %v4910, %v4918
      %v4921 = vshrl.u32 %v4816, 16
      %v4923 = vrot.slane %v4921, 1
      %v4924 = vshll.u32 %v4816, 16
      %v4926 = vrot.slane %v4924, 2
      %v4927 = vor.u32 %v4923, %v4926
      %v4928 = vsel %vm1623, %v4918, %v4927
      %v4930 = vshrl.u32 %v4817, 16
      %v4932 = vrot.slane %v4930, 1
      %v4933 = vshll.u32 %v4817, 16
      %v4935 = vrot.slane %v4933, 2
      %v4936 = vor.u32 %v4932, %v4935
      %v4937 = vsel %vm1623, %v4927, %v4936
      %v4939 = vshrl.u32 %v4818, 16
      %v4941 = vrot.slane %v4939, 1
      %v4942 = vshll.u32 %v4818, 16
      %v4944 = vrot.slane %v4942, 2
      %v4945 = vor.u32 %v4941, %v4944
      %v4946 = vsel %vm1623, %v4936, %v4945
      %v4948 = vshrl.u32 %v4902, 16
      %v4950 = vrot.slane %v4948, 1
      %v4951 = vshll.u32 %v4902, 16
      %v4953 = vrot.slane %v4951, 2
      %v4954 = vor.u32 %v4950, %v4953
      %v4955 = vsel %vm1623, %v4945, %v4954
      %v4958 = vunpack.c.l.b16 %v4898
      %v4959 = vunpack.c.l.b16 %v4899
      %v4960 = vpack.c.b16 %v4959, %v4958
      %v4963 = vsel %vm4595, %v4919, 0
      %v4966 = vsel %vm4595, %v4928, 0
      %v4969 = vsel %vm4595, %v4937, 0
      %v4972 = vsel %vm4595, %v4946, 0
      %v4975 = vsel %vm4595, %v4955, 0
      %4977 = vmatpush.bf16.msra.mxu0 0
      %4978 = vmatpush.bf16.msra.mxu0 0
      %4979 = vmatpush.bf16.msra.mxu0 0
      %4980 = vmatpush.bf16.msra.mxu0 0
      %4981 = vmatpush.bf16.msra.mxu0 0
      %4982 = vmatpush.bf16.msra.mxu0 0
      %4983 = vmatpush.bf16.msra.mxu0 0
      %4984 = vmatpush.bf16.msra.mxu0 %v4960
      %4985 = vmatmul.bf16.gmra.mxu0 %v4963
      %v4986 = vpop.f32.mrf.mxu0
      %v4987 = vadd.f32 0.0, %v4986
      %v4988 = vpop.f32.mrf.mxu0
      %v4989 = vadd.f32 0.0, %v4988
      %4990 = vmatmul.bf16.gmra.mxu0 %v4966
      %v4991 = vpop.f32.mrf.mxu0
      %v4992 = vadd.f32 0.0, %v4991
      %v4993 = vpop.f32.mrf.mxu0
      %v4994 = vadd.f32 0.0, %v4993
      %4995 = vmatmul.bf16.gmra.mxu0 %v4969
      %v4996 = vpop.f32.mrf.mxu0
      %v4997 = vadd.f32 0.0, %v4996
      %v4998 = vpop.f32.mrf.mxu0
      %v4999 = vadd.f32 0.0, %v4998
      %5000 = vmatmul.bf16.gmra.mxu0 %v4972
      %v5001 = vpop.f32.mrf.mxu0
      %v5002 = vadd.f32 0.0, %v5001
      %v5003 = vpop.f32.mrf.mxu0
      %v5004 = vadd.f32 0.0, %v5003
      %5005 = vmatmul.bf16.gmra.mxu0 %v4975
      %v5006 = vpop.f32.mrf.mxu0
      %v5007 = vadd.f32 0.0, %v5006
      %v5008 = vpop.f32.mrf.mxu0
      %v5009 = vadd.f32 0.0, %v5008
      %5010 = vdwg.mxu0
      %v5011 = vadd.f32 %v4886, %v4987
      %v5012 = vadd.f32 %v4887, %v4989
      %v5013 = vadd.f32 %v4888, %v4992
      %v5014 = vadd.f32 %v4889, %v4994
      %v5015 = vadd.f32 %v4890, %v4997
      %v5016 = vadd.f32 %v4891, %v4999
      %v5017 = vadd.f32 %v4892, %v5002
      %v5018 = vadd.f32 %v4893, %v5004
      %v5019 = vadd.f32 %v4894, %v5007
      %v5020 = vadd.f32 %v4895, %v5009
      %v5021 = vld [vmem:[#allocation2 + $0x4] sm:$0xc]
      %s5022 = scalar_lea.vmem %s3, 40
      %v5023 = vld [vmem:[%s5022] sm:$0xf]
      %v5024 = vld [vmem:[%s5022 + $0x4] sm:$0xf]
      %v5026 = vunpack.c.l.b16 %v5021
      %v5027 = vpack.c.b16 %v4804, %v5026
      %v5028 = vrot.slane %v5027, 2
      %v5029 = vrot.slane %v4815, 2
      %v5030 = vsel %vm1992, %v5028, %v5029
      %v5031 = vrot.slane %v4816, 2
      %v5032 = vsel %vm1992, %v5029, %v5031
      %v5033 = vrot.slane %v4817, 2
      %v5034 = vsel %vm1992, %v5031, %v5033
      %v5035 = vrot.slane %v4818, 2
      %v5036 = vsel %vm1992, %v5033, %v5035
      %v5037 = vrot.slane %v4902, 2
      %v5038 = vsel %vm1992, %v5035, %v5037
      %v5041 = vunpack.c.l.b16 %v5023
      %v5042 = vunpack.c.l.b16 %v5024
      %v5043 = vpack.c.b16 %v5042, %v5041
      %v5046 = vsel %vm4595, %v5030, 0
      %v5049 = vsel %vm4595, %v5032, 0
      %v5052 = vsel %vm4595, %v5034, 0
      %v5055 = vsel %vm4595, %v5036, 0
      %v5058 = vsel %vm4595, %v5038, 0
      %5060 = vmatpush.bf16.msra.mxu0 0
      %5061 = vmatpush.bf16.msra.mxu0 0
      %5062 = vmatpush.bf16.msra.mxu0 0
      %5063 = vmatpush.bf16.msra.mxu0 0
      %5064 = vmatpush.bf16.msra.mxu0 0
      %5065 = vmatpush.bf16.msra.mxu0 0
      %5066 = vmatpush.bf16.msra.mxu0 0
      %5067 = vmatpush.bf16.msra.mxu0 %v5043
      %5068 = vmatmul.bf16.gmra.mxu0 %v5046
      %v5069 = vpop.f32.mrf.mxu0
      %v5070 = vadd.f32 0.0, %v5069
      %v5071 = vpop.f32.mrf.mxu0
      %v5072 = vadd.f32 0.0, %v5071
      %5073 = vmatmul.bf16.gmra.mxu0 %v5049
      %v5074 = vpop.f32.mrf.mxu0
      %v5075 = vadd.f32 0.0, %v5074
      %v5076 = vpop.f32.mrf.mxu0
      %v5077 = vadd.f32 0.0, %v5076
      %5078 = vmatmul.bf16.gmra.mxu0 %v5052
      %v5079 = vpop.f32.mrf.mxu0
      %v5080 = vadd.f32 0.0, %v5079
      %v5081 = vpop.f32.mrf.mxu0
      %v5082 = vadd.f32 0.0, %v5081
      %5083 = vmatmul.bf16.gmra.mxu0 %v5055
      %v5084 = vpop.f32.mrf.mxu0
      %v5085 = vadd.f32 0.0, %v5084
      %v5086 = vpop.f32.mrf.mxu0
      %v5087 = vadd.f32 0.0, %v5086
      %5088 = vmatmul.bf16.gmra.mxu0 %v5058
      %v5089 = vpop.f32.mrf.mxu0
      %v5090 = vadd.f32 0.0, %v5089
      %v5091 = vpop.f32.mrf.mxu0
      %v5092 = vadd.f32 0.0, %v5091
      %5093 = vdwg.mxu0
      %v5094 = vadd.f32 %v5011, %v5070
      %v5095 = vadd.f32 %v5012, %v5072
      %v5096 = vadd.f32 %v5013, %v5075
      %v5097 = vadd.f32 %v5014, %v5077
      %v5098 = vadd.f32 %v5015, %v5080
      %v5099 = vadd.f32 %v5016, %v5082
      %v5100 = vadd.f32 %v5017, %v5085
      %v5101 = vadd.f32 %v5018, %v5087
      %v5102 = vadd.f32 %v5019, %v5090
      %v5103 = vadd.f32 %v5020, %v5092
      %v5104 = vld [vmem:[#allocation2 + $0x8] sm:$0xc]
      %v5105 = vld [vmem:[#allocation2 + $0xc] sm:$0xf]
      %v5106 = vld [vmem:[#allocation2 + $0x10] sm:$0xf]
      %v5107 = vld [vmem:[#allocation2 + $0x14] sm:$0xf]
      %v5108 = vld [vmem:[#allocation2 + $0x18] sm:$0xf]
      %v5109 = vld [vmem:[#allocation2 + $0x1c] sm:$0xf]
      %v5110 = vld [vmem:[#allocation2 + $0x20] sm:$0xf]
      %v5111 = vld [vmem:[#allocation2 + $0x24] sm:$0xf]
      %v5112 = vld [vmem:[#allocation2 + $0x28] sm:$0xf]
      %v5113 = vld [vmem:[#allocation2 + $0x2c] sm:$0xf]
      %v5114 = vld [vmem:[#allocation2 + $0x30] sm:$0x3]
      %s5115 = scalar_lea.vmem %s3, 48
      %v5116 = vld [vmem:[%s5115] sm:$0xf]
      %v5117 = vld [vmem:[%s5115 + $0x4] sm:$0xf]
      %v5129 = vunpack.c.l.b16 %v5104
      %v5130 = vunpack.c.l.b16 %v5105
      %v5131 = vunpack.c.l.b16 %v5106
      %v5132 = vunpack.c.l.b16 %v5107
      %v5133 = vunpack.c.l.b16 %v5108
      %v5134 = vunpack.c.l.b16 %v5109
      %v5135 = vunpack.c.l.b16 %v5110
      %v5136 = vunpack.c.l.b16 %v5111
      %v5137 = vunpack.c.l.b16 %v5112
      %v5138 = vunpack.c.l.b16 %v5113
      %v5139 = vunpack.c.l.b16 %v5114
      %v5140 = vpack.c.b16 %v5130, %v5129
      %v5141 = vpack.c.b16 %v5132, %v5131
      %v5142 = vpack.c.b16 %v5134, %v5133
      %v5143 = vpack.c.b16 %v5136, %v5135
      %v5144 = vpack.c.b16 %v5138, %v5137
      %v5145 = vpack.c.b16 %v5139, %v5139
      %v5146 = vrot.slane %v5140, 2
      %v5147 = vrot.slane %v5141, 2
      %v5148 = vsel %vm1992, %v5146, %v5147
      %v5149 = vrot.slane %v5142, 2
      %v5150 = vsel %vm1992, %v5147, %v5149
      %v5151 = vrot.slane %v5143, 2
      %v5152 = vsel %vm1992, %v5149, %v5151
      %v5153 = vrot.slane %v5144, 2
      %v5154 = vsel %vm1992, %v5151, %v5153
      %v5155 = vrot.slane %v5145, 2
      %v5156 = vsel %vm1992, %v5153, %v5155
      %v5159 = vunpack.c.l.b16 %v5116
      %v5160 = vunpack.c.l.b16 %v5117
      %v5161 = vpack.c.b16 %v5160, %v5159
      %v5164 = vsel %vm4595, %v5148, 0
      %v5167 = vsel %vm4595, %v5150, 0
      %v5170 = vsel %vm4595, %v5152, 0
      %v5173 = vsel %vm4595, %v5154, 0
      %v5176 = vsel %vm4595, %v5156, 0
      %5178 = vmatpush.bf16.msra.mxu0 0
      %5179 = vmatpush.bf16.msra.mxu0 0
      %5180 = vmatpush.bf16.msra.mxu0 0
      %5181 = vmatpush.bf16.msra.mxu0 0
      %5182 = vmatpush.bf16.msra.mxu0 0
      %5183 = vmatpush.bf16.msra.mxu0 0
      %5184 = vmatpush.bf16.msra.mxu0 0
      %5185 = vmatpush.bf16.msra.mxu0 %v5161
      %5186 = vmatmul.bf16.gmra.mxu0 %v5164
      %v5187 = vpop.f32.mrf.mxu0
      %v5188 = vadd.f32 0.0, %v5187
      %v5189 = vpop.f32.mrf.mxu0
      %v5190 = vadd.f32 0.0, %v5189
      %5191 = vmatmul.bf16.gmra.mxu0 %v5167
      %v5192 = vpop.f32.mrf.mxu0
      %v5193 = vadd.f32 0.0, %v5192
      %v5194 = vpop.f32.mrf.mxu0
      %v5195 = vadd.f32 0.0, %v5194
      %5196 = vmatmul.bf16.gmra.mxu0 %v5170
      %v5197 = vpop.f32.mrf.mxu0
      %v5198 = vadd.f32 0.0, %v5197
      %v5199 = vpop.f32.mrf.mxu0
      %v5200 = vadd.f32 0.0, %v5199
      %5201 = vmatmul.bf16.gmra.mxu0 %v5173
      %v5202 = vpop.f32.mrf.mxu0
      %v5203 = vadd.f32 0.0, %v5202
      %v5204 = vpop.f32.mrf.mxu0
      %v5205 = vadd.f32 0.0, %v5204
      %5206 = vmatmul.bf16.gmra.mxu0 %v5176
      %v5207 = vpop.f32.mrf.mxu0
      %v5208 = vadd.f32 0.0, %v5207
      %v5209 = vpop.f32.mrf.mxu0
      %v5210 = vadd.f32 0.0, %v5209
      %5211 = vdwg.mxu0
      %v5212 = vadd.f32 %v5094, %v5188
      %v5213 = vadd.f32 %v5095, %v5190
      %v5214 = vadd.f32 %v5096, %v5193
      %v5215 = vadd.f32 %v5097, %v5195
      %v5216 = vadd.f32 %v5098, %v5198
      %v5217 = vadd.f32 %v5099, %v5200
      %v5218 = vadd.f32 %v5100, %v5203
      %v5219 = vadd.f32 %v5101, %v5205
      %v5220 = vadd.f32 %v5102, %v5208
      %v5221 = vadd.f32 %v5103, %v5210
      %v5222 = vld [vmem:[#allocation2 + $0x30] sm:$0x7]
      %s5223 = scalar_lea.vmem %s3, 56
      %v5224 = vld [vmem:[%s5223] sm:$0xf]
      %v5225 = vld [vmem:[%s5223 + $0x4] sm:$0xf]
      %v5227 = vunpack.c.l.b16 %v5222
      %v5228 = vpack.c.b16 %v5227, %v5227
      %v5230 = vshrl.u32 %v5140, 16
      %v5232 = vrot.slane %v5230, 2
      %v5233 = vshll.u32 %v5140, 16
      %v5235 = vrot.slane %v5233, 3
      %v5236 = vor.u32 %v5232, %v5235
      %v5238 = vshrl.u32 %v5141, 16
      %v5240 = vrot.slane %v5238, 2
      %v5241 = vshll.u32 %v5141, 16
      %v5243 = vrot.slane %v5241, 3
      %v5244 = vor.u32 %v5240, %v5243
      %v5245 = vsel %vm2589, %v5236, %v5244
      %v5247 = vshrl.u32 %v5142, 16
      %v5249 = vrot.slane %v5247, 2
      %v5250 = vshll.u32 %v5142, 16
      %v5252 = vrot.slane %v5250, 3
      %v5253 = vor.u32 %v5249, %v5252
      %v5254 = vsel %vm2589, %v5244, %v5253
      %v5256 = vshrl.u32 %v5143, 16
      %v5258 = vrot.slane %v5256, 2
      %v5259 = vshll.u32 %v5143, 16
      %v5261 = vrot.slane %v5259, 3
      %v5262 = vor.u32 %v5258, %v5261
      %v5263 = vsel %vm2589, %v5253, %v5262
      %v5265 = vshrl.u32 %v5144, 16
      %v5267 = vrot.slane %v5265, 2
      %v5268 = vshll.u32 %v5144, 16
      %v5270 = vrot.slane %v5268, 3
      %v5271 = vor.u32 %v5267, %v5270
      %v5272 = vsel %vm2589, %v5262, %v5271
      %v5274 = vshrl.u32 %v5228, 16
      %v5276 = vrot.slane %v5274, 2
      %v5277 = vshll.u32 %v5228, 16
      %v5279 = vrot.slane %v5277, 3
      %v5280 = vor.u32 %v5276, %v5279
      %v5281 = vsel %vm2589, %v5271, %v5280
      %v5284 = vunpack.c.l.b16 %v5224
      %v5285 = vunpack.c.l.b16 %v5225
      %v5286 = vpack.c.b16 %v5285, %v5284
      %v5289 = vsel %vm4595, %v5245, 0
      %v5292 = vsel %vm4595, %v5254, 0
      %v5295 = vsel %vm4595, %v5263, 0
      %v5298 = vsel %vm4595, %v5272, 0
      %v5301 = vsel %vm4595, %v5281, 0
      %5303 = vmatpush.bf16.msra.mxu0 0
      %5304 = vmatpush.bf16.msra.mxu0 0
      %5305 = vmatpush.bf16.msra.mxu0 0
      %5306 = vmatpush.bf16.msra.mxu0 0
      %5307 = vmatpush.bf16.msra.mxu0 0
      %5308 = vmatpush.bf16.msra.mxu0 0
      %5309 = vmatpush.bf16.msra.mxu0 0
      %5310 = vmatpush.bf16.msra.mxu0 %v5286
      %5311 = vmatmul.bf16.gmra.mxu0 %v5289
      %v5312 = vpop.f32.mrf.mxu0
      %v5313 = vadd.f32 0.0, %v5312
      %v5314 = vpop.f32.mrf.mxu0
      %v5315 = vadd.f32 0.0, %v5314
      %5316 = vmatmul.bf16.gmra.mxu0 %v5292
      %v5317 = vpop.f32.mrf.mxu0
      %v5318 = vadd.f32 0.0, %v5317
      %v5319 = vpop.f32.mrf.mxu0
      %v5320 = vadd.f32 0.0, %v5319
      %5321 = vmatmul.bf16.gmra.mxu0 %v5295
      %v5322 = vpop.f32.mrf.mxu0
      %v5323 = vadd.f32 0.0, %v5322
      %v5324 = vpop.f32.mrf.mxu0
      %v5325 = vadd.f32 0.0, %v5324
      %5326 = vmatmul.bf16.gmra.mxu0 %v5298
      %v5327 = vpop.f32.mrf.mxu0
      %v5328 = vadd.f32 0.0, %v5327
      %v5329 = vpop.f32.mrf.mxu0
      %v5330 = vadd.f32 0.0, %v5329
      %5331 = vmatmul.bf16.gmra.mxu0 %v5301
      %v5332 = vpop.f32.mrf.mxu0
      %v5333 = vadd.f32 0.0, %v5332
      %v5334 = vpop.f32.mrf.mxu0
      %v5335 = vadd.f32 0.0, %v5334
      %5336 = vdwg.mxu0
      %v5337 = vadd.f32 %v5212, %v5313
      %v5338 = vadd.f32 %v5213, %v5315
      %v5339 = vadd.f32 %v5214, %v5318
      %v5340 = vadd.f32 %v5215, %v5320
      %v5341 = vadd.f32 %v5216, %v5323
      %v5342 = vadd.f32 %v5217, %v5325
      %v5343 = vadd.f32 %v5218, %v5328
      %v5344 = vadd.f32 %v5219, %v5330
      %v5345 = vadd.f32 %v5220, %v5333
      %v5346 = vadd.f32 %v5221, %v5335
      %v5347 = vld [vmem:[#allocation2 + $0x8] sm:$0x8]
      %s5348 = scalar_lea.vmem %s3, 64
      %v5349 = vld [vmem:[%s5348] sm:$0xf]
      %v5350 = vld [vmem:[%s5348 + $0x4] sm:$0xf]
      %v5352 = vunpack.c.l.b16 %v5347
      %v5353 = vpack.c.b16 %v5130, %v5352
      %v5354 = vrot.slane %v5353, 3
      %v5355 = vrot.slane %v5141, 3
      %v5356 = vsel %vm2958, %v5354, %v5355
      %v5357 = vrot.slane %v5142, 3
      %v5358 = vsel %vm2958, %v5355, %v5357
      %v5359 = vrot.slane %v5143, 3
      %v5360 = vsel %vm2958, %v5357, %v5359
      %v5361 = vrot.slane %v5144, 3
      %v5362 = vsel %vm2958, %v5359, %v5361
      %v5363 = vrot.slane %v5228, 3
      %v5364 = vsel %vm2958, %v5361, %v5363
      %v5367 = vunpack.c.l.b16 %v5349
      %v5368 = vunpack.c.l.b16 %v5350
      %v5369 = vpack.c.b16 %v5368, %v5367
      %v5372 = vsel %vm4595, %v5356, 0
      %v5375 = vsel %vm4595, %v5358, 0
      %v5378 = vsel %vm4595, %v5360, 0
      %v5381 = vsel %vm4595, %v5362, 0
      %v5384 = vsel %vm4595, %v5364, 0
      %5386 = vmatpush.bf16.msra.mxu0 0
      %5387 = vmatpush.bf16.msra.mxu0 0
      %5388 = vmatpush.bf16.msra.mxu0 0
      %5389 = vmatpush.bf16.msra.mxu0 0
      %5390 = vmatpush.bf16.msra.mxu0 0
      %5391 = vmatpush.bf16.msra.mxu0 0
      %5392 = vmatpush.bf16.msra.mxu0 0
      %5393 = vmatpush.bf16.msra.mxu0 %v5369
      %5394 = vmatmul.bf16.gmra.mxu0 %v5372
      %v5395 = vpop.f32.mrf.mxu0
      %v5396 = vadd.f32 0.0, %v5395
      %v5397 = vpop.f32.mrf.mxu0
      %v5398 = vadd.f32 0.0, %v5397
      %5399 = vmatmul.bf16.gmra.mxu0 %v5375
      %v5400 = vpop.f32.mrf.mxu0
      %v5401 = vadd.f32 0.0, %v5400
      %v5402 = vpop.f32.mrf.mxu0
      %v5403 = vadd.f32 0.0, %v5402
      %5404 = vmatmul.bf16.gmra.mxu0 %v5378
      %v5405 = vpop.f32.mrf.mxu0
      %v5406 = vadd.f32 0.0, %v5405
      %v5407 = vpop.f32.mrf.mxu0
      %v5408 = vadd.f32 0.0, %v5407
      %5409 = vmatmul.bf16.gmra.mxu0 %v5381
      %v5410 = vpop.f32.mrf.mxu0
      %v5411 = vadd.f32 0.0, %v5410
      %v5412 = vpop.f32.mrf.mxu0
      %v5413 = vadd.f32 0.0, %v5412
      %5414 = vmatmul.bf16.gmra.mxu0 %v5384
      %v5415 = vpop.f32.mrf.mxu0
      %v5416 = vadd.f32 0.0, %v5415
      %v5417 = vpop.f32.mrf.mxu0
      %v5418 = vadd.f32 0.0, %v5417
      %5419 = vdwg.mxu0
      %v5420 = vadd.f32 %v5337, %v5396
      %v5421 = vadd.f32 %v5338, %v5398
      %v5422 = vadd.f32 %v5339, %v5401
      %v5423 = vadd.f32 %v5340, %v5403
      %v5424 = vadd.f32 %v5341, %v5406
      %v5425 = vadd.f32 %v5342, %v5408
      %v5426 = vadd.f32 %v5343, %v5411
      %v5427 = vadd.f32 %v5344, %v5413
      %v5428 = vadd.f32 %v5345, %v5416
      %v5429 = vadd.f32 %v5346, %v5418
      %v5430 = vld [vmem:[%s4] sm:$0x1]
      %v5432 = vperm.slane %v5430, 0
      %v5434 = vadd.f32 %v5420, %v5432
      %v5435 = vadd.f32 %v5421, %v5432
      %v5436 = vadd.f32 %v5422, %v5432
      %v5437 = vadd.f32 %v5423, %v5432
      %v5438 = vadd.f32 %v5424, %v5432
      %v5439 = vadd.f32 %v5425, %v5432
      %v5440 = vadd.f32 %v5426, %v5432
      %v5441 = vadd.f32 %v5427, %v5432
      %v5442 = vadd.f32 %v5428, %v5432
      %v5443 = vadd.f32 %v5429, %v5432
      %v5444 = vmax.f32 %v5434, 0.0
      %v5445 = vmax.f32 %v5435, 0.0
      %v5446 = vmax.f32 %v5436, 0.0
      %v5447 = vmax.f32 %v5437, 0.0
      %v5448 = vmax.f32 %v5438, 0.0
      %v5449 = vmax.f32 %v5439, 0.0
      %v5450 = vmax.f32 %v5440, 0.0
      %v5451 = vmax.f32 %v5441, 0.0
      %v5452 = vmax.f32 %v5442, 0.0
      %v5453 = vmax.f32 %v5443, 0.0
      %v5454 = vpack.c.bf16 %v5445, %v5444
      %v5455 = vpack.c.bf16 %v5447, %v5446
      %v5456 = vpack.c.bf16 %v5449, %v5448
      %v5457 = vpack.c.bf16 %v5451, %v5450
      %v5458 = vpack.c.bf16 %v5453, %v5452
      %v5459 = vld [vmem:[%s10] sm:$0xf]
      %v5460 = vld [vmem:[%s10 + $0x4] sm:$0xf]
      %v5461 = vld [vmem:[%s10 + $0x8] sm:$0xf]
      %v5462 = vld [vmem:[%s10 + $0xc] sm:$0xf]
      %v5463 = vld [vmem:[%s10 + $0x10] sm:$0xf]
      %v5464 = vld [vmem:[%s10 + $0x14] sm:$0xf]
      %v5471 = vunpack.c.l.b16 %v5459
      %v5472 = vunpack.c.l.b16 %v5460
      %v5473 = vunpack.c.l.b16 %v5461
      %v5474 = vunpack.c.l.b16 %v5462
      %v5475 = vunpack.c.l.b16 %v5463
      %v5476 = vunpack.c.l.b16 %v5464
      %v5477 = vpack.c.b16 %v5472, %v5471
      %v5478 = vpack.c.b16 %v5474, %v5473
      %v5479 = vpack.c.b16 %v5476, %v5475
      %vm5480 = vcmask 654336
      %v5482 = vsel %vm5480, %v5477, 0
      %v5485 = vsel %vm5480, %v5478, 0
      %v5488 = vsel %vm5480, %v5479, 0
      %5490 = vmatpush.bf16.msra.mxu0 0
      %5491 = vmatpush.bf16.msra.mxu0 0
      %5492 = vmatpush.bf16.msra.mxu0 0
      %5493 = vmatpush.bf16.msra.mxu0 %v5458
      %5494 = vmatpush.bf16.msra.mxu0 %v5457
      %5495 = vmatpush.bf16.msra.mxu0 %v5456
      %5496 = vmatpush.bf16.msra.mxu0 %v5455
      %5497 = vmatpush.bf16.msra.mxu0 %v5454
      %5498 = vmatmul.bf16.gmra.mxu0 %v5482
      %v5499 = vpop.f32.mrf.mxu0
      %v5500 = vadd.f32 0.0, %v5499
      %v5501 = vpop.f32.mrf.mxu0
      %v5502 = vadd.f32 0.0, %v5501
      %5503 = vmatmul.bf16.gmra.mxu0 %v5485
      %v5504 = vpop.f32.mrf.mxu0
      %v5505 = vadd.f32 0.0, %v5504
      %v5506 = vpop.f32.mrf.mxu0
      %v5507 = vadd.f32 0.0, %v5506
      %5508 = vmatmul.bf16.gmra.mxu0 %v5488
      %v5509 = vpop.f32.mrf.mxu0
      %v5510 = vadd.f32 0.0, %v5509
      %v5511 = vpop.f32.mrf.mxu0
      %v5512 = vadd.f32 0.0, %v5511
      %5513 = vdwg.mxu0
      %s5514 = scalar_lea.vmem %s10, 24
      %v5515 = vld [vmem:[%s5514] sm:$0xf]
      %v5516 = vld [vmem:[%s5514 + $0x4] sm:$0xf]
      %v5517 = vld [vmem:[%s5514 + $0x8] sm:$0xf]
      %v5518 = vld [vmem:[%s5514 + $0xc] sm:$0xf]
      %v5519 = vld [vmem:[%s5514 + $0x10] sm:$0xf]
      %v5520 = vld [vmem:[%s5514 + $0x14] sm:$0xf]
      %v5527 = vunpack.c.l.b16 %v5515
      %v5528 = vunpack.c.l.b16 %v5516
      %v5529 = vunpack.c.l.b16 %v5517
      %v5530 = vunpack.c.l.b16 %v5518
      %v5531 = vunpack.c.l.b16 %v5519
      %v5532 = vunpack.c.l.b16 %v5520
      %v5533 = vpack.c.b16 %v5528, %v5527
      %v5534 = vpack.c.b16 %v5530, %v5529
      %v5535 = vpack.c.b16 %v5532, %v5531
      %v5537 = vsel %vm5480, %v5533, 0
      %v5540 = vsel %vm5480, %v5534, 0
      %v5543 = vsel %vm5480, %v5535, 0
      %5545 = vmatpush.bf16.msra.mxu0 0
      %5546 = vmatpush.bf16.msra.mxu0 0
      %5547 = vmatpush.bf16.msra.mxu0 0
      %5548 = vmatpush.bf16.msra.mxu0 %v5458
      %5549 = vmatpush.bf16.msra.mxu0 %v5457
      %5550 = vmatpush.bf16.msra.mxu0 %v5456
      %5551 = vmatpush.bf16.msra.mxu0 %v5455
      %5552 = vmatpush.bf16.msra.mxu0 %v5454
      %5553 = vmatmul.bf16.gmra.mxu0 %v5537
      %v5554 = vpop.f32.mrf.mxu0
      %v5555 = vadd.f32 0.0, %v5554
      %v5556 = vpop.f32.mrf.mxu0
      %v5557 = vadd.f32 0.0, %v5556
      %5558 = vmatmul.bf16.gmra.mxu0 %v5540
      %v5559 = vpop.f32.mrf.mxu0
      %v5560 = vadd.f32 0.0, %v5559
      %v5561 = vpop.f32.mrf.mxu0
      %v5562 = vadd.f32 0.0, %v5561
      %5563 = vmatmul.bf16.gmra.mxu0 %v5543
      %v5564 = vpop.f32.mrf.mxu0
      %v5565 = vadd.f32 0.0, %v5564
      %v5566 = vpop.f32.mrf.mxu0
      %v5567 = vadd.f32 0.0, %v5566
      %5568 = vdwg.mxu0
      %v5569 = vmax.f32 %v5500, %v5555
      %v5570 = vmax.f32 %v5502, %v5557
      %v5571 = vmax.f32 %v5505, %v5560
      %v5572 = vmax.f32 %v5507, %v5562
      %v5573 = vmax.f32 %v5510, %v5565
      %v5574 = vmax.f32 %v5512, %v5567
      %s5575 = scalar_lea.vmem %s10, 48
      %v5576 = vld [vmem:[%s5575] sm:$0xf]
      %v5577 = vld [vmem:[%s5575 + $0x4] sm:$0xf]
      %v5578 = vld [vmem:[%s5575 + $0x8] sm:$0xf]
      %v5579 = vld [vmem:[%s5575 + $0xc] sm:$0xf]
      %v5580 = vld [vmem:[%s5575 + $0x10] sm:$0xf]
      %v5581 = vld [vmem:[%s5575 + $0x14] sm:$0xf]
      %v5588 = vunpack.c.l.b16 %v5576
      %v5589 = vunpack.c.l.b16 %v5577
      %v5590 = vunpack.c.l.b16 %v5578
      %v5591 = vunpack.c.l.b16 %v5579
      %v5592 = vunpack.c.l.b16 %v5580
      %v5593 = vunpack.c.l.b16 %v5581
      %v5594 = vpack.c.b16 %v5589, %v5588
      %v5595 = vpack.c.b16 %v5591, %v5590
      %v5596 = vpack.c.b16 %v5593, %v5592
      %v5598 = vsel %vm5480, %v5594, 0
      %v5601 = vsel %vm5480, %v5595, 0
      %v5604 = vsel %vm5480, %v5596, 0
      %5606 = vmatpush.bf16.msra.mxu0 0
      %5607 = vmatpush.bf16.msra.mxu0 0
      %5608 = vmatpush.bf16.msra.mxu0 0
      %5609 = vmatpush.bf16.msra.mxu0 %v5458
      %5610 = vmatpush.bf16.msra.mxu0 %v5457
      %5611 = vmatpush.bf16.msra.mxu0 %v5456
      %5612 = vmatpush.bf16.msra.mxu0 %v5455
      %5613 = vmatpush.bf16.msra.mxu0 %v5454
      %5614 = vmatmul.bf16.gmra.mxu0 %v5598
      %v5615 = vpop.f32.mrf.mxu0
      %v5616 = vadd.f32 0.0, %v5615
      %v5617 = vpop.f32.mrf.mxu0
      %v5618 = vadd.f32 0.0, %v5617
      %5619 = vmatmul.bf16.gmra.mxu0 %v5601
      %v5620 = vpop.f32.mrf.mxu0
      %v5621 = vadd.f32 0.0, %v5620
      %v5622 = vpop.f32.mrf.mxu0
      %v5623 = vadd.f32 0.0, %v5622
      %5624 = vmatmul.bf16.gmra.mxu0 %v5604
      %v5625 = vpop.f32.mrf.mxu0
      %v5626 = vadd.f32 0.0, %v5625
      %v5627 = vpop.f32.mrf.mxu0
      %v5628 = vadd.f32 0.0, %v5627
      %5629 = vdwg.mxu0
      %v5630 = vmax.f32 %v5569, %v5616
      %v5631 = vmax.f32 %v5570, %v5618
      %v5632 = vmax.f32 %v5571, %v5621
      %v5633 = vmax.f32 %v5572, %v5623
      %v5634 = vmax.f32 %v5573, %v5626
      %v5635 = vmax.f32 %v5574, %v5628
      %s5636 = scalar_lea.vmem %s10, 72
      %v5637 = vld [vmem:[%s5636] sm:$0xf]
      %v5638 = vld [vmem:[%s5636 + $0x4] sm:$0xf]
      %v5639 = vld [vmem:[%s5636 + $0x8] sm:$0xf]
      %v5640 = vld [vmem:[%s5636 + $0xc] sm:$0xf]
      %v5641 = vld [vmem:[%s5636 + $0x10] sm:$0xf]
      %v5642 = vld [vmem:[%s5636 + $0x14] sm:$0xf]
      %v5649 = vunpack.c.l.b16 %v5637
      %v5650 = vunpack.c.l.b16 %v5638
      %v5651 = vunpack.c.l.b16 %v5639
      %v5652 = vunpack.c.l.b16 %v5640
      %v5653 = vunpack.c.l.b16 %v5641
      %v5654 = vunpack.c.l.b16 %v5642
      %v5655 = vpack.c.b16 %v5650, %v5649
      %v5656 = vpack.c.b16 %v5652, %v5651
      %v5657 = vpack.c.b16 %v5654, %v5653
      %v5659 = vsel %vm5480, %v5655, 0
      %v5662 = vsel %vm5480, %v5656, 0
      %v5665 = vsel %vm5480, %v5657, 0
      %5667 = vmatpush.bf16.msra.mxu0 0
      %5668 = vmatpush.bf16.msra.mxu0 0
      %5669 = vmatpush.bf16.msra.mxu0 0
      %5670 = vmatpush.bf16.msra.mxu0 %v5458
      %5671 = vmatpush.bf16.msra.mxu0 %v5457
      %5672 = vmatpush.bf16.msra.mxu0 %v5456
      %5673 = vmatpush.bf16.msra.mxu0 %v5455
      %5674 = vmatpush.bf16.msra.mxu0 %v5454
      %5675 = vmatmul.bf16.gmra.mxu0 %v5659
      %v5676 = vpop.f32.mrf.mxu0
      %v5677 = vadd.f32 0.0, %v5676
      %v5678 = vpop.f32.mrf.mxu0
      %v5679 = vadd.f32 0.0, %v5678
      %5680 = vmatmul.bf16.gmra.mxu0 %v5662
      %v5681 = vpop.f32.mrf.mxu0
      %v5682 = vadd.f32 0.0, %v5681
      %v5683 = vpop.f32.mrf.mxu0
      %v5684 = vadd.f32 0.0, %v5683
      %5685 = vmatmul.bf16.gmra.mxu0 %v5665
      %v5686 = vpop.f32.mrf.mxu0
      %v5687 = vadd.f32 0.0, %v5686
      %v5688 = vpop.f32.mrf.mxu0
      %v5689 = vadd.f32 0.0, %v5688
      %5690 = vdwg.mxu0
      %v5691 = vmax.f32 %v5630, %v5677
      %v5692 = vmax.f32 %v5631, %v5679
      %v5693 = vmax.f32 %v5632, %v5682
      %v5694 = vmax.f32 %v5633, %v5684
      %v5695 = vmax.f32 %v5634, %v5687
      %v5696 = vmax.f32 %v5635, %v5689
      %v5697 = vpack.c.bf16 %v5691, %v5691
      %v5698 = vpack.c.bf16 %v5692, %v5692
      %v5699 = vpack.c.bf16 %v5693, %v5693
      %v5700 = vpack.c.bf16 %v5694, %v5694
      %v5701 = vpack.c.bf16 %v5695, %v5695
      %v5702 = vpack.c.bf16 %v5696, %v5696
      %vm5703 = vcmask 257024
      %5704 = vst.msk [vmem:[#allocation3] sm:$0xf] %vm5703, %v5697
      %5705 = vst.msk [vmem:[#allocation3 + $0x4] sm:$0xf] %vm5703, %v5698
      %5706 = vst.msk [vmem:[#allocation3 + $0x8] sm:$0xf] %vm5703, %v5699
      %5707 = vst.msk [vmem:[#allocation3 + $0xc] sm:$0xf] %vm5703, %v5700
      %5708 = vst.msk [vmem:[#allocation3 + $0x10] sm:$0xf] %vm5703, %v5701
      %5709 = vst.msk [vmem:[#allocation3 + $0x14] sm:$0xf] %vm5703, %v5702
      %v5710 = vld [vmem:[#allocation3] sm:$0xf]
      %v5711 = vld [vmem:[#allocation3 + $0x4] sm:$0xf]
      %v5712 = vld [vmem:[#allocation3 + $0x8] sm:$0xf]
      %v5713 = vld [vmem:[%s5] sm:$0xf]
      %v5714 = vld [vmem:[%s5 + $0x4] sm:$0xf]
      %v5715 = vld [vmem:[%s5 + $0x8] sm:$0xf]
      %v5716 = vld [vmem:[%s5 + $0xc] sm:$0xf]
      %v5717 = vld [vmem:[#allocation3 + $0xc] sm:$0x1]
      %s5718 = scalar_lea.vmem %s5, 16
      %v5719 = vld [vmem:[%s5718] sm:$0xf]
      %v5720 = vld [vmem:[%s5718 + $0x4] sm:$0xf]
      %v5721 = vld [vmem:[%s5718 + $0x8] sm:$0xf]
      %v5722 = vld [vmem:[%s5718 + $0xc] sm:$0xf]
      %v5727 = vunpack.c.l.b16 %v5710
      %v5728 = vunpack.c.l.b16 %v5711
      %v5729 = vunpack.c.l.b16 %v5712
      %v5730 = vunpack.c.l.b16 %v5717
      %v5731 = vpack.c.b16 %v5728, %v5727
      %v5732 = vpack.c.b16 %v5730, %v5729
      %v5734 = vshrl.u32 %v5731, 16
      %v5736 = vshll.u32 %v5731, 16
      %v5738 = vrot.slane %v5736, 1
      %v5739 = vor.u32 %v5734, %v5738
      %v5741 = vshll.u32 %v5732, 16
      %v5743 = vrot.slane %v5741, 1
      %v5744 = vsel %vm575, %v5739, %v5743
      %v5745 = vshrl.u32 %v5732, 16
      %v5747 = vor.u32 %v5745, %v5743
      %v5752 = vunpack.c.l.b16 %v5719
      %v5753 = vunpack.c.l.b16 %v5720
      %v5754 = vunpack.c.l.b16 %v5721
      %v5755 = vunpack.c.l.b16 %v5722
      %v5756 = vpack.c.b16 %v5753, %v5752
      %v5757 = vpack.c.b16 %v5755, %v5754
      %v5761 = vsel %vm3415, %v5744, 0
      %v5764 = vsel %vm3415, %v5747, 0
      %5766 = vmatpush.bf16.msra.mxu0 0
      %5767 = vmatpush.bf16.msra.mxu0 0
      %5768 = vmatpush.bf16.msra.mxu0 0
      %5769 = vmatpush.bf16.msra.mxu0 0
      %5770 = vmatpush.bf16.msra.mxu0 0
      %5771 = vmatpush.bf16.msra.mxu0 0
      %5772 = vmatpush.bf16.msra.mxu0 %v5757
      %5773 = vmatpush.bf16.msra.mxu0 %v5756
      %5774 = vmatmul.bf16.gmra.mxu0 %v5761
      %v5775 = vpop.f32.mrf.mxu0
      %v5776 = vadd.f32 0.0, %v5775
      %v5777 = vpop.f32.mrf.mxu0
      %v5778 = vadd.f32 0.0, %v5777
      %5779 = vmatmul.bf16.gmra.mxu0 %v5764
      %v5780 = vpop.f32.mrf.mxu0
      %v5781 = vadd.f32 0.0, %v5780
      %v5782 = vpop.f32.mrf.mxu0
      %5783 = vdwg.mxu0
      %v5784 = vpack.c.b16 %v5729, %v5729
      %v5789 = vunpack.c.l.b16 %v5713
      %v5790 = vunpack.c.l.b16 %v5714
      %v5791 = vunpack.c.l.b16 %v5715
      %v5792 = vunpack.c.l.b16 %v5716
      %v5793 = vpack.c.b16 %v5790, %v5789
      %v5794 = vpack.c.b16 %v5792, %v5791
      %v5797 = vsel %vm3415, %v5731, 0
      %v5800 = vsel %vm3415, %v5784, 0
      %5802 = vmatpush.bf16.msra.mxu0 0
      %5803 = vmatpush.bf16.msra.mxu0 0
      %5804 = vmatpush.bf16.msra.mxu0 0
      %5805 = vmatpush.bf16.msra.mxu0 0
      %5806 = vmatpush.bf16.msra.mxu0 0
      %5807 = vmatpush.bf16.msra.mxu0 0
      %5808 = vmatpush.bf16.msra.mxu0 %v5794
      %5809 = vmatpush.bf16.msra.mxu0 %v5793
      %5810 = vmatmul.bf16.gmra.mxu0 %v5797
      %v5811 = vpop.f32.mrf.mxu0
      %v5812 = vadd.f32 %v5776, %v5811
      %v5813 = vpop.f32.mrf.mxu0
      %v5814 = vadd.f32 %v5778, %v5813
      %5815 = vmatmul.bf16.gmra.mxu0 %v5800
      %v5816 = vpop.f32.mrf.mxu0
      %v5817 = vadd.f32 %v5781, %v5816
      %v5818 = vpop.f32.mrf.mxu0
      %5819 = vdwg.mxu0
      %v5820 = vld [vmem:[#allocation3] sm:$0x8]
      %v5821 = vld [vmem:[#allocation3 + $0xc] sm:$0x7]
      %s5822 = scalar_lea.vmem %s5, 32
      %v5823 = vld [vmem:[%s5822] sm:$0xf]
      %v5824 = vld [vmem:[%s5822 + $0x4] sm:$0xf]
      %v5825 = vld [vmem:[%s5822 + $0x8] sm:$0xf]
      %v5826 = vld [vmem:[%s5822 + $0xc] sm:$0xf]
      %v5829 = vunpack.c.l.b16 %v5820
      %v5830 = vunpack.c.l.b16 %v5821
      %v5831 = vpack.c.b16 %v5728, %v5829
      %v5832 = vpack.c.b16 %v5830, %v5729
      %v5833 = vrot.slane %v5831, 3
      %v5834 = vrot.slane %v5832, 3
      %v5835 = vsel %vm2958, %v5833, %v5834
      %v5840 = vunpack.c.l.b16 %v5823
      %v5841 = vunpack.c.l.b16 %v5824
      %v5842 = vunpack.c.l.b16 %v5825
      %v5843 = vunpack.c.l.b16 %v5826
      %v5844 = vpack.c.b16 %v5841, %v5840
      %v5845 = vpack.c.b16 %v5843, %v5842
      %v5849 = vsel %vm3415, %v5835, 0
      %v5852 = vsel %vm3415, %v5834, 0
      %5854 = vmatpush.bf16.msra.mxu0 0
      %5855 = vmatpush.bf16.msra.mxu0 0
      %5856 = vmatpush.bf16.msra.mxu0 0
      %5857 = vmatpush.bf16.msra.mxu0 0
      %5858 = vmatpush.bf16.msra.mxu0 0
      %5859 = vmatpush.bf16.msra.mxu0 0
      %5860 = vmatpush.bf16.msra.mxu0 %v5845
      %5861 = vmatpush.bf16.msra.mxu0 %v5844
      %5862 = vmatmul.bf16.gmra.mxu0 %v5849
      %v5863 = vpop.f32.mrf.mxu0
      %v5864 = vadd.f32 0.0, %v5863
      %v5865 = vpop.f32.mrf.mxu0
      %v5866 = vadd.f32 0.0, %v5865
      %5867 = vmatmul.bf16.gmra.mxu0 %v5852
      %v5868 = vpop.f32.mrf.mxu0
      %v5869 = vadd.f32 0.0, %v5868
      %v5870 = vpop.f32.mrf.mxu0
      %5871 = vdwg.mxu0
      %v5872 = vadd.f32 %v5812, %v5864
      %v5873 = vadd.f32 %v5814, %v5866
      %v5874 = vadd.f32 %v5817, %v5869
      %v5875 = vld [vmem:[#allocation3 + $0xc] sm:$0xf]
      %s5876 = scalar_lea.vmem %s5, 48
      %v5877 = vld [vmem:[%s5876] sm:$0xf]
      %v5878 = vld [vmem:[%s5876 + $0x4] sm:$0xf]
      %v5879 = vld [vmem:[%s5876 + $0x8] sm:$0xf]
      %v5880 = vld [vmem:[%s5876 + $0xc] sm:$0xf]
      %v5882 = vunpack.c.l.b16 %v5875
      %v5883 = vpack.c.b16 %v5882, %v5729
      %vm5884 = vsmask.f32 4352
      %v5886 = vshrl.u32 %v5831, 16
      %v5888 = vrot.slane %v5886, 3
      %v5889 = vshll.u32 %v5831, 16
      %v5891 = vrot.slane %v5889, 4
      %v5892 = vor.u32 %v5888, %v5891
      %v5894 = vshrl.u32 %v5883, 16
      %v5896 = vrot.slane %v5894, 3
      %v5897 = vshll.u32 %v5883, 16
      %v5899 = vrot.slane %v5897, 4
      %v5900 = vor.u32 %v5896, %v5899
      %v5901 = vsel %vm5884, %v5892, %v5900
      %v5906 = vunpack.c.l.b16 %v5877
      %v5907 = vunpack.c.l.b16 %v5878
      %v5908 = vunpack.c.l.b16 %v5879
      %v5909 = vunpack.c.l.b16 %v5880
      %v5910 = vpack.c.b16 %v5907, %v5906
      %v5911 = vpack.c.b16 %v5909, %v5908
      %v5915 = vsel %vm3415, %v5901, 0
      %v5918 = vsel %vm3415, %v5900, 0
      %5920 = vmatpush.bf16.msra.mxu0 0
      %5921 = vmatpush.bf16.msra.mxu0 0
      %5922 = vmatpush.bf16.msra.mxu0 0
      %5923 = vmatpush.bf16.msra.mxu0 0
      %5924 = vmatpush.bf16.msra.mxu0 0
      %5925 = vmatpush.bf16.msra.mxu0 0
      %5926 = vmatpush.bf16.msra.mxu0 %v5911
      %5927 = vmatpush.bf16.msra.mxu0 %v5910
      %5928 = vmatmul.bf16.gmra.mxu0 %v5915
      %v5929 = vpop.f32.mrf.mxu0
      %v5930 = vadd.f32 0.0, %v5929
      %v5931 = vpop.f32.mrf.mxu0
      %v5932 = vadd.f32 0.0, %v5931
      %5933 = vmatmul.bf16.gmra.mxu0 %v5918
      %v5934 = vpop.f32.mrf.mxu0
      %v5935 = vadd.f32 0.0, %v5934
      %v5936 = vpop.f32.mrf.mxu0
      %5937 = vdwg.mxu0
      %v5938 = vadd.f32 %v5872, %v5930
      %v5939 = vadd.f32 %v5873, %v5932
      %v5940 = vadd.f32 %v5874, %v5935
      %v5941 = vld [vmem:[%s6] sm:$0x1]
      %v5943 = vperm.slane %v5941, 0
      %v5945 = vadd.f32 %v5938, %v5943
      %v5946 = vadd.f32 %v5939, %v5943
      %v5947 = vadd.f32 %v5940, %v5943
      %v5948 = vmax.f32 %v5945, 0.0
      %v5949 = vmax.f32 %v5946, 0.0
      %v5950 = vmax.f32 %v5947, 0.0
      %v5951 = vpack.c.bf16 %v5949, %v5948
      %v5952 = vpack.c.bf16 %v5950, %v5950
      %v5953 = vld [vmem:[%s11] sm:$0xf]
      %v5954 = vld [vmem:[%s11 + $0x4] sm:$0xf]
      %v5955 = vld [vmem:[%s11 + $0x8] sm:$0xf]
      %v5956 = vld [vmem:[%s11 + $0xc] sm:$0xf]
      %v5957 = vld [vmem:[%s11 + $0x10] sm:$0xf]
      %v5958 = vld [vmem:[%s11 + $0x14] sm:$0xf]
      %v5959 = vld [vmem:[%s11 + $0x18] sm:$0xf]
      %v5960 = vld [vmem:[%s11 + $0x1c] sm:$0xf]
      %v5961 = vld [vmem:[%s11 + $0x20] sm:$0xf]
      %v5962 = vld [vmem:[%s11 + $0x24] sm:$0xf]
      %v5963 = vld [vmem:[%s11 + $0x28] sm:$0xf]
      %v5964 = vld [vmem:[%s11 + $0x2c] sm:$0xf]
      %v5965 = vld [vmem:[%s11 + $0x30] sm:$0xf]
      %v5966 = vld [vmem:[%s11 + $0x34] sm:$0xf]
      %s5967 = scalar_lea.vmem %s5, 64
      %v5968 = vld [vmem:[%s5967] sm:$0xf]
      %v5969 = vld [vmem:[%s5967 + $0x4] sm:$0xf]
      %v5970 = vld [vmem:[%s5967 + $0x8] sm:$0xf]
      %v5971 = vld [vmem:[%s5967 + $0xc] sm:$0xf]
      %v5972 = vld [vmem:[#allocation3] sm:$0xe]
      %s5973 = scalar_lea.vmem %s5, 80
      %v5974 = vld [vmem:[%s5973] sm:$0xf]
      %v5975 = vld [vmem:[%s5973 + $0x4] sm:$0xf]
      %v5976 = vld [vmem:[%s5973 + $0x8] sm:$0xf]
      %v5977 = vld [vmem:[%s5973 + $0xc] sm:$0xf]
      %v5979 = vunpack.c.l.b16 %v5972
      %v5980 = vpack.c.b16 %v5728, %v5979
      %v5981 = vrot.slane %v5980, 1
      %v5982 = vrot.slane %v5732, 1
      %v5983 = vsel %vm1026, %v5981, %v5982
      %v5988 = vunpack.c.l.b16 %v5974
      %v5989 = vunpack.c.l.b16 %v5975
      %v5990 = vunpack.c.l.b16 %v5976
      %v5991 = vunpack.c.l.b16 %v5977
      %v5992 = vpack.c.b16 %v5989, %v5988
      %v5993 = vpack.c.b16 %v5991, %v5990
      %v5997 = vsel %vm3415, %v5983, 0
      %v6000 = vsel %vm3415, %v5982, 0
      %6002 = vmatpush.bf16.msra.mxu0 0
      %6003 = vmatpush.bf16.msra.mxu0 0
      %6004 = vmatpush.bf16.msra.mxu0 0
      %6005 = vmatpush.bf16.msra.mxu0 0
      %6006 = vmatpush.bf16.msra.mxu0 0
      %6007 = vmatpush.bf16.msra.mxu0 0
      %6008 = vmatpush.bf16.msra.mxu0 %v5993
      %6009 = vmatpush.bf16.msra.mxu0 %v5992
      %6010 = vmatmul.bf16.gmra.mxu0 %v5997
      %v6011 = vpop.f32.mrf.mxu0
      %v6012 = vadd.f32 0.0, %v6011
      %v6013 = vpop.f32.mrf.mxu0
      %v6014 = vadd.f32 0.0, %v6013
      %6015 = vmatmul.bf16.gmra.mxu0 %v6000
      %v6016 = vpop.f32.mrf.mxu0
      %v6017 = vadd.f32 0.0, %v6016
      %v6018 = vpop.f32.mrf.mxu0
      %6019 = vdwg.mxu0
      %v6024 = vunpack.c.l.b16 %v5968
      %v6025 = vunpack.c.l.b16 %v5969
      %v6026 = vunpack.c.l.b16 %v5970
      %v6027 = vunpack.c.l.b16 %v5971
      %v6028 = vpack.c.b16 %v6025, %v6024
      %v6029 = vpack.c.b16 %v6027, %v6026
      %6032 = vmatpush.bf16.msra.mxu0 0
      %6033 = vmatpush.bf16.msra.mxu0 0
      %6034 = vmatpush.bf16.msra.mxu0 0
      %6035 = vmatpush.bf16.msra.mxu0 0
      %6036 = vmatpush.bf16.msra.mxu0 0
      %6037 = vmatpush.bf16.msra.mxu0 0
      %6038 = vmatpush.bf16.msra.mxu0 %v6029
      %6039 = vmatpush.bf16.msra.mxu0 %v6028
      %6040 = vmatmul.bf16.gmra.mxu0 %v5761
      %v6041 = vpop.f32.mrf.mxu0
      %v6042 = vadd.f32 %v6012, %v6041
      %v6043 = vpop.f32.mrf.mxu0
      %v6044 = vadd.f32 %v6014, %v6043
      %6045 = vmatmul.bf16.gmra.mxu0 %v5764
      %v6046 = vpop.f32.mrf.mxu0
      %v6047 = vadd.f32 %v6017, %v6046
      %v6048 = vpop.f32.mrf.mxu0
      %6049 = vdwg.mxu0
      %s6050 = scalar_lea.vmem %s5, 96
      %v6051 = vld [vmem:[%s6050] sm:$0xf]
      %v6052 = vld [vmem:[%s6050 + $0x4] sm:$0xf]
      %v6053 = vld [vmem:[%s6050 + $0x8] sm:$0xf]
      %v6054 = vld [vmem:[%s6050 + $0xc] sm:$0xf]
      %v6059 = vunpack.c.l.b16 %v6051
      %v6060 = vunpack.c.l.b16 %v6052
      %v6061 = vunpack.c.l.b16 %v6053
      %v6062 = vunpack.c.l.b16 %v6054
      %v6063 = vpack.c.b16 %v6060, %v6059
      %v6064 = vpack.c.b16 %v6062, %v6061
      %6067 = vmatpush.bf16.msra.mxu0 0
      %6068 = vmatpush.bf16.msra.mxu0 0
      %6069 = vmatpush.bf16.msra.mxu0 0
      %6070 = vmatpush.bf16.msra.mxu0 0
      %6071 = vmatpush.bf16.msra.mxu0 0
      %6072 = vmatpush.bf16.msra.mxu0 0
      %6073 = vmatpush.bf16.msra.mxu0 %v6064
      %6074 = vmatpush.bf16.msra.mxu0 %v6063
      %6075 = vmatmul.bf16.gmra.mxu0 %v5915
      %v6076 = vpop.f32.mrf.mxu0
      %v6077 = vadd.f32 0.0, %v6076
      %v6078 = vpop.f32.mrf.mxu0
      %v6079 = vadd.f32 0.0, %v6078
      %6080 = vmatmul.bf16.gmra.mxu0 %v5918
      %v6081 = vpop.f32.mrf.mxu0
      %v6082 = vadd.f32 0.0, %v6081
      %v6083 = vpop.f32.mrf.mxu0
      %6084 = vdwg.mxu0
      %v6085 = vadd.f32 %v6042, %v6077
      %v6086 = vadd.f32 %v6044, %v6079
      %v6087 = vadd.f32 %v6047, %v6082
      %s6088 = scalar_lea.vmem %s5, 112
      %v6089 = vld [vmem:[%s6088] sm:$0xf]
      %v6090 = vld [vmem:[%s6088 + $0x4] sm:$0xf]
      %v6091 = vld [vmem:[%s6088 + $0x8] sm:$0xf]
      %v6092 = vld [vmem:[%s6088 + $0xc] sm:$0xf]
      %v6093 = vpack.c.b16 %v5729, %v5728
      %v6094 = vpack.c.b16 %v5882, %v5882
      %v6099 = vunpack.c.l.b16 %v6089
      %v6100 = vunpack.c.l.b16 %v6090
      %v6101 = vunpack.c.l.b16 %v6091
      %v6102 = vunpack.c.l.b16 %v6092
      %v6103 = vpack.c.b16 %v6100, %v6099
      %v6104 = vpack.c.b16 %v6102, %v6101
      %v6108 = vsel %vm3415, %v6093, 0
      %v6111 = vsel %vm3415, %v6094, 0
      %6113 = vmatpush.bf16.msra.mxu0 0
      %6114 = vmatpush.bf16.msra.mxu0 0
      %6115 = vmatpush.bf16.msra.mxu0 0
      %6116 = vmatpush.bf16.msra.mxu0 0
      %6117 = vmatpush.bf16.msra.mxu0 0
      %6118 = vmatpush.bf16.msra.mxu0 0
      %6119 = vmatpush.bf16.msra.mxu0 %v6104
      %6120 = vmatpush.bf16.msra.mxu0 %v6103
      %6121 = vmatmul.bf16.gmra.mxu0 %v6108
      %v6122 = vpop.f32.mrf.mxu0
      %v6123 = vadd.f32 0.0, %v6122
      %v6124 = vpop.f32.mrf.mxu0
      %v6125 = vadd.f32 0.0, %v6124
      %6126 = vmatmul.bf16.gmra.mxu0 %v6111
      %v6127 = vpop.f32.mrf.mxu0
      %v6128 = vadd.f32 0.0, %v6127
      %v6129 = vpop.f32.mrf.mxu0
      %6130 = vdwg.mxu0
      %v6131 = vadd.f32 %v6085, %v6123
      %v6132 = vadd.f32 %v6086, %v6125
      %v6133 = vadd.f32 %v6087, %v6128
      %v6134 = vadd.f32 %v6131, %v5943
      %v6135 = vadd.f32 %v6132, %v5943
      %v6136 = vadd.f32 %v6133, %v5943
      %v6137 = vmax.f32 %v6134, 0.0
      %v6138 = vmax.f32 %v6135, 0.0
      %v6139 = vmax.f32 %v6136, 0.0
      %v6140 = vpack.c.bf16 %v6138, %v6137
      %v6141 = vpack.c.bf16 %v6139, %v6139
      %s6142 = scalar_lea.vmem %s11, 56
      %v6143 = vld [vmem:[%s6142] sm:$0xf]
      %v6144 = vld [vmem:[%s6142 + $0x4] sm:$0xf]
      %v6145 = vld [vmem:[%s6142 + $0x8] sm:$0xf]
      %v6146 = vld [vmem:[%s6142 + $0xc] sm:$0xf]
      %v6147 = vld [vmem:[%s6142 + $0x10] sm:$0xf]
      %v6148 = vld [vmem:[%s6142 + $0x14] sm:$0xf]
      %v6149 = vld [vmem:[%s6142 + $0x18] sm:$0xf]
      %v6150 = vld [vmem:[%s6142 + $0x1c] sm:$0xf]
      %v6151 = vld [vmem:[%s6142 + $0x20] sm:$0xf]
      %v6152 = vld [vmem:[%s6142 + $0x24] sm:$0xf]
      %v6153 = vld [vmem:[%s6142 + $0x28] sm:$0xf]
      %v6154 = vld [vmem:[%s6142 + $0x2c] sm:$0xf]
      %v6155 = vld [vmem:[%s6142 + $0x30] sm:$0xf]
      %v6156 = vld [vmem:[%s6142 + $0x34] sm:$0xf]
      %v6171 = vunpack.c.l.b16 %v6143
      %v6172 = vunpack.c.l.b16 %v6144
      %v6173 = vunpack.c.l.b16 %v6145
      %v6174 = vunpack.c.l.b16 %v6146
      %v6175 = vunpack.c.l.b16 %v6147
      %v6176 = vunpack.c.l.b16 %v6148
      %v6177 = vunpack.c.l.b16 %v6149
      %v6178 = vunpack.c.l.b16 %v6150
      %v6179 = vunpack.c.l.b16 %v6151
      %v6180 = vunpack.c.l.b16 %v6152
      %v6181 = vunpack.c.l.b16 %v6153
      %v6182 = vunpack.c.l.b16 %v6154
      %v6183 = vunpack.c.l.b16 %v6155
      %v6184 = vunpack.c.l.b16 %v6156
      %v6185 = vpack.c.b16 %v6172, %v6171
      %v6186 = vpack.c.b16 %v6174, %v6173
      %v6187 = vpack.c.b16 %v6176, %v6175
      %v6188 = vpack.c.b16 %v6178, %v6177
      %v6189 = vpack.c.b16 %v6180, %v6179
      %v6190 = vpack.c.b16 %v6182, %v6181
      %v6191 = vpack.c.b16 %v6184, %v6183
      %vm6192 = vcmask 195584
      %v6194 = vsel %vm6192, %v6185, 0
      %v6197 = vsel %vm6192, %v6186, 0
      %v6200 = vsel %vm6192, %v6187, 0
      %v6203 = vsel %vm6192, %v6188, 0
      %v6206 = vsel %vm6192, %v6189, 0
      %v6209 = vsel %vm6192, %v6190, 0
      %v6212 = vsel %vm6192, %v6191, 0
      %v6215 = vsel %vm779, %v6141, 0
      %6217 = vmatpush.bf16.msra.mxu0 0
      %6218 = vmatpush.bf16.msra.mxu0 0
      %6219 = vmatpush.bf16.msra.mxu0 0
      %6220 = vmatpush.bf16.msra.mxu0 0
      %6221 = vmatpush.bf16.msra.mxu0 0
      %6222 = vmatpush.bf16.msra.mxu0 0
      %6223 = vmatpush.bf16.msra.mxu0 %v6215
      %6224 = vmatpush.bf16.msra.mxu0 %v6140
      %6225 = vmatmul.bf16.gmra.mxu0 %v6194
      %v6226 = vpop.f32.mrf.mxu0
      %v6227 = vadd.f32 0.0, %v6226
      %v6228 = vpop.f32.mrf.mxu0
      %v6229 = vadd.f32 0.0, %v6228
      %6230 = vmatmul.bf16.gmra.mxu0 %v6197
      %v6231 = vpop.f32.mrf.mxu0
      %v6232 = vadd.f32 0.0, %v6231
      %v6233 = vpop.f32.mrf.mxu0
      %v6234 = vadd.f32 0.0, %v6233
      %6235 = vmatmul.bf16.gmra.mxu0 %v6200
      %v6236 = vpop.f32.mrf.mxu0
      %v6237 = vadd.f32 0.0, %v6236
      %v6238 = vpop.f32.mrf.mxu0
      %v6239 = vadd.f32 0.0, %v6238
      %6240 = vmatmul.bf16.gmra.mxu0 %v6203
      %v6241 = vpop.f32.mrf.mxu0
      %v6242 = vadd.f32 0.0, %v6241
      %v6243 = vpop.f32.mrf.mxu0
      %v6244 = vadd.f32 0.0, %v6243
      %6245 = vmatmul.bf16.gmra.mxu0 %v6206
      %v6246 = vpop.f32.mrf.mxu0
      %v6247 = vadd.f32 0.0, %v6246
      %v6248 = vpop.f32.mrf.mxu0
      %v6249 = vadd.f32 0.0, %v6248
      %6250 = vmatmul.bf16.gmra.mxu0 %v6209
      %v6251 = vpop.f32.mrf.mxu0
      %v6252 = vadd.f32 0.0, %v6251
      %v6253 = vpop.f32.mrf.mxu0
      %v6254 = vadd.f32 0.0, %v6253
      %6255 = vmatmul.bf16.gmra.mxu0 %v6212
      %v6256 = vpop.f32.mrf.mxu0
      %v6257 = vadd.f32 0.0, %v6256
      %v6258 = vpop.f32.mrf.mxu0
      %v6259 = vadd.f32 0.0, %v6258
      %6260 = vdwg.mxu0
      %v6275 = vunpack.c.l.b16 %v5953
      %v6276 = vunpack.c.l.b16 %v5954
      %v6277 = vunpack.c.l.b16 %v5955
      %v6278 = vunpack.c.l.b16 %v5956
      %v6279 = vunpack.c.l.b16 %v5957
      %v6280 = vunpack.c.l.b16 %v5958
      %v6281 = vunpack.c.l.b16 %v5959
      %v6282 = vunpack.c.l.b16 %v5960
      %v6283 = vunpack.c.l.b16 %v5961
      %v6284 = vunpack.c.l.b16 %v5962
      %v6285 = vunpack.c.l.b16 %v5963
      %v6286 = vunpack.c.l.b16 %v5964
      %v6287 = vunpack.c.l.b16 %v5965
      %v6288 = vunpack.c.l.b16 %v5966
      %v6289 = vpack.c.b16 %v6276, %v6275
      %v6290 = vpack.c.b16 %v6278, %v6277
      %v6291 = vpack.c.b16 %v6280, %v6279
      %v6292 = vpack.c.b16 %v6282, %v6281
      %v6293 = vpack.c.b16 %v6284, %v6283
      %v6294 = vpack.c.b16 %v6286, %v6285
      %v6295 = vpack.c.b16 %v6288, %v6287
      %v6297 = vsel %vm6192, %v6289, 0
      %v6300 = vsel %vm6192, %v6290, 0
      %v6303 = vsel %vm6192, %v6291, 0
      %v6306 = vsel %vm6192, %v6292, 0
      %v6309 = vsel %vm6192, %v6293, 0
      %v6312 = vsel %vm6192, %v6294, 0
      %v6315 = vsel %vm6192, %v6295, 0
      %v6318 = vsel %vm779, %v5952, 0
      %6320 = vmatpush.bf16.msra.mxu0 0
      %6321 = vmatpush.bf16.msra.mxu0 0
      %6322 = vmatpush.bf16.msra.mxu0 0
      %6323 = vmatpush.bf16.msra.mxu0 0
      %6324 = vmatpush.bf16.msra.mxu0 0
      %6325 = vmatpush.bf16.msra.mxu0 0
      %6326 = vmatpush.bf16.msra.mxu0 %v6318
      %6327 = vmatpush.bf16.msra.mxu0 %v5951
      %6328 = vmatmul.bf16.gmra.mxu0 %v6297
      %v6329 = vpop.f32.mrf.mxu0
      %v6330 = vadd.f32 %v6227, %v6329
      %v6331 = vpop.f32.mrf.mxu0
      %v6332 = vadd.f32 %v6229, %v6331
      %6333 = vmatmul.bf16.gmra.mxu0 %v6300
      %v6334 = vpop.f32.mrf.mxu0
      %v6335 = vadd.f32 %v6232, %v6334
      %v6336 = vpop.f32.mrf.mxu0
      %v6337 = vadd.f32 %v6234, %v6336
      %6338 = vmatmul.bf16.gmra.mxu0 %v6303
      %v6339 = vpop.f32.mrf.mxu0
      %v6340 = vadd.f32 %v6237, %v6339
      %v6341 = vpop.f32.mrf.mxu0
      %v6342 = vadd.f32 %v6239, %v6341
      %6343 = vmatmul.bf16.gmra.mxu0 %v6306
      %v6344 = vpop.f32.mrf.mxu0
      %v6345 = vadd.f32 %v6242, %v6344
      %v6346 = vpop.f32.mrf.mxu0
      %v6347 = vadd.f32 %v6244, %v6346
      %6348 = vmatmul.bf16.gmra.mxu0 %v6309
      %v6349 = vpop.f32.mrf.mxu0
      %v6350 = vadd.f32 %v6247, %v6349
      %v6351 = vpop.f32.mrf.mxu0
      %v6352 = vadd.f32 %v6249, %v6351
      %6353 = vmatmul.bf16.gmra.mxu0 %v6312
      %v6354 = vpop.f32.mrf.mxu0
      %v6355 = vadd.f32 %v6252, %v6354
      %v6356 = vpop.f32.mrf.mxu0
      %v6357 = vadd.f32 %v6254, %v6356
      %6358 = vmatmul.bf16.gmra.mxu0 %v6315
      %v6359 = vpop.f32.mrf.mxu0
      %v6360 = vadd.f32 %v6257, %v6359
      %v6361 = vpop.f32.mrf.mxu0
      %v6362 = vadd.f32 %v6259, %v6361
      %6363 = vdwg.mxu0
      %s6364 = scalar_lea.vmem %s5, 128
      %v6365 = vld [vmem:[%s6364] sm:$0xf]
      %v6366 = vld [vmem:[%s6364 + $0x4] sm:$0xf]
      %v6367 = vld [vmem:[%s6364 + $0x8] sm:$0xf]
      %v6368 = vld [vmem:[%s6364 + $0xc] sm:$0xf]
      %s6369 = scalar_lea.vmem %s5, 144
      %v6370 = vld [vmem:[%s6369] sm:$0xf]
      %v6371 = vld [vmem:[%s6369 + $0x4] sm:$0xf]
      %v6372 = vld [vmem:[%s6369 + $0x8] sm:$0xf]
      %v6373 = vld [vmem:[%s6369 + $0xc] sm:$0xf]
      %v6378 = vunpack.c.l.b16 %v6370
      %v6379 = vunpack.c.l.b16 %v6371
      %v6380 = vunpack.c.l.b16 %v6372
      %v6381 = vunpack.c.l.b16 %v6373
      %v6382 = vpack.c.b16 %v6379, %v6378
      %v6383 = vpack.c.b16 %v6381, %v6380
      %6386 = vmatpush.bf16.msra.mxu0 0
      %6387 = vmatpush.bf16.msra.mxu0 0
      %6388 = vmatpush.bf16.msra.mxu0 0
      %6389 = vmatpush.bf16.msra.mxu0 0
      %6390 = vmatpush.bf16.msra.mxu0 0
      %6391 = vmatpush.bf16.msra.mxu0 0
      %6392 = vmatpush.bf16.msra.mxu0 %v6383
      %6393 = vmatpush.bf16.msra.mxu0 %v6382
      %6394 = vmatmul.bf16.gmra.mxu0 %v5915
      %v6395 = vpop.f32.mrf.mxu0
      %v6396 = vadd.f32 0.0, %v6395
      %v6397 = vpop.f32.mrf.mxu0
      %v6398 = vadd.f32 0.0, %v6397
      %6399 = vmatmul.bf16.gmra.mxu0 %v5918
      %v6400 = vpop.f32.mrf.mxu0
      %v6401 = vadd.f32 0.0, %v6400
      %v6402 = vpop.f32.mrf.mxu0
      %6403 = vdwg.mxu0
      %v6408 = vunpack.c.l.b16 %v6365
      %v6409 = vunpack.c.l.b16 %v6366
      %v6410 = vunpack.c.l.b16 %v6367
      %v6411 = vunpack.c.l.b16 %v6368
      %v6412 = vpack.c.b16 %v6409, %v6408
      %v6413 = vpack.c.b16 %v6411, %v6410
      %6416 = vmatpush.bf16.msra.mxu0 0
      %6417 = vmatpush.bf16.msra.mxu0 0
      %6418 = vmatpush.bf16.msra.mxu0 0
      %6419 = vmatpush.bf16.msra.mxu0 0
      %6420 = vmatpush.bf16.msra.mxu0 0
      %6421 = vmatpush.bf16.msra.mxu0 0
      %6422 = vmatpush.bf16.msra.mxu0 %v6413
      %6423 = vmatpush.bf16.msra.mxu0 %v6412
      %6424 = vmatmul.bf16.gmra.mxu0 %v5849
      %v6425 = vpop.f32.mrf.mxu0
      %v6426 = vadd.f32 %v6396, %v6425
      %v6427 = vpop.f32.mrf.mxu0
      %v6428 = vadd.f32 %v6398, %v6427
      %6429 = vmatmul.bf16.gmra.mxu0 %v5852
      %v6430 = vpop.f32.mrf.mxu0
      %v6431 = vadd.f32 %v6401, %v6430
      %v6432 = vpop.f32.mrf.mxu0
      %6433 = vdwg.mxu0
      %v6434 = vld [vmem:[#allocation3 + $0x4] sm:$0xc]
      %v6435 = vld [vmem:[#allocation3 + $0x8] sm:$0xf]
      %v6436 = vld [vmem:[#allocation3 + $0xc] sm:$0xf]
      %v6437 = vld [vmem:[#allocation3 + $0x10] sm:$0x3]
      %s6438 = scalar_lea.vmem %s5, 160
      %v6439 = vld [vmem:[%s6438] sm:$0xf]
      %v6440 = vld [vmem:[%s6438 + $0x4] sm:$0xf]
      %v6441 = vld [vmem:[%s6438 + $0x8] sm:$0xf]
      %v6442 = vld [vmem:[%s6438 + $0xc] sm:$0xf]
      %v6447 = vunpack.c.l.b16 %v6434
      %v6448 = vunpack.c.l.b16 %v6435
      %v6449 = vunpack.c.l.b16 %v6436
      %v6450 = vunpack.c.l.b16 %v6437
      %v6451 = vpack.c.b16 %v6448, %v6447
      %v6452 = vpack.c.b16 %v6450, %v6449
      %v6453 = vrot.slane %v6451, 2
      %v6454 = vrot.slane %v6452, 2
      %v6455 = vsel %vm1992, %v6453, %v6454
      %v6460 = vunpack.c.l.b16 %v6439
      %v6461 = vunpack.c.l.b16 %v6440
      %v6462 = vunpack.c.l.b16 %v6441
      %v6463 = vunpack.c.l.b16 %v6442
      %v6464 = vpack.c.b16 %v6461, %v6460
      %v6465 = vpack.c.b16 %v6463, %v6462
      %v6469 = vsel %vm3415, %v6455, 0
      %v6472 = vsel %vm3415, %v6454, 0
      %6474 = vmatpush.bf16.msra.mxu0 0
      %6475 = vmatpush.bf16.msra.mxu0 0
      %6476 = vmatpush.bf16.msra.mxu0 0
      %6477 = vmatpush.bf16.msra.mxu0 0
      %6478 = vmatpush.bf16.msra.mxu0 0
      %6479 = vmatpush.bf16.msra.mxu0 0
      %6480 = vmatpush.bf16.msra.mxu0 %v6465
      %6481 = vmatpush.bf16.msra.mxu0 %v6464
      %6482 = vmatmul.bf16.gmra.mxu0 %v6469
      %v6483 = vpop.f32.mrf.mxu0
      %v6484 = vadd.f32 0.0, %v6483
      %v6485 = vpop.f32.mrf.mxu0
      %v6486 = vadd.f32 0.0, %v6485
      %6487 = vmatmul.bf16.gmra.mxu0 %v6472
      %v6488 = vpop.f32.mrf.mxu0
      %v6489 = vadd.f32 0.0, %v6488
      %v6490 = vpop.f32.mrf.mxu0
      %6491 = vdwg.mxu0
      %v6492 = vadd.f32 %v6426, %v6484
      %v6493 = vadd.f32 %v6428, %v6486
      %v6494 = vadd.f32 %v6431, %v6489
      %v6495 = vld [vmem:[#allocation3 + $0x10] sm:$0x7]
      %s6496 = scalar_lea.vmem %s5, 176
      %v6497 = vld [vmem:[%s6496] sm:$0xf]
      %v6498 = vld [vmem:[%s6496 + $0x4] sm:$0xf]
      %v6499 = vld [vmem:[%s6496 + $0x8] sm:$0xf]
      %v6500 = vld [vmem:[%s6496 + $0xc] sm:$0xf]
      %v6502 = vunpack.c.l.b16 %v6495
      %v6503 = vpack.c.b16 %v6502, %v6449
      %v6505 = vshrl.u32 %v6451, 16
      %v6507 = vrot.slane %v6505, 2
      %v6508 = vshll.u32 %v6451, 16
      %v6510 = vrot.slane %v6508, 3
      %v6511 = vor.u32 %v6507, %v6510
      %v6513 = vshrl.u32 %v6503, 16
      %v6515 = vrot.slane %v6513, 2
      %v6516 = vshll.u32 %v6503, 16
      %v6518 = vrot.slane %v6516, 3
      %v6519 = vor.u32 %v6515, %v6518
      %v6520 = vsel %vm2589, %v6511, %v6519
      %v6525 = vunpack.c.l.b16 %v6497
      %v6526 = vunpack.c.l.b16 %v6498
      %v6527 = vunpack.c.l.b16 %v6499
      %v6528 = vunpack.c.l.b16 %v6500
      %v6529 = vpack.c.b16 %v6526, %v6525
      %v6530 = vpack.c.b16 %v6528, %v6527
      %v6534 = vsel %vm3415, %v6520, 0
      %v6537 = vsel %vm3415, %v6519, 0
      %6539 = vmatpush.bf16.msra.mxu0 0
      %6540 = vmatpush.bf16.msra.mxu0 0
      %6541 = vmatpush.bf16.msra.mxu0 0
      %6542 = vmatpush.bf16.msra.mxu0 0
      %6543 = vmatpush.bf16.msra.mxu0 0
      %6544 = vmatpush.bf16.msra.mxu0 0
      %6545 = vmatpush.bf16.msra.mxu0 %v6530
      %6546 = vmatpush.bf16.msra.mxu0 %v6529
      %6547 = vmatmul.bf16.gmra.mxu0 %v6534
      %v6548 = vpop.f32.mrf.mxu0
      %v6549 = vadd.f32 0.0, %v6548
      %v6550 = vpop.f32.mrf.mxu0
      %v6551 = vadd.f32 0.0, %v6550
      %6552 = vmatmul.bf16.gmra.mxu0 %v6537
      %v6553 = vpop.f32.mrf.mxu0
      %v6554 = vadd.f32 0.0, %v6553
      %v6555 = vpop.f32.mrf.mxu0
      %6556 = vdwg.mxu0
      %v6557 = vadd.f32 %v6492, %v6549
      %v6558 = vadd.f32 %v6493, %v6551
      %v6559 = vadd.f32 %v6494, %v6554
      %v6560 = vadd.f32 %v6557, %v5943
      %v6561 = vadd.f32 %v6558, %v5943
      %v6562 = vadd.f32 %v6559, %v5943
      %v6563 = vmax.f32 %v6560, 0.0
      %v6564 = vmax.f32 %v6561, 0.0
      %v6565 = vmax.f32 %v6562, 0.0
      %v6566 = vpack.c.bf16 %v6564, %v6563
      %v6567 = vpack.c.bf16 %v6565, %v6565
      %s6568 = scalar_lea.vmem %s11, 112
      %v6569 = vld [vmem:[%s6568] sm:$0xf]
      %v6570 = vld [vmem:[%s6568 + $0x4] sm:$0xf]
      %v6571 = vld [vmem:[%s6568 + $0x8] sm:$0xf]
      %v6572 = vld [vmem:[%s6568 + $0xc] sm:$0xf]
      %v6573 = vld [vmem:[%s6568 + $0x10] sm:$0xf]
      %v6574 = vld [vmem:[%s6568 + $0x14] sm:$0xf]
      %v6575 = vld [vmem:[%s6568 + $0x18] sm:$0xf]
      %v6576 = vld [vmem:[%s6568 + $0x1c] sm:$0xf]
      %v6577 = vld [vmem:[%s6568 + $0x20] sm:$0xf]
      %v6578 = vld [vmem:[%s6568 + $0x24] sm:$0xf]
      %v6579 = vld [vmem:[%s6568 + $0x28] sm:$0xf]
      %v6580 = vld [vmem:[%s6568 + $0x2c] sm:$0xf]
      %v6581 = vld [vmem:[%s6568 + $0x30] sm:$0xf]
      %v6582 = vld [vmem:[%s6568 + $0x34] sm:$0xf]
      %v6597 = vunpack.c.l.b16 %v6569
      %v6598 = vunpack.c.l.b16 %v6570
      %v6599 = vunpack.c.l.b16 %v6571
      %v6600 = vunpack.c.l.b16 %v6572
      %v6601 = vunpack.c.l.b16 %v6573
      %v6602 = vunpack.c.l.b16 %v6574
      %v6603 = vunpack.c.l.b16 %v6575
      %v6604 = vunpack.c.l.b16 %v6576
      %v6605 = vunpack.c.l.b16 %v6577
      %v6606 = vunpack.c.l.b16 %v6578
      %v6607 = vunpack.c.l.b16 %v6579
      %v6608 = vunpack.c.l.b16 %v6580
      %v6609 = vunpack.c.l.b16 %v6581
      %v6610 = vunpack.c.l.b16 %v6582
      %v6611 = vpack.c.b16 %v6598, %v6597
      %v6612 = vpack.c.b16 %v6600, %v6599
      %v6613 = vpack.c.b16 %v6602, %v6601
      %v6614 = vpack.c.b16 %v6604, %v6603
      %v6615 = vpack.c.b16 %v6606, %v6605
      %v6616 = vpack.c.b16 %v6608, %v6607
      %v6617 = vpack.c.b16 %v6610, %v6609
      %v6619 = vsel %vm6192, %v6611, 0
      %v6622 = vsel %vm6192, %v6612, 0
      %v6625 = vsel %vm6192, %v6613, 0
      %v6628 = vsel %vm6192, %v6614, 0
      %v6631 = vsel %vm6192, %v6615, 0
      %v6634 = vsel %vm6192, %v6616, 0
      %v6637 = vsel %vm6192, %v6617, 0
      %v6640 = vsel %vm779, %v6567, 0
      %6642 = vmatpush.bf16.msra.mxu0 0
      %6643 = vmatpush.bf16.msra.mxu0 0
      %6644 = vmatpush.bf16.msra.mxu0 0
      %6645 = vmatpush.bf16.msra.mxu0 0
      %6646 = vmatpush.bf16.msra.mxu0 0
      %6647 = vmatpush.bf16.msra.mxu0 0
      %6648 = vmatpush.bf16.msra.mxu0 %v6640
      %6649 = vmatpush.bf16.msra.mxu0 %v6566
      %6650 = vmatmul.bf16.gmra.mxu0 %v6619
      %v6651 = vpop.f32.mrf.mxu0
      %v6652 = vadd.f32 0.0, %v6651
      %v6653 = vpop.f32.mrf.mxu0
      %v6654 = vadd.f32 0.0, %v6653
      %6655 = vmatmul.bf16.gmra.mxu0 %v6622
      %v6656 = vpop.f32.mrf.mxu0
      %v6657 = vadd.f32 0.0, %v6656
      %v6658 = vpop.f32.mrf.mxu0
      %v6659 = vadd.f32 0.0, %v6658
      %6660 = vmatmul.bf16.gmra.mxu0 %v6625
      %v6661 = vpop.f32.mrf.mxu0
      %v6662 = vadd.f32 0.0, %v6661
      %v6663 = vpop.f32.mrf.mxu0
      %v6664 = vadd.f32 0.0, %v6663
      %6665 = vmatmul.bf16.gmra.mxu0 %v6628
      %v6666 = vpop.f32.mrf.mxu0
      %v6667 = vadd.f32 0.0, %v6666
      %v6668 = vpop.f32.mrf.mxu0
      %v6669 = vadd.f32 0.0, %v6668
      %6670 = vmatmul.bf16.gmra.mxu0 %v6631
      %v6671 = vpop.f32.mrf.mxu0
      %v6672 = vadd.f32 0.0, %v6671
      %v6673 = vpop.f32.mrf.mxu0
      %v6674 = vadd.f32 0.0, %v6673
      %6675 = vmatmul.bf16.gmra.mxu0 %v6634
      %v6676 = vpop.f32.mrf.mxu0
      %v6677 = vadd.f32 0.0, %v6676
      %v6678 = vpop.f32.mrf.mxu0
      %v6679 = vadd.f32 0.0, %v6678
      %6680 = vmatmul.bf16.gmra.mxu0 %v6637
      %v6681 = vpop.f32.mrf.mxu0
      %v6682 = vadd.f32 0.0, %v6681
      %v6683 = vpop.f32.mrf.mxu0
      %v6684 = vadd.f32 0.0, %v6683
      %6685 = vdwg.mxu0
      %v6686 = vadd.f32 %v6330, %v6652
      %v6687 = vadd.f32 %v6332, %v6654
      %v6688 = vadd.f32 %v6335, %v6657
      %v6689 = vadd.f32 %v6337, %v6659
      %v6690 = vadd.f32 %v6340, %v6662
      %v6691 = vadd.f32 %v6342, %v6664
      %v6692 = vadd.f32 %v6345, %v6667
      %v6693 = vadd.f32 %v6347, %v6669
      %v6694 = vadd.f32 %v6350, %v6672
      %v6695 = vadd.f32 %v6352, %v6674
      %v6696 = vadd.f32 %v6355, %v6677
      %v6697 = vadd.f32 %v6357, %v6679
      %v6698 = vadd.f32 %v6360, %v6682
      %v6699 = vadd.f32 %v6362, %v6684
      %s6700 = scalar_lea.vmem %s5, 192
      %v6701 = vld [vmem:[%s6700] sm:$0xf]
      %v6702 = vld [vmem:[%s6700 + $0x4] sm:$0xf]
      %v6703 = vld [vmem:[%s6700 + $0x8] sm:$0xf]
      %v6704 = vld [vmem:[%s6700 + $0xc] sm:$0xf]
      %s6705 = scalar_lea.vmem %s5, 208
      %v6706 = vld [vmem:[%s6705] sm:$0xf]
      %v6707 = vld [vmem:[%s6705 + $0x4] sm:$0xf]
      %v6708 = vld [vmem:[%s6705 + $0x8] sm:$0xf]
      %v6709 = vld [vmem:[%s6705 + $0xc] sm:$0xf]
      %v6714 = vunpack.c.l.b16 %v6706
      %v6715 = vunpack.c.l.b16 %v6707
      %v6716 = vunpack.c.l.b16 %v6708
      %v6717 = vunpack.c.l.b16 %v6709
      %v6718 = vpack.c.b16 %v6715, %v6714
      %v6719 = vpack.c.b16 %v6717, %v6716
      %6722 = vmatpush.bf16.msra.mxu0 0
      %6723 = vmatpush.bf16.msra.mxu0 0
      %6724 = vmatpush.bf16.msra.mxu0 0
      %6725 = vmatpush.bf16.msra.mxu0 0
      %6726 = vmatpush.bf16.msra.mxu0 0
      %6727 = vmatpush.bf16.msra.mxu0 0
      %6728 = vmatpush.bf16.msra.mxu0 %v6719
      %6729 = vmatpush.bf16.msra.mxu0 %v6718
      %6730 = vmatmul.bf16.gmra.mxu0 %v6108
      %v6731 = vpop.f32.mrf.mxu0
      %v6732 = vadd.f32 0.0, %v6731
      %v6733 = vpop.f32.mrf.mxu0
      %v6734 = vadd.f32 0.0, %v6733
      %6735 = vmatmul.bf16.gmra.mxu0 %v6111
      %v6736 = vpop.f32.mrf.mxu0
      %v6737 = vadd.f32 0.0, %v6736
      %v6738 = vpop.f32.mrf.mxu0
      %6739 = vdwg.mxu0
      %v6744 = vunpack.c.l.b16 %v6701
      %v6745 = vunpack.c.l.b16 %v6702
      %v6746 = vunpack.c.l.b16 %v6703
      %v6747 = vunpack.c.l.b16 %v6704
      %v6748 = vpack.c.b16 %v6745, %v6744
      %v6749 = vpack.c.b16 %v6747, %v6746
      %6752 = vmatpush.bf16.msra.mxu0 0
      %6753 = vmatpush.bf16.msra.mxu0 0
      %6754 = vmatpush.bf16.msra.mxu0 0
      %6755 = vmatpush.bf16.msra.mxu0 0
      %6756 = vmatpush.bf16.msra.mxu0 0
      %6757 = vmatpush.bf16.msra.mxu0 0
      %6758 = vmatpush.bf16.msra.mxu0 %v6749
      %6759 = vmatpush.bf16.msra.mxu0 %v6748
      %6760 = vmatmul.bf16.gmra.mxu0 %v5915
      %v6761 = vpop.f32.mrf.mxu0
      %v6762 = vadd.f32 %v6732, %v6761
      %v6763 = vpop.f32.mrf.mxu0
      %v6764 = vadd.f32 %v6734, %v6763
      %6765 = vmatmul.bf16.gmra.mxu0 %v5918
      %v6766 = vpop.f32.mrf.mxu0
      %v6767 = vadd.f32 %v6737, %v6766
      %v6768 = vpop.f32.mrf.mxu0
      %6769 = vdwg.mxu0
      %s6770 = scalar_lea.vmem %s5, 224
      %v6771 = vld [vmem:[%s6770] sm:$0xf]
      %v6772 = vld [vmem:[%s6770 + $0x4] sm:$0xf]
      %v6773 = vld [vmem:[%s6770 + $0x8] sm:$0xf]
      %v6774 = vld [vmem:[%s6770 + $0xc] sm:$0xf]
      %v6779 = vunpack.c.l.b16 %v6771
      %v6780 = vunpack.c.l.b16 %v6772
      %v6781 = vunpack.c.l.b16 %v6773
      %v6782 = vunpack.c.l.b16 %v6774
      %v6783 = vpack.c.b16 %v6780, %v6779
      %v6784 = vpack.c.b16 %v6782, %v6781
      %6787 = vmatpush.bf16.msra.mxu0 0
      %6788 = vmatpush.bf16.msra.mxu0 0
      %6789 = vmatpush.bf16.msra.mxu0 0
      %6790 = vmatpush.bf16.msra.mxu0 0
      %6791 = vmatpush.bf16.msra.mxu0 0
      %6792 = vmatpush.bf16.msra.mxu0 0
      %6793 = vmatpush.bf16.msra.mxu0 %v6784
      %6794 = vmatpush.bf16.msra.mxu0 %v6783
      %6795 = vmatmul.bf16.gmra.mxu0 %v6534
      %v6796 = vpop.f32.mrf.mxu0
      %v6797 = vadd.f32 0.0, %v6796
      %v6798 = vpop.f32.mrf.mxu0
      %v6799 = vadd.f32 0.0, %v6798
      %6800 = vmatmul.bf16.gmra.mxu0 %v6537
      %v6801 = vpop.f32.mrf.mxu0
      %v6802 = vadd.f32 0.0, %v6801
      %v6803 = vpop.f32.mrf.mxu0
      %6804 = vdwg.mxu0
      %v6805 = vadd.f32 %v6762, %v6797
      %v6806 = vadd.f32 %v6764, %v6799
      %v6807 = vadd.f32 %v6767, %v6802
      %v6808 = vld [vmem:[#allocation3 + $0x4] sm:$0x8]
      %s6809 = scalar_lea.vmem %s5, 240
      %v6810 = vld [vmem:[%s6809] sm:$0xf]
      %v6811 = vld [vmem:[%s6809 + $0x4] sm:$0xf]
      %v6812 = vld [vmem:[%s6809 + $0x8] sm:$0xf]
      %v6813 = vld [vmem:[%s6809 + $0xc] sm:$0xf]
      %v6815 = vunpack.c.l.b16 %v6808
      %v6816 = vpack.c.b16 %v6448, %v6815
      %v6817 = vrot.slane %v6816, 3
      %v6818 = vrot.slane %v6503, 3
      %v6819 = vsel %vm2958, %v6817, %v6818
      %v6824 = vunpack.c.l.b16 %v6810
      %v6825 = vunpack.c.l.b16 %v6811
      %v6826 = vunpack.c.l.b16 %v6812
      %v6827 = vunpack.c.l.b16 %v6813
      %v6828 = vpack.c.b16 %v6825, %v6824
      %v6829 = vpack.c.b16 %v6827, %v6826
      %v6833 = vsel %vm3415, %v6819, 0
      %v6836 = vsel %vm3415, %v6818, 0
      %6838 = vmatpush.bf16.msra.mxu0 0
      %6839 = vmatpush.bf16.msra.mxu0 0
      %6840 = vmatpush.bf16.msra.mxu0 0
      %6841 = vmatpush.bf16.msra.mxu0 0
      %6842 = vmatpush.bf16.msra.mxu0 0
      %6843 = vmatpush.bf16.msra.mxu0 0
      %6844 = vmatpush.bf16.msra.mxu0 %v6829
      %6845 = vmatpush.bf16.msra.mxu0 %v6828
      %6846 = vmatmul.bf16.gmra.mxu0 %v6833
      %v6847 = vpop.f32.mrf.mxu0
      %v6848 = vadd.f32 0.0, %v6847
      %v6849 = vpop.f32.mrf.mxu0
      %v6850 = vadd.f32 0.0, %v6849
      %6851 = vmatmul.bf16.gmra.mxu0 %v6836
      %v6852 = vpop.f32.mrf.mxu0
      %v6853 = vadd.f32 0.0, %v6852
      %v6854 = vpop.f32.mrf.mxu0
      %6855 = vdwg.mxu0
      %v6856 = vadd.f32 %v6805, %v6848
      %v6857 = vadd.f32 %v6806, %v6850
      %v6858 = vadd.f32 %v6807, %v6853
      %v6859 = vadd.f32 %v6856, %v5943
      %v6860 = vadd.f32 %v6857, %v5943
      %v6861 = vadd.f32 %v6858, %v5943
      %v6862 = vmax.f32 %v6859, 0.0
      %v6863 = vmax.f32 %v6860, 0.0
      %v6864 = vmax.f32 %v6861, 0.0
      %v6865 = vpack.c.bf16 %v6863, %v6862
      %v6866 = vpack.c.bf16 %v6864, %v6864
      %s6867 = scalar_lea.vmem %s11, 168
      %v6868 = vld [vmem:[%s6867] sm:$0xf]
      %v6869 = vld [vmem:[%s6867 + $0x4] sm:$0xf]
      %v6870 = vld [vmem:[%s6867 + $0x8] sm:$0xf]
      %v6871 = vld [vmem:[%s6867 + $0xc] sm:$0xf]
      %v6872 = vld [vmem:[%s6867 + $0x10] sm:$0xf]
      %v6873 = vld [vmem:[%s6867 + $0x14] sm:$0xf]
      %v6874 = vld [vmem:[%s6867 + $0x18] sm:$0xf]
      %v6875 = vld [vmem:[%s6867 + $0x1c] sm:$0xf]
      %v6876 = vld [vmem:[%s6867 + $0x20] sm:$0xf]
      %v6877 = vld [vmem:[%s6867 + $0x24] sm:$0xf]
      %v6878 = vld [vmem:[%s6867 + $0x28] sm:$0xf]
      %v6879 = vld [vmem:[%s6867 + $0x2c] sm:$0xf]
      %v6880 = vld [vmem:[%s6867 + $0x30] sm:$0xf]
      %v6881 = vld [vmem:[%s6867 + $0x34] sm:$0xf]
      %v6896 = vunpack.c.l.b16 %v6868
      %v6897 = vunpack.c.l.b16 %v6869
      %v6898 = vunpack.c.l.b16 %v6870
      %v6899 = vunpack.c.l.b16 %v6871
      %v6900 = vunpack.c.l.b16 %v6872
      %v6901 = vunpack.c.l.b16 %v6873
      %v6902 = vunpack.c.l.b16 %v6874
      %v6903 = vunpack.c.l.b16 %v6875
      %v6904 = vunpack.c.l.b16 %v6876
      %v6905 = vunpack.c.l.b16 %v6877
      %v6906 = vunpack.c.l.b16 %v6878
      %v6907 = vunpack.c.l.b16 %v6879
      %v6908 = vunpack.c.l.b16 %v6880
      %v6909 = vunpack.c.l.b16 %v6881
      %v6910 = vpack.c.b16 %v6897, %v6896
      %v6911 = vpack.c.b16 %v6899, %v6898
      %v6912 = vpack.c.b16 %v6901, %v6900
      %v6913 = vpack.c.b16 %v6903, %v6902
      %v6914 = vpack.c.b16 %v6905, %v6904
      %v6915 = vpack.c.b16 %v6907, %v6906
      %v6916 = vpack.c.b16 %v6909, %v6908
      %v6918 = vsel %vm6192, %v6910, 0
      %v6921 = vsel %vm6192, %v6911, 0
      %v6924 = vsel %vm6192, %v6912, 0
      %v6927 = vsel %vm6192, %v6913, 0
      %v6930 = vsel %vm6192, %v6914, 0
      %v6933 = vsel %vm6192, %v6915, 0
      %v6936 = vsel %vm6192, %v6916, 0
      %v6939 = vsel %vm779, %v6866, 0
      %6941 = vmatpush.bf16.msra.mxu0 0
      %6942 = vmatpush.bf16.msra.mxu0 0
      %6943 = vmatpush.bf16.msra.mxu0 0
      %6944 = vmatpush.bf16.msra.mxu0 0
      %6945 = vmatpush.bf16.msra.mxu0 0
      %6946 = vmatpush.bf16.msra.mxu0 0
      %6947 = vmatpush.bf16.msra.mxu0 %v6939
      %6948 = vmatpush.bf16.msra.mxu0 %v6865
      %6949 = vmatmul.bf16.gmra.mxu0 %v6918
      %v6950 = vpop.f32.mrf.mxu0
      %v6951 = vadd.f32 0.0, %v6950
      %v6952 = vpop.f32.mrf.mxu0
      %v6953 = vadd.f32 0.0, %v6952
      %6954 = vmatmul.bf16.gmra.mxu0 %v6921
      %v6955 = vpop.f32.mrf.mxu0
      %v6956 = vadd.f32 0.0, %v6955
      %v6957 = vpop.f32.mrf.mxu0
      %v6958 = vadd.f32 0.0, %v6957
      %6959 = vmatmul.bf16.gmra.mxu0 %v6924
      %v6960 = vpop.f32.mrf.mxu0
      %v6961 = vadd.f32 0.0, %v6960
      %v6962 = vpop.f32.mrf.mxu0
      %v6963 = vadd.f32 0.0, %v6962
      %6964 = vmatmul.bf16.gmra.mxu0 %v6927
      %v6965 = vpop.f32.mrf.mxu0
      %v6966 = vadd.f32 0.0, %v6965
      %v6967 = vpop.f32.mrf.mxu0
      %v6968 = vadd.f32 0.0, %v6967
      %6969 = vmatmul.bf16.gmra.mxu0 %v6930
      %v6970 = vpop.f32.mrf.mxu0
      %v6971 = vadd.f32 0.0, %v6970
      %v6972 = vpop.f32.mrf.mxu0
      %v6973 = vadd.f32 0.0, %v6972
      %6974 = vmatmul.bf16.gmra.mxu0 %v6933
      %v6975 = vpop.f32.mrf.mxu0
      %v6976 = vadd.f32 0.0, %v6975
      %v6977 = vpop.f32.mrf.mxu0
      %v6978 = vadd.f32 0.0, %v6977
      %6979 = vmatmul.bf16.gmra.mxu0 %v6936
      %v6980 = vpop.f32.mrf.mxu0
      %v6981 = vadd.f32 0.0, %v6980
      %v6982 = vpop.f32.mrf.mxu0
      %v6983 = vadd.f32 0.0, %v6982
      %6984 = vdwg.mxu0
      %v6985 = vadd.f32 %v6686, %v6951
      %v6986 = vadd.f32 %v6687, %v6953
      %v6987 = vadd.f32 %v6688, %v6956
      %v6988 = vadd.f32 %v6689, %v6958
      %v6989 = vadd.f32 %v6690, %v6961
      %v6990 = vadd.f32 %v6691, %v6963
      %v6991 = vadd.f32 %v6692, %v6966
      %v6992 = vadd.f32 %v6693, %v6968
      %v6993 = vadd.f32 %v6694, %v6971
      %v6994 = vadd.f32 %v6695, %v6973
      %v6995 = vadd.f32 %v6696, %v6976
      %v6996 = vadd.f32 %v6697, %v6978
      %v6997 = vadd.f32 %v6698, %v6981
      %v6998 = vadd.f32 %v6699, %v6983
      %v6999 = vpack.c.bf16 %v6985, %v6985
      %v7000 = vpack.c.bf16 %v6986, %v6986
      %v7001 = vpack.c.bf16 %v6987, %v6987
      %v7002 = vpack.c.bf16 %v6988, %v6988
      %v7003 = vpack.c.bf16 %v6989, %v6989
      %v7004 = vpack.c.bf16 %v6990, %v6990
      %v7005 = vpack.c.bf16 %v6991, %v6991
      %v7006 = vpack.c.bf16 %v6992, %v6992
      %v7007 = vpack.c.bf16 %v6993, %v6993
      %v7008 = vpack.c.bf16 %v6994, %v6994
      %v7009 = vpack.c.bf16 %v6995, %v6995
      %v7010 = vpack.c.bf16 %v6996, %v6996
      %v7011 = vpack.c.bf16 %v6997, %v6997
      %v7012 = vpack.c.bf16 %v6998, %v6998
      %7013 = vst.msk [vmem:[#allocation4] sm:$0xf] %vm4486, %v6999
      %7014 = vst.msk [vmem:[#allocation4 + $0x4] sm:$0xf] %vm4486, %v7000
      %7015 = vst.msk [vmem:[#allocation4 + $0x8] sm:$0xf] %vm4486, %v7001
      %7016 = vst.msk [vmem:[#allocation4 + $0xc] sm:$0xf] %vm4486, %v7002
      %7017 = vst.msk [vmem:[#allocation4 + $0x10] sm:$0xf] %vm4486, %v7003
      %7018 = vst.msk [vmem:[#allocation4 + $0x14] sm:$0xf] %vm4486, %v7004
      %7019 = vst.msk [vmem:[#allocation4 + $0x18] sm:$0xf] %vm4486, %v7005
      %7020 = vst.msk [vmem:[#allocation4 + $0x1c] sm:$0xf] %vm4486, %v7006
      %7021 = vst.msk [vmem:[#allocation4 + $0x20] sm:$0xf] %vm4486, %v7007
      %7022 = vst.msk [vmem:[#allocation4 + $0x24] sm:$0xf] %vm4486, %v7008
      %7023 = vst.msk [vmem:[#allocation4 + $0x28] sm:$0xf] %vm4486, %v7009
      %7024 = vst.msk [vmem:[#allocation4 + $0x2c] sm:$0xf] %vm4486, %v7010
      %7025 = vst.msk [vmem:[#allocation4 + $0x30] sm:$0xf] %vm4486, %v7011
      %7026 = vst.msk [vmem:[#allocation4 + $0x34] sm:$0xf] %vm4486, %v7012
      %v7027 = vld [vmem:[#allocation4] sm:$0xf]
      %v7028 = vld [vmem:[#allocation4 + $0x4] sm:$0xf]
      %v7029 = vld [vmem:[#allocation4 + $0x8] sm:$0xf]
      %v7030 = vld [vmem:[#allocation4 + $0xc] sm:$0xf]
      %v7031 = vld [vmem:[#allocation4 + $0x10] sm:$0xf]
      %v7032 = vld [vmem:[#allocation4 + $0x14] sm:$0xf]
      %v7033 = vld [vmem:[#allocation4 + $0x18] sm:$0xf]
      %v7034 = vld [vmem:[#allocation4 + $0x1c] sm:$0xf]
      %v7035 = vld [vmem:[#allocation4 + $0x20] sm:$0xf]
      %v7036 = vld [vmem:[#allocation4 + $0x24] sm:$0xf]
      %v7037 = vld [vmem:[%s7] sm:$0xf]
      %v7038 = vld [vmem:[%s7 + $0x4] sm:$0xf]
      %v7039 = vld [vmem:[#allocation4 + $0x28] sm:$0x1]
      %s7040 = scalar_lea.vmem %s7, 8
      %v7041 = vld [vmem:[%s7040] sm:$0xf]
      %v7042 = vld [vmem:[%s7040 + $0x4] sm:$0xf]
      %v7054 = vunpack.c.l.b16 %v7027
      %v7055 = vunpack.c.l.b16 %v7028
      %v7056 = vunpack.c.l.b16 %v7029
      %v7057 = vunpack.c.l.b16 %v7030
      %v7058 = vunpack.c.l.b16 %v7031
      %v7059 = vunpack.c.l.b16 %v7032
      %v7060 = vunpack.c.l.b16 %v7033
      %v7061 = vunpack.c.l.b16 %v7034
      %v7062 = vunpack.c.l.b16 %v7035
      %v7063 = vunpack.c.l.b16 %v7036
      %v7064 = vunpack.c.l.b16 %v7039
      %v7065 = vpack.c.b16 %v7055, %v7054
      %v7066 = vpack.c.b16 %v7057, %v7056
      %v7067 = vpack.c.b16 %v7059, %v7058
      %v7068 = vpack.c.b16 %v7061, %v7060
      %v7069 = vpack.c.b16 %v7063, %v7062
      %v7070 = vpack.c.b16 %v7064, %v7064
      %v7072 = vshrl.u32 %v7065, 16
      %v7074 = vshll.u32 %v7065, 16
      %v7076 = vrot.slane %v7074, 1
      %v7077 = vor.u32 %v7072, %v7076
      %v7079 = vshll.u32 %v7066, 16
      %v7081 = vrot.slane %v7079, 1
      %v7082 = vsel %vm575, %v7077, %v7081
      %v7083 = vshrl.u32 %v7066, 16
      %v7085 = vor.u32 %v7083, %v7081
      %v7087 = vshll.u32 %v7067, 16
      %v7089 = vrot.slane %v7087, 1
      %v7090 = vsel %vm575, %v7085, %v7089
      %v7091 = vshrl.u32 %v7067, 16
      %v7093 = vor.u32 %v7091, %v7089
      %v7095 = vshll.u32 %v7068, 16
      %v7097 = vrot.slane %v7095, 1
      %v7098 = vsel %vm575, %v7093, %v7097
      %v7099 = vshrl.u32 %v7068, 16
      %v7101 = vor.u32 %v7099, %v7097
      %v7103 = vshll.u32 %v7069, 16
      %v7105 = vrot.slane %v7103, 1
      %v7106 = vsel %vm575, %v7101, %v7105
      %v7107 = vshrl.u32 %v7069, 16
      %v7109 = vor.u32 %v7107, %v7105
      %v7111 = vshll.u32 %v7070, 16
      %v7113 = vrot.slane %v7111, 1
      %v7114 = vsel %vm575, %v7109, %v7113
      %v7117 = vunpack.c.l.b16 %v7041
      %v7118 = vunpack.c.l.b16 %v7042
      %v7119 = vpack.c.b16 %v7118, %v7117
      %v7122 = vsel %vm4595, %v7082, 0
      %v7125 = vsel %vm4595, %v7090, 0
      %v7128 = vsel %vm4595, %v7098, 0
      %v7131 = vsel %vm4595, %v7106, 0
      %v7134 = vsel %vm4595, %v7114, 0
      %7136 = vmatpush.bf16.msra.mxu0 0
      %7137 = vmatpush.bf16.msra.mxu0 0
      %7138 = vmatpush.bf16.msra.mxu0 0
      %7139 = vmatpush.bf16.msra.mxu0 0
      %7140 = vmatpush.bf16.msra.mxu0 0
      %7141 = vmatpush.bf16.msra.mxu0 0
      %7142 = vmatpush.bf16.msra.mxu0 0
      %7143 = vmatpush.bf16.msra.mxu0 %v7119
      %7144 = vmatmul.bf16.gmra.mxu0 %v7122
      %v7145 = vpop.f32.mrf.mxu0
      %v7146 = vadd.f32 0.0, %v7145
      %v7147 = vpop.f32.mrf.mxu0
      %v7148 = vadd.f32 0.0, %v7147
      %7149 = vmatmul.bf16.gmra.mxu0 %v7125
      %v7150 = vpop.f32.mrf.mxu0
      %v7151 = vadd.f32 0.0, %v7150
      %v7152 = vpop.f32.mrf.mxu0
      %v7153 = vadd.f32 0.0, %v7152
      %7154 = vmatmul.bf16.gmra.mxu0 %v7128
      %v7155 = vpop.f32.mrf.mxu0
      %v7156 = vadd.f32 0.0, %v7155
      %v7157 = vpop.f32.mrf.mxu0
      %v7158 = vadd.f32 0.0, %v7157
      %7159 = vmatmul.bf16.gmra.mxu0 %v7131
      %v7160 = vpop.f32.mrf.mxu0
      %v7161 = vadd.f32 0.0, %v7160
      %v7162 = vpop.f32.mrf.mxu0
      %v7163 = vadd.f32 0.0, %v7162
      %7164 = vmatmul.bf16.gmra.mxu0 %v7134
      %v7165 = vpop.f32.mrf.mxu0
      %v7166 = vadd.f32 0.0, %v7165
      %v7167 = vpop.f32.mrf.mxu0
      %v7168 = vadd.f32 0.0, %v7167
      %7169 = vdwg.mxu0
      %v7172 = vunpack.c.l.b16 %v7037
      %v7173 = vunpack.c.l.b16 %v7038
      %v7174 = vpack.c.b16 %v7173, %v7172
      %v7176 = vsel %vm4595, %v7065, 0
      %v7178 = vsel %vm4595, %v7066, 0
      %v7180 = vsel %vm4595, %v7067, 0
      %v7182 = vsel %vm4595, %v7068, 0
      %v7184 = vsel %vm4595, %v7069, 0
      %7186 = vmatpush.bf16.msra.mxu0 0
      %7187 = vmatpush.bf16.msra.mxu0 0
      %7188 = vmatpush.bf16.msra.mxu0 0
      %7189 = vmatpush.bf16.msra.mxu0 0
      %7190 = vmatpush.bf16.msra.mxu0 0
      %7191 = vmatpush.bf16.msra.mxu0 0
      %7192 = vmatpush.bf16.msra.mxu0 0
      %7193 = vmatpush.bf16.msra.mxu0 %v7174
      %7194 = vmatmul.bf16.gmra.mxu0 %v7176
      %v7195 = vpop.f32.mrf.mxu0
      %v7196 = vadd.f32 %v7146, %v7195
      %v7197 = vpop.f32.mrf.mxu0
      %v7198 = vadd.f32 %v7148, %v7197
      %7199 = vmatmul.bf16.gmra.mxu0 %v7178
      %v7200 = vpop.f32.mrf.mxu0
      %v7201 = vadd.f32 %v7151, %v7200
      %v7202 = vpop.f32.mrf.mxu0
      %v7203 = vadd.f32 %v7153, %v7202
      %7204 = vmatmul.bf16.gmra.mxu0 %v7180
      %v7205 = vpop.f32.mrf.mxu0
      %v7206 = vadd.f32 %v7156, %v7205
      %v7207 = vpop.f32.mrf.mxu0
      %v7208 = vadd.f32 %v7158, %v7207
      %7209 = vmatmul.bf16.gmra.mxu0 %v7182
      %v7210 = vpop.f32.mrf.mxu0
      %v7211 = vadd.f32 %v7161, %v7210
      %v7212 = vpop.f32.mrf.mxu0
      %v7213 = vadd.f32 %v7163, %v7212
      %7214 = vmatmul.bf16.gmra.mxu0 %v7184
      %v7215 = vpop.f32.mrf.mxu0
      %v7216 = vadd.f32 %v7166, %v7215
      %v7217 = vpop.f32.mrf.mxu0
      %v7218 = vadd.f32 %v7168, %v7217
      %7219 = vdwg.mxu0
      %v7220 = vld [vmem:[#allocation4 + $0x4] sm:$0xe]
      %v7221 = vld [vmem:[#allocation4 + $0x8] sm:$0xf]
      %v7222 = vld [vmem:[#allocation4 + $0xc] sm:$0xf]
      %v7223 = vld [vmem:[#allocation4 + $0x10] sm:$0xf]
      %v7224 = vld [vmem:[#allocation4 + $0x14] sm:$0xf]
      %v7225 = vld [vmem:[#allocation4 + $0x18] sm:$0xf]
      %v7226 = vld [vmem:[#allocation4 + $0x1c] sm:$0xf]
      %v7227 = vld [vmem:[#allocation4 + $0x20] sm:$0xf]
      %v7228 = vld [vmem:[#allocation4 + $0x24] sm:$0xf]
      %v7229 = vld [vmem:[#allocation4 + $0x28] sm:$0xf]
      %v7230 = vld [vmem:[#allocation4 + $0x2c] sm:$0x1]
      %s7231 = scalar_lea.vmem %s7, 16
      %v7232 = vld [vmem:[%s7231] sm:$0xf]
      %v7233 = vld [vmem:[%s7231 + $0x4] sm:$0xf]
      %v7245 = vunpack.c.l.b16 %v7220
      %v7246 = vunpack.c.l.b16 %v7221
      %v7247 = vunpack.c.l.b16 %v7222
      %v7248 = vunpack.c.l.b16 %v7223
      %v7249 = vunpack.c.l.b16 %v7224
      %v7250 = vunpack.c.l.b16 %v7225
      %v7251 = vunpack.c.l.b16 %v7226
      %v7252 = vunpack.c.l.b16 %v7227
      %v7253 = vunpack.c.l.b16 %v7228
      %v7254 = vunpack.c.l.b16 %v7229
      %v7255 = vunpack.c.l.b16 %v7230
      %v7256 = vpack.c.b16 %v7246, %v7245
      %v7257 = vpack.c.b16 %v7248, %v7247
      %v7258 = vpack.c.b16 %v7250, %v7249
      %v7259 = vpack.c.b16 %v7252, %v7251
      %v7260 = vpack.c.b16 %v7254, %v7253
      %v7261 = vpack.c.b16 %v7255, %v7255
      %v7262 = vrot.slane %v7256, 1
      %v7263 = vrot.slane %v7257, 1
      %v7264 = vsel %vm1026, %v7262, %v7263
      %v7265 = vrot.slane %v7258, 1
      %v7266 = vsel %vm1026, %v7263, %v7265
      %v7267 = vrot.slane %v7259, 1
      %v7268 = vsel %vm1026, %v7265, %v7267
      %v7269 = vrot.slane %v7260, 1
      %v7270 = vsel %vm1026, %v7267, %v7269
      %v7271 = vrot.slane %v7261, 1
      %v7272 = vsel %vm1026, %v7269, %v7271
      %v7275 = vunpack.c.l.b16 %v7232
      %v7276 = vunpack.c.l.b16 %v7233
      %v7277 = vpack.c.b16 %v7276, %v7275
      %v7280 = vsel %vm4595, %v7264, 0
      %v7283 = vsel %vm4595, %v7266, 0
      %v7286 = vsel %vm4595, %v7268, 0
      %v7289 = vsel %vm4595, %v7270, 0
      %v7292 = vsel %vm4595, %v7272, 0
      %7294 = vmatpush.bf16.msra.mxu0 0
      %7295 = vmatpush.bf16.msra.mxu0 0
      %7296 = vmatpush.bf16.msra.mxu0 0
      %7297 = vmatpush.bf16.msra.mxu0 0
      %7298 = vmatpush.bf16.msra.mxu0 0
      %7299 = vmatpush.bf16.msra.mxu0 0
      %7300 = vmatpush.bf16.msra.mxu0 0
      %7301 = vmatpush.bf16.msra.mxu0 %v7277
      %7302 = vmatmul.bf16.gmra.mxu0 %v7280
      %v7303 = vpop.f32.mrf.mxu0
      %v7304 = vadd.f32 0.0, %v7303
      %v7305 = vpop.f32.mrf.mxu0
      %v7306 = vadd.f32 0.0, %v7305
      %7307 = vmatmul.bf16.gmra.mxu0 %v7283
      %v7308 = vpop.f32.mrf.mxu0
      %v7309 = vadd.f32 0.0, %v7308
      %v7310 = vpop.f32.mrf.mxu0
      %v7311 = vadd.f32 0.0, %v7310
      %7312 = vmatmul.bf16.gmra.mxu0 %v7286
      %v7313 = vpop.f32.mrf.mxu0
      %v7314 = vadd.f32 0.0, %v7313
      %v7315 = vpop.f32.mrf.mxu0
      %v7316 = vadd.f32 0.0, %v7315
      %7317 = vmatmul.bf16.gmra.mxu0 %v7289
      %v7318 = vpop.f32.mrf.mxu0
      %v7319 = vadd.f32 0.0, %v7318
      %v7320 = vpop.f32.mrf.mxu0
      %v7321 = vadd.f32 0.0, %v7320
      %7322 = vmatmul.bf16.gmra.mxu0 %v7292
      %v7323 = vpop.f32.mrf.mxu0
      %v7324 = vadd.f32 0.0, %v7323
      %v7325 = vpop.f32.mrf.mxu0
      %v7326 = vadd.f32 0.0, %v7325
      %7327 = vdwg.mxu0
      %v7328 = vadd.f32 %v7196, %v7304
      %v7329 = vadd.f32 %v7198, %v7306
      %v7330 = vadd.f32 %v7201, %v7309
      %v7331 = vadd.f32 %v7203, %v7311
      %v7332 = vadd.f32 %v7206, %v7314
      %v7333 = vadd.f32 %v7208, %v7316
      %v7334 = vadd.f32 %v7211, %v7319
      %v7335 = vadd.f32 %v7213, %v7321
      %v7336 = vadd.f32 %v7216, %v7324
      %v7337 = vadd.f32 %v7218, %v7326
      %v7338 = vld [vmem:[#allocation4 + $0x2c] sm:$0x3]
      %s7339 = scalar_lea.vmem %s7, 24
      %v7340 = vld [vmem:[%s7339] sm:$0xf]
      %v7341 = vld [vmem:[%s7339 + $0x4] sm:$0xf]
      %v7343 = vunpack.c.l.b16 %v7338
      %v7344 = vpack.c.b16 %v7343, %v7343
      %v7346 = vshrl.u32 %v7256, 16
      %v7348 = vrot.slane %v7346, 1
      %v7349 = vshll.u32 %v7256, 16
      %v7351 = vrot.slane %v7349, 2
      %v7352 = vor.u32 %v7348, %v7351
      %v7354 = vshrl.u32 %v7257, 16
      %v7356 = vrot.slane %v7354, 1
      %v7357 = vshll.u32 %v7257, 16
      %v7359 = vrot.slane %v7357, 2
      %v7360 = vor.u32 %v7356, %v7359
      %v7361 = vsel %vm1623, %v7352, %v7360
      %v7363 = vshrl.u32 %v7258, 16
      %v7365 = vrot.slane %v7363, 1
      %v7366 = vshll.u32 %v7258, 16
      %v7368 = vrot.slane %v7366, 2
      %v7369 = vor.u32 %v7365, %v7368
      %v7370 = vsel %vm1623, %v7360, %v7369
      %v7372 = vshrl.u32 %v7259, 16
      %v7374 = vrot.slane %v7372, 1
      %v7375 = vshll.u32 %v7259, 16
      %v7377 = vrot.slane %v7375, 2
      %v7378 = vor.u32 %v7374, %v7377
      %v7379 = vsel %vm1623, %v7369, %v7378
      %v7381 = vshrl.u32 %v7260, 16
      %v7383 = vrot.slane %v7381, 1
      %v7384 = vshll.u32 %v7260, 16
      %v7386 = vrot.slane %v7384, 2
      %v7387 = vor.u32 %v7383, %v7386
      %v7388 = vsel %vm1623, %v7378, %v7387
      %v7390 = vshrl.u32 %v7344, 16
      %v7392 = vrot.slane %v7390, 1
      %v7393 = vshll.u32 %v7344, 16
      %v7395 = vrot.slane %v7393, 2
      %v7396 = vor.u32 %v7392, %v7395
      %v7397 = vsel %vm1623, %v7387, %v7396
      %v7400 = vunpack.c.l.b16 %v7340
      %v7401 = vunpack.c.l.b16 %v7341
      %v7402 = vpack.c.b16 %v7401, %v7400
      %v7405 = vsel %vm4595, %v7361, 0
      %v7408 = vsel %vm4595, %v7370, 0
      %v7411 = vsel %vm4595, %v7379, 0
      %v7414 = vsel %vm4595, %v7388, 0
      %v7417 = vsel %vm4595, %v7397, 0
      %7419 = vmatpush.bf16.msra.mxu0 0
      %7420 = vmatpush.bf16.msra.mxu0 0
      %7421 = vmatpush.bf16.msra.mxu0 0
      %7422 = vmatpush.bf16.msra.mxu0 0
      %7423 = vmatpush.bf16.msra.mxu0 0
      %7424 = vmatpush.bf16.msra.mxu0 0
      %7425 = vmatpush.bf16.msra.mxu0 0
      %7426 = vmatpush.bf16.msra.mxu0 %v7402
      %7427 = vmatmul.bf16.gmra.mxu0 %v7405
      %v7428 = vpop.f32.mrf.mxu0
      %v7429 = vadd.f32 0.0, %v7428
      %v7430 = vpop.f32.mrf.mxu0
      %v7431 = vadd.f32 0.0, %v7430
      %7432 = vmatmul.bf16.gmra.mxu0 %v7408
      %v7433 = vpop.f32.mrf.mxu0
      %v7434 = vadd.f32 0.0, %v7433
      %v7435 = vpop.f32.mrf.mxu0
      %v7436 = vadd.f32 0.0, %v7435
      %7437 = vmatmul.bf16.gmra.mxu0 %v7411
      %v7438 = vpop.f32.mrf.mxu0
      %v7439 = vadd.f32 0.0, %v7438
      %v7440 = vpop.f32.mrf.mxu0
      %v7441 = vadd.f32 0.0, %v7440
      %7442 = vmatmul.bf16.gmra.mxu0 %v7414
      %v7443 = vpop.f32.mrf.mxu0
      %v7444 = vadd.f32 0.0, %v7443
      %v7445 = vpop.f32.mrf.mxu0
      %v7446 = vadd.f32 0.0, %v7445
      %7447 = vmatmul.bf16.gmra.mxu0 %v7417
      %v7448 = vpop.f32.mrf.mxu0
      %v7449 = vadd.f32 0.0, %v7448
      %v7450 = vpop.f32.mrf.mxu0
      %v7451 = vadd.f32 0.0, %v7450
      %7452 = vdwg.mxu0
      %v7453 = vadd.f32 %v7328, %v7429
      %v7454 = vadd.f32 %v7329, %v7431
      %v7455 = vadd.f32 %v7330, %v7434
      %v7456 = vadd.f32 %v7331, %v7436
      %v7457 = vadd.f32 %v7332, %v7439
      %v7458 = vadd.f32 %v7333, %v7441
      %v7459 = vadd.f32 %v7334, %v7444
      %v7460 = vadd.f32 %v7335, %v7446
      %v7461 = vadd.f32 %v7336, %v7449
      %v7462 = vadd.f32 %v7337, %v7451
      %v7463 = vld [vmem:[%s8] sm:$0x1]
      %v7465 = vperm.slane %v7463, 0
      %v7467 = vadd.f32 %v7453, %v7465
      %v7468 = vadd.f32 %v7454, %v7465
      %v7469 = vadd.f32 %v7455, %v7465
      %v7470 = vadd.f32 %v7456, %v7465
      %v7471 = vadd.f32 %v7457, %v7465
      %v7472 = vadd.f32 %v7458, %v7465
      %v7473 = vadd.f32 %v7459, %v7465
      %v7474 = vadd.f32 %v7460, %v7465
      %v7475 = vadd.f32 %v7461, %v7465
      %v7476 = vadd.f32 %v7462, %v7465
      %v7477 = vpack.c.bf16 %v7468, %v7467
      %v7478 = vpack.c.bf16 %v7470, %v7469
      %v7479 = vpack.c.bf16 %v7472, %v7471
      %v7480 = vpack.c.bf16 %v7474, %v7473
      %v7481 = vpack.c.bf16 %v7476, %v7475
      %v7482 = vld [vmem:[%s12] sm:$0xf]
      %v7483 = vld [vmem:[%s12 + $0x4] sm:$0xf]
      %v7484 = vld [vmem:[%s12 + $0x8] sm:$0xf]
      %v7485 = vld [vmem:[%s12 + $0xc] sm:$0xf]
      %v7486 = vld [vmem:[%s12 + $0x10] sm:$0xf]
      %v7487 = vld [vmem:[%s12 + $0x14] sm:$0xf]
      %v7488 = vld [vmem:[%s12 + $0x18] sm:$0xf]
      %v7489 = vld [vmem:[%s12 + $0x1c] sm:$0xf]
      %v7490 = vld [vmem:[%s12 + $0x20] sm:$0xf]
      %v7491 = vld [vmem:[%s12 + $0x24] sm:$0xf]
      %v7492 = vld [vmem:[%s12 + $0x28] sm:$0xf]
      %v7493 = vld [vmem:[%s12 + $0x2c] sm:$0xf]
      %v7494 = vld [vmem:[%s12 + $0x30] sm:$0xf]
      %v7495 = vld [vmem:[%s12 + $0x34] sm:$0xf]
      %v7496 = vld [vmem:[%s12 + $0x38] sm:$0xf]
      %v7497 = vld [vmem:[%s12 + $0x3c] sm:$0xf]
      %v7498 = vld [vmem:[%s12 + $0x40] sm:$0xf]
      %v7499 = vld [vmem:[%s12 + $0x44] sm:$0xf]
      %v7500 = vld [vmem:[%s12 + $0x48] sm:$0xf]
      %v7501 = vld [vmem:[%s12 + $0x4c] sm:$0xf]
      %v7502 = vld [vmem:[%s12 + $0x50] sm:$0xf]
      %v7503 = vld [vmem:[%s12 + $0x54] sm:$0xf]
      %v7504 = vld [vmem:[%s12 + $0x58] sm:$0xf]
      %v7505 = vld [vmem:[%s12 + $0x5c] sm:$0xf]
      %v7506 = vld [vmem:[%s12 + $0x60] sm:$0xf]
      %v7507 = vld [vmem:[%s12 + $0x64] sm:$0xf]
      %v7508 = vld [vmem:[%s12 + $0x68] sm:$0xf]
      %v7509 = vld [vmem:[%s12 + $0x6c] sm:$0xf]
      %v7510 = vld [vmem:[%s12 + $0x70] sm:$0xf]
      %v7511 = vld [vmem:[%s12 + $0x74] sm:$0xf]
      %v7512 = vld [vmem:[%s12 + $0x78] sm:$0xf]
      %v7513 = vld [vmem:[%s12 + $0x7c] sm:$0xf]
      %s7514 = scalar_lea.vmem %s7, 32
      %v7515 = vld [vmem:[%s7514] sm:$0xf]
      %v7516 = vld [vmem:[%s7514 + $0x4] sm:$0xf]
      %v7517 = vld [vmem:[#allocation4] sm:$0xe]
      %s7518 = scalar_lea.vmem %s7, 40
      %v7519 = vld [vmem:[%s7518] sm:$0xf]
      %v7520 = vld [vmem:[%s7518 + $0x4] sm:$0xf]
      %v7522 = vunpack.c.l.b16 %v7517
      %v7523 = vpack.c.b16 %v7055, %v7522
      %v7524 = vrot.slane %v7523, 1
      %v7525 = vrot.slane %v7066, 1
      %v7526 = vsel %vm1026, %v7524, %v7525
      %v7527 = vrot.slane %v7067, 1
      %v7528 = vsel %vm1026, %v7525, %v7527
      %v7529 = vrot.slane %v7068, 1
      %v7530 = vsel %vm1026, %v7527, %v7529
      %v7531 = vrot.slane %v7069, 1
      %v7532 = vsel %vm1026, %v7529, %v7531
      %v7533 = vrot.slane %v7070, 1
      %v7534 = vsel %vm1026, %v7531, %v7533
      %v7537 = vunpack.c.l.b16 %v7519
      %v7538 = vunpack.c.l.b16 %v7520
      %v7539 = vpack.c.b16 %v7538, %v7537
      %v7542 = vsel %vm4595, %v7526, 0
      %v7545 = vsel %vm4595, %v7528, 0
      %v7548 = vsel %vm4595, %v7530, 0
      %v7551 = vsel %vm4595, %v7532, 0
      %v7554 = vsel %vm4595, %v7534, 0
      %7556 = vmatpush.bf16.msra.mxu0 0
      %7557 = vmatpush.bf16.msra.mxu0 0
      %7558 = vmatpush.bf16.msra.mxu0 0
      %7559 = vmatpush.bf16.msra.mxu0 0
      %7560 = vmatpush.bf16.msra.mxu0 0
      %7561 = vmatpush.bf16.msra.mxu0 0
      %7562 = vmatpush.bf16.msra.mxu0 0
      %7563 = vmatpush.bf16.msra.mxu0 %v7539
      %7564 = vmatmul.bf16.gmra.mxu0 %v7542
      %v7565 = vpop.f32.mrf.mxu0
      %v7566 = vadd.f32 0.0, %v7565
      %v7567 = vpop.f32.mrf.mxu0
      %v7568 = vadd.f32 0.0, %v7567
      %7569 = vmatmul.bf16.gmra.mxu0 %v7545
      %v7570 = vpop.f32.mrf.mxu0
      %v7571 = vadd.f32 0.0, %v7570
      %v7572 = vpop.f32.mrf.mxu0
      %v7573 = vadd.f32 0.0, %v7572
      %7574 = vmatmul.bf16.gmra.mxu0 %v7548
      %v7575 = vpop.f32.mrf.mxu0
      %v7576 = vadd.f32 0.0, %v7575
      %v7577 = vpop.f32.mrf.mxu0
      %v7578 = vadd.f32 0.0, %v7577
      %7579 = vmatmul.bf16.gmra.mxu0 %v7551
      %v7580 = vpop.f32.mrf.mxu0
      %v7581 = vadd.f32 0.0, %v7580
      %v7582 = vpop.f32.mrf.mxu0
      %v7583 = vadd.f32 0.0, %v7582
      %7584 = vmatmul.bf16.gmra.mxu0 %v7554
      %v7585 = vpop.f32.mrf.mxu0
      %v7586 = vadd.f32 0.0, %v7585
      %v7587 = vpop.f32.mrf.mxu0
      %v7588 = vadd.f32 0.0, %v7587
      %7589 = vdwg.mxu0
      %v7592 = vunpack.c.l.b16 %v7515
      %v7593 = vunpack.c.l.b16 %v7516
      %v7594 = vpack.c.b16 %v7593, %v7592
      %7596 = vmatpush.bf16.msra.mxu0 0
      %7597 = vmatpush.bf16.msra.mxu0 0
      %7598 = vmatpush.bf16.msra.mxu0 0
      %7599 = vmatpush.bf16.msra.mxu0 0
      %7600 = vmatpush.bf16.msra.mxu0 0
      %7601 = vmatpush.bf16.msra.mxu0 0
      %7602 = vmatpush.bf16.msra.mxu0 0
      %7603 = vmatpush.bf16.msra.mxu0 %v7594
      %7604 = vmatmul.bf16.gmra.mxu0 %v7122
      %v7605 = vpop.f32.mrf.mxu0
      %v7606 = vadd.f32 %v7566, %v7605
      %v7607 = vpop.f32.mrf.mxu0
      %v7608 = vadd.f32 %v7568, %v7607
      %7609 = vmatmul.bf16.gmra.mxu0 %v7125
      %v7610 = vpop.f32.mrf.mxu0
      %v7611 = vadd.f32 %v7571, %v7610
      %v7612 = vpop.f32.mrf.mxu0
      %v7613 = vadd.f32 %v7573, %v7612
      %7614 = vmatmul.bf16.gmra.mxu0 %v7128
      %v7615 = vpop.f32.mrf.mxu0
      %v7616 = vadd.f32 %v7576, %v7615
      %v7617 = vpop.f32.mrf.mxu0
      %v7618 = vadd.f32 %v7578, %v7617
      %7619 = vmatmul.bf16.gmra.mxu0 %v7131
      %v7620 = vpop.f32.mrf.mxu0
      %v7621 = vadd.f32 %v7581, %v7620
      %v7622 = vpop.f32.mrf.mxu0
      %v7623 = vadd.f32 %v7583, %v7622
      %7624 = vmatmul.bf16.gmra.mxu0 %v7134
      %v7625 = vpop.f32.mrf.mxu0
      %v7626 = vadd.f32 %v7586, %v7625
      %v7627 = vpop.f32.mrf.mxu0
      %v7628 = vadd.f32 %v7588, %v7627
      %7629 = vdwg.mxu0
      %s7630 = scalar_lea.vmem %s7, 48
      %v7631 = vld [vmem:[%s7630] sm:$0xf]
      %v7632 = vld [vmem:[%s7630 + $0x4] sm:$0xf]
      %v7635 = vunpack.c.l.b16 %v7631
      %v7636 = vunpack.c.l.b16 %v7632
      %v7637 = vpack.c.b16 %v7636, %v7635
      %7639 = vmatpush.bf16.msra.mxu0 0
      %7640 = vmatpush.bf16.msra.mxu0 0
      %7641 = vmatpush.bf16.msra.mxu0 0
      %7642 = vmatpush.bf16.msra.mxu0 0
      %7643 = vmatpush.bf16.msra.mxu0 0
      %7644 = vmatpush.bf16.msra.mxu0 0
      %7645 = vmatpush.bf16.msra.mxu0 0
      %7646 = vmatpush.bf16.msra.mxu0 %v7637
      %7647 = vmatmul.bf16.gmra.mxu0 %v7405
      %v7648 = vpop.f32.mrf.mxu0
      %v7649 = vadd.f32 0.0, %v7648
      %v7650 = vpop.f32.mrf.mxu0
      %v7651 = vadd.f32 0.0, %v7650
      %7652 = vmatmul.bf16.gmra.mxu0 %v7408
      %v7653 = vpop.f32.mrf.mxu0
      %v7654 = vadd.f32 0.0, %v7653
      %v7655 = vpop.f32.mrf.mxu0
      %v7656 = vadd.f32 0.0, %v7655
      %7657 = vmatmul.bf16.gmra.mxu0 %v7411
      %v7658 = vpop.f32.mrf.mxu0
      %v7659 = vadd.f32 0.0, %v7658
      %v7660 = vpop.f32.mrf.mxu0
      %v7661 = vadd.f32 0.0, %v7660
      %7662 = vmatmul.bf16.gmra.mxu0 %v7414
      %v7663 = vpop.f32.mrf.mxu0
      %v7664 = vadd.f32 0.0, %v7663
      %v7665 = vpop.f32.mrf.mxu0
      %v7666 = vadd.f32 0.0, %v7665
      %7667 = vmatmul.bf16.gmra.mxu0 %v7417
      %v7668 = vpop.f32.mrf.mxu0
      %v7669 = vadd.f32 0.0, %v7668
      %v7670 = vpop.f32.mrf.mxu0
      %v7671 = vadd.f32 0.0, %v7670
      %7672 = vdwg.mxu0
      %v7673 = vadd.f32 %v7606, %v7649
      %v7674 = vadd.f32 %v7608, %v7651
      %v7675 = vadd.f32 %v7611, %v7654
      %v7676 = vadd.f32 %v7613, %v7656
      %v7677 = vadd.f32 %v7616, %v7659
      %v7678 = vadd.f32 %v7618, %v7661
      %v7679 = vadd.f32 %v7621, %v7664
      %v7680 = vadd.f32 %v7623, %v7666
      %v7681 = vadd.f32 %v7626, %v7669
      %v7682 = vadd.f32 %v7628, %v7671
      %v7683 = vld [vmem:[#allocation4 + $0x4] sm:$0xc]
      %s7684 = scalar_lea.vmem %s7, 56
      %v7685 = vld [vmem:[%s7684] sm:$0xf]
      %v7686 = vld [vmem:[%s7684 + $0x4] sm:$0xf]
      %v7688 = vunpack.c.l.b16 %v7683
      %v7689 = vpack.c.b16 %v7246, %v7688
      %v7690 = vrot.slane %v7689, 2
      %v7691 = vrot.slane %v7257, 2
      %v7692 = vsel %vm1992, %v7690, %v7691
      %v7693 = vrot.slane %v7258, 2
      %v7694 = vsel %vm1992, %v7691, %v7693
      %v7695 = vrot.slane %v7259, 2
      %v7696 = vsel %vm1992, %v7693, %v7695
      %v7697 = vrot.slane %v7260, 2
      %v7698 = vsel %vm1992, %v7695, %v7697
      %v7699 = vrot.slane %v7344, 2
      %v7700 = vsel %vm1992, %v7697, %v7699
      %v7703 = vunpack.c.l.b16 %v7685
      %v7704 = vunpack.c.l.b16 %v7686
      %v7705 = vpack.c.b16 %v7704, %v7703
      %v7708 = vsel %vm4595, %v7692, 0
      %v7711 = vsel %vm4595, %v7694, 0
      %v7714 = vsel %vm4595, %v7696, 0
      %v7717 = vsel %vm4595, %v7698, 0
      %v7720 = vsel %vm4595, %v7700, 0
      %7722 = vmatpush.bf16.msra.mxu0 0
      %7723 = vmatpush.bf16.msra.mxu0 0
      %7724 = vmatpush.bf16.msra.mxu0 0
      %7725 = vmatpush.bf16.msra.mxu0 0
      %7726 = vmatpush.bf16.msra.mxu0 0
      %7727 = vmatpush.bf16.msra.mxu0 0
      %7728 = vmatpush.bf16.msra.mxu0 0
      %7729 = vmatpush.bf16.msra.mxu0 %v7705
      %7730 = vmatmul.bf16.gmra.mxu0 %v7708
      %v7731 = vpop.f32.mrf.mxu0
      %v7732 = vadd.f32 0.0, %v7731
      %v7733 = vpop.f32.mrf.mxu0
      %v7734 = vadd.f32 0.0, %v7733
      %7735 = vmatmul.bf16.gmra.mxu0 %v7711
      %v7736 = vpop.f32.mrf.mxu0
      %v7737 = vadd.f32 0.0, %v7736
      %v7738 = vpop.f32.mrf.mxu0
      %v7739 = vadd.f32 0.0, %v7738
      %7740 = vmatmul.bf16.gmra.mxu0 %v7714
      %v7741 = vpop.f32.mrf.mxu0
      %v7742 = vadd.f32 0.0, %v7741
      %v7743 = vpop.f32.mrf.mxu0
      %v7744 = vadd.f32 0.0, %v7743
      %7745 = vmatmul.bf16.gmra.mxu0 %v7717
      %v7746 = vpop.f32.mrf.mxu0
      %v7747 = vadd.f32 0.0, %v7746
      %v7748 = vpop.f32.mrf.mxu0
      %v7749 = vadd.f32 0.0, %v7748
      %7750 = vmatmul.bf16.gmra.mxu0 %v7720
      %v7751 = vpop.f32.mrf.mxu0
      %v7752 = vadd.f32 0.0, %v7751
      %v7753 = vpop.f32.mrf.mxu0
      %v7754 = vadd.f32 0.0, %v7753
      %7755 = vdwg.mxu0
      %v7756 = vadd.f32 %v7673, %v7732
      %v7757 = vadd.f32 %v7674, %v7734
      %v7758 = vadd.f32 %v7675, %v7737
      %v7759 = vadd.f32 %v7676, %v7739
      %v7760 = vadd.f32 %v7677, %v7742
      %v7761 = vadd.f32 %v7678, %v7744
      %v7762 = vadd.f32 %v7679, %v7747
      %v7763 = vadd.f32 %v7680, %v7749
      %v7764 = vadd.f32 %v7681, %v7752
      %v7765 = vadd.f32 %v7682, %v7754
      %v7766 = vadd.f32 %v7756, %v7465
      %v7767 = vadd.f32 %v7757, %v7465
      %v7768 = vadd.f32 %v7758, %v7465
      %v7769 = vadd.f32 %v7759, %v7465
      %v7770 = vadd.f32 %v7760, %v7465
      %v7771 = vadd.f32 %v7761, %v7465
      %v7772 = vadd.f32 %v7762, %v7465
      %v7773 = vadd.f32 %v7763, %v7465
      %v7774 = vadd.f32 %v7764, %v7465
      %v7775 = vadd.f32 %v7765, %v7465
      %v7776 = vpack.c.bf16 %v7767, %v7766
      %v7777 = vpack.c.bf16 %v7769, %v7768
      %v7778 = vpack.c.bf16 %v7771, %v7770
      %v7779 = vpack.c.bf16 %v7773, %v7772
      %v7780 = vpack.c.bf16 %v7775, %v7774
      %s7781 = scalar_lea.vmem %s12, 128
      %v7782 = vld [vmem:[%s7781] sm:$0xf]
      %v7783 = vld [vmem:[%s7781 + $0x4] sm:$0xf]
      %v7784 = vld [vmem:[%s7781 + $0x8] sm:$0xf]
      %v7785 = vld [vmem:[%s7781 + $0xc] sm:$0xf]
      %v7786 = vld [vmem:[%s7781 + $0x10] sm:$0xf]
      %v7787 = vld [vmem:[%s7781 + $0x14] sm:$0xf]
      %v7788 = vld [vmem:[%s7781 + $0x18] sm:$0xf]
      %v7789 = vld [vmem:[%s7781 + $0x1c] sm:$0xf]
      %v7790 = vld [vmem:[%s7781 + $0x20] sm:$0xf]
      %v7791 = vld [vmem:[%s7781 + $0x24] sm:$0xf]
      %v7792 = vld [vmem:[%s7781 + $0x28] sm:$0xf]
      %v7793 = vld [vmem:[%s7781 + $0x2c] sm:$0xf]
      %v7794 = vld [vmem:[%s7781 + $0x30] sm:$0xf]
      %v7795 = vld [vmem:[%s7781 + $0x34] sm:$0xf]
      %v7796 = vld [vmem:[%s7781 + $0x38] sm:$0xf]
      %v7797 = vld [vmem:[%s7781 + $0x3c] sm:$0xf]
      %v7798 = vld [vmem:[%s7781 + $0x40] sm:$0xf]
      %v7799 = vld [vmem:[%s7781 + $0x44] sm:$0xf]
      %v7800 = vld [vmem:[%s7781 + $0x48] sm:$0xf]
      %v7801 = vld [vmem:[%s7781 + $0x4c] sm:$0xf]
      %v7802 = vld [vmem:[%s7781 + $0x50] sm:$0xf]
      %v7803 = vld [vmem:[%s7781 + $0x54] sm:$0xf]
      %v7804 = vld [vmem:[%s7781 + $0x58] sm:$0xf]
      %v7805 = vld [vmem:[%s7781 + $0x5c] sm:$0xf]
      %v7806 = vld [vmem:[%s7781 + $0x60] sm:$0xf]
      %v7807 = vld [vmem:[%s7781 + $0x64] sm:$0xf]
      %v7808 = vld [vmem:[%s7781 + $0x68] sm:$0xf]
      %v7809 = vld [vmem:[%s7781 + $0x6c] sm:$0xf]
      %v7810 = vld [vmem:[%s7781 + $0x70] sm:$0xf]
      %v7811 = vld [vmem:[%s7781 + $0x74] sm:$0xf]
      %v7812 = vld [vmem:[%s7781 + $0x78] sm:$0xf]
      %v7813 = vld [vmem:[%s7781 + $0x7c] sm:$0xf]
      %v7846 = vunpack.c.l.b16 %v7782
      %v7847 = vunpack.c.l.b16 %v7783
      %v7848 = vunpack.c.l.b16 %v7784
      %v7849 = vunpack.c.l.b16 %v7785
      %v7850 = vunpack.c.l.b16 %v7786
      %v7851 = vunpack.c.l.b16 %v7787
      %v7852 = vunpack.c.l.b16 %v7788
      %v7853 = vunpack.c.l.b16 %v7789
      %v7854 = vunpack.c.l.b16 %v7790
      %v7855 = vunpack.c.l.b16 %v7791
      %v7856 = vunpack.c.l.b16 %v7792
      %v7857 = vunpack.c.l.b16 %v7793
      %v7858 = vunpack.c.l.b16 %v7794
      %v7859 = vunpack.c.l.b16 %v7795
      %v7860 = vunpack.c.l.b16 %v7796
      %v7861 = vunpack.c.l.b16 %v7797
      %v7862 = vunpack.c.l.b16 %v7798
      %v7863 = vunpack.c.l.b16 %v7799
      %v7864 = vunpack.c.l.b16 %v7800
      %v7865 = vunpack.c.l.b16 %v7801
      %v7866 = vunpack.c.l.b16 %v7802
      %v7867 = vunpack.c.l.b16 %v7803
      %v7868 = vunpack.c.l.b16 %v7804
      %v7869 = vunpack.c.l.b16 %v7805
      %v7870 = vunpack.c.l.b16 %v7806
      %v7871 = vunpack.c.l.b16 %v7807
      %v7872 = vunpack.c.l.b16 %v7808
      %v7873 = vunpack.c.l.b16 %v7809
      %v7874 = vunpack.c.l.b16 %v7810
      %v7875 = vunpack.c.l.b16 %v7811
      %v7876 = vunpack.c.l.b16 %v7812
      %v7877 = vunpack.c.l.b16 %v7813
      %v7878 = vpack.c.b16 %v7847, %v7846
      %v7879 = vpack.c.b16 %v7849, %v7848
      %v7880 = vpack.c.b16 %v7851, %v7850
      %v7881 = vpack.c.b16 %v7853, %v7852
      %v7882 = vpack.c.b16 %v7855, %v7854
      %v7883 = vpack.c.b16 %v7857, %v7856
      %v7884 = vpack.c.b16 %v7859, %v7858
      %v7885 = vpack.c.b16 %v7861, %v7860
      %v7886 = vpack.c.b16 %v7863, %v7862
      %v7887 = vpack.c.b16 %v7865, %v7864
      %v7888 = vpack.c.b16 %v7867, %v7866
      %v7889 = vpack.c.b16 %v7869, %v7868
      %v7890 = vpack.c.b16 %v7871, %v7870
      %v7891 = vpack.c.b16 %v7873, %v7872
      %v7892 = vpack.c.b16 %v7875, %v7874
      %v7893 = vpack.c.b16 %v7877, %v7876
      %v7895 = vsel %vm5480, %v7878, 0
      %v7898 = vsel %vm5480, %v7879, 0
      %v7901 = vsel %vm5480, %v7880, 0
      %v7904 = vsel %vm5480, %v7881, 0
      %v7907 = vsel %vm5480, %v7882, 0
      %v7910 = vsel %vm5480, %v7883, 0
      %v7913 = vsel %vm5480, %v7884, 0
      %v7916 = vsel %vm5480, %v7885, 0
      %v7919 = vsel %vm5480, %v7886, 0
      %v7922 = vsel %vm5480, %v7887, 0
      %v7925 = vsel %vm5480, %v7888, 0
      %v7928 = vsel %vm5480, %v7889, 0
      %v7931 = vsel %vm5480, %v7890, 0
      %v7934 = vsel %vm5480, %v7891, 0
      %v7937 = vsel %vm5480, %v7892, 0
      %v7940 = vsel %vm5480, %v7893, 0
      %7942 = vmatpush.bf16.msra.mxu0 0
      %7943 = vmatpush.bf16.msra.mxu0 0
      %7944 = vmatpush.bf16.msra.mxu0 0
      %7945 = vmatpush.bf16.msra.mxu0 %v7780
      %7946 = vmatpush.bf16.msra.mxu0 %v7779
      %7947 = vmatpush.bf16.msra.mxu0 %v7778
      %7948 = vmatpush.bf16.msra.mxu0 %v7777
      %7949 = vmatpush.bf16.msra.mxu0 %v7776
      %7950 = vmatmul.bf16.gmra.mxu0 %v7895
      %v7951 = vpop.f32.mrf.mxu0
      %v7952 = vadd.f32 0.0, %v7951
      %v7953 = vpop.f32.mrf.mxu0
      %v7954 = vadd.f32 0.0, %v7953
      %7955 = vmatmul.bf16.gmra.mxu0 %v7898
      %v7956 = vpop.f32.mrf.mxu0
      %v7957 = vadd.f32 0.0, %v7956
      %v7958 = vpop.f32.mrf.mxu0
      %v7959 = vadd.f32 0.0, %v7958
      %7960 = vmatmul.bf16.gmra.mxu0 %v7901
      %v7961 = vpop.f32.mrf.mxu0
      %v7962 = vadd.f32 0.0, %v7961
      %v7963 = vpop.f32.mrf.mxu0
      %v7964 = vadd.f32 0.0, %v7963
      %7965 = vmatmul.bf16.gmra.mxu0 %v7904
      %v7966 = vpop.f32.mrf.mxu0
      %v7967 = vadd.f32 0.0, %v7966
      %v7968 = vpop.f32.mrf.mxu0
      %v7969 = vadd.f32 0.0, %v7968
      %7970 = vmatmul.bf16.gmra.mxu0 %v7907
      %v7971 = vpop.f32.mrf.mxu0
      %v7972 = vadd.f32 0.0, %v7971
      %v7973 = vpop.f32.mrf.mxu0
      %v7974 = vadd.f32 0.0, %v7973
      %7975 = vmatmul.bf16.gmra.mxu0 %v7910
      %v7976 = vpop.f32.mrf.mxu0
      %v7977 = vadd.f32 0.0, %v7976
      %v7978 = vpop.f32.mrf.mxu0
      %v7979 = vadd.f32 0.0, %v7978
      %7980 = vmatmul.bf16.gmra.mxu0 %v7913
      %v7981 = vpop.f32.mrf.mxu0
      %v7982 = vadd.f32 0.0, %v7981
      %v7983 = vpop.f32.mrf.mxu0
      %v7984 = vadd.f32 0.0, %v7983
      %7985 = vmatmul.bf16.gmra.mxu0 %v7916
      %v7986 = vpop.f32.mrf.mxu0
      %v7987 = vadd.f32 0.0, %v7986
      %v7988 = vpop.f32.mrf.mxu0
      %v7989 = vadd.f32 0.0, %v7988
      %7990 = vmatmul.bf16.gmra.mxu0 %v7919
      %v7991 = vpop.f32.mrf.mxu0
      %v7992 = vadd.f32 0.0, %v7991
      %v7993 = vpop.f32.mrf.mxu0
      %v7994 = vadd.f32 0.0, %v7993
      %7995 = vmatmul.bf16.gmra.mxu0 %v7922
      %v7996 = vpop.f32.mrf.mxu0
      %v7997 = vadd.f32 0.0, %v7996
      %v7998 = vpop.f32.mrf.mxu0
      %v7999 = vadd.f32 0.0, %v7998
      %8000 = vmatmul.bf16.gmra.mxu0 %v7925
      %v8001 = vpop.f32.mrf.mxu0
      %v8002 = vadd.f32 0.0, %v8001
      %v8003 = vpop.f32.mrf.mxu0
      %v8004 = vadd.f32 0.0, %v8003
      %8005 = vmatmul.bf16.gmra.mxu0 %v7928
      %v8006 = vpop.f32.mrf.mxu0
      %v8007 = vadd.f32 0.0, %v8006
      %v8008 = vpop.f32.mrf.mxu0
      %v8009 = vadd.f32 0.0, %v8008
      %8010 = vmatmul.bf16.gmra.mxu0 %v7931
      %v8011 = vpop.f32.mrf.mxu0
      %v8012 = vadd.f32 0.0, %v8011
      %v8013 = vpop.f32.mrf.mxu0
      %v8014 = vadd.f32 0.0, %v8013
      %8015 = vmatmul.bf16.gmra.mxu0 %v7934
      %v8016 = vpop.f32.mrf.mxu0
      %v8017 = vadd.f32 0.0, %v8016
      %v8018 = vpop.f32.mrf.mxu0
      %v8019 = vadd.f32 0.0, %v8018
      %8020 = vmatmul.bf16.gmra.mxu0 %v7937
      %v8021 = vpop.f32.mrf.mxu0
      %v8022 = vadd.f32 0.0, %v8021
      %v8023 = vpop.f32.mrf.mxu0
      %v8024 = vadd.f32 0.0, %v8023
      %8025 = vmatmul.bf16.gmra.mxu0 %v7940
      %v8026 = vpop.f32.mrf.mxu0
      %v8027 = vadd.f32 0.0, %v8026
      %v8028 = vpop.f32.mrf.mxu0
      %v8029 = vadd.f32 0.0, %v8028
      %8030 = vdwg.mxu0
      %v8063 = vunpack.c.l.b16 %v7482
      %v8064 = vunpack.c.l.b16 %v7483
      %v8065 = vunpack.c.l.b16 %v7484
      %v8066 = vunpack.c.l.b16 %v7485
      %v8067 = vunpack.c.l.b16 %v7486
      %v8068 = vunpack.c.l.b16 %v7487
      %v8069 = vunpack.c.l.b16 %v7488
      %v8070 = vunpack.c.l.b16 %v7489
      %v8071 = vunpack.c.l.b16 %v7490
      %v8072 = vunpack.c.l.b16 %v7491
      %v8073 = vunpack.c.l.b16 %v7492
      %v8074 = vunpack.c.l.b16 %v7493
      %v8075 = vunpack.c.l.b16 %v7494
      %v8076 = vunpack.c.l.b16 %v7495
      %v8077 = vunpack.c.l.b16 %v7496
      %v8078 = vunpack.c.l.b16 %v7497
      %v8079 = vunpack.c.l.b16 %v7498
      %v8080 = vunpack.c.l.b16 %v7499
      %v8081 = vunpack.c.l.b16 %v7500
      %v8082 = vunpack.c.l.b16 %v7501
      %v8083 = vunpack.c.l.b16 %v7502
      %v8084 = vunpack.c.l.b16 %v7503
      %v8085 = vunpack.c.l.b16 %v7504
      %v8086 = vunpack.c.l.b16 %v7505
      %v8087 = vunpack.c.l.b16 %v7506
      %v8088 = vunpack.c.l.b16 %v7507
      %v8089 = vunpack.c.l.b16 %v7508
      %v8090 = vunpack.c.l.b16 %v7509
      %v8091 = vunpack.c.l.b16 %v7510
      %v8092 = vunpack.c.l.b16 %v7511
      %v8093 = vunpack.c.l.b16 %v7512
      %v8094 = vunpack.c.l.b16 %v7513
      %v8095 = vpack.c.b16 %v8064, %v8063
      %v8096 = vpack.c.b16 %v8066, %v8065
      %v8097 = vpack.c.b16 %v8068, %v8067
      %v8098 = vpack.c.b16 %v8070, %v8069
      %v8099 = vpack.c.b16 %v8072, %v8071
      %v8100 = vpack.c.b16 %v8074, %v8073
      %v8101 = vpack.c.b16 %v8076, %v8075
      %v8102 = vpack.c.b16 %v8078, %v8077
      %v8103 = vpack.c.b16 %v8080, %v8079
      %v8104 = vpack.c.b16 %v8082, %v8081
      %v8105 = vpack.c.b16 %v8084, %v8083
      %v8106 = vpack.c.b16 %v8086, %v8085
      %v8107 = vpack.c.b16 %v8088, %v8087
      %v8108 = vpack.c.b16 %v8090, %v8089
      %v8109 = vpack.c.b16 %v8092, %v8091
      %v8110 = vpack.c.b16 %v8094, %v8093
      %v8112 = vsel %vm5480, %v8095, 0
      %v8115 = vsel %vm5480, %v8096, 0
      %v8118 = vsel %vm5480, %v8097, 0
      %v8121 = vsel %vm5480, %v8098, 0
      %v8124 = vsel %vm5480, %v8099, 0
      %v8127 = vsel %vm5480, %v8100, 0
      %v8130 = vsel %vm5480, %v8101, 0
      %v8133 = vsel %vm5480, %v8102, 0
      %v8136 = vsel %vm5480, %v8103, 0
      %v8139 = vsel %vm5480, %v8104, 0
      %v8142 = vsel %vm5480, %v8105, 0
      %v8145 = vsel %vm5480, %v8106, 0
      %v8148 = vsel %vm5480, %v8107, 0
      %v8151 = vsel %vm5480, %v8108, 0
      %v8154 = vsel %vm5480, %v8109, 0
      %v8157 = vsel %vm5480, %v8110, 0
      %8159 = vmatpush.bf16.msra.mxu0 0
      %8160 = vmatpush.bf16.msra.mxu0 0
      %8161 = vmatpush.bf16.msra.mxu0 0
      %8162 = vmatpush.bf16.msra.mxu0 %v7481
      %8163 = vmatpush.bf16.msra.mxu0 %v7480
      %8164 = vmatpush.bf16.msra.mxu0 %v7479
      %8165 = vmatpush.bf16.msra.mxu0 %v7478
      %8166 = vmatpush.bf16.msra.mxu0 %v7477
      %8167 = vmatmul.bf16.gmra.mxu0 %v8112
      %v8168 = vpop.f32.mrf.mxu0
      %v8169 = vadd.f32 %v7952, %v8168
      %v8170 = vpop.f32.mrf.mxu0
      %v8171 = vadd.f32 %v7954, %v8170
      %8172 = vmatmul.bf16.gmra.mxu0 %v8115
      %v8173 = vpop.f32.mrf.mxu0
      %v8174 = vadd.f32 %v7957, %v8173
      %v8175 = vpop.f32.mrf.mxu0
      %v8176 = vadd.f32 %v7959, %v8175
      %8177 = vmatmul.bf16.gmra.mxu0 %v8118
      %v8178 = vpop.f32.mrf.mxu0
      %v8179 = vadd.f32 %v7962, %v8178
      %v8180 = vpop.f32.mrf.mxu0
      %v8181 = vadd.f32 %v7964, %v8180
      %8182 = vmatmul.bf16.gmra.mxu0 %v8121
      %v8183 = vpop.f32.mrf.mxu0
      %v8184 = vadd.f32 %v7967, %v8183
      %v8185 = vpop.f32.mrf.mxu0
      %v8186 = vadd.f32 %v7969, %v8185
      %8187 = vmatmul.bf16.gmra.mxu0 %v8124
      %v8188 = vpop.f32.mrf.mxu0
      %v8189 = vadd.f32 %v7972, %v8188
      %v8190 = vpop.f32.mrf.mxu0
      %v8191 = vadd.f32 %v7974, %v8190
      %8192 = vmatmul.bf16.gmra.mxu0 %v8127
      %v8193 = vpop.f32.mrf.mxu0
      %v8194 = vadd.f32 %v7977, %v8193
      %v8195 = vpop.f32.mrf.mxu0
      %v8196 = vadd.f32 %v7979, %v8195
      %8197 = vmatmul.bf16.gmra.mxu0 %v8130
      %v8198 = vpop.f32.mrf.mxu0
      %v8199 = vadd.f32 %v7982, %v8198
      %v8200 = vpop.f32.mrf.mxu0
      %v8201 = vadd.f32 %v7984, %v8200
      %8202 = vmatmul.bf16.gmra.mxu0 %v8133
      %v8203 = vpop.f32.mrf.mxu0
      %v8204 = vadd.f32 %v7987, %v8203
      %v8205 = vpop.f32.mrf.mxu0
      %v8206 = vadd.f32 %v7989, %v8205
      %8207 = vmatmul.bf16.gmra.mxu0 %v8136
      %v8208 = vpop.f32.mrf.mxu0
      %v8209 = vadd.f32 %v7992, %v8208
      %v8210 = vpop.f32.mrf.mxu0
      %v8211 = vadd.f32 %v7994, %v8210
      %8212 = vmatmul.bf16.gmra.mxu0 %v8139
      %v8213 = vpop.f32.mrf.mxu0
      %v8214 = vadd.f32 %v7997, %v8213
      %v8215 = vpop.f32.mrf.mxu0
      %v8216 = vadd.f32 %v7999, %v8215
      %8217 = vmatmul.bf16.gmra.mxu0 %v8142
      %v8218 = vpop.f32.mrf.mxu0
      %v8219 = vadd.f32 %v8002, %v8218
      %v8220 = vpop.f32.mrf.mxu0
      %v8221 = vadd.f32 %v8004, %v8220
      %8222 = vmatmul.bf16.gmra.mxu0 %v8145
      %v8223 = vpop.f32.mrf.mxu0
      %v8224 = vadd.f32 %v8007, %v8223
      %v8225 = vpop.f32.mrf.mxu0
      %v8226 = vadd.f32 %v8009, %v8225
      %8227 = vmatmul.bf16.gmra.mxu0 %v8148
      %v8228 = vpop.f32.mrf.mxu0
      %v8229 = vadd.f32 %v8012, %v8228
      %v8230 = vpop.f32.mrf.mxu0
      %v8231 = vadd.f32 %v8014, %v8230
      %8232 = vmatmul.bf16.gmra.mxu0 %v8151
      %v8233 = vpop.f32.mrf.mxu0
      %v8234 = vadd.f32 %v8017, %v8233
      %v8235 = vpop.f32.mrf.mxu0
      %v8236 = vadd.f32 %v8019, %v8235
      %8237 = vmatmul.bf16.gmra.mxu0 %v8154
      %v8238 = vpop.f32.mrf.mxu0
      %v8239 = vadd.f32 %v8022, %v8238
      %v8240 = vpop.f32.mrf.mxu0
      %v8241 = vadd.f32 %v8024, %v8240
      %8242 = vmatmul.bf16.gmra.mxu0 %v8157
      %v8243 = vpop.f32.mrf.mxu0
      %v8244 = vadd.f32 %v8027, %v8243
      %v8245 = vpop.f32.mrf.mxu0
      %v8246 = vadd.f32 %v8029, %v8245
      %8247 = vdwg.mxu0
      %s8248 = scalar_lea.vmem %s7, 64
      %v8249 = vld [vmem:[%s8248] sm:$0xf]
      %v8250 = vld [vmem:[%s8248 + $0x4] sm:$0xf]
      %s8251 = scalar_lea.vmem %s7, 72
      %v8252 = vld [vmem:[%s8251] sm:$0xf]
      %v8253 = vld [vmem:[%s8251 + $0x4] sm:$0xf]
      %v8256 = vunpack.c.l.b16 %v8252
      %v8257 = vunpack.c.l.b16 %v8253
      %v8258 = vpack.c.b16 %v8257, %v8256
      %8260 = vmatpush.bf16.msra.mxu0 0
      %8261 = vmatpush.bf16.msra.mxu0 0
      %8262 = vmatpush.bf16.msra.mxu0 0
      %8263 = vmatpush.bf16.msra.mxu0 0
      %8264 = vmatpush.bf16.msra.mxu0 0
      %8265 = vmatpush.bf16.msra.mxu0 0
      %8266 = vmatpush.bf16.msra.mxu0 0
      %8267 = vmatpush.bf16.msra.mxu0 %v8258
      %8268 = vmatmul.bf16.gmra.mxu0 %v7405
      %v8269 = vpop.f32.mrf.mxu0
      %v8270 = vadd.f32 0.0, %v8269
      %v8271 = vpop.f32.mrf.mxu0
      %v8272 = vadd.f32 0.0, %v8271
      %8273 = vmatmul.bf16.gmra.mxu0 %v7408
      %v8274 = vpop.f32.mrf.mxu0
      %v8275 = vadd.f32 0.0, %v8274
      %v8276 = vpop.f32.mrf.mxu0
      %v8277 = vadd.f32 0.0, %v8276
      %8278 = vmatmul.bf16.gmra.mxu0 %v7411
      %v8279 = vpop.f32.mrf.mxu0
      %v8280 = vadd.f32 0.0, %v8279
      %v8281 = vpop.f32.mrf.mxu0
      %v8282 = vadd.f32 0.0, %v8281
      %8283 = vmatmul.bf16.gmra.mxu0 %v7414
      %v8284 = vpop.f32.mrf.mxu0
      %v8285 = vadd.f32 0.0, %v8284
      %v8286 = vpop.f32.mrf.mxu0
      %v8287 = vadd.f32 0.0, %v8286
      %8288 = vmatmul.bf16.gmra.mxu0 %v7417
      %v8289 = vpop.f32.mrf.mxu0
      %v8290 = vadd.f32 0.0, %v8289
      %v8291 = vpop.f32.mrf.mxu0
      %v8292 = vadd.f32 0.0, %v8291
      %8293 = vdwg.mxu0
      %v8296 = vunpack.c.l.b16 %v8249
      %v8297 = vunpack.c.l.b16 %v8250
      %v8298 = vpack.c.b16 %v8297, %v8296
      %8300 = vmatpush.bf16.msra.mxu0 0
      %8301 = vmatpush.bf16.msra.mxu0 0
      %8302 = vmatpush.bf16.msra.mxu0 0
      %8303 = vmatpush.bf16.msra.mxu0 0
      %8304 = vmatpush.bf16.msra.mxu0 0
      %8305 = vmatpush.bf16.msra.mxu0 0
      %8306 = vmatpush.bf16.msra.mxu0 0
      %8307 = vmatpush.bf16.msra.mxu0 %v8298
      %8308 = vmatmul.bf16.gmra.mxu0 %v7280
      %v8309 = vpop.f32.mrf.mxu0
      %v8310 = vadd.f32 %v8270, %v8309
      %v8311 = vpop.f32.mrf.mxu0
      %v8312 = vadd.f32 %v8272, %v8311
      %8313 = vmatmul.bf16.gmra.mxu0 %v7283
      %v8314 = vpop.f32.mrf.mxu0
      %v8315 = vadd.f32 %v8275, %v8314
      %v8316 = vpop.f32.mrf.mxu0
      %v8317 = vadd.f32 %v8277, %v8316
      %8318 = vmatmul.bf16.gmra.mxu0 %v7286
      %v8319 = vpop.f32.mrf.mxu0
      %v8320 = vadd.f32 %v8280, %v8319
      %v8321 = vpop.f32.mrf.mxu0
      %v8322 = vadd.f32 %v8282, %v8321
      %8323 = vmatmul.bf16.gmra.mxu0 %v7289
      %v8324 = vpop.f32.mrf.mxu0
      %v8325 = vadd.f32 %v8285, %v8324
      %v8326 = vpop.f32.mrf.mxu0
      %v8327 = vadd.f32 %v8287, %v8326
      %8328 = vmatmul.bf16.gmra.mxu0 %v7292
      %v8329 = vpop.f32.mrf.mxu0
      %v8330 = vadd.f32 %v8290, %v8329
      %v8331 = vpop.f32.mrf.mxu0
      %v8332 = vadd.f32 %v8292, %v8331
      %8333 = vdwg.mxu0
      %v8334 = vld [vmem:[#allocation4 + $0x8] sm:$0xc]
      %v8335 = vld [vmem:[#allocation4 + $0xc] sm:$0xf]
      %v8336 = vld [vmem:[#allocation4 + $0x10] sm:$0xf]
      %v8337 = vld [vmem:[#allocation4 + $0x14] sm:$0xf]
      %v8338 = vld [vmem:[#allocation4 + $0x18] sm:$0xf]
      %v8339 = vld [vmem:[#allocation4 + $0x1c] sm:$0xf]
      %v8340 = vld [vmem:[#allocation4 + $0x20] sm:$0xf]
      %v8341 = vld [vmem:[#allocation4 + $0x24] sm:$0xf]
      %v8342 = vld [vmem:[#allocation4 + $0x28] sm:$0xf]
      %v8343 = vld [vmem:[#allocation4 + $0x2c] sm:$0xf]
      %v8344 = vld [vmem:[#allocation4 + $0x30] sm:$0x3]
      %s8345 = scalar_lea.vmem %s7, 80
      %v8346 = vld [vmem:[%s8345] sm:$0xf]
      %v8347 = vld [vmem:[%s8345 + $0x4] sm:$0xf]
      %v8359 = vunpack.c.l.b16 %v8334
      %v8360 = vunpack.c.l.b16 %v8335
      %v8361 = vunpack.c.l.b16 %v8336
      %v8362 = vunpack.c.l.b16 %v8337
      %v8363 = vunpack.c.l.b16 %v8338
      %v8364 = vunpack.c.l.b16 %v8339
      %v8365 = vunpack.c.l.b16 %v8340
      %v8366 = vunpack.c.l.b16 %v8341
      %v8367 = vunpack.c.l.b16 %v8342
      %v8368 = vunpack.c.l.b16 %v8343
      %v8369 = vunpack.c.l.b16 %v8344
      %v8370 = vpack.c.b16 %v8360, %v8359
      %v8371 = vpack.c.b16 %v8362, %v8361
      %v8372 = vpack.c.b16 %v8364, %v8363
      %v8373 = vpack.c.b16 %v8366, %v8365
      %v8374 = vpack.c.b16 %v8368, %v8367
      %v8375 = vpack.c.b16 %v8369, %v8369
      %v8376 = vrot.slane %v8370, 2
      %v8377 = vrot.slane %v8371, 2
      %v8378 = vsel %vm1992, %v8376, %v8377
      %v8379 = vrot.slane %v8372, 2
      %v8380 = vsel %vm1992, %v8377, %v8379
      %v8381 = vrot.slane %v8373, 2
      %v8382 = vsel %vm1992, %v8379, %v8381
      %v8383 = vrot.slane %v8374, 2
      %v8384 = vsel %vm1992, %v8381, %v8383
      %v8385 = vrot.slane %v8375, 2
      %v8386 = vsel %vm1992, %v8383, %v8385
      %v8389 = vunpack.c.l.b16 %v8346
      %v8390 = vunpack.c.l.b16 %v8347
      %v8391 = vpack.c.b16 %v8390, %v8389
      %v8394 = vsel %vm4595, %v8378, 0
      %v8397 = vsel %vm4595, %v8380, 0
      %v8400 = vsel %vm4595, %v8382, 0
      %v8403 = vsel %vm4595, %v8384, 0
      %v8406 = vsel %vm4595, %v8386, 0
      %8408 = vmatpush.bf16.msra.mxu0 0
      %8409 = vmatpush.bf16.msra.mxu0 0
      %8410 = vmatpush.bf16.msra.mxu0 0
      %8411 = vmatpush.bf16.msra.mxu0 0
      %8412 = vmatpush.bf16.msra.mxu0 0
      %8413 = vmatpush.bf16.msra.mxu0 0
      %8414 = vmatpush.bf16.msra.mxu0 0
      %8415 = vmatpush.bf16.msra.mxu0 %v8391
      %8416 = vmatmul.bf16.gmra.mxu0 %v8394
      %v8417 = vpop.f32.mrf.mxu0
      %v8418 = vadd.f32 0.0, %v8417
      %v8419 = vpop.f32.mrf.mxu0
      %v8420 = vadd.f32 0.0, %v8419
      %8421 = vmatmul.bf16.gmra.mxu0 %v8397
      %v8422 = vpop.f32.mrf.mxu0
      %v8423 = vadd.f32 0.0, %v8422
      %v8424 = vpop.f32.mrf.mxu0
      %v8425 = vadd.f32 0.0, %v8424
      %8426 = vmatmul.bf16.gmra.mxu0 %v8400
      %v8427 = vpop.f32.mrf.mxu0
      %v8428 = vadd.f32 0.0, %v8427
      %v8429 = vpop.f32.mrf.mxu0
      %v8430 = vadd.f32 0.0, %v8429
      %8431 = vmatmul.bf16.gmra.mxu0 %v8403
      %v8432 = vpop.f32.mrf.mxu0
      %v8433 = vadd.f32 0.0, %v8432
      %v8434 = vpop.f32.mrf.mxu0
      %v8435 = vadd.f32 0.0, %v8434
      %8436 = vmatmul.bf16.gmra.mxu0 %v8406
      %v8437 = vpop.f32.mrf.mxu0
      %v8438 = vadd.f32 0.0, %v8437
      %v8439 = vpop.f32.mrf.mxu0
      %v8440 = vadd.f32 0.0, %v8439
      %8441 = vdwg.mxu0
      %v8442 = vadd.f32 %v8310, %v8418
      %v8443 = vadd.f32 %v8312, %v8420
      %v8444 = vadd.f32 %v8315, %v8423
      %v8445 = vadd.f32 %v8317, %v8425
      %v8446 = vadd.f32 %v8320, %v8428
      %v8447 = vadd.f32 %v8322, %v8430
      %v8448 = vadd.f32 %v8325, %v8433
      %v8449 = vadd.f32 %v8327, %v8435
      %v8450 = vadd.f32 %v8330, %v8438
      %v8451 = vadd.f32 %v8332, %v8440
      %v8452 = vld [vmem:[#allocation4 + $0x30] sm:$0x7]
      %s8453 = scalar_lea.vmem %s7, 88
      %v8454 = vld [vmem:[%s8453] sm:$0xf]
      %v8455 = vld [vmem:[%s8453 + $0x4] sm:$0xf]
      %v8457 = vunpack.c.l.b16 %v8452
      %v8458 = vpack.c.b16 %v8457, %v8457
      %v8460 = vshrl.u32 %v8370, 16
      %v8462 = vrot.slane %v8460, 2
      %v8463 = vshll.u32 %v8370, 16
      %v8465 = vrot.slane %v8463, 3
      %v8466 = vor.u32 %v8462, %v8465
      %v8468 = vshrl.u32 %v8371, 16
      %v8470 = vrot.slane %v8468, 2
      %v8471 = vshll.u32 %v8371, 16
      %v8473 = vrot.slane %v8471, 3
      %v8474 = vor.u32 %v8470, %v8473
      %v8475 = vsel %vm2589, %v8466, %v8474
      %v8477 = vshrl.u32 %v8372, 16
      %v8479 = vrot.slane %v8477, 2
      %v8480 = vshll.u32 %v8372, 16
      %v8482 = vrot.slane %v8480, 3
      %v8483 = vor.u32 %v8479, %v8482
      %v8484 = vsel %vm2589, %v8474, %v8483
      %v8486 = vshrl.u32 %v8373, 16
      %v8488 = vrot.slane %v8486, 2
      %v8489 = vshll.u32 %v8373, 16
      %v8491 = vrot.slane %v8489, 3
      %v8492 = vor.u32 %v8488, %v8491
      %v8493 = vsel %vm2589, %v8483, %v8492
      %v8495 = vshrl.u32 %v8374, 16
      %v8497 = vrot.slane %v8495, 2
      %v8498 = vshll.u32 %v8374, 16
      %v8500 = vrot.slane %v8498, 3
      %v8501 = vor.u32 %v8497, %v8500
      %v8502 = vsel %vm2589, %v8492, %v8501
      %v8504 = vshrl.u32 %v8458, 16
      %v8506 = vrot.slane %v8504, 2
      %v8507 = vshll.u32 %v8458, 16
      %v8509 = vrot.slane %v8507, 3
      %v8510 = vor.u32 %v8506, %v8509
      %v8511 = vsel %vm2589, %v8501, %v8510
      %v8514 = vunpack.c.l.b16 %v8454
      %v8515 = vunpack.c.l.b16 %v8455
      %v8516 = vpack.c.b16 %v8515, %v8514
      %v8519 = vsel %vm4595, %v8475, 0
      %v8522 = vsel %vm4595, %v8484, 0
      %v8525 = vsel %vm4595, %v8493, 0
      %v8528 = vsel %vm4595, %v8502, 0
      %v8531 = vsel %vm4595, %v8511, 0
      %8533 = vmatpush.bf16.msra.mxu0 0
      %8534 = vmatpush.bf16.msra.mxu0 0
      %8535 = vmatpush.bf16.msra.mxu0 0
      %8536 = vmatpush.bf16.msra.mxu0 0
      %8537 = vmatpush.bf16.msra.mxu0 0
      %8538 = vmatpush.bf16.msra.mxu0 0
      %8539 = vmatpush.bf16.msra.mxu0 0
      %8540 = vmatpush.bf16.msra.mxu0 %v8516
      %8541 = vmatmul.bf16.gmra.mxu0 %v8519
      %v8542 = vpop.f32.mrf.mxu0
      %v8543 = vadd.f32 0.0, %v8542
      %v8544 = vpop.f32.mrf.mxu0
      %v8545 = vadd.f32 0.0, %v8544
      %8546 = vmatmul.bf16.gmra.mxu0 %v8522
      %v8547 = vpop.f32.mrf.mxu0
      %v8548 = vadd.f32 0.0, %v8547
      %v8549 = vpop.f32.mrf.mxu0
      %v8550 = vadd.f32 0.0, %v8549
      %8551 = vmatmul.bf16.gmra.mxu0 %v8525
      %v8552 = vpop.f32.mrf.mxu0
      %v8553 = vadd.f32 0.0, %v8552
      %v8554 = vpop.f32.mrf.mxu0
      %v8555 = vadd.f32 0.0, %v8554
      %8556 = vmatmul.bf16.gmra.mxu0 %v8528
      %v8557 = vpop.f32.mrf.mxu0
      %v8558 = vadd.f32 0.0, %v8557
      %v8559 = vpop.f32.mrf.mxu0
      %v8560 = vadd.f32 0.0, %v8559
      %8561 = vmatmul.bf16.gmra.mxu0 %v8531
      %v8562 = vpop.f32.mrf.mxu0
      %v8563 = vadd.f32 0.0, %v8562
      %v8564 = vpop.f32.mrf.mxu0
      %v8565 = vadd.f32 0.0, %v8564
      %8566 = vdwg.mxu0
      %v8567 = vadd.f32 %v8442, %v8543
      %v8568 = vadd.f32 %v8443, %v8545
      %v8569 = vadd.f32 %v8444, %v8548
      %v8570 = vadd.f32 %v8445, %v8550
      %v8571 = vadd.f32 %v8446, %v8553
      %v8572 = vadd.f32 %v8447, %v8555
      %v8573 = vadd.f32 %v8448, %v8558
      %v8574 = vadd.f32 %v8449, %v8560
      %v8575 = vadd.f32 %v8450, %v8563
      %v8576 = vadd.f32 %v8451, %v8565
      %v8577 = vadd.f32 %v8567, %v7465
      %v8578 = vadd.f32 %v8568, %v7465
      %v8579 = vadd.f32 %v8569, %v7465
      %v8580 = vadd.f32 %v8570, %v7465
      %v8581 = vadd.f32 %v8571, %v7465
      %v8582 = vadd.f32 %v8572, %v7465
      %v8583 = vadd.f32 %v8573, %v7465
      %v8584 = vadd.f32 %v8574, %v7465
      %v8585 = vadd.f32 %v8575, %v7465
      %v8586 = vadd.f32 %v8576, %v7465
      %v8587 = vpack.c.bf16 %v8578, %v8577
      %v8588 = vpack.c.bf16 %v8580, %v8579
      %v8589 = vpack.c.bf16 %v8582, %v8581
      %v8590 = vpack.c.bf16 %v8584, %v8583
      %v8591 = vpack.c.bf16 %v8586, %v8585
      %s8592 = scalar_lea.vmem %s12, 256
      %v8593 = vld [vmem:[%s8592] sm:$0xf]
      %v8594 = vld [vmem:[%s8592 + $0x4] sm:$0xf]
      %v8595 = vld [vmem:[%s8592 + $0x8] sm:$0xf]
      %v8596 = vld [vmem:[%s8592 + $0xc] sm:$0xf]
      %v8597 = vld [vmem:[%s8592 + $0x10] sm:$0xf]
      %v8598 = vld [vmem:[%s8592 + $0x14] sm:$0xf]
      %v8599 = vld [vmem:[%s8592 + $0x18] sm:$0xf]
      %v8600 = vld [vmem:[%s8592 + $0x1c] sm:$0xf]
      %v8601 = vld [vmem:[%s8592 + $0x20] sm:$0xf]
      %v8602 = vld [vmem:[%s8592 + $0x24] sm:$0xf]
      %v8603 = vld [vmem:[%s8592 + $0x28] sm:$0xf]
      %v8604 = vld [vmem:[%s8592 + $0x2c] sm:$0xf]
      %v8605 = vld [vmem:[%s8592 + $0x30] sm:$0xf]
      %v8606 = vld [vmem:[%s8592 + $0x34] sm:$0xf]
      %v8607 = vld [vmem:[%s8592 + $0x38] sm:$0xf]
      %v8608 = vld [vmem:[%s8592 + $0x3c] sm:$0xf]
      %v8609 = vld [vmem:[%s8592 + $0x40] sm:$0xf]
      %v8610 = vld [vmem:[%s8592 + $0x44] sm:$0xf]
      %v8611 = vld [vmem:[%s8592 + $0x48] sm:$0xf]
      %v8612 = vld [vmem:[%s8592 + $0x4c] sm:$0xf]
      %v8613 = vld [vmem:[%s8592 + $0x50] sm:$0xf]
      %v8614 = vld [vmem:[%s8592 + $0x54] sm:$0xf]
      %v8615 = vld [vmem:[%s8592 + $0x58] sm:$0xf]
      %v8616 = vld [vmem:[%s8592 + $0x5c] sm:$0xf]
      %v8617 = vld [vmem:[%s8592 + $0x60] sm:$0xf]
      %v8618 = vld [vmem:[%s8592 + $0x64] sm:$0xf]
      %v8619 = vld [vmem:[%s8592 + $0x68] sm:$0xf]
      %v8620 = vld [vmem:[%s8592 + $0x6c] sm:$0xf]
      %v8621 = vld [vmem:[%s8592 + $0x70] sm:$0xf]
      %v8622 = vld [vmem:[%s8592 + $0x74] sm:$0xf]
      %v8623 = vld [vmem:[%s8592 + $0x78] sm:$0xf]
      %v8624 = vld [vmem:[%s8592 + $0x7c] sm:$0xf]
      %v8657 = vunpack.c.l.b16 %v8593
      %v8658 = vunpack.c.l.b16 %v8594
      %v8659 = vunpack.c.l.b16 %v8595
      %v8660 = vunpack.c.l.b16 %v8596
      %v8661 = vunpack.c.l.b16 %v8597
      %v8662 = vunpack.c.l.b16 %v8598
      %v8663 = vunpack.c.l.b16 %v8599
      %v8664 = vunpack.c.l.b16 %v8600
      %v8665 = vunpack.c.l.b16 %v8601
      %v8666 = vunpack.c.l.b16 %v8602
      %v8667 = vunpack.c.l.b16 %v8603
      %v8668 = vunpack.c.l.b16 %v8604
      %v8669 = vunpack.c.l.b16 %v8605
      %v8670 = vunpack.c.l.b16 %v8606
      %v8671 = vunpack.c.l.b16 %v8607
      %v8672 = vunpack.c.l.b16 %v8608
      %v8673 = vunpack.c.l.b16 %v8609
      %v8674 = vunpack.c.l.b16 %v8610
      %v8675 = vunpack.c.l.b16 %v8611
      %v8676 = vunpack.c.l.b16 %v8612
      %v8677 = vunpack.c.l.b16 %v8613
      %v8678 = vunpack.c.l.b16 %v8614
      %v8679 = vunpack.c.l.b16 %v8615
      %v8680 = vunpack.c.l.b16 %v8616
      %v8681 = vunpack.c.l.b16 %v8617
      %v8682 = vunpack.c.l.b16 %v8618
      %v8683 = vunpack.c.l.b16 %v8619
      %v8684 = vunpack.c.l.b16 %v8620
      %v8685 = vunpack.c.l.b16 %v8621
      %v8686 = vunpack.c.l.b16 %v8622
      %v8687 = vunpack.c.l.b16 %v8623
      %v8688 = vunpack.c.l.b16 %v8624
      %v8689 = vpack.c.b16 %v8658, %v8657
      %v8690 = vpack.c.b16 %v8660, %v8659
      %v8691 = vpack.c.b16 %v8662, %v8661
      %v8692 = vpack.c.b16 %v8664, %v8663
      %v8693 = vpack.c.b16 %v8666, %v8665
      %v8694 = vpack.c.b16 %v8668, %v8667
      %v8695 = vpack.c.b16 %v8670, %v8669
      %v8696 = vpack.c.b16 %v8672, %v8671
      %v8697 = vpack.c.b16 %v8674, %v8673
      %v8698 = vpack.c.b16 %v8676, %v8675
      %v8699 = vpack.c.b16 %v8678, %v8677
      %v8700 = vpack.c.b16 %v8680, %v8679
      %v8701 = vpack.c.b16 %v8682, %v8681
      %v8702 = vpack.c.b16 %v8684, %v8683
      %v8703 = vpack.c.b16 %v8686, %v8685
      %v8704 = vpack.c.b16 %v8688, %v8687
      %v8706 = vsel %vm5480, %v8689, 0
      %v8709 = vsel %vm5480, %v8690, 0
      %v8712 = vsel %vm5480, %v8691, 0
      %v8715 = vsel %vm5480, %v8692, 0
      %v8718 = vsel %vm5480, %v8693, 0
      %v8721 = vsel %vm5480, %v8694, 0
      %v8724 = vsel %vm5480, %v8695, 0
      %v8727 = vsel %vm5480, %v8696, 0
      %v8730 = vsel %vm5480, %v8697, 0
      %v8733 = vsel %vm5480, %v8698, 0
      %v8736 = vsel %vm5480, %v8699, 0
      %v8739 = vsel %vm5480, %v8700, 0
      %v8742 = vsel %vm5480, %v8701, 0
      %v8745 = vsel %vm5480, %v8702, 0
      %v8748 = vsel %vm5480, %v8703, 0
      %v8751 = vsel %vm5480, %v8704, 0
      %8753 = vmatpush.bf16.msra.mxu0 0
      %8754 = vmatpush.bf16.msra.mxu0 0
      %8755 = vmatpush.bf16.msra.mxu0 0
      %8756 = vmatpush.bf16.msra.mxu0 %v8591
      %8757 = vmatpush.bf16.msra.mxu0 %v8590
      %8758 = vmatpush.bf16.msra.mxu0 %v8589
      %8759 = vmatpush.bf16.msra.mxu0 %v8588
      %8760 = vmatpush.bf16.msra.mxu0 %v8587
      %8761 = vmatmul.bf16.gmra.mxu0 %v8706
      %v8762 = vpop.f32.mrf.mxu0
      %v8763 = vadd.f32 0.0, %v8762
      %v8764 = vpop.f32.mrf.mxu0
      %v8765 = vadd.f32 0.0, %v8764
      %8766 = vmatmul.bf16.gmra.mxu0 %v8709
      %v8767 = vpop.f32.mrf.mxu0
      %v8768 = vadd.f32 0.0, %v8767
      %v8769 = vpop.f32.mrf.mxu0
      %v8770 = vadd.f32 0.0, %v8769
      %8771 = vmatmul.bf16.gmra.mxu0 %v8712
      %v8772 = vpop.f32.mrf.mxu0
      %v8773 = vadd.f32 0.0, %v8772
      %v8774 = vpop.f32.mrf.mxu0
      %v8775 = vadd.f32 0.0, %v8774
      %8776 = vmatmul.bf16.gmra.mxu0 %v8715
      %v8777 = vpop.f32.mrf.mxu0
      %v8778 = vadd.f32 0.0, %v8777
      %v8779 = vpop.f32.mrf.mxu0
      %v8780 = vadd.f32 0.0, %v8779
      %8781 = vmatmul.bf16.gmra.mxu0 %v8718
      %v8782 = vpop.f32.mrf.mxu0
      %v8783 = vadd.f32 0.0, %v8782
      %v8784 = vpop.f32.mrf.mxu0
      %v8785 = vadd.f32 0.0, %v8784
      %8786 = vmatmul.bf16.gmra.mxu0 %v8721
      %v8787 = vpop.f32.mrf.mxu0
      %v8788 = vadd.f32 0.0, %v8787
      %v8789 = vpop.f32.mrf.mxu0
      %v8790 = vadd.f32 0.0, %v8789
      %8791 = vmatmul.bf16.gmra.mxu0 %v8724
      %v8792 = vpop.f32.mrf.mxu0
      %v8793 = vadd.f32 0.0, %v8792
      %v8794 = vpop.f32.mrf.mxu0
      %v8795 = vadd.f32 0.0, %v8794
      %8796 = vmatmul.bf16.gmra.mxu0 %v8727
      %v8797 = vpop.f32.mrf.mxu0
      %v8798 = vadd.f32 0.0, %v8797
      %v8799 = vpop.f32.mrf.mxu0
      %v8800 = vadd.f32 0.0, %v8799
      %8801 = vmatmul.bf16.gmra.mxu0 %v8730
      %v8802 = vpop.f32.mrf.mxu0
      %v8803 = vadd.f32 0.0, %v8802
      %v8804 = vpop.f32.mrf.mxu0
      %v8805 = vadd.f32 0.0, %v8804
      %8806 = vmatmul.bf16.gmra.mxu0 %v8733
      %v8807 = vpop.f32.mrf.mxu0
      %v8808 = vadd.f32 0.0, %v8807
      %v8809 = vpop.f32.mrf.mxu0
      %v8810 = vadd.f32 0.0, %v8809
      %8811 = vmatmul.bf16.gmra.mxu0 %v8736
      %v8812 = vpop.f32.mrf.mxu0
      %v8813 = vadd.f32 0.0, %v8812
      %v8814 = vpop.f32.mrf.mxu0
      %v8815 = vadd.f32 0.0, %v8814
      %8816 = vmatmul.bf16.gmra.mxu0 %v8739
      %v8817 = vpop.f32.mrf.mxu0
      %v8818 = vadd.f32 0.0, %v8817
      %v8819 = vpop.f32.mrf.mxu0
      %v8820 = vadd.f32 0.0, %v8819
      %8821 = vmatmul.bf16.gmra.mxu0 %v8742
      %v8822 = vpop.f32.mrf.mxu0
      %v8823 = vadd.f32 0.0, %v8822
      %v8824 = vpop.f32.mrf.mxu0
      %v8825 = vadd.f32 0.0, %v8824
      %8826 = vmatmul.bf16.gmra.mxu0 %v8745
      %v8827 = vpop.f32.mrf.mxu0
      %v8828 = vadd.f32 0.0, %v8827
      %v8829 = vpop.f32.mrf.mxu0
      %v8830 = vadd.f32 0.0, %v8829
      %8831 = vmatmul.bf16.gmra.mxu0 %v8748
      %v8832 = vpop.f32.mrf.mxu0
      %v8833 = vadd.f32 0.0, %v8832
      %v8834 = vpop.f32.mrf.mxu0
      %v8835 = vadd.f32 0.0, %v8834
      %8836 = vmatmul.bf16.gmra.mxu0 %v8751
      %v8837 = vpop.f32.mrf.mxu0
      %v8838 = vadd.f32 0.0, %v8837
      %v8839 = vpop.f32.mrf.mxu0
      %v8840 = vadd.f32 0.0, %v8839
      %8841 = vdwg.mxu0
      %v8842 = vadd.f32 %v8169, %v8763
      %v8843 = vadd.f32 %v8171, %v8765
      %v8844 = vadd.f32 %v8174, %v8768
      %v8845 = vadd.f32 %v8176, %v8770
      %v8846 = vadd.f32 %v8179, %v8773
      %v8847 = vadd.f32 %v8181, %v8775
      %v8848 = vadd.f32 %v8184, %v8778
      %v8849 = vadd.f32 %v8186, %v8780
      %v8850 = vadd.f32 %v8189, %v8783
      %v8851 = vadd.f32 %v8191, %v8785
      %v8852 = vadd.f32 %v8194, %v8788
      %v8853 = vadd.f32 %v8196, %v8790
      %v8854 = vadd.f32 %v8199, %v8793
      %v8855 = vadd.f32 %v8201, %v8795
      %v8856 = vadd.f32 %v8204, %v8798
      %v8857 = vadd.f32 %v8206, %v8800
      %v8858 = vadd.f32 %v8209, %v8803
      %v8859 = vadd.f32 %v8211, %v8805
      %v8860 = vadd.f32 %v8214, %v8808
      %v8861 = vadd.f32 %v8216, %v8810
      %v8862 = vadd.f32 %v8219, %v8813
      %v8863 = vadd.f32 %v8221, %v8815
      %v8864 = vadd.f32 %v8224, %v8818
      %v8865 = vadd.f32 %v8226, %v8820
      %v8866 = vadd.f32 %v8229, %v8823
      %v8867 = vadd.f32 %v8231, %v8825
      %v8868 = vadd.f32 %v8234, %v8828
      %v8869 = vadd.f32 %v8236, %v8830
      %v8870 = vadd.f32 %v8239, %v8833
      %v8871 = vadd.f32 %v8241, %v8835
      %v8872 = vadd.f32 %v8244, %v8838
      %v8873 = vadd.f32 %v8246, %v8840
      %s8874 = scalar_lea.vmem %s7, 96
      %v8875 = vld [vmem:[%s8874] sm:$0xf]
      %v8876 = vld [vmem:[%s8874 + $0x4] sm:$0xf]
      %s8877 = scalar_lea.vmem %s7, 104
      %v8878 = vld [vmem:[%s8877] sm:$0xf]
      %v8879 = vld [vmem:[%s8877 + $0x4] sm:$0xf]
      %v8882 = vunpack.c.l.b16 %v8878
      %v8883 = vunpack.c.l.b16 %v8879
      %v8884 = vpack.c.b16 %v8883, %v8882
      %8886 = vmatpush.bf16.msra.mxu0 0
      %8887 = vmatpush.bf16.msra.mxu0 0
      %8888 = vmatpush.bf16.msra.mxu0 0
      %8889 = vmatpush.bf16.msra.mxu0 0
      %8890 = vmatpush.bf16.msra.mxu0 0
      %8891 = vmatpush.bf16.msra.mxu0 0
      %8892 = vmatpush.bf16.msra.mxu0 0
      %8893 = vmatpush.bf16.msra.mxu0 %v8884
      %8894 = vmatmul.bf16.gmra.mxu0 %v7708
      %v8895 = vpop.f32.mrf.mxu0
      %v8896 = vadd.f32 0.0, %v8895
      %v8897 = vpop.f32.mrf.mxu0
      %v8898 = vadd.f32 0.0, %v8897
      %8899 = vmatmul.bf16.gmra.mxu0 %v7711
      %v8900 = vpop.f32.mrf.mxu0
      %v8901 = vadd.f32 0.0, %v8900
      %v8902 = vpop.f32.mrf.mxu0
      %v8903 = vadd.f32 0.0, %v8902
      %8904 = vmatmul.bf16.gmra.mxu0 %v7714
      %v8905 = vpop.f32.mrf.mxu0
      %v8906 = vadd.f32 0.0, %v8905
      %v8907 = vpop.f32.mrf.mxu0
      %v8908 = vadd.f32 0.0, %v8907
      %8909 = vmatmul.bf16.gmra.mxu0 %v7717
      %v8910 = vpop.f32.mrf.mxu0
      %v8911 = vadd.f32 0.0, %v8910
      %v8912 = vpop.f32.mrf.mxu0
      %v8913 = vadd.f32 0.0, %v8912
      %8914 = vmatmul.bf16.gmra.mxu0 %v7720
      %v8915 = vpop.f32.mrf.mxu0
      %v8916 = vadd.f32 0.0, %v8915
      %v8917 = vpop.f32.mrf.mxu0
      %v8918 = vadd.f32 0.0, %v8917
      %8919 = vdwg.mxu0
      %v8922 = vunpack.c.l.b16 %v8875
      %v8923 = vunpack.c.l.b16 %v8876
      %v8924 = vpack.c.b16 %v8923, %v8922
      %8926 = vmatpush.bf16.msra.mxu0 0
      %8927 = vmatpush.bf16.msra.mxu0 0
      %8928 = vmatpush.bf16.msra.mxu0 0
      %8929 = vmatpush.bf16.msra.mxu0 0
      %8930 = vmatpush.bf16.msra.mxu0 0
      %8931 = vmatpush.bf16.msra.mxu0 0
      %8932 = vmatpush.bf16.msra.mxu0 0
      %8933 = vmatpush.bf16.msra.mxu0 %v8924
      %8934 = vmatmul.bf16.gmra.mxu0 %v7405
      %v8935 = vpop.f32.mrf.mxu0
      %v8936 = vadd.f32 %v8896, %v8935
      %v8937 = vpop.f32.mrf.mxu0
      %v8938 = vadd.f32 %v8898, %v8937
      %8939 = vmatmul.bf16.gmra.mxu0 %v7408
      %v8940 = vpop.f32.mrf.mxu0
      %v8941 = vadd.f32 %v8901, %v8940
      %v8942 = vpop.f32.mrf.mxu0
      %v8943 = vadd.f32 %v8903, %v8942
      %8944 = vmatmul.bf16.gmra.mxu0 %v7411
      %v8945 = vpop.f32.mrf.mxu0
      %v8946 = vadd.f32 %v8906, %v8945
      %v8947 = vpop.f32.mrf.mxu0
      %v8948 = vadd.f32 %v8908, %v8947
      %8949 = vmatmul.bf16.gmra.mxu0 %v7414
      %v8950 = vpop.f32.mrf.mxu0
      %v8951 = vadd.f32 %v8911, %v8950
      %v8952 = vpop.f32.mrf.mxu0
      %v8953 = vadd.f32 %v8913, %v8952
      %8954 = vmatmul.bf16.gmra.mxu0 %v7417
      %v8955 = vpop.f32.mrf.mxu0
      %v8956 = vadd.f32 %v8916, %v8955
      %v8957 = vpop.f32.mrf.mxu0
      %v8958 = vadd.f32 %v8918, %v8957
      %8959 = vdwg.mxu0
      %s8960 = scalar_lea.vmem %s7, 112
      %v8961 = vld [vmem:[%s8960] sm:$0xf]
      %v8962 = vld [vmem:[%s8960 + $0x4] sm:$0xf]
      %v8965 = vunpack.c.l.b16 %v8961
      %v8966 = vunpack.c.l.b16 %v8962
      %v8967 = vpack.c.b16 %v8966, %v8965
      %8969 = vmatpush.bf16.msra.mxu0 0
      %8970 = vmatpush.bf16.msra.mxu0 0
      %8971 = vmatpush.bf16.msra.mxu0 0
      %8972 = vmatpush.bf16.msra.mxu0 0
      %8973 = vmatpush.bf16.msra.mxu0 0
      %8974 = vmatpush.bf16.msra.mxu0 0
      %8975 = vmatpush.bf16.msra.mxu0 0
      %8976 = vmatpush.bf16.msra.mxu0 %v8967
      %8977 = vmatmul.bf16.gmra.mxu0 %v8519
      %v8978 = vpop.f32.mrf.mxu0
      %v8979 = vadd.f32 0.0, %v8978
      %v8980 = vpop.f32.mrf.mxu0
      %v8981 = vadd.f32 0.0, %v8980
      %8982 = vmatmul.bf16.gmra.mxu0 %v8522
      %v8983 = vpop.f32.mrf.mxu0
      %v8984 = vadd.f32 0.0, %v8983
      %v8985 = vpop.f32.mrf.mxu0
      %v8986 = vadd.f32 0.0, %v8985
      %8987 = vmatmul.bf16.gmra.mxu0 %v8525
      %v8988 = vpop.f32.mrf.mxu0
      %v8989 = vadd.f32 0.0, %v8988
      %v8990 = vpop.f32.mrf.mxu0
      %v8991 = vadd.f32 0.0, %v8990
      %8992 = vmatmul.bf16.gmra.mxu0 %v8528
      %v8993 = vpop.f32.mrf.mxu0
      %v8994 = vadd.f32 0.0, %v8993
      %v8995 = vpop.f32.mrf.mxu0
      %v8996 = vadd.f32 0.0, %v8995
      %8997 = vmatmul.bf16.gmra.mxu0 %v8531
      %v8998 = vpop.f32.mrf.mxu0
      %v8999 = vadd.f32 0.0, %v8998
      %v9000 = vpop.f32.mrf.mxu0
      %v9001 = vadd.f32 0.0, %v9000
      %9002 = vdwg.mxu0
      %v9003 = vadd.f32 %v8936, %v8979
      %v9004 = vadd.f32 %v8938, %v8981
      %v9005 = vadd.f32 %v8941, %v8984
      %v9006 = vadd.f32 %v8943, %v8986
      %v9007 = vadd.f32 %v8946, %v8989
      %v9008 = vadd.f32 %v8948, %v8991
      %v9009 = vadd.f32 %v8951, %v8994
      %v9010 = vadd.f32 %v8953, %v8996
      %v9011 = vadd.f32 %v8956, %v8999
      %v9012 = vadd.f32 %v8958, %v9001
      %v9013 = vld [vmem:[#allocation4 + $0x8] sm:$0x8]
      %s9014 = scalar_lea.vmem %s7, 120
      %v9015 = vld [vmem:[%s9014] sm:$0xf]
      %v9016 = vld [vmem:[%s9014 + $0x4] sm:$0xf]
      %v9018 = vunpack.c.l.b16 %v9013
      %v9019 = vpack.c.b16 %v8360, %v9018
      %v9020 = vrot.slane %v9019, 3
      %v9021 = vrot.slane %v8371, 3
      %v9022 = vsel %vm2958, %v9020, %v9021
      %v9023 = vrot.slane %v8372, 3
      %v9024 = vsel %vm2958, %v9021, %v9023
      %v9025 = vrot.slane %v8373, 3
      %v9026 = vsel %vm2958, %v9023, %v9025
      %v9027 = vrot.slane %v8374, 3
      %v9028 = vsel %vm2958, %v9025, %v9027
      %v9029 = vrot.slane %v8458, 3
      %v9030 = vsel %vm2958, %v9027, %v9029
      %v9033 = vunpack.c.l.b16 %v9015
      %v9034 = vunpack.c.l.b16 %v9016
      %v9035 = vpack.c.b16 %v9034, %v9033
      %v9038 = vsel %vm4595, %v9022, 0
      %v9041 = vsel %vm4595, %v9024, 0
      %v9044 = vsel %vm4595, %v9026, 0
      %v9047 = vsel %vm4595, %v9028, 0
      %v9050 = vsel %vm4595, %v9030, 0
      %9052 = vmatpush.bf16.msra.mxu0 0
      %9053 = vmatpush.bf16.msra.mxu0 0
      %9054 = vmatpush.bf16.msra.mxu0 0
      %9055 = vmatpush.bf16.msra.mxu0 0
      %9056 = vmatpush.bf16.msra.mxu0 0
      %9057 = vmatpush.bf16.msra.mxu0 0
      %9058 = vmatpush.bf16.msra.mxu0 0
      %9059 = vmatpush.bf16.msra.mxu0 %v9035
      %9060 = vmatmul.bf16.gmra.mxu0 %v9038
      %v9061 = vpop.f32.mrf.mxu0
      %v9062 = vadd.f32 0.0, %v9061
      %v9063 = vpop.f32.mrf.mxu0
      %v9064 = vadd.f32 0.0, %v9063
      %9065 = vmatmul.bf16.gmra.mxu0 %v9041
      %v9066 = vpop.f32.mrf.mxu0
      %v9067 = vadd.f32 0.0, %v9066
      %v9068 = vpop.f32.mrf.mxu0
      %v9069 = vadd.f32 0.0, %v9068
      %9070 = vmatmul.bf16.gmra.mxu0 %v9044
      %v9071 = vpop.f32.mrf.mxu0
      %v9072 = vadd.f32 0.0, %v9071
      %v9073 = vpop.f32.mrf.mxu0
      %v9074 = vadd.f32 0.0, %v9073
      %9075 = vmatmul.bf16.gmra.mxu0 %v9047
      %v9076 = vpop.f32.mrf.mxu0
      %v9077 = vadd.f32 0.0, %v9076
      %v9078 = vpop.f32.mrf.mxu0
      %v9079 = vadd.f32 0.0, %v9078
      %9080 = vmatmul.bf16.gmra.mxu0 %v9050
      %v9081 = vpop.f32.mrf.mxu0
      %v9082 = vadd.f32 0.0, %v9081
      %v9083 = vpop.f32.mrf.mxu0
      %v9084 = vadd.f32 0.0, %v9083
      %9085 = vdwg.mxu0
      %v9086 = vadd.f32 %v9003, %v9062
      %v9087 = vadd.f32 %v9004, %v9064
      %v9088 = vadd.f32 %v9005, %v9067
      %v9089 = vadd.f32 %v9006, %v9069
      %v9090 = vadd.f32 %v9007, %v9072
      %v9091 = vadd.f32 %v9008, %v9074
      %v9092 = vadd.f32 %v9009, %v9077
      %v9093 = vadd.f32 %v9010, %v9079
      %v9094 = vadd.f32 %v9011, %v9082
      %v9095 = vadd.f32 %v9012, %v9084
      %v9096 = vadd.f32 %v9086, %v7465
      %v9097 = vadd.f32 %v9087, %v7465
      %v9098 = vadd.f32 %v9088, %v7465
      %v9099 = vadd.f32 %v9089, %v7465
      %v9100 = vadd.f32 %v9090, %v7465
      %v9101 = vadd.f32 %v9091, %v7465
      %v9102 = vadd.f32 %v9092, %v7465
      %v9103 = vadd.f32 %v9093, %v7465
      %v9104 = vadd.f32 %v9094, %v7465
      %v9105 = vadd.f32 %v9095, %v7465
      %v9106 = vpack.c.bf16 %v9097, %v9096
      %v9107 = vpack.c.bf16 %v9099, %v9098
      %v9108 = vpack.c.bf16 %v9101, %v9100
      %v9109 = vpack.c.bf16 %v9103, %v9102
      %v9110 = vpack.c.bf16 %v9105, %v9104
      %s9111 = scalar_lea.vmem %s12, 384
      %v9112 = vld [vmem:[%s9111] sm:$0xf]
      %v9113 = vld [vmem:[%s9111 + $0x4] sm:$0xf]
      %v9114 = vld [vmem:[%s9111 + $0x8] sm:$0xf]
      %v9115 = vld [vmem:[%s9111 + $0xc] sm:$0xf]
      %v9116 = vld [vmem:[%s9111 + $0x10] sm:$0xf]
      %v9117 = vld [vmem:[%s9111 + $0x14] sm:$0xf]
      %v9118 = vld [vmem:[%s9111 + $0x18] sm:$0xf]
      %v9119 = vld [vmem:[%s9111 + $0x1c] sm:$0xf]
      %v9120 = vld [vmem:[%s9111 + $0x20] sm:$0xf]
      %v9121 = vld [vmem:[%s9111 + $0x24] sm:$0xf]
      %v9122 = vld [vmem:[%s9111 + $0x28] sm:$0xf]
      %v9123 = vld [vmem:[%s9111 + $0x2c] sm:$0xf]
      %v9124 = vld [vmem:[%s9111 + $0x30] sm:$0xf]
      %v9125 = vld [vmem:[%s9111 + $0x34] sm:$0xf]
      %v9126 = vld [vmem:[%s9111 + $0x38] sm:$0xf]
      %v9127 = vld [vmem:[%s9111 + $0x3c] sm:$0xf]
      %v9128 = vld [vmem:[%s9111 + $0x40] sm:$0xf]
      %v9129 = vld [vmem:[%s9111 + $0x44] sm:$0xf]
      %v9130 = vld [vmem:[%s9111 + $0x48] sm:$0xf]
      %v9131 = vld [vmem:[%s9111 + $0x4c] sm:$0xf]
      %v9132 = vld [vmem:[%s9111 + $0x50] sm:$0xf]
      %v9133 = vld [vmem:[%s9111 + $0x54] sm:$0xf]
      %v9134 = vld [vmem:[%s9111 + $0x58] sm:$0xf]
      %v9135 = vld [vmem:[%s9111 + $0x5c] sm:$0xf]
      %v9136 = vld [vmem:[%s9111 + $0x60] sm:$0xf]
      %v9137 = vld [vmem:[%s9111 + $0x64] sm:$0xf]
      %v9138 = vld [vmem:[%s9111 + $0x68] sm:$0xf]
      %v9139 = vld [vmem:[%s9111 + $0x6c] sm:$0xf]
      %v9140 = vld [vmem:[%s9111 + $0x70] sm:$0xf]
      %v9141 = vld [vmem:[%s9111 + $0x74] sm:$0xf]
      %v9142 = vld [vmem:[%s9111 + $0x78] sm:$0xf]
      %v9143 = vld [vmem:[%s9111 + $0x7c] sm:$0xf]
      %v9176 = vunpack.c.l.b16 %v9112
      %v9177 = vunpack.c.l.b16 %v9113
      %v9178 = vunpack.c.l.b16 %v9114
      %v9179 = vunpack.c.l.b16 %v9115
      %v9180 = vunpack.c.l.b16 %v9116
      %v9181 = vunpack.c.l.b16 %v9117
      %v9182 = vunpack.c.l.b16 %v9118
      %v9183 = vunpack.c.l.b16 %v9119
      %v9184 = vunpack.c.l.b16 %v9120
      %v9185 = vunpack.c.l.b16 %v9121
      %v9186 = vunpack.c.l.b16 %v9122
      %v9187 = vunpack.c.l.b16 %v9123
      %v9188 = vunpack.c.l.b16 %v9124
      %v9189 = vunpack.c.l.b16 %v9125
      %v9190 = vunpack.c.l.b16 %v9126
      %v9191 = vunpack.c.l.b16 %v9127
      %v9192 = vunpack.c.l.b16 %v9128
      %v9193 = vunpack.c.l.b16 %v9129
      %v9194 = vunpack.c.l.b16 %v9130
      %v9195 = vunpack.c.l.b16 %v9131
      %v9196 = vunpack.c.l.b16 %v9132
      %v9197 = vunpack.c.l.b16 %v9133
      %v9198 = vunpack.c.l.b16 %v9134
      %v9199 = vunpack.c.l.b16 %v9135
      %v9200 = vunpack.c.l.b16 %v9136
      %v9201 = vunpack.c.l.b16 %v9137
      %v9202 = vunpack.c.l.b16 %v9138
      %v9203 = vunpack.c.l.b16 %v9139
      %v9204 = vunpack.c.l.b16 %v9140
      %v9205 = vunpack.c.l.b16 %v9141
      %v9206 = vunpack.c.l.b16 %v9142
      %v9207 = vunpack.c.l.b16 %v9143
      %v9208 = vpack.c.b16 %v9177, %v9176
      %v9209 = vpack.c.b16 %v9179, %v9178
      %v9210 = vpack.c.b16 %v9181, %v9180
      %v9211 = vpack.c.b16 %v9183, %v9182
      %v9212 = vpack.c.b16 %v9185, %v9184
      %v9213 = vpack.c.b16 %v9187, %v9186
      %v9214 = vpack.c.b16 %v9189, %v9188
      %v9215 = vpack.c.b16 %v9191, %v9190
      %v9216 = vpack.c.b16 %v9193, %v9192
      %v9217 = vpack.c.b16 %v9195, %v9194
      %v9218 = vpack.c.b16 %v9197, %v9196
      %v9219 = vpack.c.b16 %v9199, %v9198
      %v9220 = vpack.c.b16 %v9201, %v9200
      %v9221 = vpack.c.b16 %v9203, %v9202
      %v9222 = vpack.c.b16 %v9205, %v9204
      %v9223 = vpack.c.b16 %v9207, %v9206
      %v9225 = vsel %vm5480, %v9208, 0
      %v9228 = vsel %vm5480, %v9209, 0
      %v9231 = vsel %vm5480, %v9210, 0
      %v9234 = vsel %vm5480, %v9211, 0
      %v9237 = vsel %vm5480, %v9212, 0
      %v9240 = vsel %vm5480, %v9213, 0
      %v9243 = vsel %vm5480, %v9214, 0
      %v9246 = vsel %vm5480, %v9215, 0
      %v9249 = vsel %vm5480, %v9216, 0
      %v9252 = vsel %vm5480, %v9217, 0
      %v9255 = vsel %vm5480, %v9218, 0
      %v9258 = vsel %vm5480, %v9219, 0
      %v9261 = vsel %vm5480, %v9220, 0
      %v9264 = vsel %vm5480, %v9221, 0
      %v9267 = vsel %vm5480, %v9222, 0
      %v9270 = vsel %vm5480, %v9223, 0
      %9272 = vmatpush.bf16.msra.mxu0 0
      %9273 = vmatpush.bf16.msra.mxu0 0
      %9274 = vmatpush.bf16.msra.mxu0 0
      %9275 = vmatpush.bf16.msra.mxu0 %v9110
      %9276 = vmatpush.bf16.msra.mxu0 %v9109
      %9277 = vmatpush.bf16.msra.mxu0 %v9108
      %9278 = vmatpush.bf16.msra.mxu0 %v9107
      %9279 = vmatpush.bf16.msra.mxu0 %v9106
      %9280 = vmatmul.bf16.gmra.mxu0 %v9225
      %v9281 = vpop.f32.mrf.mxu0
      %v9282 = vadd.f32 0.0, %v9281
      %v9283 = vpop.f32.mrf.mxu0
      %v9284 = vadd.f32 0.0, %v9283
      %9285 = vmatmul.bf16.gmra.mxu0 %v9228
      %v9286 = vpop.f32.mrf.mxu0
      %v9287 = vadd.f32 0.0, %v9286
      %v9288 = vpop.f32.mrf.mxu0
      %v9289 = vadd.f32 0.0, %v9288
      %9290 = vmatmul.bf16.gmra.mxu0 %v9231
      %v9291 = vpop.f32.mrf.mxu0
      %v9292 = vadd.f32 0.0, %v9291
      %v9293 = vpop.f32.mrf.mxu0
      %v9294 = vadd.f32 0.0, %v9293
      %9295 = vmatmul.bf16.gmra.mxu0 %v9234
      %v9296 = vpop.f32.mrf.mxu0
      %v9297 = vadd.f32 0.0, %v9296
      %v9298 = vpop.f32.mrf.mxu0
      %v9299 = vadd.f32 0.0, %v9298
      %9300 = vmatmul.bf16.gmra.mxu0 %v9237
      %v9301 = vpop.f32.mrf.mxu0
      %v9302 = vadd.f32 0.0, %v9301
      %v9303 = vpop.f32.mrf.mxu0
      %v9304 = vadd.f32 0.0, %v9303
      %9305 = vmatmul.bf16.gmra.mxu0 %v9240
      %v9306 = vpop.f32.mrf.mxu0
      %v9307 = vadd.f32 0.0, %v9306
      %v9308 = vpop.f32.mrf.mxu0
      %v9309 = vadd.f32 0.0, %v9308
      %9310 = vmatmul.bf16.gmra.mxu0 %v9243
      %v9311 = vpop.f32.mrf.mxu0
      %v9312 = vadd.f32 0.0, %v9311
      %v9313 = vpop.f32.mrf.mxu0
      %v9314 = vadd.f32 0.0, %v9313
      %9315 = vmatmul.bf16.gmra.mxu0 %v9246
      %v9316 = vpop.f32.mrf.mxu0
      %v9317 = vadd.f32 0.0, %v9316
      %v9318 = vpop.f32.mrf.mxu0
      %v9319 = vadd.f32 0.0, %v9318
      %9320 = vmatmul.bf16.gmra.mxu0 %v9249
      %v9321 = vpop.f32.mrf.mxu0
      %v9322 = vadd.f32 0.0, %v9321
      %v9323 = vpop.f32.mrf.mxu0
      %v9324 = vadd.f32 0.0, %v9323
      %9325 = vmatmul.bf16.gmra.mxu0 %v9252
      %v9326 = vpop.f32.mrf.mxu0
      %v9327 = vadd.f32 0.0, %v9326
      %v9328 = vpop.f32.mrf.mxu0
      %v9329 = vadd.f32 0.0, %v9328
      %9330 = vmatmul.bf16.gmra.mxu0 %v9255
      %v9331 = vpop.f32.mrf.mxu0
      %v9332 = vadd.f32 0.0, %v9331
      %v9333 = vpop.f32.mrf.mxu0
      %v9334 = vadd.f32 0.0, %v9333
      %9335 = vmatmul.bf16.gmra.mxu0 %v9258
      %v9336 = vpop.f32.mrf.mxu0
      %v9337 = vadd.f32 0.0, %v9336
      %v9338 = vpop.f32.mrf.mxu0
      %v9339 = vadd.f32 0.0, %v9338
      %9340 = vmatmul.bf16.gmra.mxu0 %v9261
      %v9341 = vpop.f32.mrf.mxu0
      %v9342 = vadd.f32 0.0, %v9341
      %v9343 = vpop.f32.mrf.mxu0
      %v9344 = vadd.f32 0.0, %v9343
      %9345 = vmatmul.bf16.gmra.mxu0 %v9264
      %v9346 = vpop.f32.mrf.mxu0
      %v9347 = vadd.f32 0.0, %v9346
      %v9348 = vpop.f32.mrf.mxu0
      %v9349 = vadd.f32 0.0, %v9348
      %9350 = vmatmul.bf16.gmra.mxu0 %v9267
      %v9351 = vpop.f32.mrf.mxu0
      %v9352 = vadd.f32 0.0, %v9351
      %v9353 = vpop.f32.mrf.mxu0
      %v9354 = vadd.f32 0.0, %v9353
      %9355 = vmatmul.bf16.gmra.mxu0 %v9270
      %v9356 = vpop.f32.mrf.mxu0
      %v9357 = vadd.f32 0.0, %v9356
      %v9358 = vpop.f32.mrf.mxu0
      %v9359 = vadd.f32 0.0, %v9358
      %9360 = vdwg.mxu0
      %v9361 = vadd.f32 %v8842, %v9282
      %v9362 = vadd.f32 %v8843, %v9284
      %v9363 = vadd.f32 %v8844, %v9287
      %v9364 = vadd.f32 %v8845, %v9289
      %v9365 = vadd.f32 %v8846, %v9292
      %v9366 = vadd.f32 %v8847, %v9294
      %v9367 = vadd.f32 %v8848, %v9297
      %v9368 = vadd.f32 %v8849, %v9299
      %v9369 = vadd.f32 %v8850, %v9302
      %v9370 = vadd.f32 %v8851, %v9304
      %v9371 = vadd.f32 %v8852, %v9307
      %v9372 = vadd.f32 %v8853, %v9309
      %v9373 = vadd.f32 %v8854, %v9312
      %v9374 = vadd.f32 %v8855, %v9314
      %v9375 = vadd.f32 %v8856, %v9317
      %v9376 = vadd.f32 %v8857, %v9319
      %v9377 = vadd.f32 %v8858, %v9322
      %v9378 = vadd.f32 %v8859, %v9324
      %v9379 = vadd.f32 %v8860, %v9327
      %v9380 = vadd.f32 %v8861, %v9329
      %v9381 = vadd.f32 %v8862, %v9332
      %v9382 = vadd.f32 %v8863, %v9334
      %v9383 = vadd.f32 %v8864, %v9337
      %v9384 = vadd.f32 %v8865, %v9339
      %v9385 = vadd.f32 %v8866, %v9342
      %v9386 = vadd.f32 %v8867, %v9344
      %v9387 = vadd.f32 %v8868, %v9347
      %v9388 = vadd.f32 %v8869, %v9349
      %v9389 = vadd.f32 %v8870, %v9352
      %v9390 = vadd.f32 %v8871, %v9354
      %v9391 = vadd.f32 %v8872, %v9357
      %v9392 = vadd.f32 %v8873, %v9359
      %v9393 = vpack.c.bf16 %v9361, %v9361
      %v9394 = vpack.c.bf16 %v9362, %v9362
      %v9395 = vpack.c.bf16 %v9363, %v9363
      %v9396 = vpack.c.bf16 %v9364, %v9364
      %v9397 = vpack.c.bf16 %v9365, %v9365
      %v9398 = vpack.c.bf16 %v9366, %v9366
      %v9399 = vpack.c.bf16 %v9367, %v9367
      %v9400 = vpack.c.bf16 %v9368, %v9368
      %v9401 = vpack.c.bf16 %v9369, %v9369
      %v9402 = vpack.c.bf16 %v9370, %v9370
      %v9403 = vpack.c.bf16 %v9371, %v9371
      %v9404 = vpack.c.bf16 %v9372, %v9372
      %v9405 = vpack.c.bf16 %v9373, %v9373
      %v9406 = vpack.c.bf16 %v9374, %v9374
      %v9407 = vpack.c.bf16 %v9375, %v9375
      %v9408 = vpack.c.bf16 %v9376, %v9376
      %v9409 = vpack.c.bf16 %v9377, %v9377
      %v9410 = vpack.c.bf16 %v9378, %v9378
      %v9411 = vpack.c.bf16 %v9379, %v9379
      %v9412 = vpack.c.bf16 %v9380, %v9380
      %v9413 = vpack.c.bf16 %v9381, %v9381
      %v9414 = vpack.c.bf16 %v9382, %v9382
      %v9415 = vpack.c.bf16 %v9383, %v9383
      %v9416 = vpack.c.bf16 %v9384, %v9384
      %v9417 = vpack.c.bf16 %v9385, %v9385
      %v9418 = vpack.c.bf16 %v9386, %v9386
      %v9419 = vpack.c.bf16 %v9387, %v9387
      %v9420 = vpack.c.bf16 %v9388, %v9388
      %v9421 = vpack.c.bf16 %v9389, %v9389
      %v9422 = vpack.c.bf16 %v9390, %v9390
      %v9423 = vpack.c.bf16 %v9391, %v9391
      %v9424 = vpack.c.bf16 %v9392, %v9392
      %vm9425 = vcmask 60416
      %9426 = vst.msk [vmem:[%s440] sm:$0xf] %vm9425, %v9393
      %9427 = vst.msk [vmem:[%s440 + $0x4] sm:$0xf] %vm9425, %v9394
      %9428 = vst.msk [vmem:[%s440 + $0x8] sm:$0xf] %vm9425, %v9395
      %9429 = vst.msk [vmem:[%s440 + $0xc] sm:$0xf] %vm9425, %v9396
      %9430 = vst.msk [vmem:[%s440 + $0x10] sm:$0xf] %vm9425, %v9397
      %9431 = vst.msk [vmem:[%s440 + $0x14] sm:$0xf] %vm9425, %v9398
      %9432 = vst.msk [vmem:[%s440 + $0x18] sm:$0xf] %vm9425, %v9399
      %9433 = vst.msk [vmem:[%s440 + $0x1c] sm:$0xf] %vm9425, %v9400
      %9434 = vst.msk [vmem:[%s440 + $0x20] sm:$0xf] %vm9425, %v9401
      %9435 = vst.msk [vmem:[%s440 + $0x24] sm:$0xf] %vm9425, %v9402
      %9436 = vst.msk [vmem:[%s440 + $0x28] sm:$0xf] %vm9425, %v9403
      %9437 = vst.msk [vmem:[%s440 + $0x2c] sm:$0xf] %vm9425, %v9404
      %9438 = vst.msk [vmem:[%s440 + $0x30] sm:$0xf] %vm9425, %v9405
      %9439 = vst.msk [vmem:[%s440 + $0x34] sm:$0xf] %vm9425, %v9406
      %9440 = vst.msk [vmem:[%s440 + $0x38] sm:$0xf] %vm9425, %v9407
      %9441 = vst.msk [vmem:[%s440 + $0x3c] sm:$0xf] %vm9425, %v9408
      %9442 = vst.msk [vmem:[%s440 + $0x40] sm:$0xf] %vm9425, %v9409
      %9443 = vst.msk [vmem:[%s440 + $0x44] sm:$0xf] %vm9425, %v9410
      %9444 = vst.msk [vmem:[%s440 + $0x48] sm:$0xf] %vm9425, %v9411
      %9445 = vst.msk [vmem:[%s440 + $0x4c] sm:$0xf] %vm9425, %v9412
      %9446 = vst.msk [vmem:[%s440 + $0x50] sm:$0xf] %vm9425, %v9413
      %9447 = vst.msk [vmem:[%s440 + $0x54] sm:$0xf] %vm9425, %v9414
      %9448 = vst.msk [vmem:[%s440 + $0x58] sm:$0xf] %vm9425, %v9415
      %9449 = vst.msk [vmem:[%s440 + $0x5c] sm:$0xf] %vm9425, %v9416
      %9450 = vst.msk [vmem:[%s440 + $0x60] sm:$0xf] %vm9425, %v9417
      %9451 = vst.msk [vmem:[%s440 + $0x64] sm:$0xf] %vm9425, %v9418
      %9452 = vst.msk [vmem:[%s440 + $0x68] sm:$0xf] %vm9425, %v9419
      %9453 = vst.msk [vmem:[%s440 + $0x6c] sm:$0xf] %vm9425, %v9420
      %9454 = vst.msk [vmem:[%s440 + $0x70] sm:$0xf] %vm9425, %v9421
      %9455 = vst.msk [vmem:[%s440 + $0x74] sm:$0xf] %vm9425, %v9422
      %9456 = vst.msk [vmem:[%s440 + $0x78] sm:$0xf] %vm9425, %v9423
      %9457 = vst.msk [vmem:[%s440 + $0x7c] sm:$0xf] %vm9425, %v9424
      %p9458 = scmp.lt.s32.totalorder %s24, 1
      %s9459 = scalar_select %p9458, %s24, 1
      %s9460 = smul.addr %s9459, 32
      %s9461 = smul.addr %s9460, 4
      %s9462 = scalar_lea.vmem %s13, %s9461
      // Predicated region
      $region73: #{conv_example_forward.1} parent=71 // pred_check
        %p9463 = pneg %p320
      $region74: #{conv_example_forward.1} parent=71 // pred_check_branch
        %9465 = sbr.rel (%p9463) target = $region76
      $region75: #{conv_example_forward.1} parent=71 // pred_region
        _
      $region76: #{conv_example_forward.1} parent=71 // pred_fallthru
        _
    $region72: #{conv_example_forward.1} parent=5 // pred_fallthru
      _
    %p9466 = scmp.le.s32.totalorder 2, %s19
    // Predicated region
    $region77: #{conv_example_forward.1} parent=5 // pred_check
      %p9467 = pneg %p9466
    $region78: #{conv_example_forward.1} parent=5 // pred_check_branch
      %9469 = sbr.rel (%p9467) target = $region80
    $region79: #{conv_example_forward.1} parent=5 // pred_region
      %s9470 = ssub.s32 %s19, 2
      // Predicated region
      $region81: #{conv_example_forward.1} parent=79 // pred_check
        %p9471 = pneg %p326
      $region82: #{conv_example_forward.1} parent=79 // pred_check_branch
        %9473 = sbr.rel (%p9471) target = $region84
      $region83: #{conv_example_forward.1} parent=79 // pred_region
        %p9474 = scmp.lt.s32.totalorder %s25, 1
        %s9475 = scalar_select %p9474, %s25, 1
        %s9476 = smul.addr %s9475, 32
        %s9477 = smul.addr %s9476, 4
        %s9478 = scalar_lea.vmem %s13, %s9477
      $region84: #{conv_example_forward.1} parent=79 // pred_fallthru
        _
    $region80: #{conv_example_forward.1} parent=5 // pred_fallthru
      _
  $region6: #{conv_example_forward.1} parent=0 // loop_footer
    %s23 = sadd.s32 1, %s19
  $region7: #{conv_example_forward.1} parent=0 // loop_footer_branch
    %18 = sbr.rel target = $region3
  $region8: #{conv_example_forward.1} parent=0 // loop_exit
    _

</llo_original>
